<compile_context>
chip_gen: v6e
topology: v6e:2x2x1
jax: 0.10.0
libtpu: 0.0.40
codegen_flags: <defaults>
</compile_context>

<pallas_src>
import functools

import jax
import jax.numpy as jnp
import numpy as np
from jax.experimental import pallas as pl
from jax.experimental.pallas import tpu as pltpu

HIDDEN_SIZE = 64      # hidden_size
ACTION_SIZE = 3       # action_size
STATE_SIZE = 256      # CNNBackbone output_dim == fc1 input size
LOG_STD_MIN = -20.0
LOG_STD_MAX = 2.0
INIT_W = 0.003


# ----------------------------------------------------------------------------
# Small helpers
# ----------------------------------------------------------------------------
def _num_tensorcores():
    """Best-effort TensorCores-per-device (megacore v4/v5p and v7x -> 2)."""
    try:
        kind = jax.devices()[0].device_kind.lower()
    except Exception:
        return 1
    return 2 if any(t in kind for t in ("v4", "v5p", "v7", "7x")) else 1


def _full_spec(shape):
    """BlockSpec with block == full array (always (8,128)-rule compliant)."""
    nd = len(shape)
    return pl.BlockSpec(tuple(shape), lambda *_: (0,) * nd)


def _nbytes(x):
    return int(np.prod(x.shape)) * jnp.dtype(x.dtype).itemsize


def _row_tile(m, n_blocks):
    """Tile M into n_blocks balanced, 8-aligned blocks (or one full block)."""
    if n_blocks <= 1:
        return m
    return min(m, ((pl.cdiv(m, n_blocks) + 7) // 8) * 8)


# ----------------------------------------------------------------------------
# Pallas kernels
# ----------------------------------------------------------------------------
def _matmul_bias_act_kernel(x_ref, w_ref, b_ref, o_ref, *, act):
    """o = act(x @ w + b); bf16 operands, f32 accumulation/epilogue, bf16 store."""
    y = jnp.dot(x_ref[...], w_ref[...], preferred_element_type=jnp.float32)
    y = y + b_ref[...]
    if act == "leaky_relu":
        y = jnp.where(y >= 0.0, y, 0.01 * y)      # nn.LeakyReLU default slope
    elif act == "relu":
        y = jnp.maximum(y, 0.0)
    o_ref[...] = y.astype(o_ref.dtype)


def _conv_maxpool_kernel(c00_ref, c01_ref, c10_ref, c11_ref, w_ref, b_ref, o_ref):
    """Conv (matmul over 4 pooling-phase im2col matrices) fused with
    MaxPool2d(2): running max over the four phase matmuls, then bias."""
    w = w_ref[...]
    y = jnp.dot(c00_ref[...], w, preferred_element_type=jnp.float32)
    y = jnp.maximum(y, jnp.dot(c01_ref[...], w, preferred_element_type=jnp.float32))
    y = jnp.maximum(y, jnp.dot(c10_ref[...], w, preferred_element_type=jnp.float32))
    y = jnp.maximum(y, jnp.dot(c11_ref[...], w, preferred_element_type=jnp.float32))
    o_ref[...] = (y + b_ref[...]).astype(o_ref.dtype)


def _conv3_pool_head_kernel(c00_ref, c01_ref, c10_ref, c11_ref,
                            w3_ref, b3_ref, w1_ref, b1_ref,
                            wf1_ref, bf1_ref, wf2_ref, bf2_ref,
                            wh_ref, bh_ref, mu_ref, ls_ref, *, batch):
    """conv3 + MaxPool2d(2) + full FC head, all VMEM-resident in one kernel.

    Pooling-phase im2col rows are (spatial, batch)-ordered, so line_1 is a sum
    of per-spatial (B, C)@(C, 256) blocks -- no in-kernel flatten/reshape."""
    w3 = w3_ref[...]
    y = jnp.dot(c00_ref[...], w3, preferred_element_type=jnp.float32)
    y = jnp.maximum(y, jnp.dot(c01_ref[...], w3, preferred_element_type=jnp.float32))
    y = jnp.maximum(y, jnp.dot(c10_ref[...], w3, preferred_element_type=jnp.float32))
    y = jnp.maximum(y, jnp.dot(c11_ref[...], w3, preferred_element_type=jnp.float32))
    pooled = y + b3_ref[...]                       # (S*B, C), rows (s, b), f32

    n_rows, cin = pooled.shape
    n_spatial = n_rows // batch
    acc = jnp.zeros((batch, w1_ref.shape[1]), jnp.float32)
    for s in range(n_spatial):                     # line_1 without flattening
        blk = pooled[s * batch:(s + 1) * batch, :].astype(jnp.bfloat16)
        w_blk = w1_ref[s * cin:(s + 1) * cin, :]
        acc = acc + jnp.dot(blk, w_blk, preferred_element_type=jnp.float32)
    h = acc + b1_ref[...]
    h = jnp.where(h >= 0.0, h, 0.01 * h).astype(jnp.bfloat16)      # line_1 + LeakyReLU

    h = jnp.dot(h, wf1_ref[...], preferred_element_type=jnp.float32) + bf1_ref[...]
    h = jnp.maximum(h, 0.0).astype(jnp.bfloat16)                    # fc1 + ReLU
    h = jnp.dot(h, wf2_ref[...], preferred_element_type=jnp.float32) + bf2_ref[...]
    h = jnp.maximum(h, 0.0).astype(jnp.bfloat16)                    # fc2 + ReLU

    # merged (mu | log_std) projection: one (HIDDEN, 2*ACTION) matmul.
    yh = jnp.dot(h, wh_ref[...], preferred_element_type=jnp.float32) + bh_ref[...]
    a = mu_ref.shape[1]
    mu_ref[...] = yh[:, :a]
    ls_ref[...] = jnp.clip(yh[:, a:], LOG_STD_MIN, LOG_STD_MAX)


# ----------------------------------------------------------------------------
# Pallas wrappers
# ----------------------------------------------------------------------------
def matmul_bias_act(col, w, b, *, act, n_blocks=1, out_dtype=jnp.bfloat16):
    """y = act(col @ w + b); n_blocks balanced 'parallel' row-blocks."""
    M, K = col.shape
    N = w.shape[1]
    tm = _row_tile(M, n_blocks)
    grid = (pl.cdiv(M, tm),)
    cost = pl.CostEstimate(
        flops=2 * M * K * N, transcendentals=0,
        bytes_accessed=_nbytes(col) + _nbytes(w) + _nbytes(b)
        + M * N * jnp.dtype(out_dtype).itemsize)
    kernel = functools.partial(_matmul_bias_act_kernel, act=act)
    return pl.pallas_call(
        kernel,
        out_shape=jax.ShapeDtypeStruct((M, N), out_dtype),
        grid=grid,
        in_specs=[
            pl.BlockSpec((tm, K), lambda i: (i, 0)),
            pl.BlockSpec((K, N), lambda i: (0, 0)),
            pl.BlockSpec((1, N), lambda i: (0, 0)),
        ],
        out_specs=pl.BlockSpec((tm, N), lambda i: (i, 0)),
        compiler_params=pltpu.CompilerParams(dimension_semantics=("parallel",)),
        cost_estimate=cost,
    )(col, w, b)


def conv_maxpool_matmul(cols, w, b, *, n_blocks=1, out_dtype=jnp.bfloat16):
    """One pallas_call: conv-as-matmul + fused 2x2 max-pool + bias (bf16 out)."""
    M, K = cols[0].shape
    N = w.shape[1]
    tm = _row_tile(M, n_blocks)
    grid = (pl.cdiv(M, tm),)
    in_specs = [pl.BlockSpec((tm, K), lambda i: (i, 0)) for _ in range(4)]
    in_specs += [pl.BlockSpec((K, N), lambda i: (0, 0)),
                 pl.BlockSpec((1, N), lambda i: (0, 0))]
    cost = pl.CostEstimate(
        flops=8 * M * K * N, transcendentals=0,
        bytes_accessed=sum(_nbytes(c) for c in cols) + _nbytes(w) + _nbytes(b)
        + M * N * jnp.dtype(out_dtype).itemsize)
    return pl.pallas_call(
        _conv_maxpool_kernel,
        out_shape=jax.ShapeDtypeStruct((M, N), out_dtype),
        grid=grid,
        in_specs=in_specs,
        out_specs=pl.BlockSpec((tm, N), lambda i: (i, 0)),
        compiler_params=pltpu.CompilerParams(dimension_semantics=("parallel",)),
        cost_estimate=cost,
    )(*cols, w, b)


def conv3_pool_head(cols, kp, batch):
    """conv3 + pool + whole FC head as ONE pallas_call with two outputs."""
    M, K = cols[0].shape
    n3 = kp["c3_w"].shape[1]
    args = (*cols, kp["c3_w"], kp["c3_b"], kp["l1_w"], kp["l1_b"],
            kp["fc1_w"], kp["fc1_b"], kp["fc2_w"], kp["fc2_b"],
            kp["head_w"], kp["head_b"])
    flops = (8 * M * K * n3
             + 2 * batch * kp["l1_w"].shape[0] * kp["l1_w"].shape[1]
             + 2 * batch * kp["fc1_w"].shape[0] * kp["fc1_w"].shape[1]
             + 2 * batch * kp["fc2_w"].shape[0] * kp["fc2_w"].shape[1]
             + 2 * batch * kp["head_w"].shape[0] * kp["head_w"].shape[1])
    cost = pl.CostEstimate(
        flops=flops, transcendentals=0,
        bytes_accessed=sum(_nbytes(a) for a in args) + 2 * batch * ACTION_SIZE * 4)
    kernel = functools.partial(_conv3_pool_head_kernel, batch=batch)
    return pl.pallas_call(
        kernel,
        out_shape=(jax.ShapeDtypeStruct((batch, ACTION_SIZE), jnp.float32),
                   jax.ShapeDtypeStruct((batch, ACTION_SIZE), jnp.float32)),
        in_specs=[_full_spec(a.shape) for a in args],
        out_specs=(_full_spec((batch, ACTION_SIZE)),
                   _full_spec((batch, ACTION_SIZE))),
        cost_estimate=cost,
    )(*args)


# ----------------------------------------------------------------------------
# im2col glue (NHWC, bf16: strided slices + concat only)
# ----------------------------------------------------------------------------
def _im2col_nhwc(x, KH, KW, stride, OH, OW):
    """x: (B,H,W,C) -> (B*OH*OW, KH*KW*C); patch index order (kh, kw, c)."""
    B = x.shape[0]
    patches = []
    for kh in range(KH):
        for kw in range(KW):
            patches.append(x[:, kh:kh + stride * OH:stride,
                               kw:kw + stride * OW:stride, :])
    col = jnp.concatenate(patches, axis=-1)
    return col.reshape(B * OH * OW, -1)


def _im2col_pool_nhwc(x, KH, KW, stride, PH, PW, batch_last=False):
    """Four pooling-phase im2col matrices for conv followed by MaxPool2d(2).
    Phase (dh, dw) covers conv-output positions (2*ph+dh, 2*pw+dw).
    batch_last=True orders rows (ph, pw, b) instead of (b, ph, pw)."""
    B = x.shape[0]
    cols = []
    for dh in range(2):
        for dw in range(2):
            patches = []
            for kh in range(KH):
                for kw in range(KW):
                    h0 = stride * dh + kh
                    w0 = stride * dw + kw
                    patches.append(x[:, h0:h0 + 2 * stride * PH:2 * stride,
                                       w0:w0 + 2 * stride * PW:2 * stride, :])
            col = jnp.concatenate(patches, axis=-1)          # (B, PH, PW, K)
            if batch_last:
                col = jnp.transpose(col, (1, 2, 0, 3)).reshape(PH * PW * B, -1)
            else:
                col = col.reshape(B * PH * PW, -1)
            cols.append(col)
    return cols


# ----------------------------------------------------------------------------
# Parameters: PyTorch-layout init + one-time repack into kernel layout
# ----------------------------------------------------------------------------
def init_params(key):
    ks = jax.random.split(key, 10)

    def kaiming(k, shape, fan_out):
        return (jax.random.normal(k, shape, jnp.float32)
                * jnp.sqrt(2.0 / fan_out)).astype(jnp.float32)

    p = {}
    # CNNBackbone (PyTorch layouts: OIHW convs, (out, in) linears)
    p["conv1_w"] = kaiming(ks[0], (32, 4, 4, 4), 32 * 4 * 4)
    p["conv1_b"] = jnp.zeros((32,), jnp.float32)
    p["conv2_w"] = kaiming(ks[1], (64, 32, 2, 2), 64 * 2 * 2)
    p["conv2_b"] = jnp.zeros((64,), jnp.float32)
    p["conv3_w"] = kaiming(ks[2], (64, 64, 2, 2), 64 * 2 * 2)
    p["conv3_b"] = jnp.zeros((64,), jnp.float32)
    p["line1_w"] = kaiming(ks[3], (256, 1280), 256)      # flatten = 64*4*5 = 1280
    p["line1_b"] = jnp.zeros((256,), jnp.float32)
    # Actor heads
    p["fc1_w"] = kaiming(ks[4], (HIDDEN_SIZE, STATE_SIZE), HIDDEN_SIZE)
    p["fc1_b"] = jnp.zeros((HIDDEN_SIZE,), jnp.float32)
    p["fc2_w"] = kaiming(ks[5], (HIDDEN_SIZE, HIDDEN_SIZE), HIDDEN_SIZE)
    p["fc2_b"] = jnp.zeros((HIDDEN_SIZE,), jnp.float32)
    p["mu_w"] = jax.random.uniform(ks[6], (ACTION_SIZE, HIDDEN_SIZE),
                                   jnp.float32, -INIT_W, INIT_W)
    p["mu_b"] = jnp.zeros((ACTION_SIZE,), jnp.float32)
    p["logstd_w"] = jax.random.uniform(ks[7], (ACTION_SIZE, HIDDEN_SIZE),
                                       jnp.float32, -INIT_W, INIT_W)
    p["logstd_b"] = jnp.zeros((ACTION_SIZE,), jnp.float32)
    return p


def prepare_params(p, conv_dtype=jnp.bfloat16, fc_dtype=jnp.bfloat16):
    """Repack PyTorch-layout params ONCE into kernel-friendly layout:
    conv weights OIHW -> (KH*KW*Cin, Cout) bf16, FC weights transposed bf16,
    mu|log_std merged into one (HIDDEN, 2*ACTION) weight, biases (1, N) f32."""
    def conv_w(w):
        return jnp.transpose(w, (2, 3, 1, 0)).reshape(-1, w.shape[0]).astype(conv_dtype)

    def row(b):
        return b.reshape(1, -1).astype(jnp.float32)

    kp = {
        "c1_w": conv_w(p["conv1_w"]), "c1_b": row(p["conv1_b"]),
        "c2_w": conv_w(p["conv2_w"]), "c2_b": row(p["conv2_b"]),
        "c3_w": conv_w(p["conv3_w"]), "c3_b": row(p["conv3_b"]),
    }
    # line_1 expects PyTorch's (C, H, W) flatten order; the fused tail kernel
    # contracts per-spatial (h, w) blocks with channels fastest, so repack once
    # to row index = (h*W + w)*C + c.
    w = p["line1_w"].reshape(STATE_SIZE, 64, 4, 5)            # (out, c, h, w)
    w = jnp.transpose(w, (2, 3, 1, 0)).reshape(4 * 5 * 64, STATE_SIZE)
    kp["l1_w"] = w.astype(fc_dtype)                           # (1280, 256)
    kp["l1_b"] = row(p["line1_b"])
    kp["fc1_w"] = jnp.transpose(p["fc1_w"]).astype(fc_dtype)  # (256, 64)
    kp["fc1_b"] = row(p["fc1_b"])
    kp["fc2_w"] = jnp.transpose(p["fc2_w"]).astype(fc_dtype)  # (64, 64)
    kp["fc2_b"] = row(p["fc2_b"])
    kp["head_w"] = jnp.concatenate(
        [jnp.transpose(p["mu_w"]), jnp.transpose(p["logstd_w"])],
        axis=1).astype(fc_dtype)                              # (64, 6)
    kp["head_b"] = jnp.concatenate(
        [p["mu_b"], p["logstd_b"]]).reshape(1, -1).astype(jnp.float32)
    return kp


# ----------------------------------------------------------------------------
# Actor.forward (3 pallas_calls total)
# ----------------------------------------------------------------------------
def actor_forward(kparams, state, n_cores=1):
    """state: (B, 4, 84, 96) NCHW -> (mu, log_std), each (B, 3)."""
    B = state.shape[0]
    x = jnp.transpose(state.astype(jnp.bfloat16), (0, 2, 3, 1))   # bf16 NHWC, once
    _, H, W, _ = x.shape

    # conv1 (k=4, s=2) + LeakyReLU: 1 block (single-TC) or 2 parallel blocks.
    OH1, OW1 = (H - 4) // 2 + 1, (W - 4) // 2 + 1
    col = _im2col_nhwc(x, 4, 4, 2, OH1, OW1)
    x = matmul_bias_act(col, kparams["c1_w"], kparams["c1_b"],
                        act="leaky_relu", n_blocks=n_cores)
    x = x.reshape(B, OH1, OW1, -1)

    # conv2 (k=2, s=2) + MaxPool2d(2): one fused kernel (bf16 out).
    OH2, OW2 = (OH1 - 2) // 2 + 1, (OW1 - 2) // 2 + 1
    PH2, PW2 = OH2 // 2, OW2 // 2
    cols2 = _im2col_pool_nhwc(x, 2, 2, 2, PH2, PW2)
    x = conv_maxpool_matmul(cols2, kparams["c2_w"], kparams["c2_b"],
                            n_blocks=n_cores)
    x = x.reshape(B, PH2, PW2, -1)

    # conv3 (k=2, s=1) + MaxPool2d(2) + entire FC head: ONE fused kernel.
    OH3, OW3 = PH2 - 2 + 1, PW2 - 2 + 1
    PH3, PW3 = OH3 // 2, OW3 // 2
    cols3 = _im2col_pool_nhwc(x, 2, 2, 1, PH3, PW3, batch_last=True)
    return conv3_pool_head(cols3, kparams, B)


# ----------------------------------------------------------------------------
# Pure-JAX reference (PyTorch-layout params, NCHW) for the sanity check
# ----------------------------------------------------------------------------
def actor_forward_ref(params, state):
    dn = ("NCHW", "OIHW", "NCHW")

    def conv(x, w, b, s):
        y = jax.lax.conv_general_dilated(x, w, (s, s), "VALID",
                                         dimension_numbers=dn)
        return y + b[None, :, None, None]

    def pool(x):
        return jax.lax.reduce_window(x, -jnp.inf, jax.lax.max,
                                     (1, 1, 2, 2), (1, 1, 2, 2), "VALID")

    lrelu = lambda t: jnp.where(t >= 0, t, 0.01 * t)
    x = lrelu(conv(state, params["conv1_w"], params["conv1_b"], 2))
    x = pool(conv(x, params["conv2_w"], params["conv2_b"], 2))
    x = pool(conv(x, params["conv3_w"], params["conv3_b"], 1))
    x = x.reshape(x.shape[0], -1)                            # (C,H,W) flatten
    x = lrelu(x @ params["line1_w"].T + params["line1_b"])
    x = jnp.maximum(x @ params["fc1_w"].T + params["fc1_b"], 0.0)
    x = jnp.maximum(x @ params["fc2_w"].T + params["fc2_b"], 0.0)
    mu = x @ params["mu_w"].T + params["mu_b"]
    log_std = jnp.clip(x @ params["logstd_w"].T + params["logstd_b"],
                       LOG_STD_MIN, LOG_STD_MAX)
    return mu, log_std


if __name__ == "__main__":
    key = jax.random.PRNGKey(0)
    pkey, xkey = jax.random.split(key)
    params = init_params(pkey)
    kparams = prepare_params(params)     # one-time repack (no per-forward work)

    # batch=2 frames of (4, 84, 96) — the CNNBackbone's expected input shape.
    state = jax.random.normal(xkey, (2, 4, 84, 96), jnp.float32)

    n_cores = _num_tensorcores()
    fwd = jax.jit(actor_forward, static_argnames=("n_cores",))
    mu, log_std = jax.block_until_ready(fwd(kparams, state, n_cores=n_cores))

    assert mu.shape == (2, ACTION_SIZE) and log_std.shape == (2, ACTION_SIZE)
    assert np.all(np.isfinite(np.asarray(mu)))
    assert np.all(np.isfinite(np.asarray(log_std)))

    mu_ref, ls_ref = actor_forward_ref(params, state)
    np.testing.assert_allclose(np.asarray(mu), np.asarray(mu_ref),
                               rtol=3e-2, atol=3e-2)
    np.testing.assert_allclose(np.asarray(log_std), np.asarray(ls_ref),
                               rtol=3e-2, atol=3e-2)

    print("KERNEL_OK")
</pallas_src>

<mosaic_0001>
module attributes {stable_mosaic.version = 11 : i64} {
  func.func @_matmul_bias_act_kernel(%arg0: i32, %arg1: memref<3854x64xbf16, #tpu.memory_space<vmem>>, %arg2: memref<64x32xbf16, #tpu.memory_space<vmem>>, %arg3: memref<1x32xf32, #tpu.memory_space<vmem>>, %arg4: memref<3854x32xbf16, #tpu.memory_space<vmem>>) attributes {dimension_semantics = [#tpu.dimension_semantics<parallel>], iteration_bounds = array<i64: 1>, scalar_prefetch = 0 : i64, scratch_operands = 0 : i64, tpu.core_type = #tpu.core_type<tc>, window_params = [{transform_indices = @transform_0, window_bounds = array<i64: 3854, 64>}, {pipeline_mode = #tpu.pipeline_mode<synchronous>, transform_indices = @transform_1, window_bounds = array<i64: 64, 32>}, {pipeline_mode = #tpu.pipeline_mode<synchronous>, transform_indices = @transform_2, window_bounds = array<i64: 1, 32>}, {transform_indices = @transform_3, window_bounds = array<i64: 3854, 32>}]} {
    %c0 = arith.constant 0 : index
    %c0_0 = arith.constant 0 : index
    %0 = vector.load %arg1[%c0, %c0_0] : memref<3854x64xbf16, #tpu.memory_space<vmem>>, vector<3854x64xbf16>
    %c0_1 = arith.constant 0 : index
    %c0_2 = arith.constant 0 : index
    %1 = vector.load %arg2[%c0_1, %c0_2] : memref<64x32xbf16, #tpu.memory_space<vmem>>, vector<64x32xbf16>
    %cst = arith.constant dense<0.000000e+00> : vector<3854x32xf32>
    %2 = tpu.matmul %0, %1, %cst {dimension_numbers = #tpu.dot_dimension_numbers<[1], [0], [0], [1], [0, 0, 1, 1], [], []>} : vector<3854x64xbf16>, vector<64x32xbf16>, vector<3854x32xf32> -> vector<3854x32xf32>
    %c0_3 = arith.constant 0 : index
    %c0_4 = arith.constant 0 : index
    %3 = vector.load %arg3[%c0_3, %c0_4] : memref<1x32xf32, #tpu.memory_space<vmem>>, vector<1x32xf32>
    %4 = vector.broadcast %3 : vector<1x32xf32> to vector<3854x32xf32>
    %5 = arith.addf %2, %4 : vector<3854x32xf32>
    %cst_5 = arith.constant 0.000000e+00 : f32
    %6 = vector.broadcast %cst_5 : f32 to vector<3854x32xf32>
    %7 = arith.cmpf oge, %5, %6 : vector<3854x32xf32>
    %cst_6 = arith.constant 0.00999999977 : f32
    %8 = vector.broadcast %cst_6 : f32 to vector<3854x32xf32>
    %9 = arith.mulf %8, %5 : vector<3854x32xf32>
    %10 = arith.select %7, %5, %9 : vector<3854x32xi1>, vector<3854x32xf32>
    %11 = arith.truncf %10 : vector<3854x32xf32> to vector<3854x32xbf16>
    %c0_7 = arith.constant 0 : index
    %c0_8 = arith.constant 0 : index
    %12 = vector.load %arg4[%c0_7, %c0_8] : memref<3854x32xbf16, #tpu.memory_space<vmem>>, vector<3854x32xbf16>
    tpu.vector_store %arg4[%c0_7, %c0_8], %11 {strides = array<i32>} : memref<3854x32xbf16, #tpu.memory_space<vmem>>, vector<3854x32xbf16>,
    return
  }
  func.func @transform_0(%arg0: i32) -> (i32, i32) {
    %c0_i32 = arith.constant 0 : i32
    %c0_i32_0 = arith.constant 0 : i32
    return %arg0, %c0_i32 : i32, i32
  }
  func.func @transform_1(%arg0: i32) -> (i32, i32) {
    %c0_i32 = arith.constant 0 : i32
    %c0_i32_0 = arith.constant 0 : i32
    %c0_i32_1 = arith.constant 0 : i32
    return %c0_i32, %c0_i32_0 : i32, i32
  }
  func.func @transform_2(%arg0: i32) -> (i32, i32) {
    %c0_i32 = arith.constant 0 : i32
    %c0_i32_0 = arith.constant 0 : i32
    %c0_i32_1 = arith.constant 0 : i32
    return %c0_i32, %c0_i32_0 : i32, i32
  }
  func.func @transform_3(%arg0: i32) -> (i32, i32) {
    %c0_i32 = arith.constant 0 : i32
    %c0_i32_0 = arith.constant 0 : i32
    return %arg0, %c0_i32 : i32, i32
  }
}

module attributes {stable_mosaic.version = 11 : i64} {
  func.func @_conv_maxpool_kernel(%arg0: i32, %arg1: memref<220x128xbf16, #tpu.memory_space<vmem>>, %arg2: memref<220x128xbf16, #tpu.memory_space<vmem>>, %arg3: memref<220x128xbf16, #tpu.memory_space<vmem>>, %arg4: memref<220x128xbf16, #tpu.memory_space<vmem>>, %arg5: memref<128x64xbf16, #tpu.memory_space<vmem>>, %arg6: memref<1x64xf32, #tpu.memory_space<vmem>>, %arg7: memref<220x64xbf16, #tpu.memory_space<vmem>>) attributes {dimension_semantics = [#tpu.dimension_semantics<parallel>], iteration_bounds = array<i64: 1>, scalar_prefetch = 0 : i64, scratch_operands = 0 : i64, tpu.core_type = #tpu.core_type<tc>, window_params = [{transform_indices = @transform_0, window_bounds = array<i64: 220, 128>}, {transform_indices = @transform_1, window_bounds = array<i64: 220, 128>}, {transform_indices = @transform_2, window_bounds = array<i64: 220, 128>}, {transform_indices = @transform_3, window_bounds = array<i64: 220, 128>}, {pipeline_mode = #tpu.pipeline_mode<synchronous>, transform_indices = @transform_4, window_bounds = array<i64: 128, 64>}, {pipeline_mode = #tpu.pipeline_mode<synchronous>, transform_indices = @transform_5, window_bounds = array<i64: 1, 64>}, {transform_indices = @transform_6, window_bounds = array<i64: 220, 64>}]} {
    %c0 = arith.constant 0 : index
    %c0_0 = arith.constant 0 : index
    %0 = vector.load %arg5[%c0, %c0_0] : memref<128x64xbf16, #tpu.memory_space<vmem>>, vector<128x64xbf16>
    %c0_1 = arith.constant 0 : index
    %c0_2 = arith.constant 0 : index
    %1 = vector.load %arg1[%c0_1, %c0_2] : memref<220x128xbf16, #tpu.memory_space<vmem>>, vector<220x128xbf16>
    %cst = arith.constant dense<0.000000e+00> : vector<220x64xf32>
    %2 = tpu.matmul %1, %0, %cst {dimension_numbers = #tpu.dot_dimension_numbers<[1], [0], [0], [1], [0, 0, 1, 1], [], []>} : vector<220x128xbf16>, vector<128x64xbf16>, vector<220x64xf32> -> vector<220x64xf32>
    %c0_3 = arith.constant 0 : index
    %c0_4 = arith.constant 0 : index
    %3 = vector.load %arg2[%c0_3, %c0_4] : memref<220x128xbf16, #tpu.memory_space<vmem>>, vector<220x128xbf16>
    %cst_5 = arith.constant dense<0.000000e+00> : vector<220x64xf32>
    %4 = tpu.matmul %3, %0, %cst_5 {dimension_numbers = #tpu.dot_dimension_numbers<[1], [0], [0], [1], [0, 0, 1, 1], [], []>} : vector<220x128xbf16>, vector<128x64xbf16>, vector<220x64xf32> -> vector<220x64xf32>
    %5 = arith.maximumf %2, %4 : vector<220x64xf32>
    %c0_6 = arith.constant 0 : index
    %c0_7 = arith.constant 0 : index
    %6 = vector.load %arg3[%c0_6, %c0_7] : memref<220x128xbf16, #tpu.memory_space<vmem>>, vector<220x128xbf16>
    %cst_8 = arith.constant dense<0.000000e+00> : vector<220x64xf32>
    %7 = tpu.matmul %6, %0, %cst_8 {dimension_numbers = #tpu.dot_dimension_numbers<[1], [0], [0], [1], [0, 0, 1, 1], [], []>} : vector<220x128xbf16>, vector<128x64xbf16>, vector<220x64xf32> -> vector<220x64xf32>
    %8 = arith.maximumf %5, %7 : vector<220x64xf32>
    %c0_9 = arith.constant 0 : index
    %c0_10 = arith.constant 0 : index
    %9 = vector.load %arg4[%c0_9, %c0_10] : memref<220x128xbf16, #tpu.memory_space<vmem>>, vector<220x128xbf16>
    %cst_11 = arith.constant dense<0.000000e+00> : vector<220x64xf32>
    %10 = tpu.matmul %9, %0, %cst_11 {dimension_numbers = #tpu.dot_dimension_numbers<[1], [0], [0], [1], [0, 0, 1, 1], [], []>} : vector<220x128xbf16>, vector<128x64xbf16>, vector<220x64xf32> -> vector<220x64xf32>
    %11 = arith.maximumf %8, %10 : vector<220x64xf32>
    %c0_12 = arith.constant 0 : index
    %c0_13 = arith.constant 0 : index
    %12 = vector.load %arg6[%c0_12, %c0_13] : memref<1x64xf32, #tpu.memory_space<vmem>>, vector<1x64xf32>
    %13 = vector.broadcast %12 : vector<1x64xf32> to vector<220x64xf32>
    %14 = arith.addf %11, %13 : vector<220x64xf32>
    %15 = arith.truncf %14 : vector<220x64xf32> to vector<220x64xbf16>
    %c0_14 = arith.constant 0 : index
    %c0_15 = arith.constant 0 : index
    %16 = vector.load %arg7[%c0_14, %c0_15] : memref<220x64xbf16, #tpu.memory_space<vmem>>, vector<220x64xbf16>
    tpu.vector_store %arg7[%c0_14, %c0_15], %15 {strides = array<i32>} : memref<220x64xbf16, #tpu.memory_space<vmem>>, vector<220x64xbf16>,
    return
  }
  func.func @transform_0(%arg0: i32) -> (i32, i32) {
    %c0_i32 = arith.constant 0 : i32
    %c0_i32_0 = arith.constant 0 : i32
    return %arg0, %c0_i32 : i32, i32
  }
  func.func @transform_1(%arg0: i32) -> (i32, i32) {
    %c0_i32 = arith.constant 0 : i32
    %c0_i32_0 = arith.constant 0 : i32
    return %arg0, %c0_i32 : i32, i32
  }
  func.func @transform_2(%arg0: i32) -> (i32, i32) {
    %c0_i32 = arith.constant 0 : i32
    %c0_i32_0 = arith.constant 0 : i32
    return %arg0, %c0_i32 : i32, i32
  }
  func.func @transform_3(%arg0: i32) -> (i32, i32) {
    %c0_i32 = arith.constant 0 : i32
    %c0_i32_0 = arith.constant 0 : i32
    return %arg0, %c0_i32 : i32, i32
  }
  func.func @transform_4(%arg0: i32) -> (i32, i32) {
    %c0_i32 = arith.constant 0 : i32
    %c0_i32_0 = arith.constant 0 : i32
    %c0_i32_1 = arith.constant 0 : i32
    return %c0_i32, %c0_i32_0 : i32, i32
  }
  func.func @transform_5(%arg0: i32) -> (i32, i32) {
    %c0_i32 = arith.constant 0 : i32
    %c0_i32_0 = arith.constant 0 : i32
    %c0_i32_1 = arith.constant 0 : i32
    return %c0_i32, %c0_i32_0 : i32, i32
  }
  func.func @transform_6(%arg0: i32) -> (i32, i32) {
    %c0_i32 = arith.constant 0 : i32
    %c0_i32_0 = arith.constant 0 : i32
    return %arg0, %c0_i32 : i32, i32
  }
}

module attributes {stable_mosaic.version = 11 : i64} {
  func.func @_conv3_pool_head_kernel(%arg0: memref<40x256xbf16, #tpu.memory_space<vmem>>, %arg1: memref<40x256xbf16, #tpu.memory_space<vmem>>, %arg2: memref<40x256xbf16, #tpu.memory_space<vmem>>, %arg3: memref<40x256xbf16, #tpu.memory_space<vmem>>, %arg4: memref<256x64xbf16, #tpu.memory_space<vmem>>, %arg5: memref<1x64xf32, #tpu.memory_space<vmem>>, %arg6: memref<1280x256xbf16, #tpu.memory_space<vmem>>, %arg7: memref<1x256xf32, #tpu.memory_space<vmem>>, %arg8: memref<256x64xbf16, #tpu.memory_space<vmem>>, %arg9: memref<1x64xf32, #tpu.memory_space<vmem>>, %arg10: memref<64x64xbf16, #tpu.memory_space<vmem>>, %arg11: memref<1x64xf32, #tpu.memory_space<vmem>>, %arg12: memref<64x6xbf16, #tpu.memory_space<vmem>>, %arg13: memref<1x6xf32, #tpu.memory_space<vmem>>, %arg14: memref<2x3xf32, #tpu.memory_space<vmem>>, %arg15: memref<2x3xf32, #tpu.memory_space<vmem>>) attributes {dimension_semantics = [], scalar_prefetch = 0 : i64, scratch_operands = 0 : i64, tpu.core_type = #tpu.core_type<tc>} {
    %c0 = arith.constant 0 : index
    %c0_0 = arith.constant 0 : index
    %0 = vector.load %arg4[%c0, %c0_0] : memref<256x64xbf16, #tpu.memory_space<vmem>>, vector<256x64xbf16>
    %c0_1 = arith.constant 0 : index
    %c0_2 = arith.constant 0 : index
    %1 = vector.load %arg0[%c0_1, %c0_2] : memref<40x256xbf16, #tpu.memory_space<vmem>>, vector<40x256xbf16>
    %cst = arith.constant dense<0.000000e+00> : vector<40x64xf32>
    %2 = tpu.matmul %1, %0, %cst {dimension_numbers = #tpu.dot_dimension_numbers<[1], [0], [0], [1], [0, 0, 1, 1], [], []>} : vector<40x256xbf16>, vector<256x64xbf16>, vector<40x64xf32> -> vector<40x64xf32>
    %c0_3 = arith.constant 0 : index
    %c0_4 = arith.constant 0 : index
    %3 = vector.load %arg1[%c0_3, %c0_4] : memref<40x256xbf16, #tpu.memory_space<vmem>>, vector<40x256xbf16>
    %cst_5 = arith.constant dense<0.000000e+00> : vector<40x64xf32>
    %4 = tpu.matmul %3, %0, %cst_5 {dimension_numbers = #tpu.dot_dimension_numbers<[1], [0], [0], [1], [0, 0, 1, 1], [], []>} : vector<40x256xbf16>, vector<256x64xbf16>, vector<40x64xf32> -> vector<40x64xf32>
    %5 = arith.maximumf %2, %4 : vector<40x64xf32>
    %c0_6 = arith.constant 0 : index
    %c0_7 = arith.constant 0 : index
    %6 = vector.load %arg2[%c0_6, %c0_7] : memref<40x256xbf16, #tpu.memory_space<vmem>>, vector<40x256xbf16>
    %cst_8 = arith.constant dense<0.000000e+00> : vector<40x64xf32>
    %7 = tpu.matmul %6, %0, %cst_8 {dimension_numbers = #tpu.dot_dimension_numbers<[1], [0], [0], [1], [0, 0, 1, 1], [], []>} : vector<40x256xbf16>, vector<256x64xbf16>, vector<40x64xf32> -> vector<40x64xf32>
    %8 = arith.maximumf %5, %7 : vector<40x64xf32>
    %c0_9 = arith.constant 0 : index
    %c0_10 = arith.constant 0 : index
    %9 = vector.load %arg3[%c0_9, %c0_10] : memref<40x256xbf16, #tpu.memory_space<vmem>>, vector<40x256xbf16>
    %cst_11 = arith.constant dense<0.000000e+00> : vector<40x64xf32>
    %10 = tpu.matmul %9, %0, %cst_11 {dimension_numbers = #tpu.dot_dimension_numbers<[1], [0], [0], [1], [0, 0, 1, 1], [], []>} : vector<40x256xbf16>, vector<256x64xbf16>, vector<40x64xf32> -> vector<40x64xf32>
    %11 = arith.maximumf %8, %10 : vector<40x64xf32>
    %c0_12 = arith.constant 0 : index
    %c0_13 = arith.constant 0 : index
    %12 = vector.load %arg5[%c0_12, %c0_13] : memref<1x64xf32, #tpu.memory_space<vmem>>, vector<1x64xf32>
    %13 = vector.broadcast %12 : vector<1x64xf32> to vector<40x64xf32>
    %14 = arith.addf %11, %13 : vector<40x64xf32>
    %cst_14 = arith.constant 0.000000e+00 : f32
    %15 = vector.broadcast %cst_14 : f32 to vector<2x256xf32>
    %16 = vector.extract_strided_slice %14 {offsets = [0, 0], sizes = [2, 64], strides = [1, 1]} : vector<40x64xf32> to vector<2x64xf32>
    %17 = arith.truncf %16 : vector<2x64xf32> to vector<2x64xbf16>
    %c0_15 = arith.constant 0 : index
    %c0_16 = arith.constant 0 : index
    %18 = vector.load %arg6[%c0_15, %c0_16] : memref<1280x256xbf16, #tpu.memory_space<vmem>>, vector<64x256xbf16>
    %cst_17 = arith.constant dense<0.000000e+00> : vector<2x256xf32>
    %19 = tpu.matmul %17, %18, %cst_17 {dimension_numbers = #tpu.dot_dimension_numbers<[1], [0], [0], [1], [0, 0, 1, 1], [], []>} : vector<2x64xbf16>, vector<64x256xbf16>, vector<2x256xf32> -> vector<2x256xf32>
    %20 = arith.addf %15, %19 : vector<2x256xf32>
    %21 = vector.extract_strided_slice %14 {offsets = [2, 0], sizes = [2, 64], strides = [1, 1]} : vector<40x64xf32> to vector<2x64xf32>
    %22 = arith.truncf %21 : vector<2x64xf32> to vector<2x64xbf16>
    %c64 = arith.constant 64 : index
    %c0_18 = arith.constant 0 : index
    %23 = vector.load %arg6[%c64, %c0_18] : memref<1280x256xbf16, #tpu.memory_space<vmem>>, vector<64x256xbf16>
    %cst_19 = arith.constant dense<0.000000e+00> : vector<2x256xf32>
    %24 = tpu.matmul %22, %23, %cst_19 {dimension_numbers = #tpu.dot_dimension_numbers<[1], [0], [0], [1], [0, 0, 1, 1], [], []>} : vector<2x64xbf16>, vector<64x256xbf16>, vector<2x256xf32> -> vector<2x256xf32>
    %25 = arith.addf %20, %24 : vector<2x256xf32>
    %26 = vector.extract_strided_slice %14 {offsets = [4, 0], sizes = [2, 64], strides = [1, 1]} : vector<40x64xf32> to vector<2x64xf32>
    %27 = arith.truncf %26 : vector<2x64xf32> to vector<2x64xbf16>
    %c128 = arith.constant 128 : index
    %c0_20 = arith.constant 0 : index
    %28 = vector.load %arg6[%c128, %c0_20] : memref<1280x256xbf16, #tpu.memory_space<vmem>>, vector<64x256xbf16>
    %cst_21 = arith.constant dense<0.000000e+00> : vector<2x256xf32>
    %29 = tpu.matmul %27, %28, %cst_21 {dimension_numbers = #tpu.dot_dimension_numbers<[1], [0], [0], [1], [0, 0, 1, 1], [], []>} : vector<2x64xbf16>, vector<64x256xbf16>, vector<2x256xf32> -> vector<2x256xf32>
    %30 = arith.addf %25, %29 : vector<2x256xf32>
    %31 = vector.extract_strided_slice %14 {offsets = [6, 0], sizes = [2, 64], strides = [1, 1]} : vector<40x64xf32> to vector<2x64xf32>
    %32 = arith.truncf %31 : vector<2x64xf32> to vector<2x64xbf16>
    %c192 = arith.constant 192 : index
    %c0_22 = arith.constant 0 : index
    %33 = vector.load %arg6[%c192, %c0_22] : memref<1280x256xbf16, #tpu.memory_space<vmem>>, vector<64x256xbf16>
    %cst_23 = arith.constant dense<0.000000e+00> : vector<2x256xf32>
    %34 = tpu.matmul %32, %33, %cst_23 {dimension_numbers = #tpu.dot_dimension_numbers<[1], [0], [0], [1], [0, 0, 1, 1], [], []>} : vector<2x64xbf16>, vector<64x256xbf16>, vector<2x256xf32> -> vector<2x256xf32>
    %35 = arith.addf %30, %34 : vector<2x256xf32>
    %36 = vector.extract_strided_slice %14 {offsets = [8, 0], sizes = [2, 64], strides = [1, 1]} : vector<40x64xf32> to vector<2x64xf32>
    %37 = arith.truncf %36 : vector<2x64xf32> to vector<2x64xbf16>
    %c256 = arith.constant 256 : index
    %c0_24 = arith.constant 0 : index
    %38 = vector.load %arg6[%c256, %c0_24] : memref<1280x256xbf16, #tpu.memory_space<vmem>>, vector<64x256xbf16>
    %cst_25 = arith.constant dense<0.000000e+00> : vector<2x256xf32>
    %39 = tpu.matmul %37, %38, %cst_25 {dimension_numbers = #tpu.dot_dimension_numbers<[1], [0], [0], [1], [0, 0, 1, 1], [], []>} : vector<2x64xbf16>, vector<64x256xbf16>, vector<2x256xf32> -> vector<2x256xf32>
    %40 = arith.addf %35, %39 : vector<2x256xf32>
    %41 = vector.extract_strided_slice %14 {offsets = [10, 0], sizes = [2, 64], strides = [1, 1]} : vector<40x64xf32> to vector<2x64xf32>
    %42 = arith.truncf %41 : vector<2x64xf32> to vector<2x64xbf16>
    %c320 = arith.constant 320 : index
    %c0_26 = arith.constant 0 : index
    %43 = vector.load %arg6[%c320, %c0_26] : memref<1280x256xbf16, #tpu.memory_space<vmem>>, vector<64x256xbf16>
    %cst_27 = arith.constant dense<0.000000e+00> : vector<2x256xf32>
    %44 = tpu.matmul %42, %43, %cst_27 {dimension_numbers = #tpu.dot_dimension_numbers<[1], [0], [0], [1], [0, 0, 1, 1], [], []>} : vector<2x64xbf16>, vector<64x256xbf16>, vector<2x256xf32> -> vector<2x256xf32>
    %45 = arith.addf %40, %44 : vector<2x256xf32>
    %46 = vector.extract_strided_slice %14 {offsets = [12, 0], sizes = [2, 64], strides = [1, 1]} : vector<40x64xf32> to vector<2x64xf32>
    %47 = arith.truncf %46 : vector<2x64xf32> to vector<2x64xbf16>
    %c384 = arith.constant 384 : index
    %c0_28 = arith.constant 0 : index
    %48 = vector.load %arg6[%c384, %c0_28] : memref<1280x256xbf16, #tpu.memory_space<vmem>>, vector<64x256xbf16>
    %cst_29 = arith.constant dense<0.000000e+00> : vector<2x256xf32>
    %49 = tpu.matmul %47, %48, %cst_29 {dimension_numbers = #tpu.dot_dimension_numbers<[1], [0], [0], [1], [0, 0, 1, 1], [], []>} : vector<2x64xbf16>, vector<64x256xbf16>, vector<2x256xf32> -> vector<2x256xf32>
    %50 = arith.addf %45, %49 : vector<2x256xf32>
    %51 = vector.extract_strided_slice %14 {offsets = [14, 0], sizes = [2, 64], strides = [1, 1]} : vector<40x64xf32> to vector<2x64xf32>
    %52 = arith.truncf %51 : vector<2x64xf32> to vector<2x64xbf16>
    %c448 = arith.constant 448 : index
    %c0_30 = arith.constant 0 : index
    %53 = vector.load %arg6[%c448, %c0_30] : memref<1280x256xbf16, #tpu.memory_space<vmem>>, vector<64x256xbf16>
    %cst_31 = arith.constant dense<0.000000e+00> : vector<2x256xf32>
    %54 = tpu.matmul %52, %53, %cst_31 {dimension_numbers = #tpu.dot_dimension_numbers<[1], [0], [0], [1], [0, 0, 1, 1], [], []>} : vector<2x64xbf16>, vector<64x256xbf16>, vector<2x256xf32> -> vector<2x256xf32>
    %55 = arith.addf %50, %54 : vector<2x256xf32>
    %56 = vector.extract_strided_slice %14 {offsets = [16, 0], sizes = [2, 64], strides = [1, 1]} : vector<40x64xf32> to vector<2x64xf32>
    %57 = arith.truncf %56 : vector<2x64xf32> to vector<2x64xbf16>
    %c512 = arith.constant 512 : index
    %c0_32 = arith.constant 0 : index
    %58 = vector.load %arg6[%c512, %c0_32] : memref<1280x256xbf16, #tpu.memory_space<vmem>>, vector<64x256xbf16>
    %cst_33 = arith.constant dense<0.000000e+00> : vector<2x256xf32>
    %59 = tpu.matmul %57, %58, %cst_33 {dimension_numbers = #tpu.dot_dimension_numbers<[1], [0], [0], [1], [0, 0, 1, 1], [], []>} : vector<2x64xbf16>, vector<64x256xbf16>, vector<2x256xf32> -> vector<2x256xf32>
    %60 = arith.addf %55, %59 : vector<2x256xf32>
    %61 = vector.extract_strided_slice %14 {offsets = [18, 0], sizes = [2, 64], strides = [1, 1]} : vector<40x64xf32> to vector<2x64xf32>
    %62 = arith.truncf %61 : vector<2x64xf32> to vector<2x64xbf16>
    %c576 = arith.constant 576 : index
    %c0_34 = arith.constant 0 : index
    %63 = vector.load %arg6[%c576, %c0_34] : memref<1280x256xbf16, #tpu.memory_space<vmem>>, vector<64x256xbf16>
    %cst_35 = arith.constant dense<0.000000e+00> : vector<2x256xf32>
    %64 = tpu.matmul %62, %63, %cst_35 {dimension_numbers = #tpu.dot_dimension_numbers<[1], [0], [0], [1], [0, 0, 1, 1], [], []>} : vector<2x64xbf16>, vector<64x256xbf16>, vector<2x256xf32> -> vector<2x256xf32>
    %65 = arith.addf %60, %64 : vector<2x256xf32>
    %66 = vector.extract_strided_slice %14 {offsets = [20, 0], sizes = [2, 64], strides = [1, 1]} : vector<40x64xf32> to vector<2x64xf32>
    %67 = arith.truncf %66 : vector<2x64xf32> to vector<2x64xbf16>
    %c640 = arith.constant 640 : index
    %c0_36 = arith.constant 0 : index
    %68 = vector.load %arg6[%c640, %c0_36] : memref<1280x256xbf16, #tpu.memory_space<vmem>>, vector<64x256xbf16>
    %cst_37 = arith.constant dense<0.000000e+00> : vector<2x256xf32>
    %69 = tpu.matmul %67, %68, %cst_37 {dimension_numbers = #tpu.dot_dimension_numbers<[1], [0], [0], [1], [0, 0, 1, 1], [], []>} : vector<2x64xbf16>, vector<64x256xbf16>, vector<2x256xf32> -> vector<2x256xf32>
    %70 = arith.addf %65, %69 : vector<2x256xf32>
    %71 = vector.extract_strided_slice %14 {offsets = [22, 0], sizes = [2, 64], strides = [1, 1]} : vector<40x64xf32> to vector<2x64xf32>
    %72 = arith.truncf %71 : vector<2x64xf32> to vector<2x64xbf16>
    %c704 = arith.constant 704 : index
    %c0_38 = arith.constant 0 : index
    %73 = vector.load %arg6[%c704, %c0_38] : memref<1280x256xbf16, #tpu.memory_space<vmem>>, vector<64x256xbf16>
    %cst_39 = arith.constant dense<0.000000e+00> : vector<2x256xf32>
    %74 = tpu.matmul %72, %73, %cst_39 {dimension_numbers = #tpu.dot_dimension_numbers<[1], [0], [0], [1], [0, 0, 1, 1], [], []>} : vector<2x64xbf16>, vector<64x256xbf16>, vector<2x256xf32> -> vector<2x256xf32>
    %75 = arith.addf %70, %74 : vector<2x256xf32>
    %76 = vector.extract_strided_slice %14 {offsets = [24, 0], sizes = [2, 64], strides = [1, 1]} : vector<40x64xf32> to vector<2x64xf32>
    %77 = arith.truncf %76 : vector<2x64xf32> to vector<2x64xbf16>
    %c768 = arith.constant 768 : index
    %c0_40 = arith.constant 0 : index
    %78 = vector.load %arg6[%c768, %c0_40] : memref<1280x256xbf16, #tpu.memory_space<vmem>>, vector<64x256xbf16>
    %cst_41 = arith.constant dense<0.000000e+00> : vector<2x256xf32>
    %79 = tpu.matmul %77, %78, %cst_41 {dimension_numbers = #tpu.dot_dimension_numbers<[1], [0], [0], [1], [0, 0, 1, 1], [], []>} : vector<2x64xbf16>, vector<64x256xbf16>, vector<2x256xf32> -> vector<2x256xf32>
    %80 = arith.addf %75, %79 : vector<2x256xf32>
    %81 = vector.extract_strided_slice %14 {offsets = [26, 0], sizes = [2, 64], strides = [1, 1]} : vector<40x64xf32> to vector<2x64xf32>
    %82 = arith.truncf %81 : vector<2x64xf32> to vector<2x64xbf16>
    %c832 = arith.constant 832 : index
    %c0_42 = arith.constant 0 : index
    %83 = vector.load %arg6[%c832, %c0_42] : memref<1280x256xbf16, #tpu.memory_space<vmem>>, vector<64x256xbf16>
    %cst_43 = arith.constant dense<0.000000e+00> : vector<2x256xf32>
    %84 = tpu.matmul %82, %83, %cst_43 {dimension_numbers = #tpu.dot_dimension_numbers<[1], [0], [0], [1], [0, 0, 1, 1], [], []>} : vector<2x64xbf16>, vector<64x256xbf16>, vector<2x256xf32> -> vector<2x256xf32>
    %85 = arith.addf %80, %84 : vector<2x256xf32>
    %86 = vector.extract_strided_slice %14 {offsets = [28, 0], sizes = [2, 64], strides = [1, 1]} : vector<40x64xf32> to vector<2x64xf32>
    %87 = arith.truncf %86 : vector<2x64xf32> to vector<2x64xbf16>
    %c896 = arith.constant 896 : index
    %c0_44 = arith.constant 0 : index
    %88 = vector.load %arg6[%c896, %c0_44] : memref<1280x256xbf16, #tpu.memory_space<vmem>>, vector<64x256xbf16>
    %cst_45 = arith.constant dense<0.000000e+00> : vector<2x256xf32>
    %89 = tpu.matmul %87, %88, %cst_45 {dimension_numbers = #tpu.dot_dimension_numbers<[1], [0], [0], [1], [0, 0, 1, 1], [], []>} : vector<2x64xbf16>, vector<64x256xbf16>, vector<2x256xf32> -> vector<2x256xf32>
    %90 = arith.addf %85, %89 : vector<2x256xf32>
    %91 = vector.extract_strided_slice %14 {offsets = [30, 0], sizes = [2, 64], strides = [1, 1]} : vector<40x64xf32> to vector<2x64xf32>
    %92 = arith.truncf %91 : vector<2x64xf32> to vector<2x64xbf16>
    %c960 = arith.constant 960 : index
    %c0_46 = arith.constant 0 : index
    %93 = vector.load %arg6[%c960, %c0_46] : memref<1280x256xbf16, #tpu.memory_space<vmem>>, vector<64x256xbf16>
    %cst_47 = arith.constant dense<0.000000e+00> : vector<2x256xf32>
    %94 = tpu.matmul %92, %93, %cst_47 {dimension_numbers = #tpu.dot_dimension_numbers<[1], [0], [0], [1], [0, 0, 1, 1], [], []>} : vector<2x64xbf16>, vector<64x256xbf16>, vector<2x256xf32> -> vector<2x256xf32>
    %95 = arith.addf %90, %94 : vector<2x256xf32>
    %96 = vector.extract_strided_slice %14 {offsets = [32, 0], sizes = [2, 64], strides = [1, 1]} : vector<40x64xf32> to vector<2x64xf32>
    %97 = arith.truncf %96 : vector<2x64xf32> to vector<2x64xbf16>
    %c1024 = arith.constant 1024 : index
    %c0_48 = arith.constant 0 : index
    %98 = vector.load %arg6[%c1024, %c0_48] : memref<1280x256xbf16, #tpu.memory_space<vmem>>, vector<64x256xbf16>
    %cst_49 = arith.constant dense<0.000000e+00> : vector<2x256xf32>
    %99 = tpu.matmul %97, %98, %cst_49 {dimension_numbers = #tpu.dot_dimension_numbers<[1], [0], [0], [1], [0, 0, 1, 1], [], []>} : vector<2x64xbf16>, vector<64x256xbf16>, vector<2x256xf32> -> vector<2x256xf32>
    %100 = arith.addf %95, %99 : vector<2x256xf32>
    %101 = vector.extract_strided_slice %14 {offsets = [34, 0], sizes = [2, 64], strides = [1, 1]} : vector<40x64xf32> to vector<2x64xf32>
    %102 = arith.truncf %101 : vector<2x64xf32> to vector<2x64xbf16>
    %c1088 = arith.constant 1088 : index
    %c0_50 = arith.constant 0 : index
    %103 = vector.load %arg6[%c1088, %c0_50] : memref<1280x256xbf16, #tpu.memory_space<vmem>>, vector<64x256xbf16>
    %cst_51 = arith.constant dense<0.000000e+00> : vector<2x256xf32>
    %104 = tpu.matmul %102, %103, %cst_51 {dimension_numbers = #tpu.dot_dimension_numbers<[1], [0], [0], [1], [0, 0, 1, 1], [], []>} : vector<2x64xbf16>, vector<64x256xbf16>, vector<2x256xf32> -> vector<2x256xf32>
    %105 = arith.addf %100, %104 : vector<2x256xf32>
    %106 = vector.extract_strided_slice %14 {offsets = [36, 0], sizes = [2, 64], strides = [1, 1]} : vector<40x64xf32> to vector<2x64xf32>
    %107 = arith.truncf %106 : vector<2x64xf32> to vector<2x64xbf16>
    %c1152 = arith.constant 1152 : index
    %c0_52 = arith.constant 0 : index
    %108 = vector.load %arg6[%c1152, %c0_52] : memref<1280x256xbf16, #tpu.memory_space<vmem>>, vector<64x256xbf16>
    %cst_53 = arith.constant dense<0.000000e+00> : vector<2x256xf32>
    %109 = tpu.matmul %107, %108, %cst_53 {dimension_numbers = #tpu.dot_dimension_numbers<[1], [0], [0], [1], [0, 0, 1, 1], [], []>} : vector<2x64xbf16>, vector<64x256xbf16>, vector<2x256xf32> -> vector<2x256xf32>
    %110 = arith.addf %105, %109 : vector<2x256xf32>
    %111 = vector.extract_strided_slice %14 {offsets = [38, 0], sizes = [2, 64], strides = [1, 1]} : vector<40x64xf32> to vector<2x64xf32>
    %112 = arith.truncf %111 : vector<2x64xf32> to vector<2x64xbf16>
    %c1216 = arith.constant 1216 : index
    %c0_54 = arith.constant 0 : index
    %113 = vector.load %arg6[%c1216, %c0_54] : memref<1280x256xbf16, #tpu.memory_space<vmem>>, vector<64x256xbf16>
    %cst_55 = arith.constant dense<0.000000e+00> : vector<2x256xf32>
    %114 = tpu.matmul %112, %113, %cst_55 {dimension_numbers = #tpu.dot_dimension_numbers<[1], [0], [0], [1], [0, 0, 1, 1], [], []>} : vector<2x64xbf16>, vector<64x256xbf16>, vector<2x256xf32> -> vector<2x256xf32>
    %115 = arith.addf %110, %114 : vector<2x256xf32>
    %c0_56 = arith.constant 0 : index
    %c0_57 = arith.constant 0 : index
    %116 = vector.load %arg7[%c0_56, %c0_57] : memref<1x256xf32, #tpu.memory_space<vmem>>, vector<1x256xf32>
    %117 = vector.broadcast %116 : vector<1x256xf32> to vector<2x256xf32>
    %118 = arith.addf %115, %117 : vector<2x256xf32>
    %cst_58 = arith.constant 0.000000e+00 : f32
    %119 = vector.broadcast %cst_58 : f32 to vector<2x256xf32>
    %120 = arith.cmpf oge, %118, %119 : vector<2x256xf32>
    %cst_59 = arith.constant 0.00999999977 : f32
    %121 = vector.broadcast %cst_59 : f32 to vector<2x256xf32>
    %122 = arith.mulf %121, %118 : vector<2x256xf32>
    %123 = arith.select %120, %118, %122 : vector<2x256xi1>, vector<2x256xf32>
    %124 = arith.truncf %123 : vector<2x256xf32> to vector<2x256xbf16>
    %c0_60 = arith.constant 0 : index
    %c0_61 = arith.constant 0 : index
    %125 = vector.load %arg8[%c0_60, %c0_61] : memref<256x64xbf16, #tpu.memory_space<vmem>>, vector<256x64xbf16>
    %cst_62 = arith.constant dense<0.000000e+00> : vector<2x64xf32>
    %126 = tpu.matmul %124, %125, %cst_62 {dimension_numbers = #tpu.dot_dimension_numbers<[1], [0], [0], [1], [0, 0, 1, 1], [], []>} : vector<2x256xbf16>, vector<256x64xbf16>, vector<2x64xf32> -> vector<2x64xf32>
    %c0_63 = arith.constant 0 : index
    %c0_64 = arith.constant 0 : index
    %127 = vector.load %arg9[%c0_63, %c0_64] : memref<1x64xf32, #tpu.memory_space<vmem>>, vector<1x64xf32>
    %128 = vector.broadcast %127 : vector<1x64xf32> to vector<2x64xf32>
    %129 = arith.addf %126, %128 : vector<2x64xf32>
    %cst_65 = arith.constant 0.000000e+00 : f32
    %130 = vector.broadcast %cst_65 : f32 to vector<2x64xf32>
    %131 = arith.maximumf %129, %130 : vector<2x64xf32>
    %132 = arith.truncf %131 : vector<2x64xf32> to vector<2x64xbf16>
    %c0_66 = arith.constant 0 : index
    %c0_67 = arith.constant 0 : index
    %133 = vector.load %arg10[%c0_66, %c0_67] : memref<64x64xbf16, #tpu.memory_space<vmem>>, vector<64x64xbf16>
    %cst_68 = arith.constant dense<0.000000e+00> : vector<2x64xf32>
    %134 = tpu.matmul %132, %133, %cst_68 {dimension_numbers = #tpu.dot_dimension_numbers<[1], [0], [0], [1], [0, 0, 1, 1], [], []>} : vector<2x64xbf16>, vector<64x64xbf16>, vector<2x64xf32> -> vector<2x64xf32>
    %c0_69 = arith.constant 0 : index
    %c0_70 = arith.constant 0 : index
    %135 = vector.load %arg11[%c0_69, %c0_70] : memref<1x64xf32, #tpu.memory_space<vmem>>, vector<1x64xf32>
    %136 = vector.broadcast %135 : vector<1x64xf32> to vector<2x64xf32>
    %137 = arith.addf %134, %136 : vector<2x64xf32>
    %cst_71 = arith.constant 0.000000e+00 : f32
    %138 = vector.broadcast %cst_71 : f32 to vector<2x64xf32>
    %139 = arith.maximumf %137, %138 : vector<2x64xf32>
    %140 = arith.truncf %139 : vector<2x64xf32> to vector<2x64xbf16>
    %c0_72 = arith.constant 0 : index
    %c0_73 = arith.constant 0 : index
    %141 = vector.load %arg12[%c0_72, %c0_73] : memref<64x6xbf16, #tpu.memory_space<vmem>>, vector<64x6xbf16>
    %cst_74 = arith.constant dense<0.000000e+00> : vector<2x6xf32>
    %142 = tpu.matmul %140, %141, %cst_74 {dimension_numbers = #tpu.dot_dimension_numbers<[1], [0], [0], [1], [0, 0, 1, 1], [], []>} : vector<2x64xbf16>, vector<64x6xbf16>, vector<2x6xf32> -> vector<2x6xf32>
    %c0_75 = arith.constant 0 : index
    %c0_76 = arith.constant 0 : index
    %143 = vector.load %arg13[%c0_75, %c0_76] : memref<1x6xf32, #tpu.memory_space<vmem>>, vector<1x6xf32>
    %144 = vector.broadcast %143 : vector<1x6xf32> to vector<2x6xf32>
    %145 = arith.addf %142, %144 : vector<2x6xf32>
    %146 = vector.extract_strided_slice %145 {offsets = [0, 0], sizes = [2, 3], strides = [1, 1]} : vector<2x6xf32> to vector<2x3xf32>
    %c0_77 = arith.constant 0 : index
    %c0_78 = arith.constant 0 : index
    %147 = vector.load %arg14[%c0_77, %c0_78] : memref<2x3xf32, #tpu.memory_space<vmem>>, vector<2x3xf32>
    tpu.vector_store %arg14[%c0_77, %c0_78], %146 {strides = array<i32>} : memref<2x3xf32, #tpu.memory_space<vmem>>, vector<2x3xf32>,
    %148 = vector.extract_strided_slice %145 {offsets = [0, 3], sizes = [2, 3], strides = [1, 1]} : vector<2x6xf32> to vector<2x3xf32>
    %cst_79 = arith.constant -2.000000e+01 : f32
    %cst_80 = arith.constant 2.000000e+00 : f32
    %149 = vector.broadcast %cst_79 : f32 to vector<2x3xf32>
    %150 = arith.maximumf %149, %148 : vector<2x3xf32>
    %151 = vector.broadcast %cst_80 : f32 to vector<2x3xf32>
    %152 = arith.minimumf %151, %150 : vector<2x3xf32>
    %c0_81 = arith.constant 0 : index
    %c0_82 = arith.constant 0 : index
    %153 = vector.load %arg15[%c0_81, %c0_82] : memref<2x3xf32, #tpu.memory_space<vmem>>, vector<2x3xf32>
    tpu.vector_store %arg15[%c0_81, %c0_82], %152 {strides = array<i32>} : memref<2x3xf32, #tpu.memory_space<vmem>>, vector<2x3xf32>,
    return
  }
}

</mosaic_0001>

<llo_original>
// kernel: actor_forward.3
$region0: #{actor_forward.3}
  #allocation0 [shape = 'u32[]', space=smem, size = 0x4, offset = 0x4, fixed_abs, tag = 'smem constant byte address 0x4 - core index']
  #allocation1 [shape = 'u32[144,128]{1,0:T(1,128)}', space=vmem, size = 0x12000, scoped, tag = 'internal scratch']
  %s0 = inlined_call_operand.vmem [shape: bf16[3854,64], index: 0, kind: input, shape index: {}]
  %s1 = inlined_call_operand.vmem [shape: bf16[64,32], index: 1, kind: input, shape index: {}]
  %s2 = inlined_call_operand.vmem [shape: f32[1,32], index: 2, kind: input, shape index: {}]
  %s3 = inlined_call_operand.vmem [shape: bf16[3854,32], index: 3, kind: output, shape index: {}]
  %s4 = sld [smem:[#allocation0]]
  $region22: #{actor_forward.3} parent=0
    _
  %s6 = ssub.s32 1, %s4
  %s7 = scalar_select 0, %s6, %s4
  // Predicated region
  $region2: #{actor_forward.3} parent=0 // pred_check
    _
  $region3: #{actor_forward.3} parent=0 // pred_check_branch
    %9 = sbr.rel (0) target = $region5
  $region4: #{actor_forward.3} parent=0 // pred_region
    _
  $region5: #{actor_forward.3} parent=0 // pred_fallthru
    _
  // Predicated region
  $region6: #{actor_forward.3} parent=0 // pred_check
    _
  $region7: #{actor_forward.3} parent=0 // pred_check_branch
    %11 = sbr.rel (0) target = $region9
  $region8: #{actor_forward.3} parent=0 // pred_region
    _
  $region9: #{actor_forward.3} parent=0 // pred_fallthru
    _
  // Predicated region
  $region10: #{actor_forward.3} parent=0 // pred_check
    _
  $region11: #{actor_forward.3} parent=0 // pred_check_branch
    %13 = sbr.rel (0) target = $region13
  $region12: #{actor_forward.3} parent=0 // pred_region
    _
  $region13: #{actor_forward.3} parent=0 // pred_fallthru
    _
  %v15 = vld [vmem:[%s0] sm:$0xf]
  %v16 = vld [vmem:[%s0 + $0x4] sm:$0xf]
  %v17 = vld [vmem:[%s0 + $0x8] sm:$0xf]
  %v18 = vld [vmem:[%s0 + $0xc] sm:$0xf]
  %v19 = vld [vmem:[%s0 + $0x10] sm:$0xf]
  %v20 = vld [vmem:[%s0 + $0x14] sm:$0xf]
  %v21 = vld [vmem:[%s0 + $0x18] sm:$0xf]
  %v22 = vld [vmem:[%s0 + $0x1c] sm:$0xf]
  %v23 = vld [vmem:[%s0 + $0x20] sm:$0xf]
  %v24 = vld [vmem:[%s0 + $0x24] sm:$0xf]
  %v25 = vld [vmem:[%s0 + $0x28] sm:$0xf]
  %v26 = vld [vmem:[%s0 + $0x2c] sm:$0xf]
  %v27 = vld [vmem:[%s0 + $0x30] sm:$0xf]
  %v28 = vld [vmem:[%s0 + $0x34] sm:$0xf]
  %v29 = vld [vmem:[%s0 + $0x38] sm:$0xf]
  %v30 = vld [vmem:[%s0 + $0x3c] sm:$0xf]
  %v31 = vld [vmem:[%s0 + $0x40] sm:$0xf]
  %v32 = vld [vmem:[%s0 + $0x44] sm:$0xf]
  %v33 = vld [vmem:[%s0 + $0x48] sm:$0xf]
  %v34 = vld [vmem:[%s0 + $0x4c] sm:$0xf]
  %v35 = vld [vmem:[%s0 + $0x50] sm:$0xf]
  %v36 = vld [vmem:[%s0 + $0x54] sm:$0xf]
  %v37 = vld [vmem:[%s0 + $0x58] sm:$0xf]
  %v38 = vld [vmem:[%s0 + $0x5c] sm:$0xf]
  %v39 = vld [vmem:[%s0 + $0x60] sm:$0xf]
  %v40 = vld [vmem:[%s0 + $0x64] sm:$0xf]
  %v41 = vld [vmem:[%s0 + $0x68] sm:$0xf]
  %v42 = vld [vmem:[%s0 + $0x6c] sm:$0xf]
  %v43 = vld [vmem:[%s0 + $0x70] sm:$0xf]
  %v44 = vld [vmem:[%s0 + $0x74] sm:$0xf]
  %v45 = vld [vmem:[%s0 + $0x78] sm:$0xf]
  %v46 = vld [vmem:[%s0 + $0x7c] sm:$0xf]
  %v47 = vld [vmem:[%s0 + $0x80] sm:$0xf]
  %v48 = vld [vmem:[%s0 + $0x84] sm:$0xf]
  %v49 = vld [vmem:[%s0 + $0x88] sm:$0xf]
  %v50 = vld [vmem:[%s0 + $0x8c] sm:$0xf]
  %v51 = vld [vmem:[%s0 + $0x90] sm:$0xf]
  %v52 = vld [vmem:[%s0 + $0x94] sm:$0xf]
  %v53 = vld [vmem:[%s0 + $0x98] sm:$0xf]
  %v54 = vld [vmem:[%s0 + $0x9c] sm:$0xf]
  %v55 = vld [vmem:[%s0 + $0xa0] sm:$0xf]
  %v56 = vld [vmem:[%s0 + $0xa4] sm:$0xf]
  %v57 = vld [vmem:[%s0 + $0xa8] sm:$0xf]
  %v58 = vld [vmem:[%s0 + $0xac] sm:$0xf]
  %v59 = vld [vmem:[%s0 + $0xb0] sm:$0xf]
  %v60 = vld [vmem:[%s0 + $0xb4] sm:$0xf]
  %v61 = vld [vmem:[%s0 + $0xb8] sm:$0xf]
  %v62 = vld [vmem:[%s0 + $0xbc] sm:$0xf]
  %v63 = vld [vmem:[%s0 + $0xc0] sm:$0xf]
  %v64 = vld [vmem:[%s0 + $0xc4] sm:$0xf]
  %v65 = vld [vmem:[%s0 + $0xc8] sm:$0xf]
  %v66 = vld [vmem:[%s0 + $0xcc] sm:$0xf]
  %v67 = vld [vmem:[%s0 + $0xd0] sm:$0xf]
  %v68 = vld [vmem:[%s0 + $0xd4] sm:$0xf]
  %v69 = vld [vmem:[%s0 + $0xd8] sm:$0xf]
  %v70 = vld [vmem:[%s0 + $0xdc] sm:$0xf]
  %v71 = vld [vmem:[%s0 + $0xe0] sm:$0xf]
  %v72 = vld [vmem:[%s0 + $0xe4] sm:$0xf]
  %v73 = vld [vmem:[%s0 + $0xe8] sm:$0xf]
  %v74 = vld [vmem:[%s0 + $0xec] sm:$0xf]
  %v75 = vld [vmem:[%s0 + $0xf0] sm:$0xf]
  %v76 = vld [vmem:[%s0 + $0xf4] sm:$0xf]
  %v77 = vld [vmem:[%s0 + $0xf8] sm:$0xf]
  %v78 = vld [vmem:[%s0 + $0xfc] sm:$0xf]
  %v79 = vld [vmem:[%s0 + $0x100] sm:$0xf]
  %v80 = vld [vmem:[%s0 + $0x104] sm:$0xf]
  %v81 = vld [vmem:[%s0 + $0x108] sm:$0xf]
  %v82 = vld [vmem:[%s0 + $0x10c] sm:$0xf]
  %v83 = vld [vmem:[%s0 + $0x110] sm:$0xf]
  %v84 = vld [vmem:[%s0 + $0x114] sm:$0xf]
  %v85 = vld [vmem:[%s0 + $0x118] sm:$0xf]
  %v86 = vld [vmem:[%s0 + $0x11c] sm:$0xf]
  %v87 = vld [vmem:[%s0 + $0x120] sm:$0xf]
  %v88 = vld [vmem:[%s0 + $0x124] sm:$0xf]
  %v89 = vld [vmem:[%s0 + $0x128] sm:$0xf]
  %v90 = vld [vmem:[%s0 + $0x12c] sm:$0xf]
  %v91 = vld [vmem:[%s0 + $0x130] sm:$0xf]
  %v92 = vld [vmem:[%s0 + $0x134] sm:$0xf]
  %v93 = vld [vmem:[%s0 + $0x138] sm:$0xf]
  %v94 = vld [vmem:[%s0 + $0x13c] sm:$0xf]
  %v95 = vld [vmem:[%s0 + $0x140] sm:$0xf]
  %v96 = vld [vmem:[%s0 + $0x144] sm:$0xf]
  %v97 = vld [vmem:[%s0 + $0x148] sm:$0xf]
  %v98 = vld [vmem:[%s0 + $0x14c] sm:$0xf]
  %v99 = vld [vmem:[%s0 + $0x150] sm:$0xf]
  %v100 = vld [vmem:[%s0 + $0x154] sm:$0xf]
  %v101 = vld [vmem:[%s0 + $0x158] sm:$0xf]
  %v102 = vld [vmem:[%s0 + $0x15c] sm:$0xf]
  %v103 = vld [vmem:[%s0 + $0x160] sm:$0xf]
  %v104 = vld [vmem:[%s0 + $0x164] sm:$0xf]
  %v105 = vld [vmem:[%s0 + $0x168] sm:$0xf]
  %v106 = vld [vmem:[%s0 + $0x16c] sm:$0xf]
  %v107 = vld [vmem:[%s0 + $0x170] sm:$0xf]
  %v108 = vld [vmem:[%s0 + $0x174] sm:$0xf]
  %v109 = vld [vmem:[%s0 + $0x178] sm:$0xf]
  %v110 = vld [vmem:[%s0 + $0x17c] sm:$0xf]
  %v111 = vld [vmem:[%s0 + $0x180] sm:$0xf]
  %v112 = vld [vmem:[%s0 + $0x184] sm:$0xf]
  %v113 = vld [vmem:[%s0 + $0x188] sm:$0xf]
  %v114 = vld [vmem:[%s0 + $0x18c] sm:$0xf]
  %v115 = vld [vmem:[%s0 + $0x190] sm:$0xf]
  %v116 = vld [vmem:[%s0 + $0x194] sm:$0xf]
  %v117 = vld [vmem:[%s0 + $0x198] sm:$0xf]
  %v118 = vld [vmem:[%s0 + $0x19c] sm:$0xf]
  %v119 = vld [vmem:[%s0 + $0x1a0] sm:$0xf]
  %v120 = vld [vmem:[%s0 + $0x1a4] sm:$0xf]
  %v121 = vld [vmem:[%s0 + $0x1a8] sm:$0xf]
  %v122 = vld [vmem:[%s0 + $0x1ac] sm:$0xf]
  %v123 = vld [vmem:[%s0 + $0x1b0] sm:$0xf]
  %v124 = vld [vmem:[%s0 + $0x1b4] sm:$0xf]
  %v125 = vld [vmem:[%s0 + $0x1b8] sm:$0xf]
  %v126 = vld [vmem:[%s0 + $0x1bc] sm:$0xf]
  %v127 = vld [vmem:[%s0 + $0x1c0] sm:$0xf]
  %v128 = vld [vmem:[%s0 + $0x1c4] sm:$0xf]
  %v129 = vld [vmem:[%s0 + $0x1c8] sm:$0xf]
  %v130 = vld [vmem:[%s0 + $0x1cc] sm:$0xf]
  %v131 = vld [vmem:[%s0 + $0x1d0] sm:$0xf]
  %v132 = vld [vmem:[%s0 + $0x1d4] sm:$0xf]
  %v133 = vld [vmem:[%s0 + $0x1d8] sm:$0xf]
  %v134 = vld [vmem:[%s0 + $0x1dc] sm:$0xf]
  %v135 = vld [vmem:[%s0 + $0x1e0] sm:$0xf]
  %v136 = vld [vmem:[%s0 + $0x1e4] sm:$0xf]
  %v137 = vld [vmem:[%s0 + $0x1e8] sm:$0xf]
  %v138 = vld [vmem:[%s0 + $0x1ec] sm:$0xf]
  %v139 = vld [vmem:[%s0 + $0x1f0] sm:$0xf]
  %v140 = vld [vmem:[%s0 + $0x1f4] sm:$0xf]
  %v141 = vld [vmem:[%s0 + $0x1f8] sm:$0xf]
  %v142 = vld [vmem:[%s0 + $0x1fc] sm:$0xf]
  %v143 = vld [vmem:[%s0 + $0x200] sm:$0xf]
  %v144 = vld [vmem:[%s0 + $0x204] sm:$0xf]
  %v145 = vld [vmem:[%s0 + $0x208] sm:$0xf]
  %v146 = vld [vmem:[%s0 + $0x20c] sm:$0xf]
  %v147 = vld [vmem:[%s0 + $0x210] sm:$0xf]
  %v148 = vld [vmem:[%s0 + $0x214] sm:$0xf]
  %v149 = vld [vmem:[%s0 + $0x218] sm:$0xf]
  %v150 = vld [vmem:[%s0 + $0x21c] sm:$0xf]
  %v151 = vld [vmem:[%s0 + $0x220] sm:$0xf]
  %v152 = vld [vmem:[%s0 + $0x224] sm:$0xf]
  %v153 = vld [vmem:[%s0 + $0x228] sm:$0xf]
  %v154 = vld [vmem:[%s0 + $0x22c] sm:$0xf]
  %v155 = vld [vmem:[%s0 + $0x230] sm:$0xf]
  %v156 = vld [vmem:[%s0 + $0x234] sm:$0xf]
  %v157 = vld [vmem:[%s0 + $0x238] sm:$0xf]
  %v158 = vld [vmem:[%s0 + $0x23c] sm:$0xf]
  %v159 = vld [vmem:[%s0 + $0x240] sm:$0xf]
  %v160 = vld [vmem:[%s0 + $0x244] sm:$0xf]
  %v161 = vld [vmem:[%s0 + $0x248] sm:$0xf]
  %v162 = vld [vmem:[%s0 + $0x24c] sm:$0xf]
  %v163 = vld [vmem:[%s0 + $0x250] sm:$0xf]
  %v164 = vld [vmem:[%s0 + $0x254] sm:$0xf]
  %v165 = vld [vmem:[%s0 + $0x258] sm:$0xf]
  %v166 = vld [vmem:[%s0 + $0x25c] sm:$0xf]
  %v167 = vld [vmem:[%s0 + $0x260] sm:$0xf]
  %v168 = vld [vmem:[%s0 + $0x264] sm:$0xf]
  %v169 = vld [vmem:[%s0 + $0x268] sm:$0xf]
  %v170 = vld [vmem:[%s0 + $0x26c] sm:$0xf]
  %v171 = vld [vmem:[%s0 + $0x270] sm:$0xf]
  %v172 = vld [vmem:[%s0 + $0x274] sm:$0xf]
  %v173 = vld [vmem:[%s0 + $0x278] sm:$0xf]
  %v174 = vld [vmem:[%s0 + $0x27c] sm:$0xf]
  %v175 = vld [vmem:[%s0 + $0x280] sm:$0xf]
  %v176 = vld [vmem:[%s0 + $0x284] sm:$0xf]
  %v177 = vld [vmem:[%s0 + $0x288] sm:$0xf]
  %v178 = vld [vmem:[%s0 + $0x28c] sm:$0xf]
  %v179 = vld [vmem:[%s0 + $0x290] sm:$0xf]
  %v180 = vld [vmem:[%s0 + $0x294] sm:$0xf]
  %v181 = vld [vmem:[%s0 + $0x298] sm:$0xf]
  %v182 = vld [vmem:[%s0 + $0x29c] sm:$0xf]
  %v183 = vld [vmem:[%s0 + $0x2a0] sm:$0xf]
  %v184 = vld [vmem:[%s0 + $0x2a4] sm:$0xf]
  %v185 = vld [vmem:[%s0 + $0x2a8] sm:$0xf]
  %v186 = vld [vmem:[%s0 + $0x2ac] sm:$0xf]
  %v187 = vld [vmem:[%s0 + $0x2b0] sm:$0xf]
  %v188 = vld [vmem:[%s0 + $0x2b4] sm:$0xf]
  %v189 = vld [vmem:[%s0 + $0x2b8] sm:$0xf]
  %v190 = vld [vmem:[%s0 + $0x2bc] sm:$0xf]
  %v191 = vld [vmem:[%s0 + $0x2c0] sm:$0xf]
  %v192 = vld [vmem:[%s0 + $0x2c4] sm:$0xf]
  %v193 = vld [vmem:[%s0 + $0x2c8] sm:$0xf]
  %v194 = vld [vmem:[%s0 + $0x2cc] sm:$0xf]
  %v195 = vld [vmem:[%s0 + $0x2d0] sm:$0xf]
  %v196 = vld [vmem:[%s0 + $0x2d4] sm:$0xf]
  %v197 = vld [vmem:[%s0 + $0x2d8] sm:$0xf]
  %v198 = vld [vmem:[%s0 + $0x2dc] sm:$0xf]
  %v199 = vld [vmem:[%s0 + $0x2e0] sm:$0xf]
  %v200 = vld [vmem:[%s0 + $0x2e4] sm:$0xf]
  %v201 = vld [vmem:[%s0 + $0x2e8] sm:$0xf]
  %v202 = vld [vmem:[%s0 + $0x2ec] sm:$0xf]
  %v203 = vld [vmem:[%s0 + $0x2f0] sm:$0xf]
  %v204 = vld [vmem:[%s0 + $0x2f4] sm:$0xf]
  %v205 = vld [vmem:[%s0 + $0x2f8] sm:$0xf]
  %v206 = vld [vmem:[%s0 + $0x2fc] sm:$0xf]
  %v207 = vld [vmem:[%s0 + $0x300] sm:$0xf]
  %v208 = vld [vmem:[%s0 + $0x304] sm:$0xf]
  %v209 = vld [vmem:[%s0 + $0x308] sm:$0xf]
  %v210 = vld [vmem:[%s0 + $0x30c] sm:$0xf]
  %v211 = vld [vmem:[%s0 + $0x310] sm:$0xf]
  %v212 = vld [vmem:[%s0 + $0x314] sm:$0xf]
  %v213 = vld [vmem:[%s0 + $0x318] sm:$0xf]
  %v214 = vld [vmem:[%s0 + $0x31c] sm:$0xf]
  %v215 = vld [vmem:[%s0 + $0x320] sm:$0xf]
  %v216 = vld [vmem:[%s0 + $0x324] sm:$0xf]
  %v217 = vld [vmem:[%s0 + $0x328] sm:$0xf]
  %v218 = vld [vmem:[%s0 + $0x32c] sm:$0xf]
  %v219 = vld [vmem:[%s0 + $0x330] sm:$0xf]
  %v220 = vld [vmem:[%s0 + $0x334] sm:$0xf]
  %v221 = vld [vmem:[%s0 + $0x338] sm:$0xf]
  %v222 = vld [vmem:[%s0 + $0x33c] sm:$0xf]
  %v223 = vld [vmem:[%s0 + $0x340] sm:$0xf]
  %v224 = vld [vmem:[%s0 + $0x344] sm:$0xf]
  %v225 = vld [vmem:[%s0 + $0x348] sm:$0xf]
  %v226 = vld [vmem:[%s0 + $0x34c] sm:$0xf]
  %v227 = vld [vmem:[%s0 + $0x350] sm:$0xf]
  %v228 = vld [vmem:[%s0 + $0x354] sm:$0xf]
  %v229 = vld [vmem:[%s0 + $0x358] sm:$0xf]
  %v230 = vld [vmem:[%s0 + $0x35c] sm:$0xf]
  %v231 = vld [vmem:[%s0 + $0x360] sm:$0xf]
  %v232 = vld [vmem:[%s0 + $0x364] sm:$0xf]
  %v233 = vld [vmem:[%s0 + $0x368] sm:$0xf]
  %v234 = vld [vmem:[%s0 + $0x36c] sm:$0xf]
  %v235 = vld [vmem:[%s0 + $0x370] sm:$0xf]
  %v236 = vld [vmem:[%s0 + $0x374] sm:$0xf]
  %v237 = vld [vmem:[%s0 + $0x378] sm:$0xf]
  %v238 = vld [vmem:[%s0 + $0x37c] sm:$0xf]
  %v239 = vld [vmem:[%s0 + $0x380] sm:$0xf]
  %v240 = vld [vmem:[%s0 + $0x384] sm:$0xf]
  %v241 = vld [vmem:[%s0 + $0x388] sm:$0xf]
  %v242 = vld [vmem:[%s0 + $0x38c] sm:$0xf]
  %v243 = vld [vmem:[%s0 + $0x390] sm:$0xf]
  %v244 = vld [vmem:[%s0 + $0x394] sm:$0xf]
  %v245 = vld [vmem:[%s0 + $0x398] sm:$0xf]
  %v246 = vld [vmem:[%s0 + $0x39c] sm:$0xf]
  %v247 = vld [vmem:[%s0 + $0x3a0] sm:$0xf]
  %v248 = vld [vmem:[%s0 + $0x3a4] sm:$0xf]
  %v249 = vld [vmem:[%s0 + $0x3a8] sm:$0xf]
  %v250 = vld [vmem:[%s0 + $0x3ac] sm:$0xf]
  %v251 = vld [vmem:[%s0 + $0x3b0] sm:$0xf]
  %v252 = vld [vmem:[%s0 + $0x3b4] sm:$0xf]
  %v253 = vld [vmem:[%s0 + $0x3b8] sm:$0xf]
  %v254 = vld [vmem:[%s0 + $0x3bc] sm:$0xf]
  %v255 = vld [vmem:[%s0 + $0x3c0] sm:$0xf]
  %v256 = vld [vmem:[%s0 + $0x3c4] sm:$0xf]
  %v257 = vld [vmem:[%s0 + $0x3c8] sm:$0xf]
  %v258 = vld [vmem:[%s0 + $0x3cc] sm:$0xf]
  %v259 = vld [vmem:[%s0 + $0x3d0] sm:$0xf]
  %v260 = vld [vmem:[%s0 + $0x3d4] sm:$0xf]
  %v261 = vld [vmem:[%s0 + $0x3d8] sm:$0xf]
  %v262 = vld [vmem:[%s0 + $0x3dc] sm:$0xf]
  %v263 = vld [vmem:[%s0 + $0x3e0] sm:$0xf]
  %v264 = vld [vmem:[%s0 + $0x3e4] sm:$0xf]
  %v265 = vld [vmem:[%s0 + $0x3e8] sm:$0xf]
  %v266 = vld [vmem:[%s0 + $0x3ec] sm:$0xf]
  %v267 = vld [vmem:[%s0 + $0x3f0] sm:$0xf]
  %v268 = vld [vmem:[%s0 + $0x3f4] sm:$0xf]
  %v269 = vld [vmem:[%s0 + $0x3f8] sm:$0xf]
  %v270 = vld [vmem:[%s0 + $0x3fc] sm:$0xf]
  %v271 = vld [vmem:[%s0 + $0x400] sm:$0xf]
  %v272 = vld [vmem:[%s0 + $0x404] sm:$0xf]
  %v273 = vld [vmem:[%s0 + $0x408] sm:$0xf]
  %v274 = vld [vmem:[%s0 + $0x40c] sm:$0xf]
  %v275 = vld [vmem:[%s0 + $0x410] sm:$0xf]
  %v276 = vld [vmem:[%s0 + $0x414] sm:$0xf]
  %v277 = vld [vmem:[%s0 + $0x418] sm:$0xf]
  %v278 = vld [vmem:[%s0 + $0x41c] sm:$0xf]
  %v279 = vld [vmem:[%s0 + $0x420] sm:$0xf]
  %v280 = vld [vmem:[%s0 + $0x424] sm:$0xf]
  %v281 = vld [vmem:[%s0 + $0x428] sm:$0xf]
  %v282 = vld [vmem:[%s0 + $0x42c] sm:$0xf]
  %v283 = vld [vmem:[%s0 + $0x430] sm:$0xf]
  %v284 = vld [vmem:[%s0 + $0x434] sm:$0xf]
  %v285 = vld [vmem:[%s0 + $0x438] sm:$0xf]
  %v286 = vld [vmem:[%s0 + $0x43c] sm:$0xf]
  %v287 = vld [vmem:[%s0 + $0x440] sm:$0xf]
  %v288 = vld [vmem:[%s0 + $0x444] sm:$0xf]
  %v289 = vld [vmem:[%s0 + $0x448] sm:$0xf]
  %v290 = vld [vmem:[%s0 + $0x44c] sm:$0xf]
  %v291 = vld [vmem:[%s0 + $0x450] sm:$0xf]
  %v292 = vld [vmem:[%s0 + $0x454] sm:$0xf]
  %v293 = vld [vmem:[%s0 + $0x458] sm:$0xf]
  %v294 = vld [vmem:[%s0 + $0x45c] sm:$0xf]
  %v295 = vld [vmem:[%s0 + $0x460] sm:$0xf]
  %v296 = vld [vmem:[%s0 + $0x464] sm:$0xf]
  %v297 = vld [vmem:[%s0 + $0x468] sm:$0xf]
  %v298 = vld [vmem:[%s0 + $0x46c] sm:$0xf]
  %v299 = vld [vmem:[%s0 + $0x470] sm:$0xf]
  %v300 = vld [vmem:[%s0 + $0x474] sm:$0xf]
  %v301 = vld [vmem:[%s0 + $0x478] sm:$0xf]
  %v302 = vld [vmem:[%s0 + $0x47c] sm:$0xf]
  %v303 = vld [vmem:[%s0 + $0x480] sm:$0xf]
  %v304 = vld [vmem:[%s0 + $0x484] sm:$0xf]
  %v305 = vld [vmem:[%s0 + $0x488] sm:$0xf]
  %v306 = vld [vmem:[%s0 + $0x48c] sm:$0xf]
  %v307 = vld [vmem:[%s0 + $0x490] sm:$0xf]
  %v308 = vld [vmem:[%s0 + $0x494] sm:$0xf]
  %v309 = vld [vmem:[%s0 + $0x498] sm:$0xf]
  %v310 = vld [vmem:[%s0 + $0x49c] sm:$0xf]
  %v311 = vld [vmem:[%s0 + $0x4a0] sm:$0xf]
  %v312 = vld [vmem:[%s0 + $0x4a4] sm:$0xf]
  %v313 = vld [vmem:[%s0 + $0x4a8] sm:$0xf]
  %v314 = vld [vmem:[%s0 + $0x4ac] sm:$0xf]
  %v315 = vld [vmem:[%s0 + $0x4b0] sm:$0xf]
  %v316 = vld [vmem:[%s0 + $0x4b4] sm:$0xf]
  %v317 = vld [vmem:[%s0 + $0x4b8] sm:$0xf]
  %v318 = vld [vmem:[%s0 + $0x4bc] sm:$0xf]
  %v319 = vld [vmem:[%s0 + $0x4c0] sm:$0xf]
  %v320 = vld [vmem:[%s0 + $0x4c4] sm:$0xf]
  %v321 = vld [vmem:[%s0 + $0x4c8] sm:$0xf]
  %v322 = vld [vmem:[%s0 + $0x4cc] sm:$0xf]
  %v323 = vld [vmem:[%s0 + $0x4d0] sm:$0xf]
  %v324 = vld [vmem:[%s0 + $0x4d4] sm:$0xf]
  %v325 = vld [vmem:[%s0 + $0x4d8] sm:$0xf]
  %v326 = vld [vmem:[%s0 + $0x4dc] sm:$0xf]
  %v327 = vld [vmem:[%s0 + $0x4e0] sm:$0xf]
  %v328 = vld [vmem:[%s0 + $0x4e4] sm:$0xf]
  %v329 = vld [vmem:[%s0 + $0x4e8] sm:$0xf]
  %v330 = vld [vmem:[%s0 + $0x4ec] sm:$0xf]
  %v331 = vld [vmem:[%s0 + $0x4f0] sm:$0xf]
  %v332 = vld [vmem:[%s0 + $0x4f4] sm:$0xf]
  %v333 = vld [vmem:[%s0 + $0x4f8] sm:$0xf]
  %v334 = vld [vmem:[%s0 + $0x4fc] sm:$0xf]
  %v335 = vld [vmem:[%s0 + $0x500] sm:$0xf]
  %v336 = vld [vmem:[%s0 + $0x504] sm:$0xf]
  %v337 = vld [vmem:[%s0 + $0x508] sm:$0xf]
  %v338 = vld [vmem:[%s0 + $0x50c] sm:$0xf]
  %v339 = vld [vmem:[%s0 + $0x510] sm:$0xf]
  %v340 = vld [vmem:[%s0 + $0x514] sm:$0xf]
  %v341 = vld [vmem:[%s0 + $0x518] sm:$0xf]
  %v342 = vld [vmem:[%s0 + $0x51c] sm:$0xf]
  %v343 = vld [vmem:[%s0 + $0x520] sm:$0xf]
  %v344 = vld [vmem:[%s0 + $0x524] sm:$0xf]
  %v345 = vld [vmem:[%s0 + $0x528] sm:$0xf]
  %v346 = vld [vmem:[%s0 + $0x52c] sm:$0xf]
  %v347 = vld [vmem:[%s0 + $0x530] sm:$0xf]
  %v348 = vld [vmem:[%s0 + $0x534] sm:$0xf]
  %v349 = vld [vmem:[%s0 + $0x538] sm:$0xf]
  %v350 = vld [vmem:[%s0 + $0x53c] sm:$0xf]
  %v351 = vld [vmem:[%s0 + $0x540] sm:$0xf]
  %v352 = vld [vmem:[%s0 + $0x544] sm:$0xf]
  %v353 = vld [vmem:[%s0 + $0x548] sm:$0xf]
  %v354 = vld [vmem:[%s0 + $0x54c] sm:$0xf]
  %v355 = vld [vmem:[%s0 + $0x550] sm:$0xf]
  %v356 = vld [vmem:[%s0 + $0x554] sm:$0xf]
  %v357 = vld [vmem:[%s0 + $0x558] sm:$0xf]
  %v358 = vld [vmem:[%s0 + $0x55c] sm:$0xf]
  %v359 = vld [vmem:[%s0 + $0x560] sm:$0xf]
  %v360 = vld [vmem:[%s0 + $0x564] sm:$0xf]
  %v361 = vld [vmem:[%s0 + $0x568] sm:$0xf]
  %v362 = vld [vmem:[%s0 + $0x56c] sm:$0xf]
  %v363 = vld [vmem:[%s0 + $0x570] sm:$0xf]
  %v364 = vld [vmem:[%s0 + $0x574] sm:$0xf]
  %v365 = vld [vmem:[%s0 + $0x578] sm:$0xf]
  %v366 = vld [vmem:[%s0 + $0x57c] sm:$0xf]
  %v367 = vld [vmem:[%s0 + $0x580] sm:$0xf]
  %v368 = vld [vmem:[%s0 + $0x584] sm:$0xf]
  %v369 = vld [vmem:[%s0 + $0x588] sm:$0xf]
  %v370 = vld [vmem:[%s0 + $0x58c] sm:$0xf]
  %v371 = vld [vmem:[%s0 + $0x590] sm:$0xf]
  %v372 = vld [vmem:[%s0 + $0x594] sm:$0xf]
  %v373 = vld [vmem:[%s0 + $0x598] sm:$0xf]
  %v374 = vld [vmem:[%s0 + $0x59c] sm:$0xf]
  %v375 = vld [vmem:[%s0 + $0x5a0] sm:$0xf]
  %v376 = vld [vmem:[%s0 + $0x5a4] sm:$0xf]
  %v377 = vld [vmem:[%s0 + $0x5a8] sm:$0xf]
  %v378 = vld [vmem:[%s0 + $0x5ac] sm:$0xf]
  %v379 = vld [vmem:[%s0 + $0x5b0] sm:$0xf]
  %v380 = vld [vmem:[%s0 + $0x5b4] sm:$0xf]
  %v381 = vld [vmem:[%s0 + $0x5b8] sm:$0xf]
  %v382 = vld [vmem:[%s0 + $0x5bc] sm:$0xf]
  %v383 = vld [vmem:[%s0 + $0x5c0] sm:$0xf]
  %v384 = vld [vmem:[%s0 + $0x5c4] sm:$0xf]
  %v385 = vld [vmem:[%s0 + $0x5c8] sm:$0xf]
  %v386 = vld [vmem:[%s0 + $0x5cc] sm:$0xf]
  %v387 = vld [vmem:[%s0 + $0x5d0] sm:$0xf]
  %v388 = vld [vmem:[%s0 + $0x5d4] sm:$0xf]
  %v389 = vld [vmem:[%s0 + $0x5d8] sm:$0xf]
  %v390 = vld [vmem:[%s0 + $0x5dc] sm:$0xf]
  %v391 = vld [vmem:[%s0 + $0x5e0] sm:$0xf]
  %v392 = vld [vmem:[%s0 + $0x5e4] sm:$0xf]
  %v393 = vld [vmem:[%s0 + $0x5e8] sm:$0xf]
  %v394 = vld [vmem:[%s0 + $0x5ec] sm:$0xf]
  %v395 = vld [vmem:[%s0 + $0x5f0] sm:$0xf]
  %v396 = vld [vmem:[%s0 + $0x5f4] sm:$0xf]
  %v397 = vld [vmem:[%s0 + $0x5f8] sm:$0xf]
  %v398 = vld [vmem:[%s0 + $0x5fc] sm:$0xf]
  %v399 = vld [vmem:[%s0 + $0x600] sm:$0xf]
  %v400 = vld [vmem:[%s0 + $0x604] sm:$0xf]
  %v401 = vld [vmem:[%s0 + $0x608] sm:$0xf]
  %v402 = vld [vmem:[%s0 + $0x60c] sm:$0xf]
  %v403 = vld [vmem:[%s0 + $0x610] sm:$0xf]
  %v404 = vld [vmem:[%s0 + $0x614] sm:$0xf]
  %v405 = vld [vmem:[%s0 + $0x618] sm:$0xf]
  %v406 = vld [vmem:[%s0 + $0x61c] sm:$0xf]
  %v407 = vld [vmem:[%s0 + $0x620] sm:$0xf]
  %v408 = vld [vmem:[%s0 + $0x624] sm:$0xf]
  %v409 = vld [vmem:[%s0 + $0x628] sm:$0xf]
  %v410 = vld [vmem:[%s0 + $0x62c] sm:$0xf]
  %v411 = vld [vmem:[%s0 + $0x630] sm:$0xf]
  %v412 = vld [vmem:[%s0 + $0x634] sm:$0xf]
  %v413 = vld [vmem:[%s0 + $0x638] sm:$0xf]
  %v414 = vld [vmem:[%s0 + $0x63c] sm:$0xf]
  %v415 = vld [vmem:[%s0 + $0x640] sm:$0xf]
  %v416 = vld [vmem:[%s0 + $0x644] sm:$0xf]
  %v417 = vld [vmem:[%s0 + $0x648] sm:$0xf]
  %v418 = vld [vmem:[%s0 + $0x64c] sm:$0xf]
  %v419 = vld [vmem:[%s0 + $0x650] sm:$0xf]
  %v420 = vld [vmem:[%s0 + $0x654] sm:$0xf]
  %v421 = vld [vmem:[%s0 + $0x658] sm:$0xf]
  %v422 = vld [vmem:[%s0 + $0x65c] sm:$0xf]
  %v423 = vld [vmem:[%s0 + $0x660] sm:$0xf]
  %v424 = vld [vmem:[%s0 + $0x664] sm:$0xf]
  %v425 = vld [vmem:[%s0 + $0x668] sm:$0xf]
  %v426 = vld [vmem:[%s0 + $0x66c] sm:$0xf]
  %v427 = vld [vmem:[%s0 + $0x670] sm:$0xf]
  %v428 = vld [vmem:[%s0 + $0x674] sm:$0xf]
  %v429 = vld [vmem:[%s0 + $0x678] sm:$0xf]
  %v430 = vld [vmem:[%s0 + $0x67c] sm:$0xf]
  %v431 = vld [vmem:[%s0 + $0x680] sm:$0xf]
  %v432 = vld [vmem:[%s0 + $0x684] sm:$0xf]
  %v433 = vld [vmem:[%s0 + $0x688] sm:$0xf]
  %v434 = vld [vmem:[%s0 + $0x68c] sm:$0xf]
  %v435 = vld [vmem:[%s0 + $0x690] sm:$0xf]
  %v436 = vld [vmem:[%s0 + $0x694] sm:$0xf]
  %v437 = vld [vmem:[%s0 + $0x698] sm:$0xf]
  %v438 = vld [vmem:[%s0 + $0x69c] sm:$0xf]
  %v439 = vld [vmem:[%s0 + $0x6a0] sm:$0xf]
  %v440 = vld [vmem:[%s0 + $0x6a4] sm:$0xf]
  %v441 = vld [vmem:[%s0 + $0x6a8] sm:$0xf]
  %v442 = vld [vmem:[%s0 + $0x6ac] sm:$0xf]
  %v443 = vld [vmem:[%s0 + $0x6b0] sm:$0xf]
  %v444 = vld [vmem:[%s0 + $0x6b4] sm:$0xf]
  %v445 = vld [vmem:[%s0 + $0x6b8] sm:$0xf]
  %v446 = vld [vmem:[%s0 + $0x6bc] sm:$0xf]
  %v447 = vld [vmem:[%s0 + $0x6c0] sm:$0xf]
  %v448 = vld [vmem:[%s0 + $0x6c4] sm:$0xf]
  %v449 = vld [vmem:[%s0 + $0x6c8] sm:$0xf]
  %v450 = vld [vmem:[%s0 + $0x6cc] sm:$0xf]
  %v451 = vld [vmem:[%s0 + $0x6d0] sm:$0xf]
  %v452 = vld [vmem:[%s0 + $0x6d4] sm:$0xf]
  %v453 = vld [vmem:[%s0 + $0x6d8] sm:$0xf]
  %v454 = vld [vmem:[%s0 + $0x6dc] sm:$0xf]
  %v455 = vld [vmem:[%s0 + $0x6e0] sm:$0xf]
  %v456 = vld [vmem:[%s0 + $0x6e4] sm:$0xf]
  %v457 = vld [vmem:[%s0 + $0x6e8] sm:$0xf]
  %v458 = vld [vmem:[%s0 + $0x6ec] sm:$0xf]
  %v459 = vld [vmem:[%s0 + $0x6f0] sm:$0xf]
  %v460 = vld [vmem:[%s0 + $0x6f4] sm:$0xf]
  %v461 = vld [vmem:[%s0 + $0x6f8] sm:$0xf]
  %v462 = vld [vmem:[%s0 + $0x6fc] sm:$0xf]
  %v463 = vld [vmem:[%s0 + $0x700] sm:$0xf]
  %v464 = vld [vmem:[%s0 + $0x704] sm:$0xf]
  %v465 = vld [vmem:[%s0 + $0x708] sm:$0xf]
  %v466 = vld [vmem:[%s0 + $0x70c] sm:$0xf]
  %v467 = vld [vmem:[%s0 + $0x710] sm:$0xf]
  %v468 = vld [vmem:[%s0 + $0x714] sm:$0xf]
  %v469 = vld [vmem:[%s0 + $0x718] sm:$0xf]
  %v470 = vld [vmem:[%s0 + $0x71c] sm:$0xf]
  %v471 = vld [vmem:[%s0 + $0x720] sm:$0xf]
  %v472 = vld [vmem:[%s0 + $0x724] sm:$0xf]
  %v473 = vld [vmem:[%s0 + $0x728] sm:$0xf]
  %v474 = vld [vmem:[%s0 + $0x72c] sm:$0xf]
  %v475 = vld [vmem:[%s0 + $0x730] sm:$0xf]
  %v476 = vld [vmem:[%s0 + $0x734] sm:$0xf]
  %v477 = vld [vmem:[%s0 + $0x738] sm:$0xf]
  %v478 = vld [vmem:[%s0 + $0x73c] sm:$0xf]
  %v479 = vld [vmem:[%s0 + $0x740] sm:$0xf]
  %v480 = vld [vmem:[%s0 + $0x744] sm:$0xf]
  %v481 = vld [vmem:[%s0 + $0x748] sm:$0xf]
  %v482 = vld [vmem:[%s0 + $0x74c] sm:$0xf]
  %v483 = vld [vmem:[%s0 + $0x750] sm:$0xf]
  %v484 = vld [vmem:[%s0 + $0x754] sm:$0xf]
  %v485 = vld [vmem:[%s0 + $0x758] sm:$0xf]
  %v486 = vld [vmem:[%s0 + $0x75c] sm:$0xf]
  %v487 = vld [vmem:[%s0 + $0x760] sm:$0xf]
  %v488 = vld [vmem:[%s0 + $0x764] sm:$0xf]
  %v489 = vld [vmem:[%s0 + $0x768] sm:$0xf]
  %v490 = vld [vmem:[%s0 + $0x76c] sm:$0xf]
  %v491 = vld [vmem:[%s0 + $0x770] sm:$0xf]
  %v492 = vld [vmem:[%s0 + $0x774] sm:$0xf]
  %v493 = vld [vmem:[%s0 + $0x778] sm:$0xf]
  %v494 = vld [vmem:[%s0 + $0x77c] sm:$0xf]
  %v495 = vld [vmem:[%s0 + $0x780] sm:$0xf]
  %v496 = vld [vmem:[%s0 + $0x784] sm:$0x7]
  %v497 = vld [vmem:[%s1] sm:$0xf]
  %v498 = vld [vmem:[%s1 + $0x4] sm:$0xf]
  %v499 = vld [vmem:[%s1 + $0x8] sm:$0xf]
  %v500 = vld [vmem:[%s1 + $0xc] sm:$0xf]
  %v501 = vld [vmem:[%s1 + $0x10] sm:$0xf]
  %v502 = vld [vmem:[%s1 + $0x14] sm:$0xf]
  %v503 = vld [vmem:[%s1 + $0x18] sm:$0xf]
  %v504 = vld [vmem:[%s1 + $0x1c] sm:$0xf]
  %v505 = vld [vmem:[%s2] sm:$0x1]
  %v507 = vlaneseq
  %v508 = vshrl.u32 %v507, 7
  %v509 = vsub.s32 0, %v508
  %v510 = vrot.slane %v505, %v509
  %v994 = vunpack.c.l.b16 %v15
  %v995 = vunpack.c.l.b16 %v16
  %v996 = vunpack.c.l.b16 %v17
  %v997 = vunpack.c.l.b16 %v18
  %v998 = vunpack.c.l.b16 %v19
  %v999 = vunpack.c.l.b16 %v20
  %v1000 = vunpack.c.l.b16 %v21
  %v1001 = vunpack.c.l.b16 %v22
  %v1002 = vunpack.c.l.b16 %v23
  %v1003 = vunpack.c.l.b16 %v24
  %v1004 = vunpack.c.l.b16 %v25
  %v1005 = vunpack.c.l.b16 %v26
  %v1006 = vunpack.c.l.b16 %v27
  %v1007 = vunpack.c.l.b16 %v28
  %v1008 = vunpack.c.l.b16 %v29
  %v1009 = vunpack.c.l.b16 %v30
  %v1010 = vunpack.c.l.b16 %v31
  %v1011 = vunpack.c.l.b16 %v32
  %v1012 = vunpack.c.l.b16 %v33
  %v1013 = vunpack.c.l.b16 %v34
  %v1014 = vunpack.c.l.b16 %v35
  %v1015 = vunpack.c.l.b16 %v36
  %v1016 = vunpack.c.l.b16 %v37
  %v1017 = vunpack.c.l.b16 %v38
  %v1018 = vunpack.c.l.b16 %v39
  %v1019 = vunpack.c.l.b16 %v40
  %v1020 = vunpack.c.l.b16 %v41
  %v1021 = vunpack.c.l.b16 %v42
  %v1022 = vunpack.c.l.b16 %v43
  %v1023 = vunpack.c.l.b16 %v44
  %v1024 = vunpack.c.l.b16 %v45
  %v1025 = vunpack.c.l.b16 %v46
  %v1026 = vunpack.c.l.b16 %v47
  %v1027 = vunpack.c.l.b16 %v48
  %v1028 = vunpack.c.l.b16 %v49
  %v1029 = vunpack.c.l.b16 %v50
  %v1030 = vunpack.c.l.b16 %v51
  %v1031 = vunpack.c.l.b16 %v52
  %v1032 = vunpack.c.l.b16 %v53
  %v1033 = vunpack.c.l.b16 %v54
  %v1034 = vunpack.c.l.b16 %v55
  %v1035 = vunpack.c.l.b16 %v56
  %v1036 = vunpack.c.l.b16 %v57
  %v1037 = vunpack.c.l.b16 %v58
  %v1038 = vunpack.c.l.b16 %v59
  %v1039 = vunpack.c.l.b16 %v60
  %v1040 = vunpack.c.l.b16 %v61
  %v1041 = vunpack.c.l.b16 %v62
  %v1042 = vunpack.c.l.b16 %v63
  %v1043 = vunpack.c.l.b16 %v64
  %v1044 = vunpack.c.l.b16 %v65
  %v1045 = vunpack.c.l.b16 %v66
  %v1046 = vunpack.c.l.b16 %v67
  %v1047 = vunpack.c.l.b16 %v68
  %v1048 = vunpack.c.l.b16 %v69
  %v1049 = vunpack.c.l.b16 %v70
  %v1050 = vunpack.c.l.b16 %v71
  %v1051 = vunpack.c.l.b16 %v72
  %v1052 = vunpack.c.l.b16 %v73
  %v1053 = vunpack.c.l.b16 %v74
  %v1054 = vunpack.c.l.b16 %v75
  %v1055 = vunpack.c.l.b16 %v76
  %v1056 = vunpack.c.l.b16 %v77
  %v1057 = vunpack.c.l.b16 %v78
  %v1058 = vunpack.c.l.b16 %v79
  %v1059 = vunpack.c.l.b16 %v80
  %v1060 = vunpack.c.l.b16 %v81
  %v1061 = vunpack.c.l.b16 %v82
  %v1062 = vunpack.c.l.b16 %v83
  %v1063 = vunpack.c.l.b16 %v84
  %v1064 = vunpack.c.l.b16 %v85
  %v1065 = vunpack.c.l.b16 %v86
  %v1066 = vunpack.c.l.b16 %v87
  %v1067 = vunpack.c.l.b16 %v88
  %v1068 = vunpack.c.l.b16 %v89
  %v1069 = vunpack.c.l.b16 %v90
  %v1070 = vunpack.c.l.b16 %v91
  %v1071 = vunpack.c.l.b16 %v92
  %v1072 = vunpack.c.l.b16 %v93
  %v1073 = vunpack.c.l.b16 %v94
  %v1074 = vunpack.c.l.b16 %v95
  %v1075 = vunpack.c.l.b16 %v96
  %v1076 = vunpack.c.l.b16 %v97
  %v1077 = vunpack.c.l.b16 %v98
  %v1078 = vunpack.c.l.b16 %v99
  %v1079 = vunpack.c.l.b16 %v100
  %v1080 = vunpack.c.l.b16 %v101
  %v1081 = vunpack.c.l.b16 %v102
  %v1082 = vunpack.c.l.b16 %v103
  %v1083 = vunpack.c.l.b16 %v104
  %v1084 = vunpack.c.l.b16 %v105
  %v1085 = vunpack.c.l.b16 %v106
  %v1086 = vunpack.c.l.b16 %v107
  %v1087 = vunpack.c.l.b16 %v108
  %v1088 = vunpack.c.l.b16 %v109
  %v1089 = vunpack.c.l.b16 %v110
  %v1090 = vunpack.c.l.b16 %v111
  %v1091 = vunpack.c.l.b16 %v112
  %v1092 = vunpack.c.l.b16 %v113
  %v1093 = vunpack.c.l.b16 %v114
  %v1094 = vunpack.c.l.b16 %v115
  %v1095 = vunpack.c.l.b16 %v116
  %v1096 = vunpack.c.l.b16 %v117
  %v1097 = vunpack.c.l.b16 %v118
  %v1098 = vunpack.c.l.b16 %v119
  %v1099 = vunpack.c.l.b16 %v120
  %v1100 = vunpack.c.l.b16 %v121
  %v1101 = vunpack.c.l.b16 %v122
  %v1102 = vunpack.c.l.b16 %v123
  %v1103 = vunpack.c.l.b16 %v124
  %v1104 = vunpack.c.l.b16 %v125
  %v1105 = vunpack.c.l.b16 %v126
  %v1106 = vunpack.c.l.b16 %v127
  %v1107 = vunpack.c.l.b16 %v128
  %v1108 = vunpack.c.l.b16 %v129
  %v1109 = vunpack.c.l.b16 %v130
  %v1110 = vunpack.c.l.b16 %v131
  %v1111 = vunpack.c.l.b16 %v132
  %v1112 = vunpack.c.l.b16 %v133
  %v1113 = vunpack.c.l.b16 %v134
  %v1114 = vunpack.c.l.b16 %v135
  %v1115 = vunpack.c.l.b16 %v136
  %v1116 = vunpack.c.l.b16 %v137
  %v1117 = vunpack.c.l.b16 %v138
  %v1118 = vunpack.c.l.b16 %v139
  %v1119 = vunpack.c.l.b16 %v140
  %v1120 = vunpack.c.l.b16 %v141
  %v1121 = vunpack.c.l.b16 %v142
  %v1122 = vunpack.c.l.b16 %v143
  %v1123 = vunpack.c.l.b16 %v144
  %v1124 = vunpack.c.l.b16 %v145
  %v1125 = vunpack.c.l.b16 %v146
  %v1126 = vunpack.c.l.b16 %v147
  %v1127 = vunpack.c.l.b16 %v148
  %v1128 = vunpack.c.l.b16 %v149
  %v1129 = vunpack.c.l.b16 %v150
  %v1130 = vunpack.c.l.b16 %v151
  %v1131 = vunpack.c.l.b16 %v152
  %v1132 = vunpack.c.l.b16 %v153
  %v1133 = vunpack.c.l.b16 %v154
  %v1134 = vunpack.c.l.b16 %v155
  %v1135 = vunpack.c.l.b16 %v156
  %v1136 = vunpack.c.l.b16 %v157
  %v1137 = vunpack.c.l.b16 %v158
  %v1138 = vunpack.c.l.b16 %v159
  %v1139 = vunpack.c.l.b16 %v160
  %v1140 = vunpack.c.l.b16 %v161
  %v1141 = vunpack.c.l.b16 %v162
  %v1142 = vunpack.c.l.b16 %v163
  %v1143 = vunpack.c.l.b16 %v164
  %v1144 = vunpack.c.l.b16 %v165
  %v1145 = vunpack.c.l.b16 %v166
  %v1146 = vunpack.c.l.b16 %v167
  %v1147 = vunpack.c.l.b16 %v168
  %v1148 = vunpack.c.l.b16 %v169
  %v1149 = vunpack.c.l.b16 %v170
  %v1150 = vunpack.c.l.b16 %v171
  %v1151 = vunpack.c.l.b16 %v172
  %v1152 = vunpack.c.l.b16 %v173
  %v1153 = vunpack.c.l.b16 %v174
  %v1154 = vunpack.c.l.b16 %v175
  %v1155 = vunpack.c.l.b16 %v176
  %v1156 = vunpack.c.l.b16 %v177
  %v1157 = vunpack.c.l.b16 %v178
  %v1158 = vunpack.c.l.b16 %v179
  %v1159 = vunpack.c.l.b16 %v180
  %v1160 = vunpack.c.l.b16 %v181
  %v1161 = vunpack.c.l.b16 %v182
  %v1162 = vunpack.c.l.b16 %v183
  %v1163 = vunpack.c.l.b16 %v184
  %v1164 = vunpack.c.l.b16 %v185
  %v1165 = vunpack.c.l.b16 %v186
  %v1166 = vunpack.c.l.b16 %v187
  %v1167 = vunpack.c.l.b16 %v188
  %v1168 = vunpack.c.l.b16 %v189
  %v1169 = vunpack.c.l.b16 %v190
  %v1170 = vunpack.c.l.b16 %v191
  %v1171 = vunpack.c.l.b16 %v192
  %v1172 = vunpack.c.l.b16 %v193
  %v1173 = vunpack.c.l.b16 %v194
  %v1174 = vunpack.c.l.b16 %v195
  %v1175 = vunpack.c.l.b16 %v196
  %v1176 = vunpack.c.l.b16 %v197
  %v1177 = vunpack.c.l.b16 %v198
  %v1178 = vunpack.c.l.b16 %v199
  %v1179 = vunpack.c.l.b16 %v200
  %v1180 = vunpack.c.l.b16 %v201
  %v1181 = vunpack.c.l.b16 %v202
  %v1182 = vunpack.c.l.b16 %v203
  %v1183 = vunpack.c.l.b16 %v204
  %v1184 = vunpack.c.l.b16 %v205
  %v1185 = vunpack.c.l.b16 %v206
  %v1186 = vunpack.c.l.b16 %v207
  %v1187 = vunpack.c.l.b16 %v208
  %v1188 = vunpack.c.l.b16 %v209
  %v1189 = vunpack.c.l.b16 %v210
  %v1190 = vunpack.c.l.b16 %v211
  %v1191 = vunpack.c.l.b16 %v212
  %v1192 = vunpack.c.l.b16 %v213
  %v1193 = vunpack.c.l.b16 %v214
  %v1194 = vunpack.c.l.b16 %v215
  %v1195 = vunpack.c.l.b16 %v216
  %v1196 = vunpack.c.l.b16 %v217
  %v1197 = vunpack.c.l.b16 %v218
  %v1198 = vunpack.c.l.b16 %v219
  %v1199 = vunpack.c.l.b16 %v220
  %v1200 = vunpack.c.l.b16 %v221
  %v1201 = vunpack.c.l.b16 %v222
  %v1202 = vunpack.c.l.b16 %v223
  %v1203 = vunpack.c.l.b16 %v224
  %v1204 = vunpack.c.l.b16 %v225
  %v1205 = vunpack.c.l.b16 %v226
  %v1206 = vunpack.c.l.b16 %v227
  %v1207 = vunpack.c.l.b16 %v228
  %v1208 = vunpack.c.l.b16 %v229
  %v1209 = vunpack.c.l.b16 %v230
  %v1210 = vunpack.c.l.b16 %v231
  %v1211 = vunpack.c.l.b16 %v232
  %v1212 = vunpack.c.l.b16 %v233
  %v1213 = vunpack.c.l.b16 %v234
  %v1214 = vunpack.c.l.b16 %v235
  %v1215 = vunpack.c.l.b16 %v236
  %v1216 = vunpack.c.l.b16 %v237
  %v1217 = vunpack.c.l.b16 %v238
  %v1218 = vunpack.c.l.b16 %v239
  %v1219 = vunpack.c.l.b16 %v240
  %v1220 = vunpack.c.l.b16 %v241
  %v1221 = vunpack.c.l.b16 %v242
  %v1222 = vunpack.c.l.b16 %v243
  %v1223 = vunpack.c.l.b16 %v244
  %v1224 = vunpack.c.l.b16 %v245
  %v1225 = vunpack.c.l.b16 %v246
  %v1226 = vunpack.c.l.b16 %v247
  %v1227 = vunpack.c.l.b16 %v248
  %v1228 = vunpack.c.l.b16 %v249
  %v1229 = vunpack.c.l.b16 %v250
  %v1230 = vunpack.c.l.b16 %v251
  %v1231 = vunpack.c.l.b16 %v252
  %v1232 = vunpack.c.l.b16 %v253
  %v1233 = vunpack.c.l.b16 %v254
  %v1234 = vunpack.c.l.b16 %v255
  %v1235 = vunpack.c.l.b16 %v256
  %v1236 = vunpack.c.l.b16 %v257
  %v1237 = vunpack.c.l.b16 %v258
  %v1238 = vunpack.c.l.b16 %v259
  %v1239 = vunpack.c.l.b16 %v260
  %v1240 = vunpack.c.l.b16 %v261
  %v1241 = vunpack.c.l.b16 %v262
  %v1242 = vunpack.c.l.b16 %v263
  %v1243 = vunpack.c.l.b16 %v264
  %v1244 = vunpack.c.l.b16 %v265
  %v1245 = vunpack.c.l.b16 %v266
  %v1246 = vunpack.c.l.b16 %v267
  %v1247 = vunpack.c.l.b16 %v268
  %v1248 = vunpack.c.l.b16 %v269
  %v1249 = vunpack.c.l.b16 %v270
  %v1250 = vunpack.c.l.b16 %v271
  %v1251 = vunpack.c.l.b16 %v272
  %v1252 = vunpack.c.l.b16 %v273
  %v1253 = vunpack.c.l.b16 %v274
  %v1254 = vunpack.c.l.b16 %v275
  %v1255 = vunpack.c.l.b16 %v276
  %v1256 = vunpack.c.l.b16 %v277
  %v1257 = vunpack.c.l.b16 %v278
  %v1258 = vunpack.c.l.b16 %v279
  %v1259 = vunpack.c.l.b16 %v280
  %v1260 = vunpack.c.l.b16 %v281
  %v1261 = vunpack.c.l.b16 %v282
  %v1262 = vunpack.c.l.b16 %v283
  %v1263 = vunpack.c.l.b16 %v284
  %v1264 = vunpack.c.l.b16 %v285
  %v1265 = vunpack.c.l.b16 %v286
  %v1266 = vunpack.c.l.b16 %v287
  %v1267 = vunpack.c.l.b16 %v288
  %v1268 = vunpack.c.l.b16 %v289
  %v1269 = vunpack.c.l.b16 %v290
  %v1270 = vunpack.c.l.b16 %v291
  %v1271 = vunpack.c.l.b16 %v292
  %v1272 = vunpack.c.l.b16 %v293
  %v1273 = vunpack.c.l.b16 %v294
  %v1274 = vunpack.c.l.b16 %v295
  %v1275 = vunpack.c.l.b16 %v296
  %v1276 = vunpack.c.l.b16 %v297
  %v1277 = vunpack.c.l.b16 %v298
  %v1278 = vunpack.c.l.b16 %v299
  %v1279 = vunpack.c.l.b16 %v300
  %v1280 = vunpack.c.l.b16 %v301
  %v1281 = vunpack.c.l.b16 %v302
  %v1282 = vunpack.c.l.b16 %v303
  %v1283 = vunpack.c.l.b16 %v304
  %v1284 = vunpack.c.l.b16 %v305
  %v1285 = vunpack.c.l.b16 %v306
  %v1286 = vunpack.c.l.b16 %v307
  %v1287 = vunpack.c.l.b16 %v308
  %v1288 = vunpack.c.l.b16 %v309
  %v1289 = vunpack.c.l.b16 %v310
  %v1290 = vunpack.c.l.b16 %v311
  %v1291 = vunpack.c.l.b16 %v312
  %v1292 = vunpack.c.l.b16 %v313
  %v1293 = vunpack.c.l.b16 %v314
  %v1294 = vunpack.c.l.b16 %v315
  %v1295 = vunpack.c.l.b16 %v316
  %v1296 = vunpack.c.l.b16 %v317
  %v1297 = vunpack.c.l.b16 %v318
  %v1298 = vunpack.c.l.b16 %v319
  %v1299 = vunpack.c.l.b16 %v320
  %v1300 = vunpack.c.l.b16 %v321
  %v1301 = vunpack.c.l.b16 %v322
  %v1302 = vunpack.c.l.b16 %v323
  %v1303 = vunpack.c.l.b16 %v324
  %v1304 = vunpack.c.l.b16 %v325
  %v1305 = vunpack.c.l.b16 %v326
  %v1306 = vunpack.c.l.b16 %v327
  %v1307 = vunpack.c.l.b16 %v328
  %v1308 = vunpack.c.l.b16 %v329
  %v1309 = vunpack.c.l.b16 %v330
  %v1310 = vunpack.c.l.b16 %v331
  %v1311 = vunpack.c.l.b16 %v332
  %v1312 = vunpack.c.l.b16 %v333
  %v1313 = vunpack.c.l.b16 %v334
  %v1314 = vunpack.c.l.b16 %v335
  %v1315 = vunpack.c.l.b16 %v336
  %v1316 = vunpack.c.l.b16 %v337
  %v1317 = vunpack.c.l.b16 %v338
  %v1318 = vunpack.c.l.b16 %v339
  %v1319 = vunpack.c.l.b16 %v340
  %v1320 = vunpack.c.l.b16 %v341
  %v1321 = vunpack.c.l.b16 %v342
  %v1322 = vunpack.c.l.b16 %v343
  %v1323 = vunpack.c.l.b16 %v344
  %v1324 = vunpack.c.l.b16 %v345
  %v1325 = vunpack.c.l.b16 %v346
  %v1326 = vunpack.c.l.b16 %v347
  %v1327 = vunpack.c.l.b16 %v348
  %v1328 = vunpack.c.l.b16 %v349
  %v1329 = vunpack.c.l.b16 %v350
  %v1330 = vunpack.c.l.b16 %v351
  %v1331 = vunpack.c.l.b16 %v352
  %v1332 = vunpack.c.l.b16 %v353
  %v1333 = vunpack.c.l.b16 %v354
  %v1334 = vunpack.c.l.b16 %v355
  %v1335 = vunpack.c.l.b16 %v356
  %v1336 = vunpack.c.l.b16 %v357
  %v1337 = vunpack.c.l.b16 %v358
  %v1338 = vunpack.c.l.b16 %v359
  %v1339 = vunpack.c.l.b16 %v360
  %v1340 = vunpack.c.l.b16 %v361
  %v1341 = vunpack.c.l.b16 %v362
  %v1342 = vunpack.c.l.b16 %v363
  %v1343 = vunpack.c.l.b16 %v364
  %v1344 = vunpack.c.l.b16 %v365
  %v1345 = vunpack.c.l.b16 %v366
  %v1346 = vunpack.c.l.b16 %v367
  %v1347 = vunpack.c.l.b16 %v368
  %v1348 = vunpack.c.l.b16 %v369
  %v1349 = vunpack.c.l.b16 %v370
  %v1350 = vunpack.c.l.b16 %v371
  %v1351 = vunpack.c.l.b16 %v372
  %v1352 = vunpack.c.l.b16 %v373
  %v1353 = vunpack.c.l.b16 %v374
  %v1354 = vunpack.c.l.b16 %v375
  %v1355 = vunpack.c.l.b16 %v376
  %v1356 = vunpack.c.l.b16 %v377
  %v1357 = vunpack.c.l.b16 %v378
  %v1358 = vunpack.c.l.b16 %v379
  %v1359 = vunpack.c.l.b16 %v380
  %v1360 = vunpack.c.l.b16 %v381
  %v1361 = vunpack.c.l.b16 %v382
  %v1362 = vunpack.c.l.b16 %v383
  %v1363 = vunpack.c.l.b16 %v384
  %v1364 = vunpack.c.l.b16 %v385
  %v1365 = vunpack.c.l.b16 %v386
  %v1366 = vunpack.c.l.b16 %v387
  %v1367 = vunpack.c.l.b16 %v388
  %v1368 = vunpack.c.l.b16 %v389
  %v1369 = vunpack.c.l.b16 %v390
  %v1370 = vunpack.c.l.b16 %v391
  %v1371 = vunpack.c.l.b16 %v392
  %v1372 = vunpack.c.l.b16 %v393
  %v1373 = vunpack.c.l.b16 %v394
  %v1374 = vunpack.c.l.b16 %v395
  %v1375 = vunpack.c.l.b16 %v396
  %v1376 = vunpack.c.l.b16 %v397
  %v1377 = vunpack.c.l.b16 %v398
  %v1378 = vunpack.c.l.b16 %v399
  %v1379 = vunpack.c.l.b16 %v400
  %v1380 = vunpack.c.l.b16 %v401
  %v1381 = vunpack.c.l.b16 %v402
  %v1382 = vunpack.c.l.b16 %v403
  %v1383 = vunpack.c.l.b16 %v404
  %v1384 = vunpack.c.l.b16 %v405
  %v1385 = vunpack.c.l.b16 %v406
  %v1386 = vunpack.c.l.b16 %v407
  %v1387 = vunpack.c.l.b16 %v408
  %v1388 = vunpack.c.l.b16 %v409
  %v1389 = vunpack.c.l.b16 %v410
  %v1390 = vunpack.c.l.b16 %v411
  %v1391 = vunpack.c.l.b16 %v412
  %v1392 = vunpack.c.l.b16 %v413
  %v1393 = vunpack.c.l.b16 %v414
  %v1394 = vunpack.c.l.b16 %v415
  %v1395 = vunpack.c.l.b16 %v416
  %v1396 = vunpack.c.l.b16 %v417
  %v1397 = vunpack.c.l.b16 %v418
  %v1398 = vunpack.c.l.b16 %v419
  %v1399 = vunpack.c.l.b16 %v420
  %v1400 = vunpack.c.l.b16 %v421
  %v1401 = vunpack.c.l.b16 %v422
  %v1402 = vunpack.c.l.b16 %v423
  %v1403 = vunpack.c.l.b16 %v424
  %v1404 = vunpack.c.l.b16 %v425
  %v1405 = vunpack.c.l.b16 %v426
  %v1406 = vunpack.c.l.b16 %v427
  %v1407 = vunpack.c.l.b16 %v428
  %v1408 = vunpack.c.l.b16 %v429
  %v1409 = vunpack.c.l.b16 %v430
  %v1410 = vunpack.c.l.b16 %v431
  %v1411 = vunpack.c.l.b16 %v432
  %v1412 = vunpack.c.l.b16 %v433
  %v1413 = vunpack.c.l.b16 %v434
  %v1414 = vunpack.c.l.b16 %v435
  %v1415 = vunpack.c.l.b16 %v436
  %v1416 = vunpack.c.l.b16 %v437
  %v1417 = vunpack.c.l.b16 %v438
  %v1418 = vunpack.c.l.b16 %v439
  %v1419 = vunpack.c.l.b16 %v440
  %v1420 = vunpack.c.l.b16 %v441
  %v1421 = vunpack.c.l.b16 %v442
  %v1422 = vunpack.c.l.b16 %v443
  %v1423 = vunpack.c.l.b16 %v444
  %v1424 = vunpack.c.l.b16 %v445
  %v1425 = vunpack.c.l.b16 %v446
  %v1426 = vunpack.c.l.b16 %v447
  %v1427 = vunpack.c.l.b16 %v448
  %v1428 = vunpack.c.l.b16 %v449
  %v1429 = vunpack.c.l.b16 %v450
  %v1430 = vunpack.c.l.b16 %v451
  %v1431 = vunpack.c.l.b16 %v452
  %v1432 = vunpack.c.l.b16 %v453
  %v1433 = vunpack.c.l.b16 %v454
  %v1434 = vunpack.c.l.b16 %v455
  %v1435 = vunpack.c.l.b16 %v456
  %v1436 = vunpack.c.l.b16 %v457
  %v1437 = vunpack.c.l.b16 %v458
  %v1438 = vunpack.c.l.b16 %v459
  %v1439 = vunpack.c.l.b16 %v460
  %v1440 = vunpack.c.l.b16 %v461
  %v1441 = vunpack.c.l.b16 %v462
  %v1442 = vunpack.c.l.b16 %v463
  %v1443 = vunpack.c.l.b16 %v464
  %v1444 = vunpack.c.l.b16 %v465
  %v1445 = vunpack.c.l.b16 %v466
  %v1446 = vunpack.c.l.b16 %v467
  %v1447 = vunpack.c.l.b16 %v468
  %v1448 = vunpack.c.l.b16 %v469
  %v1449 = vunpack.c.l.b16 %v470
  %v1450 = vunpack.c.l.b16 %v471
  %v1451 = vunpack.c.l.b16 %v472
  %v1452 = vunpack.c.l.b16 %v473
  %v1453 = vunpack.c.l.b16 %v474
  %v1454 = vunpack.c.l.b16 %v475
  %v1455 = vunpack.c.l.b16 %v476
  %v1456 = vunpack.c.l.b16 %v477
  %v1457 = vunpack.c.l.b16 %v478
  %v1458 = vunpack.c.l.b16 %v479
  %v1459 = vunpack.c.l.b16 %v480
  %v1460 = vunpack.c.l.b16 %v481
  %v1461 = vunpack.c.l.b16 %v482
  %v1462 = vunpack.c.l.b16 %v483
  %v1463 = vunpack.c.l.b16 %v484
  %v1464 = vunpack.c.l.b16 %v485
  %v1465 = vunpack.c.l.b16 %v486
  %v1466 = vunpack.c.l.b16 %v487
  %v1467 = vunpack.c.l.b16 %v488
  %v1468 = vunpack.c.l.b16 %v489
  %v1469 = vunpack.c.l.b16 %v490
  %v1470 = vunpack.c.l.b16 %v491
  %v1471 = vunpack.c.l.b16 %v492
  %v1472 = vunpack.c.l.b16 %v493
  %v1473 = vunpack.c.l.b16 %v494
  %v1474 = vunpack.c.l.b16 %v495
  %v1475 = vunpack.c.l.b16 %v496
  %v1476 = vpack.c.b16 %v995, %v994
  %v1477 = vpack.c.b16 %v997, %v996
  %v1478 = vpack.c.b16 %v999, %v998
  %v1479 = vpack.c.b16 %v1001, %v1000
  %v1480 = vpack.c.b16 %v1003, %v1002
  %v1481 = vpack.c.b16 %v1005, %v1004
  %v1482 = vpack.c.b16 %v1007, %v1006
  %v1483 = vpack.c.b16 %v1009, %v1008
  %v1484 = vpack.c.b16 %v1011, %v1010
  %v1485 = vpack.c.b16 %v1013, %v1012
  %v1486 = vpack.c.b16 %v1015, %v1014
  %v1487 = vpack.c.b16 %v1017, %v1016
  %v1488 = vpack.c.b16 %v1019, %v1018
  %v1489 = vpack.c.b16 %v1021, %v1020
  %v1490 = vpack.c.b16 %v1023, %v1022
  %v1491 = vpack.c.b16 %v1025, %v1024
  %v1492 = vpack.c.b16 %v1027, %v1026
  %v1493 = vpack.c.b16 %v1029, %v1028
  %v1494 = vpack.c.b16 %v1031, %v1030
  %v1495 = vpack.c.b16 %v1033, %v1032
  %v1496 = vpack.c.b16 %v1035, %v1034
  %v1497 = vpack.c.b16 %v1037, %v1036
  %v1498 = vpack.c.b16 %v1039, %v1038
  %v1499 = vpack.c.b16 %v1041, %v1040
  %v1500 = vpack.c.b16 %v1043, %v1042
  %v1501 = vpack.c.b16 %v1045, %v1044
  %v1502 = vpack.c.b16 %v1047, %v1046
  %v1503 = vpack.c.b16 %v1049, %v1048
  %v1504 = vpack.c.b16 %v1051, %v1050
  %v1505 = vpack.c.b16 %v1053, %v1052
  %v1506 = vpack.c.b16 %v1055, %v1054
  %v1507 = vpack.c.b16 %v1057, %v1056
  %v1508 = vpack.c.b16 %v1059, %v1058
  %v1509 = vpack.c.b16 %v1061, %v1060
  %v1510 = vpack.c.b16 %v1063, %v1062
  %v1511 = vpack.c.b16 %v1065, %v1064
  %v1512 = vpack.c.b16 %v1067, %v1066
  %v1513 = vpack.c.b16 %v1069, %v1068
  %v1514 = vpack.c.b16 %v1071, %v1070
  %v1515 = vpack.c.b16 %v1073, %v1072
  %v1516 = vpack.c.b16 %v1075, %v1074
  %v1517 = vpack.c.b16 %v1077, %v1076
  %v1518 = vpack.c.b16 %v1079, %v1078
  %v1519 = vpack.c.b16 %v1081, %v1080
  %v1520 = vpack.c.b16 %v1083, %v1082
  %v1521 = vpack.c.b16 %v1085, %v1084
  %v1522 = vpack.c.b16 %v1087, %v1086
  %v1523 = vpack.c.b16 %v1089, %v1088
  %v1524 = vpack.c.b16 %v1091, %v1090
  %v1525 = vpack.c.b16 %v1093, %v1092
  %v1526 = vpack.c.b16 %v1095, %v1094
  %v1527 = vpack.c.b16 %v1097, %v1096
  %v1528 = vpack.c.b16 %v1099, %v1098
  %v1529 = vpack.c.b16 %v1101, %v1100
  %v1530 = vpack.c.b16 %v1103, %v1102
  %v1531 = vpack.c.b16 %v1105, %v1104
  %v1532 = vpack.c.b16 %v1107, %v1106
  %v1533 = vpack.c.b16 %v1109, %v1108
  %v1534 = vpack.c.b16 %v1111, %v1110
  %v1535 = vpack.c.b16 %v1113, %v1112
  %v1536 = vpack.c.b16 %v1115, %v1114
  %v1537 = vpack.c.b16 %v1117, %v1116
  %v1538 = vpack.c.b16 %v1119, %v1118
  %v1539 = vpack.c.b16 %v1121, %v1120
  %v1540 = vpack.c.b16 %v1123, %v1122
  %v1541 = vpack.c.b16 %v1125, %v1124
  %v1542 = vpack.c.b16 %v1127, %v1126
  %v1543 = vpack.c.b16 %v1129, %v1128
  %v1544 = vpack.c.b16 %v1131, %v1130
  %v1545 = vpack.c.b16 %v1133, %v1132
  %v1546 = vpack.c.b16 %v1135, %v1134
  %v1547 = vpack.c.b16 %v1137, %v1136
  %v1548 = vpack.c.b16 %v1139, %v1138
  %v1549 = vpack.c.b16 %v1141, %v1140
  %v1550 = vpack.c.b16 %v1143, %v1142
  %v1551 = vpack.c.b16 %v1145, %v1144
  %v1552 = vpack.c.b16 %v1147, %v1146
  %v1553 = vpack.c.b16 %v1149, %v1148
  %v1554 = vpack.c.b16 %v1151, %v1150
  %v1555 = vpack.c.b16 %v1153, %v1152
  %v1556 = vpack.c.b16 %v1155, %v1154
  %v1557 = vpack.c.b16 %v1157, %v1156
  %v1558 = vpack.c.b16 %v1159, %v1158
  %v1559 = vpack.c.b16 %v1161, %v1160
  %v1560 = vpack.c.b16 %v1163, %v1162
  %v1561 = vpack.c.b16 %v1165, %v1164
  %v1562 = vpack.c.b16 %v1167, %v1166
  %v1563 = vpack.c.b16 %v1169, %v1168
  %v1564 = vpack.c.b16 %v1171, %v1170
  %v1565 = vpack.c.b16 %v1173, %v1172
  %v1566 = vpack.c.b16 %v1175, %v1174
  %v1567 = vpack.c.b16 %v1177, %v1176
  %v1568 = vpack.c.b16 %v1179, %v1178
  %v1569 = vpack.c.b16 %v1181, %v1180
  %v1570 = vpack.c.b16 %v1183, %v1182
  %v1571 = vpack.c.b16 %v1185, %v1184
  %v1572 = vpack.c.b16 %v1187, %v1186
  %v1573 = vpack.c.b16 %v1189, %v1188
  %v1574 = vpack.c.b16 %v1191, %v1190
  %v1575 = vpack.c.b16 %v1193, %v1192
  %v1576 = vpack.c.b16 %v1195, %v1194
  %v1577 = vpack.c.b16 %v1197, %v1196
  %v1578 = vpack.c.b16 %v1199, %v1198
  %v1579 = vpack.c.b16 %v1201, %v1200
  %v1580 = vpack.c.b16 %v1203, %v1202
  %v1581 = vpack.c.b16 %v1205, %v1204
  %v1582 = vpack.c.b16 %v1207, %v1206
  %v1583 = vpack.c.b16 %v1209, %v1208
  %v1584 = vpack.c.b16 %v1211, %v1210
  %v1585 = vpack.c.b16 %v1213, %v1212
  %v1586 = vpack.c.b16 %v1215, %v1214
  %v1587 = vpack.c.b16 %v1217, %v1216
  %v1588 = vpack.c.b16 %v1219, %v1218
  %v1589 = vpack.c.b16 %v1221, %v1220
  %v1590 = vpack.c.b16 %v1223, %v1222
  %v1591 = vpack.c.b16 %v1225, %v1224
  %v1592 = vpack.c.b16 %v1227, %v1226
  %v1593 = vpack.c.b16 %v1229, %v1228
  %v1594 = vpack.c.b16 %v1231, %v1230
  %v1595 = vpack.c.b16 %v1233, %v1232
  %v1596 = vpack.c.b16 %v1235, %v1234
  %v1597 = vpack.c.b16 %v1237, %v1236
  %v1598 = vpack.c.b16 %v1239, %v1238
  %v1599 = vpack.c.b16 %v1241, %v1240
  %v1600 = vpack.c.b16 %v1243, %v1242
  %v1601 = vpack.c.b16 %v1245, %v1244
  %v1602 = vpack.c.b16 %v1247, %v1246
  %v1603 = vpack.c.b16 %v1249, %v1248
  %v1604 = vpack.c.b16 %v1251, %v1250
  %v1605 = vpack.c.b16 %v1253, %v1252
  %v1606 = vpack.c.b16 %v1255, %v1254
  %v1607 = vpack.c.b16 %v1257, %v1256
  %v1608 = vpack.c.b16 %v1259, %v1258
  %v1609 = vpack.c.b16 %v1261, %v1260
  %v1610 = vpack.c.b16 %v1263, %v1262
  %v1611 = vpack.c.b16 %v1265, %v1264
  %v1612 = vpack.c.b16 %v1267, %v1266
  %v1613 = vpack.c.b16 %v1269, %v1268
  %v1614 = vpack.c.b16 %v1271, %v1270
  %v1615 = vpack.c.b16 %v1273, %v1272
  %v1616 = vpack.c.b16 %v1275, %v1274
  %v1617 = vpack.c.b16 %v1277, %v1276
  %v1618 = vpack.c.b16 %v1279, %v1278
  %v1619 = vpack.c.b16 %v1281, %v1280
  %v1620 = vpack.c.b16 %v1283, %v1282
  %v1621 = vpack.c.b16 %v1285, %v1284
  %v1622 = vpack.c.b16 %v1287, %v1286
  %v1623 = vpack.c.b16 %v1289, %v1288
  %v1624 = vpack.c.b16 %v1291, %v1290
  %v1625 = vpack.c.b16 %v1293, %v1292
  %v1626 = vpack.c.b16 %v1295, %v1294
  %v1627 = vpack.c.b16 %v1297, %v1296
  %v1628 = vpack.c.b16 %v1299, %v1298
  %v1629 = vpack.c.b16 %v1301, %v1300
  %v1630 = vpack.c.b16 %v1303, %v1302
  %v1631 = vpack.c.b16 %v1305, %v1304
  %v1632 = vpack.c.b16 %v1307, %v1306
  %v1633 = vpack.c.b16 %v1309, %v1308
  %v1634 = vpack.c.b16 %v1311, %v1310
  %v1635 = vpack.c.b16 %v1313, %v1312
  %v1636 = vpack.c.b16 %v1315, %v1314
  %v1637 = vpack.c.b16 %v1317, %v1316
  %v1638 = vpack.c.b16 %v1319, %v1318
  %v1639 = vpack.c.b16 %v1321, %v1320
  %v1640 = vpack.c.b16 %v1323, %v1322
  %v1641 = vpack.c.b16 %v1325, %v1324
  %v1642 = vpack.c.b16 %v1327, %v1326
  %v1643 = vpack.c.b16 %v1329, %v1328
  %v1644 = vpack.c.b16 %v1331, %v1330
  %v1645 = vpack.c.b16 %v1333, %v1332
  %v1646 = vpack.c.b16 %v1335, %v1334
  %v1647 = vpack.c.b16 %v1337, %v1336
  %v1648 = vpack.c.b16 %v1339, %v1338
  %v1649 = vpack.c.b16 %v1341, %v1340
  %v1650 = vpack.c.b16 %v1343, %v1342
  %v1651 = vpack.c.b16 %v1345, %v1344
  %v1652 = vpack.c.b16 %v1347, %v1346
  %v1653 = vpack.c.b16 %v1349, %v1348
  %v1654 = vpack.c.b16 %v1351, %v1350
  %v1655 = vpack.c.b16 %v1353, %v1352
  %v1656 = vpack.c.b16 %v1355, %v1354
  %v1657 = vpack.c.b16 %v1357, %v1356
  %v1658 = vpack.c.b16 %v1359, %v1358
  %v1659 = vpack.c.b16 %v1361, %v1360
  %v1660 = vpack.c.b16 %v1363, %v1362
  %v1661 = vpack.c.b16 %v1365, %v1364
  %v1662 = vpack.c.b16 %v1367, %v1366
  %v1663 = vpack.c.b16 %v1369, %v1368
  %v1664 = vpack.c.b16 %v1371, %v1370
  %v1665 = vpack.c.b16 %v1373, %v1372
  %v1666 = vpack.c.b16 %v1375, %v1374
  %v1667 = vpack.c.b16 %v1377, %v1376
  %v1668 = vpack.c.b16 %v1379, %v1378
  %v1669 = vpack.c.b16 %v1381, %v1380
  %v1670 = vpack.c.b16 %v1383, %v1382
  %v1671 = vpack.c.b16 %v1385, %v1384
  %v1672 = vpack.c.b16 %v1387, %v1386
  %v1673 = vpack.c.b16 %v1389, %v1388
  %v1674 = vpack.c.b16 %v1391, %v1390
  %v1675 = vpack.c.b16 %v1393, %v1392
  %v1676 = vpack.c.b16 %v1395, %v1394
  %v1677 = vpack.c.b16 %v1397, %v1396
  %v1678 = vpack.c.b16 %v1399, %v1398
  %v1679 = vpack.c.b16 %v1401, %v1400
  %v1680 = vpack.c.b16 %v1403, %v1402
  %v1681 = vpack.c.b16 %v1405, %v1404
  %v1682 = vpack.c.b16 %v1407, %v1406
  %v1683 = vpack.c.b16 %v1409, %v1408
  %v1684 = vpack.c.b16 %v1411, %v1410
  %v1685 = vpack.c.b16 %v1413, %v1412
  %v1686 = vpack.c.b16 %v1415, %v1414
  %v1687 = vpack.c.b16 %v1417, %v1416
  %v1688 = vpack.c.b16 %v1419, %v1418
  %v1689 = vpack.c.b16 %v1421, %v1420
  %v1690 = vpack.c.b16 %v1423, %v1422
  %v1691 = vpack.c.b16 %v1425, %v1424
  %v1692 = vpack.c.b16 %v1427, %v1426
  %v1693 = vpack.c.b16 %v1429, %v1428
  %v1694 = vpack.c.b16 %v1431, %v1430
  %v1695 = vpack.c.b16 %v1433, %v1432
  %v1696 = vpack.c.b16 %v1435, %v1434
  %v1697 = vpack.c.b16 %v1437, %v1436
  %v1698 = vpack.c.b16 %v1439, %v1438
  %v1699 = vpack.c.b16 %v1441, %v1440
  %v1700 = vpack.c.b16 %v1443, %v1442
  %v1701 = vpack.c.b16 %v1445, %v1444
  %v1702 = vpack.c.b16 %v1447, %v1446
  %v1703 = vpack.c.b16 %v1449, %v1448
  %v1704 = vpack.c.b16 %v1451, %v1450
  %v1705 = vpack.c.b16 %v1453, %v1452
  %v1706 = vpack.c.b16 %v1455, %v1454
  %v1707 = vpack.c.b16 %v1457, %v1456
  %v1708 = vpack.c.b16 %v1459, %v1458
  %v1709 = vpack.c.b16 %v1461, %v1460
  %v1710 = vpack.c.b16 %v1463, %v1462
  %v1711 = vpack.c.b16 %v1465, %v1464
  %v1712 = vpack.c.b16 %v1467, %v1466
  %v1713 = vpack.c.b16 %v1469, %v1468
  %v1714 = vpack.c.b16 %v1471, %v1470
  %v1715 = vpack.c.b16 %v1473, %v1472
  %v1716 = vpack.c.b16 %v1475, %v1474
  %v1725 = vunpack.c.l.b16 %v497
  %v1726 = vunpack.c.l.b16 %v498
  %v1727 = vunpack.c.l.b16 %v499
  %v1728 = vunpack.c.l.b16 %v500
  %v1729 = vunpack.c.l.b16 %v501
  %v1730 = vunpack.c.l.b16 %v502
  %v1731 = vunpack.c.l.b16 %v503
  %v1732 = vunpack.c.l.b16 %v504
  %v1733 = vpack.c.b16 %v1726, %v1725
  %v1734 = vpack.c.b16 %v1728, %v1727
  %v1735 = vpack.c.b16 %v1730, %v1729
  %v1736 = vpack.c.b16 %v1732, %v1731
  %vm1741 = vcmask 523264
  %v1743 = vsel %vm1741, %v1476, 0
  %v1746 = vsel %vm1741, %v1477, 0
  %v1749 = vsel %vm1741, %v1478, 0
  %v1752 = vsel %vm1741, %v1479, 0
  %v1755 = vsel %vm1741, %v1480, 0
  %v1758 = vsel %vm1741, %v1481, 0
  %v1761 = vsel %vm1741, %v1482, 0
  %v1764 = vsel %vm1741, %v1483, 0
  %v1767 = vsel %vm1741, %v1484, 0
  %v1770 = vsel %vm1741, %v1485, 0
  %v1773 = vsel %vm1741, %v1486, 0
  %v1776 = vsel %vm1741, %v1487, 0
  %v1779 = vsel %vm1741, %v1488, 0
  %v1782 = vsel %vm1741, %v1489, 0
  %v1785 = vsel %vm1741, %v1490, 0
  %v1788 = vsel %vm1741, %v1491, 0
  %v1791 = vsel %vm1741, %v1492, 0
  %v1794 = vsel %vm1741, %v1493, 0
  %v1797 = vsel %vm1741, %v1494, 0
  %v1800 = vsel %vm1741, %v1495, 0
  %v1803 = vsel %vm1741, %v1496, 0
  %v1806 = vsel %vm1741, %v1497, 0
  %v1809 = vsel %vm1741, %v1498, 0
  %v1812 = vsel %vm1741, %v1499, 0
  %v1815 = vsel %vm1741, %v1500, 0
  %v1818 = vsel %vm1741, %v1501, 0
  %v1821 = vsel %vm1741, %v1502, 0
  %v1824 = vsel %vm1741, %v1503, 0
  %v1827 = vsel %vm1741, %v1504, 0
  %v1830 = vsel %vm1741, %v1505, 0
  %v1833 = vsel %vm1741, %v1506, 0
  %v1836 = vsel %vm1741, %v1507, 0
  %v1839 = vsel %vm1741, %v1508, 0
  %v1842 = vsel %vm1741, %v1509, 0
  %v1845 = vsel %vm1741, %v1510, 0
  %v1848 = vsel %vm1741, %v1511, 0
  %v1851 = vsel %vm1741, %v1512, 0
  %v1854 = vsel %vm1741, %v1513, 0
  %v1857 = vsel %vm1741, %v1514, 0
  %v1860 = vsel %vm1741, %v1515, 0
  %v1863 = vsel %vm1741, %v1516, 0
  %v1866 = vsel %vm1741, %v1517, 0
  %v1869 = vsel %vm1741, %v1518, 0
  %v1872 = vsel %vm1741, %v1519, 0
  %v1875 = vsel %vm1741, %v1520, 0
  %v1878 = vsel %vm1741, %v1521, 0
  %v1881 = vsel %vm1741, %v1522, 0
  %v1884 = vsel %vm1741, %v1523, 0
  %v1887 = vsel %vm1741, %v1524, 0
  %v1890 = vsel %vm1741, %v1525, 0
  %v1893 = vsel %vm1741, %v1526, 0
  %v1896 = vsel %vm1741, %v1527, 0
  %v1899 = vsel %vm1741, %v1528, 0
  %v1902 = vsel %vm1741, %v1529, 0
  %v1905 = vsel %vm1741, %v1530, 0
  %v1908 = vsel %vm1741, %v1531, 0
  %v1911 = vsel %vm1741, %v1532, 0
  %v1914 = vsel %vm1741, %v1533, 0
  %v1917 = vsel %vm1741, %v1534, 0
  %v1920 = vsel %vm1741, %v1535, 0
  %v1923 = vsel %vm1741, %v1536, 0
  %v1926 = vsel %vm1741, %v1537, 0
  %v1929 = vsel %vm1741, %v1538, 0
  %v1932 = vsel %vm1741, %v1539, 0
  %v1935 = vsel %vm1741, %v1540, 0
  %v1938 = vsel %vm1741, %v1541, 0
  %v1941 = vsel %vm1741, %v1542, 0
  %v1944 = vsel %vm1741, %v1543, 0
  %v1947 = vsel %vm1741, %v1544, 0
  %v1950 = vsel %vm1741, %v1545, 0
  %v1953 = vsel %vm1741, %v1546, 0
  %v1956 = vsel %vm1741, %v1547, 0
  %v1959 = vsel %vm1741, %v1548, 0
  %v1962 = vsel %vm1741, %v1549, 0
  %v1965 = vsel %vm1741, %v1550, 0
  %v1968 = vsel %vm1741, %v1551, 0
  %v1971 = vsel %vm1741, %v1552, 0
  %v1974 = vsel %vm1741, %v1553, 0
  %v1977 = vsel %vm1741, %v1554, 0
  %v1980 = vsel %vm1741, %v1555, 0
  %v1983 = vsel %vm1741, %v1556, 0
  %v1986 = vsel %vm1741, %v1557, 0
  %v1989 = vsel %vm1741, %v1558, 0
  %v1992 = vsel %vm1741, %v1559, 0
  %v1995 = vsel %vm1741, %v1560, 0
  %v1998 = vsel %vm1741, %v1561, 0
  %v2001 = vsel %vm1741, %v1562, 0
  %v2004 = vsel %vm1741, %v1563, 0
  %v2007 = vsel %vm1741, %v1564, 0
  %v2010 = vsel %vm1741, %v1565, 0
  %v2013 = vsel %vm1741, %v1566, 0
  %v2016 = vsel %vm1741, %v1567, 0
  %v2019 = vsel %vm1741, %v1568, 0
  %v2022 = vsel %vm1741, %v1569, 0
  %v2025 = vsel %vm1741, %v1570, 0
  %v2028 = vsel %vm1741, %v1571, 0
  %v2031 = vsel %vm1741, %v1572, 0
  %v2034 = vsel %vm1741, %v1573, 0
  %v2037 = vsel %vm1741, %v1574, 0
  %v2040 = vsel %vm1741, %v1575, 0
  %v2043 = vsel %vm1741, %v1576, 0
  %v2046 = vsel %vm1741, %v1577, 0
  %v2049 = vsel %vm1741, %v1578, 0
  %v2052 = vsel %vm1741, %v1579, 0
  %v2055 = vsel %vm1741, %v1580, 0
  %v2058 = vsel %vm1741, %v1581, 0
  %v2061 = vsel %vm1741, %v1582, 0
  %v2064 = vsel %vm1741, %v1583, 0
  %v2067 = vsel %vm1741, %v1584, 0
  %v2070 = vsel %vm1741, %v1585, 0
  %v2073 = vsel %vm1741, %v1586, 0
  %v2076 = vsel %vm1741, %v1587, 0
  %v2079 = vsel %vm1741, %v1588, 0
  %v2082 = vsel %vm1741, %v1589, 0
  %v2085 = vsel %vm1741, %v1590, 0
  %v2088 = vsel %vm1741, %v1591, 0
  %v2091 = vsel %vm1741, %v1592, 0
  %v2094 = vsel %vm1741, %v1593, 0
  %v2097 = vsel %vm1741, %v1594, 0
  %v2100 = vsel %vm1741, %v1595, 0
  %v2103 = vsel %vm1741, %v1596, 0
  %v2106 = vsel %vm1741, %v1597, 0
  %v2109 = vsel %vm1741, %v1598, 0
  %v2112 = vsel %vm1741, %v1599, 0
  %v2115 = vsel %vm1741, %v1600, 0
  %v2118 = vsel %vm1741, %v1601, 0
  %v2121 = vsel %vm1741, %v1602, 0
  %v2124 = vsel %vm1741, %v1603, 0
  %v2127 = vsel %vm1741, %v1604, 0
  %v2130 = vsel %vm1741, %v1605, 0
  %v2133 = vsel %vm1741, %v1606, 0
  %v2136 = vsel %vm1741, %v1607, 0
  %v2139 = vsel %vm1741, %v1608, 0
  %v2142 = vsel %vm1741, %v1609, 0
  %v2145 = vsel %vm1741, %v1610, 0
  %v2148 = vsel %vm1741, %v1611, 0
  %v2151 = vsel %vm1741, %v1612, 0
  %v2154 = vsel %vm1741, %v1613, 0
  %v2157 = vsel %vm1741, %v1614, 0
  %v2160 = vsel %vm1741, %v1615, 0
  %v2163 = vsel %vm1741, %v1616, 0
  %v2166 = vsel %vm1741, %v1617, 0
  %v2169 = vsel %vm1741, %v1618, 0
  %v2172 = vsel %vm1741, %v1619, 0
  %v2175 = vsel %vm1741, %v1620, 0
  %v2178 = vsel %vm1741, %v1621, 0
  %v2181 = vsel %vm1741, %v1622, 0
  %v2184 = vsel %vm1741, %v1623, 0
  %v2187 = vsel %vm1741, %v1624, 0
  %v2190 = vsel %vm1741, %v1625, 0
  %v2193 = vsel %vm1741, %v1626, 0
  %v2196 = vsel %vm1741, %v1627, 0
  %v2199 = vsel %vm1741, %v1628, 0
  %v2202 = vsel %vm1741, %v1629, 0
  %v2205 = vsel %vm1741, %v1630, 0
  %v2208 = vsel %vm1741, %v1631, 0
  %v2211 = vsel %vm1741, %v1632, 0
  %v2214 = vsel %vm1741, %v1633, 0
  %v2217 = vsel %vm1741, %v1634, 0
  %v2220 = vsel %vm1741, %v1635, 0
  %v2223 = vsel %vm1741, %v1636, 0
  %v2226 = vsel %vm1741, %v1637, 0
  %v2229 = vsel %vm1741, %v1638, 0
  %v2232 = vsel %vm1741, %v1639, 0
  %v2235 = vsel %vm1741, %v1640, 0
  %v2238 = vsel %vm1741, %v1641, 0
  %v2241 = vsel %vm1741, %v1642, 0
  %v2244 = vsel %vm1741, %v1643, 0
  %v2247 = vsel %vm1741, %v1644, 0
  %v2250 = vsel %vm1741, %v1645, 0
  %v2253 = vsel %vm1741, %v1646, 0
  %v2256 = vsel %vm1741, %v1647, 0
  %v2259 = vsel %vm1741, %v1648, 0
  %v2262 = vsel %vm1741, %v1649, 0
  %v2265 = vsel %vm1741, %v1650, 0
  %v2268 = vsel %vm1741, %v1651, 0
  %v2271 = vsel %vm1741, %v1652, 0
  %v2274 = vsel %vm1741, %v1653, 0
  %v2277 = vsel %vm1741, %v1654, 0
  %v2280 = vsel %vm1741, %v1655, 0
  %v2283 = vsel %vm1741, %v1656, 0
  %v2286 = vsel %vm1741, %v1657, 0
  %v2289 = vsel %vm1741, %v1658, 0
  %v2292 = vsel %vm1741, %v1659, 0
  %v2295 = vsel %vm1741, %v1660, 0
  %v2298 = vsel %vm1741, %v1661, 0
  %v2301 = vsel %vm1741, %v1662, 0
  %v2304 = vsel %vm1741, %v1663, 0
  %v2307 = vsel %vm1741, %v1664, 0
  %v2310 = vsel %vm1741, %v1665, 0
  %v2313 = vsel %vm1741, %v1666, 0
  %v2316 = vsel %vm1741, %v1667, 0
  %v2319 = vsel %vm1741, %v1668, 0
  %v2322 = vsel %vm1741, %v1669, 0
  %v2325 = vsel %vm1741, %v1670, 0
  %v2328 = vsel %vm1741, %v1671, 0
  %v2331 = vsel %vm1741, %v1672, 0
  %v2334 = vsel %vm1741, %v1673, 0
  %v2337 = vsel %vm1741, %v1674, 0
  %v2340 = vsel %vm1741, %v1675, 0
  %v2343 = vsel %vm1741, %v1676, 0
  %v2346 = vsel %vm1741, %v1677, 0
  %v2349 = vsel %vm1741, %v1678, 0
  %v2352 = vsel %vm1741, %v1679, 0
  %v2355 = vsel %vm1741, %v1680, 0
  %v2358 = vsel %vm1741, %v1681, 0
  %v2361 = vsel %vm1741, %v1682, 0
  %v2364 = vsel %vm1741, %v1683, 0
  %v2367 = vsel %vm1741, %v1684, 0
  %v2370 = vsel %vm1741, %v1685, 0
  %v2373 = vsel %vm1741, %v1686, 0
  %v2376 = vsel %vm1741, %v1687, 0
  %v2379 = vsel %vm1741, %v1688, 0
  %v2382 = vsel %vm1741, %v1689, 0
  %v2385 = vsel %vm1741, %v1690, 0
  %v2388 = vsel %vm1741, %v1691, 0
  %v2391 = vsel %vm1741, %v1692, 0
  %v2394 = vsel %vm1741, %v1693, 0
  %v2397 = vsel %vm1741, %v1694, 0
  %v2400 = vsel %vm1741, %v1695, 0
  %v2403 = vsel %vm1741, %v1696, 0
  %v2406 = vsel %vm1741, %v1697, 0
  %v2409 = vsel %vm1741, %v1698, 0
  %v2412 = vsel %vm1741, %v1699, 0
  %v2415 = vsel %vm1741, %v1700, 0
  %v2418 = vsel %vm1741, %v1701, 0
  %v2421 = vsel %vm1741, %v1702, 0
  %v2424 = vsel %vm1741, %v1703, 0
  %v2427 = vsel %vm1741, %v1704, 0
  %v2430 = vsel %vm1741, %v1705, 0
  %v2433 = vsel %vm1741, %v1706, 0
  %v2436 = vsel %vm1741, %v1707, 0
  %v2439 = vsel %vm1741, %v1708, 0
  %v2442 = vsel %vm1741, %v1709, 0
  %v2445 = vsel %vm1741, %v1710, 0
  %v2448 = vsel %vm1741, %v1711, 0
  %v2451 = vsel %vm1741, %v1712, 0
  %v2454 = vsel %vm1741, %v1713, 0
  %v2457 = vsel %vm1741, %v1714, 0
  %v2460 = vsel %vm1741, %v1715, 0
  %v2463 = vsel %vm1741, %v1716, 0
  %2465 = vmatprep.subr.bf16.mxu0 0
  %2466 = vmatpush1.bf16.msra.mxu0 0
  %2467 = vmatprep.subr.bf16.mxu0 0
  %2468 = vmatpush1.bf16.msra.mxu0 0
  %2469 = vmatprep.subr.bf16.mxu0 0
  %2470 = vmatpush1.bf16.msra.mxu0 0
  %2471 = vmatprep.subr.bf16.mxu0 0
  %2472 = vmatpush1.bf16.msra.mxu0 0
  %2473 = vmatprep.subr.bf16.mxu0 0
  %2474 = vmatpush1.bf16.msra.mxu0 %v1736
  %2475 = vmatprep.subr.bf16.mxu0 0
  %2476 = vmatpush1.bf16.msra.mxu0 %v1735
  %2477 = vmatprep.subr.bf16.mxu0 0
  %2478 = vmatpush1.bf16.msra.mxu0 %v1734
  %2479 = vmatprep.subr.bf16.mxu0 0
  %2480 = vmatpush1.bf16.msra.mxu0 %v1733
  %2481 = vmatprep.subr.bf16.mxu0 0
  %2482 = vmatpush2.bf16.msra.mxu0 0
  %2483 = vmatprep.subr.bf16.mxu0 0
  %2484 = vmatpush2.bf16.msra.mxu0 0
  %2485 = vmatprep.subr.bf16.mxu0 0
  %2486 = vmatpush2.bf16.msra.mxu0 0
  %2487 = vmatprep.subr.bf16.mxu0 0
  %2488 = vmatpush2.bf16.msra.mxu0 0
  %2489 = vmatprep.subr.bf16.mxu0 0
  %2490 = vmatpush2.bf16.msra.mxu0 0
  %2491 = vmatprep.subr.bf16.mxu0 0
  %2492 = vmatpush2.bf16.msra.mxu0 0
  %2493 = vmatprep.subr.bf16.mxu0 0
  %2494 = vmatpush2.bf16.msra.mxu0 0
  %2495 = vmatprep.subr.bf16.mxu0 0
  %2496 = vmatpush2.bf16.msra.mxu0 0
  %2497 = vmatprep.mubr.bf16.mxu0 0
  %2498 = vmatmul.mubr.bf16.gmra.mxu0 %v1743
  %v2499 = vpop.f32.mrf.mxu0
  %v2500 = vadd.f32 %v510, %v2499
  %v2501 = vpop.f32.mrf.mxu0
  %v2502 = vpop.f32.mrf.mxu0
  %v2503 = vadd.f32 %v510, %v2502
  %v2504 = vpop.f32.mrf.mxu0
  %2505 = vmatprep.mubr.bf16.mxu0 0
  %2506 = vmatmul.mubr.bf16.gmra.mxu0 %v1746
  %v2507 = vpop.f32.mrf.mxu0
  %v2508 = vadd.f32 %v510, %v2507
  %v2509 = vpop.f32.mrf.mxu0
  %v2510 = vpop.f32.mrf.mxu0
  %v2511 = vadd.f32 %v510, %v2510
  %v2512 = vpop.f32.mrf.mxu0
  %2513 = vmatprep.mubr.bf16.mxu0 0
  %2514 = vmatmul.mubr.bf16.gmra.mxu0 %v1749
  %v2515 = vpop.f32.mrf.mxu0
  %v2516 = vadd.f32 %v510, %v2515
  %v2517 = vpop.f32.mrf.mxu0
  %v2518 = vpop.f32.mrf.mxu0
  %v2519 = vadd.f32 %v510, %v2518
  %v2520 = vpop.f32.mrf.mxu0
  %2521 = vmatprep.mubr.bf16.mxu0 0
  %2522 = vmatmul.mubr.bf16.gmra.mxu0 %v1752
  %v2523 = vpop.f32.mrf.mxu0
  %v2524 = vadd.f32 %v510, %v2523
  %v2525 = vpop.f32.mrf.mxu0
  %v2526 = vpop.f32.mrf.mxu0
  %v2527 = vadd.f32 %v510, %v2526
  %v2528 = vpop.f32.mrf.mxu0
  %2529 = vmatprep.mubr.bf16.mxu0 0
  %2530 = vmatmul.mubr.bf16.gmra.mxu0 %v1755
  %v2531 = vpop.f32.mrf.mxu0
  %v2532 = vadd.f32 %v510, %v2531
  %v2533 = vpop.f32.mrf.mxu0
  %v2534 = vpop.f32.mrf.mxu0
  %v2535 = vadd.f32 %v510, %v2534
  %v2536 = vpop.f32.mrf.mxu0
  %2537 = vmatprep.mubr.bf16.mxu0 0
  %2538 = vmatmul.mubr.bf16.gmra.mxu0 %v1758
  %v2539 = vpop.f32.mrf.mxu0
  %v2540 = vadd.f32 %v510, %v2539
  %v2541 = vpop.f32.mrf.mxu0
  %v2542 = vpop.f32.mrf.mxu0
  %v2543 = vadd.f32 %v510, %v2542
  %v2544 = vpop.f32.mrf.mxu0
  %2545 = vmatprep.mubr.bf16.mxu0 0
  %2546 = vmatmul.mubr.bf16.gmra.mxu0 %v1761
  %v2547 = vpop.f32.mrf.mxu0
  %v2548 = vadd.f32 %v510, %v2547
  %v2549 = vpop.f32.mrf.mxu0
  %v2550 = vpop.f32.mrf.mxu0
  %v2551 = vadd.f32 %v510, %v2550
  %v2552 = vpop.f32.mrf.mxu0
  %2553 = vmatprep.mubr.bf16.mxu0 0
  %2554 = vmatmul.mubr.bf16.gmra.mxu0 %v1764
  %v2555 = vpop.f32.mrf.mxu0
  %v2556 = vadd.f32 %v510, %v2555
  %v2557 = vpop.f32.mrf.mxu0
  %v2558 = vpop.f32.mrf.mxu0
  %v2559 = vadd.f32 %v510, %v2558
  %v2560 = vpop.f32.mrf.mxu0
  %2561 = vmatprep.mubr.bf16.mxu0 0
  %2562 = vmatmul.mubr.bf16.gmra.mxu0 %v1767
  %v2563 = vpop.f32.mrf.mxu0
  %v2564 = vadd.f32 %v510, %v2563
  %v2565 = vpop.f32.mrf.mxu0
  %v2566 = vpop.f32.mrf.mxu0
  %v2567 = vadd.f32 %v510, %v2566
  %v2568 = vpop.f32.mrf.mxu0
  %2569 = vmatprep.mubr.bf16.mxu0 0
  %2570 = vmatmul.mubr.bf16.gmra.mxu0 %v1770
  %v2571 = vpop.f32.mrf.mxu0
  %v2572 = vadd.f32 %v510, %v2571
  %v2573 = vpop.f32.mrf.mxu0
  %v2574 = vpop.f32.mrf.mxu0
  %v2575 = vadd.f32 %v510, %v2574
  %v2576 = vpop.f32.mrf.mxu0
  %2577 = vmatprep.mubr.bf16.mxu0 0
  %2578 = vmatmul.mubr.bf16.gmra.mxu0 %v1773
  %v2579 = vpop.f32.mrf.mxu0
  %v2580 = vadd.f32 %v510, %v2579
  %v2581 = vpop.f32.mrf.mxu0
  %v2582 = vpop.f32.mrf.mxu0
  %v2583 = vadd.f32 %v510, %v2582
  %v2584 = vpop.f32.mrf.mxu0
  %2585 = vmatprep.mubr.bf16.mxu0 0
  %2586 = vmatmul.mubr.bf16.gmra.mxu0 %v1776
  %v2587 = vpop.f32.mrf.mxu0
  %v2588 = vadd.f32 %v510, %v2587
  %v2589 = vpop.f32.mrf.mxu0
  %v2590 = vpop.f32.mrf.mxu0
  %v2591 = vadd.f32 %v510, %v2590
  %v2592 = vpop.f32.mrf.mxu0
  %2593 = vmatprep.mubr.bf16.mxu0 0
  %2594 = vmatmul.mubr.bf16.gmra.mxu0 %v1779
  %v2595 = vpop.f32.mrf.mxu0
  %v2596 = vadd.f32 %v510, %v2595
  %v2597 = vpop.f32.mrf.mxu0
  %v2598 = vpop.f32.mrf.mxu0
  %v2599 = vadd.f32 %v510, %v2598
  %v2600 = vpop.f32.mrf.mxu0
  %2601 = vmatprep.mubr.bf16.mxu0 0
  %2602 = vmatmul.mubr.bf16.gmra.mxu0 %v1782
  %v2603 = vpop.f32.mrf.mxu0
  %v2604 = vadd.f32 %v510, %v2603
  %v2605 = vpop.f32.mrf.mxu0
  %v2606 = vpop.f32.mrf.mxu0
  %v2607 = vadd.f32 %v510, %v2606
  %v2608 = vpop.f32.mrf.mxu0
  %2609 = vmatprep.mubr.bf16.mxu0 0
  %2610 = vmatmul.mubr.bf16.gmra.mxu0 %v1785
  %v2611 = vpop.f32.mrf.mxu0
  %v2612 = vadd.f32 %v510, %v2611
  %v2613 = vpop.f32.mrf.mxu0
  %v2614 = vpop.f32.mrf.mxu0
  %v2615 = vadd.f32 %v510, %v2614
  %v2616 = vpop.f32.mrf.mxu0
  %2617 = vmatprep.mubr.bf16.mxu0 0
  %2618 = vmatmul.mubr.bf16.gmra.mxu0 %v1788
  %v2619 = vpop.f32.mrf.mxu0
  %v2620 = vadd.f32 %v510, %v2619
  %v2621 = vpop.f32.mrf.mxu0
  %v2622 = vpop.f32.mrf.mxu0
  %v2623 = vadd.f32 %v510, %v2622
  %v2624 = vpop.f32.mrf.mxu0
  %2625 = vmatprep.mubr.bf16.mxu0 0
  %2626 = vmatmul.mubr.bf16.gmra.mxu0 %v1791
  %v2627 = vpop.f32.mrf.mxu0
  %v2628 = vadd.f32 %v510, %v2627
  %v2629 = vpop.f32.mrf.mxu0
  %v2630 = vpop.f32.mrf.mxu0
  %v2631 = vadd.f32 %v510, %v2630
  %v2632 = vpop.f32.mrf.mxu0
  %2633 = vmatprep.mubr.bf16.mxu0 0
  %2634 = vmatmul.mubr.bf16.gmra.mxu0 %v1794
  %v2635 = vpop.f32.mrf.mxu0
  %v2636 = vadd.f32 %v510, %v2635
  %v2637 = vpop.f32.mrf.mxu0
  %v2638 = vpop.f32.mrf.mxu0
  %v2639 = vadd.f32 %v510, %v2638
  %v2640 = vpop.f32.mrf.mxu0
  %2641 = vmatprep.mubr.bf16.mxu0 0
  %2642 = vmatmul.mubr.bf16.gmra.mxu0 %v1797
  %v2643 = vpop.f32.mrf.mxu0
  %v2644 = vadd.f32 %v510, %v2643
  %v2645 = vpop.f32.mrf.mxu0
  %v2646 = vpop.f32.mrf.mxu0
  %v2647 = vadd.f32 %v510, %v2646
  %v2648 = vpop.f32.mrf.mxu0
  %2649 = vmatprep.mubr.bf16.mxu0 0
  %2650 = vmatmul.mubr.bf16.gmra.mxu0 %v1800
  %v2651 = vpop.f32.mrf.mxu0
  %v2652 = vadd.f32 %v510, %v2651
  %v2653 = vpop.f32.mrf.mxu0
  %v2654 = vpop.f32.mrf.mxu0
  %v2655 = vadd.f32 %v510, %v2654
  %v2656 = vpop.f32.mrf.mxu0
  %2657 = vmatprep.mubr.bf16.mxu0 0
  %2658 = vmatmul.mubr.bf16.gmra.mxu0 %v1803
  %v2659 = vpop.f32.mrf.mxu0
  %v2660 = vadd.f32 %v510, %v2659
  %v2661 = vpop.f32.mrf.mxu0
  %v2662 = vpop.f32.mrf.mxu0
  %v2663 = vadd.f32 %v510, %v2662
  %v2664 = vpop.f32.mrf.mxu0
  %2665 = vmatprep.mubr.bf16.mxu0 0
  %2666 = vmatmul.mubr.bf16.gmra.mxu0 %v1806
  %v2667 = vpop.f32.mrf.mxu0
  %v2668 = vadd.f32 %v510, %v2667
  %v2669 = vpop.f32.mrf.mxu0
  %v2670 = vpop.f32.mrf.mxu0
  %v2671 = vadd.f32 %v510, %v2670
  %v2672 = vpop.f32.mrf.mxu0
  %2673 = vmatprep.mubr.bf16.mxu0 0
  %2674 = vmatmul.mubr.bf16.gmra.mxu0 %v1809
  %v2675 = vpop.f32.mrf.mxu0
  %v2676 = vadd.f32 %v510, %v2675
  %v2677 = vpop.f32.mrf.mxu0
  %v2678 = vpop.f32.mrf.mxu0
  %v2679 = vadd.f32 %v510, %v2678
  %v2680 = vpop.f32.mrf.mxu0
  %2681 = vmatprep.mubr.bf16.mxu0 0
  %2682 = vmatmul.mubr.bf16.gmra.mxu0 %v1812
  %v2683 = vpop.f32.mrf.mxu0
  %v2684 = vadd.f32 %v510, %v2683
  %v2685 = vpop.f32.mrf.mxu0
  %v2686 = vpop.f32.mrf.mxu0
  %v2687 = vadd.f32 %v510, %v2686
  %v2688 = vpop.f32.mrf.mxu0
  %2689 = vmatprep.mubr.bf16.mxu0 0
  %2690 = vmatmul.mubr.bf16.gmra.mxu0 %v1815
  %v2691 = vpop.f32.mrf.mxu0
  %v2692 = vadd.f32 %v510, %v2691
  %v2693 = vpop.f32.mrf.mxu0
  %v2694 = vpop.f32.mrf.mxu0
  %v2695 = vadd.f32 %v510, %v2694
  %v2696 = vpop.f32.mrf.mxu0
  %2697 = vmatprep.mubr.bf16.mxu0 0
  %2698 = vmatmul.mubr.bf16.gmra.mxu0 %v1818
  %v2699 = vpop.f32.mrf.mxu0
  %v2700 = vadd.f32 %v510, %v2699
  %v2701 = vpop.f32.mrf.mxu0
  %v2702 = vpop.f32.mrf.mxu0
  %v2703 = vadd.f32 %v510, %v2702
  %v2704 = vpop.f32.mrf.mxu0
  %2705 = vmatprep.mubr.bf16.mxu0 0
  %2706 = vmatmul.mubr.bf16.gmra.mxu0 %v1821
  %v2707 = vpop.f32.mrf.mxu0
  %v2708 = vadd.f32 %v510, %v2707
  %v2709 = vpop.f32.mrf.mxu0
  %v2710 = vpop.f32.mrf.mxu0
  %v2711 = vadd.f32 %v510, %v2710
  %v2712 = vpop.f32.mrf.mxu0
  %2713 = vmatprep.mubr.bf16.mxu0 0
  %2714 = vmatmul.mubr.bf16.gmra.mxu0 %v1824
  %v2715 = vpop.f32.mrf.mxu0
  %v2716 = vadd.f32 %v510, %v2715
  %v2717 = vpop.f32.mrf.mxu0
  %v2718 = vpop.f32.mrf.mxu0
  %v2719 = vadd.f32 %v510, %v2718
  %v2720 = vpop.f32.mrf.mxu0
  %2721 = vmatprep.mubr.bf16.mxu0 0
  %2722 = vmatmul.mubr.bf16.gmra.mxu0 %v1827
  %v2723 = vpop.f32.mrf.mxu0
  %v2724 = vadd.f32 %v510, %v2723
  %v2725 = vpop.f32.mrf.mxu0
  %v2726 = vpop.f32.mrf.mxu0
  %v2727 = vadd.f32 %v510, %v2726
  %v2728 = vpop.f32.mrf.mxu0
  %2729 = vmatprep.mubr.bf16.mxu0 0
  %2730 = vmatmul.mubr.bf16.gmra.mxu0 %v1830
  %v2731 = vpop.f32.mrf.mxu0
  %v2732 = vadd.f32 %v510, %v2731
  %v2733 = vpop.f32.mrf.mxu0
  %v2734 = vpop.f32.mrf.mxu0
  %v2735 = vadd.f32 %v510, %v2734
  %v2736 = vpop.f32.mrf.mxu0
  %2737 = vmatprep.mubr.bf16.mxu0 0
  %2738 = vmatmul.mubr.bf16.gmra.mxu0 %v1833
  %v2739 = vpop.f32.mrf.mxu0
  %v2740 = vadd.f32 %v510, %v2739
  %v2741 = vpop.f32.mrf.mxu0
  %v2742 = vpop.f32.mrf.mxu0
  %v2743 = vadd.f32 %v510, %v2742
  %v2744 = vpop.f32.mrf.mxu0
  %2745 = vmatprep.mubr.bf16.mxu0 0
  %2746 = vmatmul.mubr.bf16.gmra.mxu0 %v1836
  %v2747 = vpop.f32.mrf.mxu0
  %v2748 = vadd.f32 %v510, %v2747
  %v2749 = vpop.f32.mrf.mxu0
  %v2750 = vpop.f32.mrf.mxu0
  %v2751 = vadd.f32 %v510, %v2750
  %v2752 = vpop.f32.mrf.mxu0
  %2753 = vmatprep.mubr.bf16.mxu0 0
  %2754 = vmatmul.mubr.bf16.gmra.mxu0 %v1839
  %v2755 = vpop.f32.mrf.mxu0
  %v2756 = vadd.f32 %v510, %v2755
  %v2757 = vpop.f32.mrf.mxu0
  %v2758 = vpop.f32.mrf.mxu0
  %v2759 = vadd.f32 %v510, %v2758
  %v2760 = vpop.f32.mrf.mxu0
  %2761 = vmatprep.mubr.bf16.mxu0 0
  %2762 = vmatmul.mubr.bf16.gmra.mxu0 %v1842
  %v2763 = vpop.f32.mrf.mxu0
  %v2764 = vadd.f32 %v510, %v2763
  %v2765 = vpop.f32.mrf.mxu0
  %v2766 = vpop.f32.mrf.mxu0
  %v2767 = vadd.f32 %v510, %v2766
  %v2768 = vpop.f32.mrf.mxu0
  %2769 = vmatprep.mubr.bf16.mxu0 0
  %2770 = vmatmul.mubr.bf16.gmra.mxu0 %v1845
  %v2771 = vpop.f32.mrf.mxu0
  %v2772 = vadd.f32 %v510, %v2771
  %v2773 = vpop.f32.mrf.mxu0
  %v2774 = vpop.f32.mrf.mxu0
  %v2775 = vadd.f32 %v510, %v2774
  %v2776 = vpop.f32.mrf.mxu0
  %2777 = vmatprep.mubr.bf16.mxu0 0
  %2778 = vmatmul.mubr.bf16.gmra.mxu0 %v1848
  %v2779 = vpop.f32.mrf.mxu0
  %v2780 = vadd.f32 %v510, %v2779
  %v2781 = vpop.f32.mrf.mxu0
  %v2782 = vpop.f32.mrf.mxu0
  %v2783 = vadd.f32 %v510, %v2782
  %v2784 = vpop.f32.mrf.mxu0
  %2785 = vmatprep.mubr.bf16.mxu0 0
  %2786 = vmatmul.mubr.bf16.gmra.mxu0 %v1851
  %v2787 = vpop.f32.mrf.mxu0
  %v2788 = vadd.f32 %v510, %v2787
  %v2789 = vpop.f32.mrf.mxu0
  %v2790 = vpop.f32.mrf.mxu0
  %v2791 = vadd.f32 %v510, %v2790
  %v2792 = vpop.f32.mrf.mxu0
  %2793 = vmatprep.mubr.bf16.mxu0 0
  %2794 = vmatmul.mubr.bf16.gmra.mxu0 %v1854
  %v2795 = vpop.f32.mrf.mxu0
  %v2796 = vadd.f32 %v510, %v2795
  %v2797 = vpop.f32.mrf.mxu0
  %v2798 = vpop.f32.mrf.mxu0
  %v2799 = vadd.f32 %v510, %v2798
  %v2800 = vpop.f32.mrf.mxu0
  %2801 = vmatprep.mubr.bf16.mxu0 0
  %2802 = vmatmul.mubr.bf16.gmra.mxu0 %v1857
  %v2803 = vpop.f32.mrf.mxu0
  %v2804 = vadd.f32 %v510, %v2803
  %v2805 = vpop.f32.mrf.mxu0
  %v2806 = vpop.f32.mrf.mxu0
  %v2807 = vadd.f32 %v510, %v2806
  %v2808 = vpop.f32.mrf.mxu0
  %2809 = vmatprep.mubr.bf16.mxu0 0
  %2810 = vmatmul.mubr.bf16.gmra.mxu0 %v1860
  %v2811 = vpop.f32.mrf.mxu0
  %v2812 = vadd.f32 %v510, %v2811
  %v2813 = vpop.f32.mrf.mxu0
  %v2814 = vpop.f32.mrf.mxu0
  %v2815 = vadd.f32 %v510, %v2814
  %v2816 = vpop.f32.mrf.mxu0
  %2817 = vmatprep.mubr.bf16.mxu0 0
  %2818 = vmatmul.mubr.bf16.gmra.mxu0 %v1863
  %v2819 = vpop.f32.mrf.mxu0
  %v2820 = vadd.f32 %v510, %v2819
  %v2821 = vpop.f32.mrf.mxu0
  %v2822 = vpop.f32.mrf.mxu0
  %v2823 = vadd.f32 %v510, %v2822
  %v2824 = vpop.f32.mrf.mxu0
  %2825 = vmatprep.mubr.bf16.mxu0 0
  %2826 = vmatmul.mubr.bf16.gmra.mxu0 %v1866
  %v2827 = vpop.f32.mrf.mxu0
  %v2828 = vadd.f32 %v510, %v2827
  %v2829 = vpop.f32.mrf.mxu0
  %v2830 = vpop.f32.mrf.mxu0
  %v2831 = vadd.f32 %v510, %v2830
  %v2832 = vpop.f32.mrf.mxu0
  %2833 = vmatprep.mubr.bf16.mxu0 0
  %2834 = vmatmul.mubr.bf16.gmra.mxu0 %v1869
  %v2835 = vpop.f32.mrf.mxu0
  %v2836 = vadd.f32 %v510, %v2835
  %v2837 = vpop.f32.mrf.mxu0
  %v2838 = vpop.f32.mrf.mxu0
  %v2839 = vadd.f32 %v510, %v2838
  %v2840 = vpop.f32.mrf.mxu0
  %2841 = vmatprep.mubr.bf16.mxu0 0
  %2842 = vmatmul.mubr.bf16.gmra.mxu0 %v1872
  %v2843 = vpop.f32.mrf.mxu0
  %v2844 = vadd.f32 %v510, %v2843
  %v2845 = vpop.f32.mrf.mxu0
  %v2846 = vpop.f32.mrf.mxu0
  %v2847 = vadd.f32 %v510, %v2846
  %v2848 = vpop.f32.mrf.mxu0
  %2849 = vmatprep.mubr.bf16.mxu0 0
  %2850 = vmatmul.mubr.bf16.gmra.mxu0 %v1875
  %v2851 = vpop.f32.mrf.mxu0
  %v2852 = vadd.f32 %v510, %v2851
  %v2853 = vpop.f32.mrf.mxu0
  %v2854 = vpop.f32.mrf.mxu0
  %v2855 = vadd.f32 %v510, %v2854
  %v2856 = vpop.f32.mrf.mxu0
  %2857 = vmatprep.mubr.bf16.mxu0 0
  %2858 = vmatmul.mubr.bf16.gmra.mxu0 %v1878
  %v2859 = vpop.f32.mrf.mxu0
  %v2860 = vadd.f32 %v510, %v2859
  %v2861 = vpop.f32.mrf.mxu0
  %v2862 = vpop.f32.mrf.mxu0
  %v2863 = vadd.f32 %v510, %v2862
  %v2864 = vpop.f32.mrf.mxu0
  %2865 = vmatprep.mubr.bf16.mxu0 0
  %2866 = vmatmul.mubr.bf16.gmra.mxu0 %v1881
  %v2867 = vpop.f32.mrf.mxu0
  %v2868 = vadd.f32 %v510, %v2867
  %v2869 = vpop.f32.mrf.mxu0
  %v2870 = vpop.f32.mrf.mxu0
  %v2871 = vadd.f32 %v510, %v2870
  %v2872 = vpop.f32.mrf.mxu0
  %2873 = vmatprep.mubr.bf16.mxu0 0
  %2874 = vmatmul.mubr.bf16.gmra.mxu0 %v1884
  %v2875 = vpop.f32.mrf.mxu0
  %v2876 = vadd.f32 %v510, %v2875
  %v2877 = vpop.f32.mrf.mxu0
  %v2878 = vpop.f32.mrf.mxu0
  %v2879 = vadd.f32 %v510, %v2878
  %v2880 = vpop.f32.mrf.mxu0
  %2881 = vmatprep.mubr.bf16.mxu0 0
  %2882 = vmatmul.mubr.bf16.gmra.mxu0 %v1887
  %v2883 = vpop.f32.mrf.mxu0
  %v2884 = vadd.f32 %v510, %v2883
  %v2885 = vpop.f32.mrf.mxu0
  %v2886 = vpop.f32.mrf.mxu0
  %v2887 = vadd.f32 %v510, %v2886
  %v2888 = vpop.f32.mrf.mxu0
  %2889 = vmatprep.mubr.bf16.mxu0 0
  %2890 = vmatmul.mubr.bf16.gmra.mxu0 %v1890
  %v2891 = vpop.f32.mrf.mxu0
  %v2892 = vadd.f32 %v510, %v2891
  %v2893 = vpop.f32.mrf.mxu0
  %v2894 = vpop.f32.mrf.mxu0
  %v2895 = vadd.f32 %v510, %v2894
  %v2896 = vpop.f32.mrf.mxu0
  %2897 = vmatprep.mubr.bf16.mxu0 0
  %2898 = vmatmul.mubr.bf16.gmra.mxu0 %v1893
  %v2899 = vpop.f32.mrf.mxu0
  %v2900 = vadd.f32 %v510, %v2899
  %v2901 = vpop.f32.mrf.mxu0
  %v2902 = vpop.f32.mrf.mxu0
  %v2903 = vadd.f32 %v510, %v2902
  %v2904 = vpop.f32.mrf.mxu0
  %2905 = vmatprep.mubr.bf16.mxu0 0
  %2906 = vmatmul.mubr.bf16.gmra.mxu0 %v1896
  %v2907 = vpop.f32.mrf.mxu0
  %v2908 = vadd.f32 %v510, %v2907
  %v2909 = vpop.f32.mrf.mxu0
  %v2910 = vpop.f32.mrf.mxu0
  %v2911 = vadd.f32 %v510, %v2910
  %v2912 = vpop.f32.mrf.mxu0
  %2913 = vmatprep.mubr.bf16.mxu0 0
  %2914 = vmatmul.mubr.bf16.gmra.mxu0 %v1899
  %v2915 = vpop.f32.mrf.mxu0
  %v2916 = vadd.f32 %v510, %v2915
  %v2917 = vpop.f32.mrf.mxu0
  %v2918 = vpop.f32.mrf.mxu0
  %v2919 = vadd.f32 %v510, %v2918
  %v2920 = vpop.f32.mrf.mxu0
  %2921 = vmatprep.mubr.bf16.mxu0 0
  %2922 = vmatmul.mubr.bf16.gmra.mxu0 %v1902
  %v2923 = vpop.f32.mrf.mxu0
  %v2924 = vadd.f32 %v510, %v2923
  %v2925 = vpop.f32.mrf.mxu0
  %v2926 = vpop.f32.mrf.mxu0
  %v2927 = vadd.f32 %v510, %v2926
  %v2928 = vpop.f32.mrf.mxu0
  %2929 = vmatprep.mubr.bf16.mxu0 0
  %2930 = vmatmul.mubr.bf16.gmra.mxu0 %v1905
  %v2931 = vpop.f32.mrf.mxu0
  %v2932 = vadd.f32 %v510, %v2931
  %v2933 = vpop.f32.mrf.mxu0
  %v2934 = vpop.f32.mrf.mxu0
  %v2935 = vadd.f32 %v510, %v2934
  %v2936 = vpop.f32.mrf.mxu0
  %2937 = vmatprep.mubr.bf16.mxu0 0
  %2938 = vmatmul.mubr.bf16.gmra.mxu0 %v1908
  %v2939 = vpop.f32.mrf.mxu0
  %v2940 = vadd.f32 %v510, %v2939
  %v2941 = vpop.f32.mrf.mxu0
  %v2942 = vpop.f32.mrf.mxu0
  %v2943 = vadd.f32 %v510, %v2942
  %v2944 = vpop.f32.mrf.mxu0
  %2945 = vmatprep.mubr.bf16.mxu0 0
  %2946 = vmatmul.mubr.bf16.gmra.mxu0 %v1911
  %v2947 = vpop.f32.mrf.mxu0
  %v2948 = vadd.f32 %v510, %v2947
  %v2949 = vpop.f32.mrf.mxu0
  %v2950 = vpop.f32.mrf.mxu0
  %v2951 = vadd.f32 %v510, %v2950
  %v2952 = vpop.f32.mrf.mxu0
  %2953 = vmatprep.mubr.bf16.mxu0 0
  %2954 = vmatmul.mubr.bf16.gmra.mxu0 %v1914
  %v2955 = vpop.f32.mrf.mxu0
  %v2956 = vadd.f32 %v510, %v2955
  %v2957 = vpop.f32.mrf.mxu0
  %v2958 = vpop.f32.mrf.mxu0
  %v2959 = vadd.f32 %v510, %v2958
  %v2960 = vpop.f32.mrf.mxu0
  %2961 = vmatprep.mubr.bf16.mxu0 0
  %2962 = vmatmul.mubr.bf16.gmra.mxu0 %v1917
  %v2963 = vpop.f32.mrf.mxu0
  %v2964 = vadd.f32 %v510, %v2963
  %v2965 = vpop.f32.mrf.mxu0
  %v2966 = vpop.f32.mrf.mxu0
  %v2967 = vadd.f32 %v510, %v2966
  %v2968 = vpop.f32.mrf.mxu0
  %2969 = vmatprep.mubr.bf16.mxu0 0
  %2970 = vmatmul.mubr.bf16.gmra.mxu0 %v1920
  %v2971 = vpop.f32.mrf.mxu0
  %v2972 = vadd.f32 %v510, %v2971
  %v2973 = vpop.f32.mrf.mxu0
  %v2974 = vpop.f32.mrf.mxu0
  %v2975 = vadd.f32 %v510, %v2974
  %v2976 = vpop.f32.mrf.mxu0
  %2977 = vmatprep.mubr.bf16.mxu0 0
  %2978 = vmatmul.mubr.bf16.gmra.mxu0 %v1923
  %v2979 = vpop.f32.mrf.mxu0
  %v2980 = vadd.f32 %v510, %v2979
  %v2981 = vpop.f32.mrf.mxu0
  %v2982 = vpop.f32.mrf.mxu0
  %v2983 = vadd.f32 %v510, %v2982
  %v2984 = vpop.f32.mrf.mxu0
  %2985 = vmatprep.mubr.bf16.mxu0 0
  %2986 = vmatmul.mubr.bf16.gmra.mxu0 %v1926
  %v2987 = vpop.f32.mrf.mxu0
  %v2988 = vadd.f32 %v510, %v2987
  %v2989 = vpop.f32.mrf.mxu0
  %v2990 = vpop.f32.mrf.mxu0
  %v2991 = vadd.f32 %v510, %v2990
  %v2992 = vpop.f32.mrf.mxu0
  %2993 = vmatprep.mubr.bf16.mxu0 0
  %2994 = vmatmul.mubr.bf16.gmra.mxu0 %v1929
  %v2995 = vpop.f32.mrf.mxu0
  %v2996 = vadd.f32 %v510, %v2995
  %v2997 = vpop.f32.mrf.mxu0
  %v2998 = vpop.f32.mrf.mxu0
  %v2999 = vadd.f32 %v510, %v2998
  %v3000 = vpop.f32.mrf.mxu0
  %3001 = vmatprep.mubr.bf16.mxu0 0
  %3002 = vmatmul.mubr.bf16.gmra.mxu0 %v1932
  %v3003 = vpop.f32.mrf.mxu0
  %v3004 = vadd.f32 %v510, %v3003
  %v3005 = vpop.f32.mrf.mxu0
  %v3006 = vpop.f32.mrf.mxu0
  %v3007 = vadd.f32 %v510, %v3006
  %v3008 = vpop.f32.mrf.mxu0
  %3009 = vmatprep.mubr.bf16.mxu0 0
  %3010 = vmatmul.mubr.bf16.gmra.mxu0 %v1935
  %v3011 = vpop.f32.mrf.mxu0
  %v3012 = vadd.f32 %v510, %v3011
  %v3013 = vpop.f32.mrf.mxu0
  %v3014 = vpop.f32.mrf.mxu0
  %v3015 = vadd.f32 %v510, %v3014
  %v3016 = vpop.f32.mrf.mxu0
  %3017 = vmatprep.mubr.bf16.mxu0 0
  %3018 = vmatmul.mubr.bf16.gmra.mxu0 %v1938
  %v3019 = vpop.f32.mrf.mxu0
  %v3020 = vadd.f32 %v510, %v3019
  %v3021 = vpop.f32.mrf.mxu0
  %v3022 = vpop.f32.mrf.mxu0
  %v3023 = vadd.f32 %v510, %v3022
  %v3024 = vpop.f32.mrf.mxu0
  %3025 = vmatprep.mubr.bf16.mxu0 0
  %3026 = vmatmul.mubr.bf16.gmra.mxu0 %v1941
  %v3027 = vpop.f32.mrf.mxu0
  %v3028 = vadd.f32 %v510, %v3027
  %v3029 = vpop.f32.mrf.mxu0
  %v3030 = vpop.f32.mrf.mxu0
  %v3031 = vadd.f32 %v510, %v3030
  %v3032 = vpop.f32.mrf.mxu0
  %3033 = vmatprep.mubr.bf16.mxu0 0
  %3034 = vmatmul.mubr.bf16.gmra.mxu0 %v1944
  %v3035 = vpop.f32.mrf.mxu0
  %v3036 = vadd.f32 %v510, %v3035
  %v3037 = vpop.f32.mrf.mxu0
  %v3038 = vpop.f32.mrf.mxu0
  %v3039 = vadd.f32 %v510, %v3038
  %v3040 = vpop.f32.mrf.mxu0
  %3041 = vmatprep.mubr.bf16.mxu0 0
  %3042 = vmatmul.mubr.bf16.gmra.mxu0 %v1947
  %v3043 = vpop.f32.mrf.mxu0
  %v3044 = vadd.f32 %v510, %v3043
  %v3045 = vpop.f32.mrf.mxu0
  %v3046 = vpop.f32.mrf.mxu0
  %v3047 = vadd.f32 %v510, %v3046
  %v3048 = vpop.f32.mrf.mxu0
  %3049 = vmatprep.mubr.bf16.mxu0 0
  %3050 = vmatmul.mubr.bf16.gmra.mxu0 %v1950
  %v3051 = vpop.f32.mrf.mxu0
  %v3052 = vadd.f32 %v510, %v3051
  %v3053 = vpop.f32.mrf.mxu0
  %v3054 = vpop.f32.mrf.mxu0
  %v3055 = vadd.f32 %v510, %v3054
  %v3056 = vpop.f32.mrf.mxu0
  %3057 = vmatprep.mubr.bf16.mxu0 0
  %3058 = vmatmul.mubr.bf16.gmra.mxu0 %v1953
  %v3059 = vpop.f32.mrf.mxu0
  %v3060 = vadd.f32 %v510, %v3059
  %v3061 = vpop.f32.mrf.mxu0
  %v3062 = vpop.f32.mrf.mxu0
  %v3063 = vadd.f32 %v510, %v3062
  %v3064 = vpop.f32.mrf.mxu0
  %3065 = vmatprep.mubr.bf16.mxu0 0
  %3066 = vmatmul.mubr.bf16.gmra.mxu0 %v1956
  %v3067 = vpop.f32.mrf.mxu0
  %v3068 = vadd.f32 %v510, %v3067
  %v3069 = vpop.f32.mrf.mxu0
  %v3070 = vpop.f32.mrf.mxu0
  %v3071 = vadd.f32 %v510, %v3070
  %v3072 = vpop.f32.mrf.mxu0
  %3073 = vmatprep.mubr.bf16.mxu0 0
  %3074 = vmatmul.mubr.bf16.gmra.mxu0 %v1959
  %v3075 = vpop.f32.mrf.mxu0
  %v3076 = vadd.f32 %v510, %v3075
  %v3077 = vpop.f32.mrf.mxu0
  %v3078 = vpop.f32.mrf.mxu0
  %v3079 = vadd.f32 %v510, %v3078
  %v3080 = vpop.f32.mrf.mxu0
  %3081 = vmatprep.mubr.bf16.mxu0 0
  %3082 = vmatmul.mubr.bf16.gmra.mxu0 %v1962
  %v3083 = vpop.f32.mrf.mxu0
  %v3084 = vadd.f32 %v510, %v3083
  %v3085 = vpop.f32.mrf.mxu0
  %v3086 = vpop.f32.mrf.mxu0
  %v3087 = vadd.f32 %v510, %v3086
  %v3088 = vpop.f32.mrf.mxu0
  %3089 = vmatprep.mubr.bf16.mxu0 0
  %3090 = vmatmul.mubr.bf16.gmra.mxu0 %v1965
  %v3091 = vpop.f32.mrf.mxu0
  %v3092 = vadd.f32 %v510, %v3091
  %v3093 = vpop.f32.mrf.mxu0
  %v3094 = vpop.f32.mrf.mxu0
  %v3095 = vadd.f32 %v510, %v3094
  %v3096 = vpop.f32.mrf.mxu0
  %3097 = vmatprep.mubr.bf16.mxu0 0
  %3098 = vmatmul.mubr.bf16.gmra.mxu0 %v1968
  %v3099 = vpop.f32.mrf.mxu0
  %v3100 = vadd.f32 %v510, %v3099
  %v3101 = vpop.f32.mrf.mxu0
  %v3102 = vpop.f32.mrf.mxu0
  %v3103 = vadd.f32 %v510, %v3102
  %v3104 = vpop.f32.mrf.mxu0
  %3105 = vmatprep.mubr.bf16.mxu0 0
  %3106 = vmatmul.mubr.bf16.gmra.mxu0 %v1971
  %v3107 = vpop.f32.mrf.mxu0
  %v3108 = vadd.f32 %v510, %v3107
  %v3109 = vpop.f32.mrf.mxu0
  %v3110 = vpop.f32.mrf.mxu0
  %v3111 = vadd.f32 %v510, %v3110
  %v3112 = vpop.f32.mrf.mxu0
  %3113 = vmatprep.mubr.bf16.mxu0 0
  %3114 = vmatmul.mubr.bf16.gmra.mxu0 %v1974
  %v3115 = vpop.f32.mrf.mxu0
  %v3116 = vadd.f32 %v510, %v3115
  %v3117 = vpop.f32.mrf.mxu0
  %v3118 = vpop.f32.mrf.mxu0
  %v3119 = vadd.f32 %v510, %v3118
  %v3120 = vpop.f32.mrf.mxu0
  %3121 = vmatprep.mubr.bf16.mxu0 0
  %3122 = vmatmul.mubr.bf16.gmra.mxu0 %v1977
  %v3123 = vpop.f32.mrf.mxu0
  %v3124 = vadd.f32 %v510, %v3123
  %v3125 = vpop.f32.mrf.mxu0
  %v3126 = vpop.f32.mrf.mxu0
  %v3127 = vadd.f32 %v510, %v3126
  %v3128 = vpop.f32.mrf.mxu0
  %3129 = vmatprep.mubr.bf16.mxu0 0
  %3130 = vmatmul.mubr.bf16.gmra.mxu0 %v1980
  %v3131 = vpop.f32.mrf.mxu0
  %v3132 = vadd.f32 %v510, %v3131
  %v3133 = vpop.f32.mrf.mxu0
  %v3134 = vpop.f32.mrf.mxu0
  %v3135 = vadd.f32 %v510, %v3134
  %v3136 = vpop.f32.mrf.mxu0
  %3137 = vmatprep.mubr.bf16.mxu0 0
  %3138 = vmatmul.mubr.bf16.gmra.mxu0 %v1983
  %v3139 = vpop.f32.mrf.mxu0
  %v3140 = vadd.f32 %v510, %v3139
  %v3141 = vpop.f32.mrf.mxu0
  %v3142 = vpop.f32.mrf.mxu0
  %v3143 = vadd.f32 %v510, %v3142
  %v3144 = vpop.f32.mrf.mxu0
  %3145 = vmatprep.mubr.bf16.mxu0 0
  %3146 = vmatmul.mubr.bf16.gmra.mxu0 %v1986
  %v3147 = vpop.f32.mrf.mxu0
  %v3148 = vadd.f32 %v510, %v3147
  %v3149 = vpop.f32.mrf.mxu0
  %v3150 = vpop.f32.mrf.mxu0
  %v3151 = vadd.f32 %v510, %v3150
  %v3152 = vpop.f32.mrf.mxu0
  %3153 = vmatprep.mubr.bf16.mxu0 0
  %3154 = vmatmul.mubr.bf16.gmra.mxu0 %v1989
  %v3155 = vpop.f32.mrf.mxu0
  %v3156 = vadd.f32 %v510, %v3155
  %v3157 = vpop.f32.mrf.mxu0
  %v3158 = vpop.f32.mrf.mxu0
  %v3159 = vadd.f32 %v510, %v3158
  %v3160 = vpop.f32.mrf.mxu0
  %3161 = vmatprep.mubr.bf16.mxu0 0
  %3162 = vmatmul.mubr.bf16.gmra.mxu0 %v1992
  %v3163 = vpop.f32.mrf.mxu0
  %v3164 = vadd.f32 %v510, %v3163
  %v3165 = vpop.f32.mrf.mxu0
  %v3166 = vpop.f32.mrf.mxu0
  %v3167 = vadd.f32 %v510, %v3166
  %v3168 = vpop.f32.mrf.mxu0
  %3169 = vmatprep.mubr.bf16.mxu0 0
  %3170 = vmatmul.mubr.bf16.gmra.mxu0 %v1995
  %v3171 = vpop.f32.mrf.mxu0
  %v3172 = vadd.f32 %v510, %v3171
  %v3173 = vpop.f32.mrf.mxu0
  %v3174 = vpop.f32.mrf.mxu0
  %v3175 = vadd.f32 %v510, %v3174
  %v3176 = vpop.f32.mrf.mxu0
  %3177 = vmatprep.mubr.bf16.mxu0 0
  %3178 = vmatmul.mubr.bf16.gmra.mxu0 %v1998
  %v3179 = vpop.f32.mrf.mxu0
  %v3180 = vadd.f32 %v510, %v3179
  %v3181 = vpop.f32.mrf.mxu0
  %v3182 = vpop.f32.mrf.mxu0
  %v3183 = vadd.f32 %v510, %v3182
  %v3184 = vpop.f32.mrf.mxu0
  %3185 = vmatprep.mubr.bf16.mxu0 0
  %3186 = vmatmul.mubr.bf16.gmra.mxu0 %v2001
  %v3187 = vpop.f32.mrf.mxu0
  %v3188 = vadd.f32 %v510, %v3187
  %v3189 = vpop.f32.mrf.mxu0
  %v3190 = vpop.f32.mrf.mxu0
  %v3191 = vadd.f32 %v510, %v3190
  %v3192 = vpop.f32.mrf.mxu0
  %3193 = vmatprep.mubr.bf16.mxu0 0
  %3194 = vmatmul.mubr.bf16.gmra.mxu0 %v2004
  %v3195 = vpop.f32.mrf.mxu0
  %v3196 = vadd.f32 %v510, %v3195
  %v3197 = vpop.f32.mrf.mxu0
  %v3198 = vpop.f32.mrf.mxu0
  %v3199 = vadd.f32 %v510, %v3198
  %v3200 = vpop.f32.mrf.mxu0
  %3201 = vmatprep.mubr.bf16.mxu0 0
  %3202 = vmatmul.mubr.bf16.gmra.mxu0 %v2007
  %v3203 = vpop.f32.mrf.mxu0
  %v3204 = vadd.f32 %v510, %v3203
  %v3205 = vpop.f32.mrf.mxu0
  %v3206 = vpop.f32.mrf.mxu0
  %v3207 = vadd.f32 %v510, %v3206
  %v3208 = vpop.f32.mrf.mxu0
  %3209 = vmatprep.mubr.bf16.mxu0 0
  %3210 = vmatmul.mubr.bf16.gmra.mxu0 %v2010
  %v3211 = vpop.f32.mrf.mxu0
  %v3212 = vadd.f32 %v510, %v3211
  %v3213 = vpop.f32.mrf.mxu0
  %v3214 = vpop.f32.mrf.mxu0
  %v3215 = vadd.f32 %v510, %v3214
  %v3216 = vpop.f32.mrf.mxu0
  %3217 = vmatprep.mubr.bf16.mxu0 0
  %3218 = vmatmul.mubr.bf16.gmra.mxu0 %v2013
  %v3219 = vpop.f32.mrf.mxu0
  %v3220 = vadd.f32 %v510, %v3219
  %v3221 = vpop.f32.mrf.mxu0
  %v3222 = vpop.f32.mrf.mxu0
  %v3223 = vadd.f32 %v510, %v3222
  %v3224 = vpop.f32.mrf.mxu0
  %3225 = vmatprep.mubr.bf16.mxu0 0
  %3226 = vmatmul.mubr.bf16.gmra.mxu0 %v2016
  %v3227 = vpop.f32.mrf.mxu0
  %v3228 = vadd.f32 %v510, %v3227
  %v3229 = vpop.f32.mrf.mxu0
  %v3230 = vpop.f32.mrf.mxu0
  %v3231 = vadd.f32 %v510, %v3230
  %v3232 = vpop.f32.mrf.mxu0
  %3233 = vmatprep.mubr.bf16.mxu0 0
  %3234 = vmatmul.mubr.bf16.gmra.mxu0 %v2019
  %v3235 = vpop.f32.mrf.mxu0
  %v3236 = vadd.f32 %v510, %v3235
  %v3237 = vpop.f32.mrf.mxu0
  %v3238 = vpop.f32.mrf.mxu0
  %v3239 = vadd.f32 %v510, %v3238
  %v3240 = vpop.f32.mrf.mxu0
  %3241 = vmatprep.mubr.bf16.mxu0 0
  %3242 = vmatmul.mubr.bf16.gmra.mxu0 %v2022
  %v3243 = vpop.f32.mrf.mxu0
  %v3244 = vadd.f32 %v510, %v3243
  %v3245 = vpop.f32.mrf.mxu0
  %v3246 = vpop.f32.mrf.mxu0
  %v3247 = vadd.f32 %v510, %v3246
  %v3248 = vpop.f32.mrf.mxu0
  %3249 = vmatprep.mubr.bf16.mxu0 0
  %3250 = vmatmul.mubr.bf16.gmra.mxu0 %v2025
  %v3251 = vpop.f32.mrf.mxu0
  %v3252 = vadd.f32 %v510, %v3251
  %v3253 = vpop.f32.mrf.mxu0
  %v3254 = vpop.f32.mrf.mxu0
  %v3255 = vadd.f32 %v510, %v3254
  %v3256 = vpop.f32.mrf.mxu0
  %3257 = vmatprep.mubr.bf16.mxu0 0
  %3258 = vmatmul.mubr.bf16.gmra.mxu0 %v2028
  %v3259 = vpop.f32.mrf.mxu0
  %v3260 = vadd.f32 %v510, %v3259
  %v3261 = vpop.f32.mrf.mxu0
  %v3262 = vpop.f32.mrf.mxu0
  %v3263 = vadd.f32 %v510, %v3262
  %v3264 = vpop.f32.mrf.mxu0
  %3265 = vmatprep.mubr.bf16.mxu0 0
  %3266 = vmatmul.mubr.bf16.gmra.mxu0 %v2031
  %v3267 = vpop.f32.mrf.mxu0
  %v3268 = vadd.f32 %v510, %v3267
  %v3269 = vpop.f32.mrf.mxu0
  %v3270 = vpop.f32.mrf.mxu0
  %v3271 = vadd.f32 %v510, %v3270
  %v3272 = vpop.f32.mrf.mxu0
  %3273 = vmatprep.mubr.bf16.mxu0 0
  %3274 = vmatmul.mubr.bf16.gmra.mxu0 %v2034
  %v3275 = vpop.f32.mrf.mxu0
  %v3276 = vadd.f32 %v510, %v3275
  %v3277 = vpop.f32.mrf.mxu0
  %v3278 = vpop.f32.mrf.mxu0
  %v3279 = vadd.f32 %v510, %v3278
  %v3280 = vpop.f32.mrf.mxu0
  %3281 = vmatprep.mubr.bf16.mxu0 0
  %3282 = vmatmul.mubr.bf16.gmra.mxu0 %v2037
  %v3283 = vpop.f32.mrf.mxu0
  %v3284 = vadd.f32 %v510, %v3283
  %v3285 = vpop.f32.mrf.mxu0
  %v3286 = vpop.f32.mrf.mxu0
  %v3287 = vadd.f32 %v510, %v3286
  %v3288 = vpop.f32.mrf.mxu0
  %3289 = vmatprep.mubr.bf16.mxu0 0
  %3290 = vmatmul.mubr.bf16.gmra.mxu0 %v2040
  %v3291 = vpop.f32.mrf.mxu0
  %v3292 = vadd.f32 %v510, %v3291
  %v3293 = vpop.f32.mrf.mxu0
  %v3294 = vpop.f32.mrf.mxu0
  %v3295 = vadd.f32 %v510, %v3294
  %v3296 = vpop.f32.mrf.mxu0
  %3297 = vmatprep.mubr.bf16.mxu0 0
  %3298 = vmatmul.mubr.bf16.gmra.mxu0 %v2043
  %v3299 = vpop.f32.mrf.mxu0
  %v3300 = vadd.f32 %v510, %v3299
  %v3301 = vpop.f32.mrf.mxu0
  %v3302 = vpop.f32.mrf.mxu0
  %v3303 = vadd.f32 %v510, %v3302
  %v3304 = vpop.f32.mrf.mxu0
  %3305 = vmatprep.mubr.bf16.mxu0 0
  %3306 = vmatmul.mubr.bf16.gmra.mxu0 %v2046
  %v3307 = vpop.f32.mrf.mxu0
  %v3308 = vadd.f32 %v510, %v3307
  %v3309 = vpop.f32.mrf.mxu0
  %v3310 = vpop.f32.mrf.mxu0
  %v3311 = vadd.f32 %v510, %v3310
  %v3312 = vpop.f32.mrf.mxu0
  %3313 = vmatprep.mubr.bf16.mxu0 0
  %3314 = vmatmul.mubr.bf16.gmra.mxu0 %v2049
  %v3315 = vpop.f32.mrf.mxu0
  %v3316 = vadd.f32 %v510, %v3315
  %v3317 = vpop.f32.mrf.mxu0
  %v3318 = vpop.f32.mrf.mxu0
  %v3319 = vadd.f32 %v510, %v3318
  %v3320 = vpop.f32.mrf.mxu0
  %3321 = vmatprep.mubr.bf16.mxu0 0
  %3322 = vmatmul.mubr.bf16.gmra.mxu0 %v2052
  %v3323 = vpop.f32.mrf.mxu0
  %v3324 = vadd.f32 %v510, %v3323
  %v3325 = vpop.f32.mrf.mxu0
  %v3326 = vpop.f32.mrf.mxu0
  %v3327 = vadd.f32 %v510, %v3326
  %v3328 = vpop.f32.mrf.mxu0
  %3329 = vmatprep.mubr.bf16.mxu0 0
  %3330 = vmatmul.mubr.bf16.gmra.mxu0 %v2055
  %v3331 = vpop.f32.mrf.mxu0
  %v3332 = vadd.f32 %v510, %v3331
  %v3333 = vpop.f32.mrf.mxu0
  %v3334 = vpop.f32.mrf.mxu0
  %v3335 = vadd.f32 %v510, %v3334
  %v3336 = vpop.f32.mrf.mxu0
  %3337 = vmatprep.mubr.bf16.mxu0 0
  %3338 = vmatmul.mubr.bf16.gmra.mxu0 %v2058
  %v3339 = vpop.f32.mrf.mxu0
  %v3340 = vadd.f32 %v510, %v3339
  %v3341 = vpop.f32.mrf.mxu0
  %v3342 = vpop.f32.mrf.mxu0
  %v3343 = vadd.f32 %v510, %v3342
  %v3344 = vpop.f32.mrf.mxu0
  %3345 = vmatprep.mubr.bf16.mxu0 0
  %3346 = vmatmul.mubr.bf16.gmra.mxu0 %v2061
  %v3347 = vpop.f32.mrf.mxu0
  %v3348 = vadd.f32 %v510, %v3347
  %v3349 = vpop.f32.mrf.mxu0
  %v3350 = vpop.f32.mrf.mxu0
  %v3351 = vadd.f32 %v510, %v3350
  %v3352 = vpop.f32.mrf.mxu0
  %3353 = vmatprep.mubr.bf16.mxu0 0
  %3354 = vmatmul.mubr.bf16.gmra.mxu0 %v2064
  %v3355 = vpop.f32.mrf.mxu0
  %v3356 = vadd.f32 %v510, %v3355
  %v3357 = vpop.f32.mrf.mxu0
  %v3358 = vpop.f32.mrf.mxu0
  %v3359 = vadd.f32 %v510, %v3358
  %v3360 = vpop.f32.mrf.mxu0
  %3361 = vmatprep.mubr.bf16.mxu0 0
  %3362 = vmatmul.mubr.bf16.gmra.mxu0 %v2067
  %v3363 = vpop.f32.mrf.mxu0
  %v3364 = vadd.f32 %v510, %v3363
  %v3365 = vpop.f32.mrf.mxu0
  %v3366 = vpop.f32.mrf.mxu0
  %v3367 = vadd.f32 %v510, %v3366
  %v3368 = vpop.f32.mrf.mxu0
  %3369 = vmatprep.mubr.bf16.mxu0 0
  %3370 = vmatmul.mubr.bf16.gmra.mxu0 %v2070
  %v3371 = vpop.f32.mrf.mxu0
  %v3372 = vadd.f32 %v510, %v3371
  %v3373 = vpop.f32.mrf.mxu0
  %v3374 = vpop.f32.mrf.mxu0
  %v3375 = vadd.f32 %v510, %v3374
  %v3376 = vpop.f32.mrf.mxu0
  %3377 = vmatprep.mubr.bf16.mxu0 0
  %3378 = vmatmul.mubr.bf16.gmra.mxu0 %v2073
  %v3379 = vpop.f32.mrf.mxu0
  %v3380 = vadd.f32 %v510, %v3379
  %v3381 = vpop.f32.mrf.mxu0
  %v3382 = vpop.f32.mrf.mxu0
  %v3383 = vadd.f32 %v510, %v3382
  %v3384 = vpop.f32.mrf.mxu0
  %3385 = vmatprep.mubr.bf16.mxu0 0
  %3386 = vmatmul.mubr.bf16.gmra.mxu0 %v2076
  %v3387 = vpop.f32.mrf.mxu0
  %v3388 = vadd.f32 %v510, %v3387
  %v3389 = vpop.f32.mrf.mxu0
  %v3390 = vpop.f32.mrf.mxu0
  %v3391 = vadd.f32 %v510, %v3390
  %v3392 = vpop.f32.mrf.mxu0
  %3393 = vmatprep.mubr.bf16.mxu0 0
  %3394 = vmatmul.mubr.bf16.gmra.mxu0 %v2079
  %v3395 = vpop.f32.mrf.mxu0
  %v3396 = vadd.f32 %v510, %v3395
  %v3397 = vpop.f32.mrf.mxu0
  %v3398 = vpop.f32.mrf.mxu0
  %v3399 = vadd.f32 %v510, %v3398
  %v3400 = vpop.f32.mrf.mxu0
  %3401 = vmatprep.mubr.bf16.mxu0 0
  %3402 = vmatmul.mubr.bf16.gmra.mxu0 %v2082
  %v3403 = vpop.f32.mrf.mxu0
  %v3404 = vadd.f32 %v510, %v3403
  %v3405 = vpop.f32.mrf.mxu0
  %v3406 = vpop.f32.mrf.mxu0
  %v3407 = vadd.f32 %v510, %v3406
  %v3408 = vpop.f32.mrf.mxu0
  %3409 = vmatprep.mubr.bf16.mxu0 0
  %3410 = vmatmul.mubr.bf16.gmra.mxu0 %v2085
  %v3411 = vpop.f32.mrf.mxu0
  %v3412 = vadd.f32 %v510, %v3411
  %v3413 = vpop.f32.mrf.mxu0
  %v3414 = vpop.f32.mrf.mxu0
  %v3415 = vadd.f32 %v510, %v3414
  %v3416 = vpop.f32.mrf.mxu0
  %3417 = vmatprep.mubr.bf16.mxu0 0
  %3418 = vmatmul.mubr.bf16.gmra.mxu0 %v2088
  %v3419 = vpop.f32.mrf.mxu0
  %v3420 = vadd.f32 %v510, %v3419
  %v3421 = vpop.f32.mrf.mxu0
  %v3422 = vpop.f32.mrf.mxu0
  %v3423 = vadd.f32 %v510, %v3422
  %v3424 = vpop.f32.mrf.mxu0
  %3425 = vmatprep.mubr.bf16.mxu0 0
  %3426 = vmatmul.mubr.bf16.gmra.mxu0 %v2091
  %v3427 = vpop.f32.mrf.mxu0
  %v3428 = vadd.f32 %v510, %v3427
  %v3429 = vpop.f32.mrf.mxu0
  %v3430 = vpop.f32.mrf.mxu0
  %v3431 = vadd.f32 %v510, %v3430
  %v3432 = vpop.f32.mrf.mxu0
  %3433 = vmatprep.mubr.bf16.mxu0 0
  %3434 = vmatmul.mubr.bf16.gmra.mxu0 %v2094
  %v3435 = vpop.f32.mrf.mxu0
  %v3436 = vadd.f32 %v510, %v3435
  %v3437 = vpop.f32.mrf.mxu0
  %v3438 = vpop.f32.mrf.mxu0
  %v3439 = vadd.f32 %v510, %v3438
  %v3440 = vpop.f32.mrf.mxu0
  %3441 = vmatprep.mubr.bf16.mxu0 0
  %3442 = vmatmul.mubr.bf16.gmra.mxu0 %v2097
  %v3443 = vpop.f32.mrf.mxu0
  %v3444 = vadd.f32 %v510, %v3443
  %v3445 = vpop.f32.mrf.mxu0
  %v3446 = vpop.f32.mrf.mxu0
  %v3447 = vadd.f32 %v510, %v3446
  %v3448 = vpop.f32.mrf.mxu0
  %3449 = vmatprep.mubr.bf16.mxu0 0
  %3450 = vmatmul.mubr.bf16.gmra.mxu0 %v2100
  %v3451 = vpop.f32.mrf.mxu0
  %v3452 = vadd.f32 %v510, %v3451
  %v3453 = vpop.f32.mrf.mxu0
  %v3454 = vpop.f32.mrf.mxu0
  %v3455 = vadd.f32 %v510, %v3454
  %v3456 = vpop.f32.mrf.mxu0
  %3457 = vmatprep.mubr.bf16.mxu0 0
  %3458 = vmatmul.mubr.bf16.gmra.mxu0 %v2103
  %v3459 = vpop.f32.mrf.mxu0
  %v3460 = vadd.f32 %v510, %v3459
  %v3461 = vpop.f32.mrf.mxu0
  %v3462 = vpop.f32.mrf.mxu0
  %v3463 = vadd.f32 %v510, %v3462
  %v3464 = vpop.f32.mrf.mxu0
  %3465 = vmatprep.mubr.bf16.mxu0 0
  %3466 = vmatmul.mubr.bf16.gmra.mxu0 %v2106
  %v3467 = vpop.f32.mrf.mxu0
  %v3468 = vadd.f32 %v510, %v3467
  %v3469 = vpop.f32.mrf.mxu0
  %v3470 = vpop.f32.mrf.mxu0
  %v3471 = vadd.f32 %v510, %v3470
  %v3472 = vpop.f32.mrf.mxu0
  %3473 = vmatprep.mubr.bf16.mxu0 0
  %3474 = vmatmul.mubr.bf16.gmra.mxu0 %v2109
  %v3475 = vpop.f32.mrf.mxu0
  %v3476 = vadd.f32 %v510, %v3475
  %v3477 = vpop.f32.mrf.mxu0
  %v3478 = vpop.f32.mrf.mxu0
  %v3479 = vadd.f32 %v510, %v3478
  %v3480 = vpop.f32.mrf.mxu0
  %3481 = vmatprep.mubr.bf16.mxu0 0
  %3482 = vmatmul.mubr.bf16.gmra.mxu0 %v2112
  %v3483 = vpop.f32.mrf.mxu0
  %v3484 = vadd.f32 %v510, %v3483
  %v3485 = vpop.f32.mrf.mxu0
  %v3486 = vpop.f32.mrf.mxu0
  %v3487 = vadd.f32 %v510, %v3486
  %v3488 = vpop.f32.mrf.mxu0
  %3489 = vmatprep.mubr.bf16.mxu0 0
  %3490 = vmatmul.mubr.bf16.gmra.mxu0 %v2115
  %v3491 = vpop.f32.mrf.mxu0
  %v3492 = vadd.f32 %v510, %v3491
  %v3493 = vpop.f32.mrf.mxu0
  %v3494 = vpop.f32.mrf.mxu0
  %v3495 = vadd.f32 %v510, %v3494
  %v3496 = vpop.f32.mrf.mxu0
  %3497 = vmatprep.mubr.bf16.mxu0 0
  %3498 = vmatmul.mubr.bf16.gmra.mxu0 %v2118
  %v3499 = vpop.f32.mrf.mxu0
  %v3500 = vadd.f32 %v510, %v3499
  %v3501 = vpop.f32.mrf.mxu0
  %v3502 = vpop.f32.mrf.mxu0
  %v3503 = vadd.f32 %v510, %v3502
  %v3504 = vpop.f32.mrf.mxu0
  %3505 = vmatprep.mubr.bf16.mxu0 0
  %3506 = vmatmul.mubr.bf16.gmra.mxu0 %v2121
  %v3507 = vpop.f32.mrf.mxu0
  %v3508 = vadd.f32 %v510, %v3507
  %v3509 = vpop.f32.mrf.mxu0
  %v3510 = vpop.f32.mrf.mxu0
  %v3511 = vadd.f32 %v510, %v3510
  %v3512 = vpop.f32.mrf.mxu0
  %3513 = vmatprep.mubr.bf16.mxu0 0
  %3514 = vmatmul.mubr.bf16.gmra.mxu0 %v2124
  %v3515 = vpop.f32.mrf.mxu0
  %v3516 = vadd.f32 %v510, %v3515
  %v3517 = vpop.f32.mrf.mxu0
  %v3518 = vpop.f32.mrf.mxu0
  %v3519 = vadd.f32 %v510, %v3518
  %v3520 = vpop.f32.mrf.mxu0
  %3521 = vmatprep.mubr.bf16.mxu0 0
  %3522 = vmatmul.mubr.bf16.gmra.mxu0 %v2127
  %v3523 = vpop.f32.mrf.mxu0
  %v3524 = vadd.f32 %v510, %v3523
  %v3525 = vpop.f32.mrf.mxu0
  %v3526 = vpop.f32.mrf.mxu0
  %v3527 = vadd.f32 %v510, %v3526
  %v3528 = vpop.f32.mrf.mxu0
  %3529 = vmatprep.mubr.bf16.mxu0 0
  %3530 = vmatmul.mubr.bf16.gmra.mxu0 %v2130
  %v3531 = vpop.f32.mrf.mxu0
  %v3532 = vadd.f32 %v510, %v3531
  %v3533 = vpop.f32.mrf.mxu0
  %v3534 = vpop.f32.mrf.mxu0
  %v3535 = vadd.f32 %v510, %v3534
  %v3536 = vpop.f32.mrf.mxu0
  %3537 = vmatprep.mubr.bf16.mxu0 0
  %3538 = vmatmul.mubr.bf16.gmra.mxu0 %v2133
  %v3539 = vpop.f32.mrf.mxu0
  %v3540 = vadd.f32 %v510, %v3539
  %v3541 = vpop.f32.mrf.mxu0
  %v3542 = vpop.f32.mrf.mxu0
  %v3543 = vadd.f32 %v510, %v3542
  %v3544 = vpop.f32.mrf.mxu0
  %3545 = vmatprep.mubr.bf16.mxu0 0
  %3546 = vmatmul.mubr.bf16.gmra.mxu0 %v2136
  %v3547 = vpop.f32.mrf.mxu0
  %v3548 = vadd.f32 %v510, %v3547
  %v3549 = vpop.f32.mrf.mxu0
  %v3550 = vpop.f32.mrf.mxu0
  %v3551 = vadd.f32 %v510, %v3550
  %v3552 = vpop.f32.mrf.mxu0
  %3553 = vmatprep.mubr.bf16.mxu0 0
  %3554 = vmatmul.mubr.bf16.gmra.mxu0 %v2139
  %v3555 = vpop.f32.mrf.mxu0
  %v3556 = vadd.f32 %v510, %v3555
  %v3557 = vpop.f32.mrf.mxu0
  %v3558 = vpop.f32.mrf.mxu0
  %v3559 = vadd.f32 %v510, %v3558
  %v3560 = vpop.f32.mrf.mxu0
  %3561 = vmatprep.mubr.bf16.mxu0 0
  %3562 = vmatmul.mubr.bf16.gmra.mxu0 %v2142
  %v3563 = vpop.f32.mrf.mxu0
  %v3564 = vadd.f32 %v510, %v3563
  %v3565 = vpop.f32.mrf.mxu0
  %v3566 = vpop.f32.mrf.mxu0
  %v3567 = vadd.f32 %v510, %v3566
  %v3568 = vpop.f32.mrf.mxu0
  %3569 = vmatprep.mubr.bf16.mxu0 0
  %3570 = vmatmul.mubr.bf16.gmra.mxu0 %v2145
  %v3571 = vpop.f32.mrf.mxu0
  %v3572 = vadd.f32 %v510, %v3571
  %v3573 = vpop.f32.mrf.mxu0
  %v3574 = vpop.f32.mrf.mxu0
  %v3575 = vadd.f32 %v510, %v3574
  %v3576 = vpop.f32.mrf.mxu0
  %3577 = vmatprep.mubr.bf16.mxu0 0
  %3578 = vmatmul.mubr.bf16.gmra.mxu0 %v2148
  %v3579 = vpop.f32.mrf.mxu0
  %v3580 = vadd.f32 %v510, %v3579
  %v3581 = vpop.f32.mrf.mxu0
  %v3582 = vpop.f32.mrf.mxu0
  %v3583 = vadd.f32 %v510, %v3582
  %v3584 = vpop.f32.mrf.mxu0
  %3585 = vmatprep.mubr.bf16.mxu0 0
  %3586 = vmatmul.mubr.bf16.gmra.mxu0 %v2151
  %v3587 = vpop.f32.mrf.mxu0
  %v3588 = vadd.f32 %v510, %v3587
  %v3589 = vpop.f32.mrf.mxu0
  %v3590 = vpop.f32.mrf.mxu0
  %v3591 = vadd.f32 %v510, %v3590
  %v3592 = vpop.f32.mrf.mxu0
  %3593 = vmatprep.mubr.bf16.mxu0 0
  %3594 = vmatmul.mubr.bf16.gmra.mxu0 %v2154
  %v3595 = vpop.f32.mrf.mxu0
  %v3596 = vadd.f32 %v510, %v3595
  %v3597 = vpop.f32.mrf.mxu0
  %v3598 = vpop.f32.mrf.mxu0
  %v3599 = vadd.f32 %v510, %v3598
  %v3600 = vpop.f32.mrf.mxu0
  %3601 = vmatprep.mubr.bf16.mxu0 0
  %3602 = vmatmul.mubr.bf16.gmra.mxu0 %v2157
  %v3603 = vpop.f32.mrf.mxu0
  %v3604 = vadd.f32 %v510, %v3603
  %v3605 = vpop.f32.mrf.mxu0
  %v3606 = vpop.f32.mrf.mxu0
  %v3607 = vadd.f32 %v510, %v3606
  %v3608 = vpop.f32.mrf.mxu0
  %3609 = vmatprep.mubr.bf16.mxu0 0
  %3610 = vmatmul.mubr.bf16.gmra.mxu0 %v2160
  %v3611 = vpop.f32.mrf.mxu0
  %v3612 = vadd.f32 %v510, %v3611
  %v3613 = vpop.f32.mrf.mxu0
  %v3614 = vpop.f32.mrf.mxu0
  %v3615 = vadd.f32 %v510, %v3614
  %v3616 = vpop.f32.mrf.mxu0
  %3617 = vmatprep.mubr.bf16.mxu0 0
  %3618 = vmatmul.mubr.bf16.gmra.mxu0 %v2163
  %v3619 = vpop.f32.mrf.mxu0
  %v3620 = vadd.f32 %v510, %v3619
  %v3621 = vpop.f32.mrf.mxu0
  %v3622 = vpop.f32.mrf.mxu0
  %v3623 = vadd.f32 %v510, %v3622
  %v3624 = vpop.f32.mrf.mxu0
  %3625 = vmatprep.mubr.bf16.mxu0 0
  %3626 = vmatmul.mubr.bf16.gmra.mxu0 %v2166
  %v3627 = vpop.f32.mrf.mxu0
  %v3628 = vadd.f32 %v510, %v3627
  %v3629 = vpop.f32.mrf.mxu0
  %v3630 = vpop.f32.mrf.mxu0
  %v3631 = vadd.f32 %v510, %v3630
  %v3632 = vpop.f32.mrf.mxu0
  %3633 = vmatprep.mubr.bf16.mxu0 0
  %3634 = vmatmul.mubr.bf16.gmra.mxu0 %v2169
  %v3635 = vpop.f32.mrf.mxu0
  %v3636 = vadd.f32 %v510, %v3635
  %v3637 = vpop.f32.mrf.mxu0
  %v3638 = vpop.f32.mrf.mxu0
  %v3639 = vadd.f32 %v510, %v3638
  %v3640 = vpop.f32.mrf.mxu0
  %3641 = vmatprep.mubr.bf16.mxu0 0
  %3642 = vmatmul.mubr.bf16.gmra.mxu0 %v2172
  %v3643 = vpop.f32.mrf.mxu0
  %v3644 = vadd.f32 %v510, %v3643
  %v3645 = vpop.f32.mrf.mxu0
  %v3646 = vpop.f32.mrf.mxu0
  %v3647 = vadd.f32 %v510, %v3646
  %v3648 = vpop.f32.mrf.mxu0
  %3649 = vmatprep.mubr.bf16.mxu0 0
  %3650 = vmatmul.mubr.bf16.gmra.mxu0 %v2175
  %v3651 = vpop.f32.mrf.mxu0
  %v3652 = vadd.f32 %v510, %v3651
  %v3653 = vpop.f32.mrf.mxu0
  %v3654 = vpop.f32.mrf.mxu0
  %v3655 = vadd.f32 %v510, %v3654
  %v3656 = vpop.f32.mrf.mxu0
  %3657 = vmatprep.mubr.bf16.mxu0 0
  %3658 = vmatmul.mubr.bf16.gmra.mxu0 %v2178
  %v3659 = vpop.f32.mrf.mxu0
  %v3660 = vadd.f32 %v510, %v3659
  %v3661 = vpop.f32.mrf.mxu0
  %v3662 = vpop.f32.mrf.mxu0
  %v3663 = vadd.f32 %v510, %v3662
  %v3664 = vpop.f32.mrf.mxu0
  %3665 = vmatprep.mubr.bf16.mxu0 0
  %3666 = vmatmul.mubr.bf16.gmra.mxu0 %v2181
  %v3667 = vpop.f32.mrf.mxu0
  %v3668 = vadd.f32 %v510, %v3667
  %v3669 = vpop.f32.mrf.mxu0
  %v3670 = vpop.f32.mrf.mxu0
  %v3671 = vadd.f32 %v510, %v3670
  %v3672 = vpop.f32.mrf.mxu0
  %3673 = vmatprep.mubr.bf16.mxu0 0
  %3674 = vmatmul.mubr.bf16.gmra.mxu0 %v2184
  %v3675 = vpop.f32.mrf.mxu0
  %v3676 = vadd.f32 %v510, %v3675
  %v3677 = vpop.f32.mrf.mxu0
  %v3678 = vpop.f32.mrf.mxu0
  %v3679 = vadd.f32 %v510, %v3678
  %v3680 = vpop.f32.mrf.mxu0
  %3681 = vmatprep.mubr.bf16.mxu0 0
  %3682 = vmatmul.mubr.bf16.gmra.mxu0 %v2187
  %v3683 = vpop.f32.mrf.mxu0
  %v3684 = vadd.f32 %v510, %v3683
  %v3685 = vpop.f32.mrf.mxu0
  %v3686 = vpop.f32.mrf.mxu0
  %v3687 = vadd.f32 %v510, %v3686
  %v3688 = vpop.f32.mrf.mxu0
  %3689 = vmatprep.mubr.bf16.mxu0 0
  %3690 = vmatmul.mubr.bf16.gmra.mxu0 %v2190
  %v3691 = vpop.f32.mrf.mxu0
  %v3692 = vadd.f32 %v510, %v3691
  %v3693 = vpop.f32.mrf.mxu0
  %v3694 = vpop.f32.mrf.mxu0
  %v3695 = vadd.f32 %v510, %v3694
  %v3696 = vpop.f32.mrf.mxu0
  %3697 = vmatprep.mubr.bf16.mxu0 0
  %3698 = vmatmul.mubr.bf16.gmra.mxu0 %v2193
  %v3699 = vpop.f32.mrf.mxu0
  %v3700 = vadd.f32 %v510, %v3699
  %v3701 = vpop.f32.mrf.mxu0
  %v3702 = vpop.f32.mrf.mxu0
  %v3703 = vadd.f32 %v510, %v3702
  %v3704 = vpop.f32.mrf.mxu0
  %3705 = vmatprep.mubr.bf16.mxu0 0
  %3706 = vmatmul.mubr.bf16.gmra.mxu0 %v2196
  %v3707 = vpop.f32.mrf.mxu0
  %v3708 = vadd.f32 %v510, %v3707
  %v3709 = vpop.f32.mrf.mxu0
  %v3710 = vpop.f32.mrf.mxu0
  %v3711 = vadd.f32 %v510, %v3710
  %v3712 = vpop.f32.mrf.mxu0
  %3713 = vmatprep.mubr.bf16.mxu0 0
  %3714 = vmatmul.mubr.bf16.gmra.mxu0 %v2199
  %v3715 = vpop.f32.mrf.mxu0
  %v3716 = vadd.f32 %v510, %v3715
  %v3717 = vpop.f32.mrf.mxu0
  %v3718 = vpop.f32.mrf.mxu0
  %v3719 = vadd.f32 %v510, %v3718
  %v3720 = vpop.f32.mrf.mxu0
  %3721 = vmatprep.mubr.bf16.mxu0 0
  %3722 = vmatmul.mubr.bf16.gmra.mxu0 %v2202
  %v3723 = vpop.f32.mrf.mxu0
  %v3724 = vadd.f32 %v510, %v3723
  %v3725 = vpop.f32.mrf.mxu0
  %v3726 = vpop.f32.mrf.mxu0
  %v3727 = vadd.f32 %v510, %v3726
  %v3728 = vpop.f32.mrf.mxu0
  %3729 = vmatprep.mubr.bf16.mxu0 0
  %3730 = vmatmul.mubr.bf16.gmra.mxu0 %v2205
  %v3731 = vpop.f32.mrf.mxu0
  %v3732 = vadd.f32 %v510, %v3731
  %v3733 = vpop.f32.mrf.mxu0
  %v3734 = vpop.f32.mrf.mxu0
  %v3735 = vadd.f32 %v510, %v3734
  %v3736 = vpop.f32.mrf.mxu0
  %3737 = vmatprep.mubr.bf16.mxu0 0
  %3738 = vmatmul.mubr.bf16.gmra.mxu0 %v2208
  %v3739 = vpop.f32.mrf.mxu0
  %v3740 = vadd.f32 %v510, %v3739
  %v3741 = vpop.f32.mrf.mxu0
  %v3742 = vpop.f32.mrf.mxu0
  %v3743 = vadd.f32 %v510, %v3742
  %v3744 = vpop.f32.mrf.mxu0
  %3745 = vmatprep.mubr.bf16.mxu0 0
  %3746 = vmatmul.mubr.bf16.gmra.mxu0 %v2211
  %v3747 = vpop.f32.mrf.mxu0
  %v3748 = vadd.f32 %v510, %v3747
  %v3749 = vpop.f32.mrf.mxu0
  %v3750 = vpop.f32.mrf.mxu0
  %v3751 = vadd.f32 %v510, %v3750
  %v3752 = vpop.f32.mrf.mxu0
  %3753 = vmatprep.mubr.bf16.mxu0 0
  %3754 = vmatmul.mubr.bf16.gmra.mxu0 %v2214
  %v3755 = vpop.f32.mrf.mxu0
  %v3756 = vadd.f32 %v510, %v3755
  %v3757 = vpop.f32.mrf.mxu0
  %v3758 = vpop.f32.mrf.mxu0
  %v3759 = vadd.f32 %v510, %v3758
  %v3760 = vpop.f32.mrf.mxu0
  %3761 = vmatprep.mubr.bf16.mxu0 0
  %3762 = vmatmul.mubr.bf16.gmra.mxu0 %v2217
  %v3763 = vpop.f32.mrf.mxu0
  %v3764 = vadd.f32 %v510, %v3763
  %v3765 = vpop.f32.mrf.mxu0
  %v3766 = vpop.f32.mrf.mxu0
  %v3767 = vadd.f32 %v510, %v3766
  %v3768 = vpop.f32.mrf.mxu0
  %3769 = vmatprep.mubr.bf16.mxu0 0
  %3770 = vmatmul.mubr.bf16.gmra.mxu0 %v2220
  %v3771 = vpop.f32.mrf.mxu0
  %v3772 = vadd.f32 %v510, %v3771
  %v3773 = vpop.f32.mrf.mxu0
  %v3774 = vpop.f32.mrf.mxu0
  %v3775 = vadd.f32 %v510, %v3774
  %v3776 = vpop.f32.mrf.mxu0
  %3777 = vmatprep.mubr.bf16.mxu0 0
  %3778 = vmatmul.mubr.bf16.gmra.mxu0 %v2223
  %v3779 = vpop.f32.mrf.mxu0
  %v3780 = vadd.f32 %v510, %v3779
  %v3781 = vpop.f32.mrf.mxu0
  %v3782 = vpop.f32.mrf.mxu0
  %v3783 = vadd.f32 %v510, %v3782
  %v3784 = vpop.f32.mrf.mxu0
  %3785 = vmatprep.mubr.bf16.mxu0 0
  %3786 = vmatmul.mubr.bf16.gmra.mxu0 %v2226
  %v3787 = vpop.f32.mrf.mxu0
  %v3788 = vadd.f32 %v510, %v3787
  %v3789 = vpop.f32.mrf.mxu0
  %v3790 = vpop.f32.mrf.mxu0
  %v3791 = vadd.f32 %v510, %v3790
  %v3792 = vpop.f32.mrf.mxu0
  %3793 = vmatprep.mubr.bf16.mxu0 0
  %3794 = vmatmul.mubr.bf16.gmra.mxu0 %v2229
  %v3795 = vpop.f32.mrf.mxu0
  %v3796 = vadd.f32 %v510, %v3795
  %v3797 = vpop.f32.mrf.mxu0
  %v3798 = vpop.f32.mrf.mxu0
  %v3799 = vadd.f32 %v510, %v3798
  %v3800 = vpop.f32.mrf.mxu0
  %3801 = vmatprep.mubr.bf16.mxu0 0
  %3802 = vmatmul.mubr.bf16.gmra.mxu0 %v2232
  %v3803 = vpop.f32.mrf.mxu0
  %v3804 = vadd.f32 %v510, %v3803
  %v3805 = vpop.f32.mrf.mxu0
  %v3806 = vpop.f32.mrf.mxu0
  %v3807 = vadd.f32 %v510, %v3806
  %v3808 = vpop.f32.mrf.mxu0
  %3809 = vmatprep.mubr.bf16.mxu0 0
  %3810 = vmatmul.mubr.bf16.gmra.mxu0 %v2235
  %v3811 = vpop.f32.mrf.mxu0
  %v3812 = vadd.f32 %v510, %v3811
  %v3813 = vpop.f32.mrf.mxu0
  %v3814 = vpop.f32.mrf.mxu0
  %v3815 = vadd.f32 %v510, %v3814
  %v3816 = vpop.f32.mrf.mxu0
  %3817 = vmatprep.mubr.bf16.mxu0 0
  %3818 = vmatmul.mubr.bf16.gmra.mxu0 %v2238
  %v3819 = vpop.f32.mrf.mxu0
  %v3820 = vadd.f32 %v510, %v3819
  %v3821 = vpop.f32.mrf.mxu0
  %v3822 = vpop.f32.mrf.mxu0
  %v3823 = vadd.f32 %v510, %v3822
  %v3824 = vpop.f32.mrf.mxu0
  %3825 = vmatprep.mubr.bf16.mxu0 0
  %3826 = vmatmul.mubr.bf16.gmra.mxu0 %v2241
  %v3827 = vpop.f32.mrf.mxu0
  %v3828 = vadd.f32 %v510, %v3827
  %v3829 = vpop.f32.mrf.mxu0
  %v3830 = vpop.f32.mrf.mxu0
  %v3831 = vadd.f32 %v510, %v3830
  %v3832 = vpop.f32.mrf.mxu0
  %3833 = vmatprep.mubr.bf16.mxu0 0
  %3834 = vmatmul.mubr.bf16.gmra.mxu0 %v2244
  %v3835 = vpop.f32.mrf.mxu0
  %v3836 = vadd.f32 %v510, %v3835
  %v3837 = vpop.f32.mrf.mxu0
  %v3838 = vpop.f32.mrf.mxu0
  %v3839 = vadd.f32 %v510, %v3838
  %v3840 = vpop.f32.mrf.mxu0
  %3841 = vmatprep.mubr.bf16.mxu0 0
  %3842 = vmatmul.mubr.bf16.gmra.mxu0 %v2247
  %v3843 = vpop.f32.mrf.mxu0
  %v3844 = vadd.f32 %v510, %v3843
  %v3845 = vpop.f32.mrf.mxu0
  %v3846 = vpop.f32.mrf.mxu0
  %v3847 = vadd.f32 %v510, %v3846
  %v3848 = vpop.f32.mrf.mxu0
  %3849 = vmatprep.mubr.bf16.mxu0 0
  %3850 = vmatmul.mubr.bf16.gmra.mxu0 %v2250
  %v3851 = vpop.f32.mrf.mxu0
  %v3852 = vadd.f32 %v510, %v3851
  %v3853 = vpop.f32.mrf.mxu0
  %v3854 = vpop.f32.mrf.mxu0
  %v3855 = vadd.f32 %v510, %v3854
  %v3856 = vpop.f32.mrf.mxu0
  %3857 = vmatprep.mubr.bf16.mxu0 0
  %3858 = vmatmul.mubr.bf16.gmra.mxu0 %v2253
  %v3859 = vpop.f32.mrf.mxu0
  %v3860 = vadd.f32 %v510, %v3859
  %v3861 = vpop.f32.mrf.mxu0
  %v3862 = vpop.f32.mrf.mxu0
  %v3863 = vadd.f32 %v510, %v3862
  %v3864 = vpop.f32.mrf.mxu0
  %3865 = vmatprep.mubr.bf16.mxu0 0
  %3866 = vmatmul.mubr.bf16.gmra.mxu0 %v2256
  %v3867 = vpop.f32.mrf.mxu0
  %v3868 = vadd.f32 %v510, %v3867
  %v3869 = vpop.f32.mrf.mxu0
  %v3870 = vpop.f32.mrf.mxu0
  %v3871 = vadd.f32 %v510, %v3870
  %v3872 = vpop.f32.mrf.mxu0
  %3873 = vmatprep.mubr.bf16.mxu0 0
  %3874 = vmatmul.mubr.bf16.gmra.mxu0 %v2259
  %v3875 = vpop.f32.mrf.mxu0
  %v3876 = vadd.f32 %v510, %v3875
  %v3877 = vpop.f32.mrf.mxu0
  %v3878 = vpop.f32.mrf.mxu0
  %v3879 = vadd.f32 %v510, %v3878
  %v3880 = vpop.f32.mrf.mxu0
  %3881 = vmatprep.mubr.bf16.mxu0 0
  %3882 = vmatmul.mubr.bf16.gmra.mxu0 %v2262
  %v3883 = vpop.f32.mrf.mxu0
  %v3884 = vadd.f32 %v510, %v3883
  %v3885 = vpop.f32.mrf.mxu0
  %v3886 = vpop.f32.mrf.mxu0
  %v3887 = vadd.f32 %v510, %v3886
  %v3888 = vpop.f32.mrf.mxu0
  %3889 = vmatprep.mubr.bf16.mxu0 0
  %3890 = vmatmul.mubr.bf16.gmra.mxu0 %v2265
  %v3891 = vpop.f32.mrf.mxu0
  %v3892 = vadd.f32 %v510, %v3891
  %v3893 = vpop.f32.mrf.mxu0
  %v3894 = vpop.f32.mrf.mxu0
  %v3895 = vadd.f32 %v510, %v3894
  %v3896 = vpop.f32.mrf.mxu0
  %3897 = vmatprep.mubr.bf16.mxu0 0
  %3898 = vmatmul.mubr.bf16.gmra.mxu0 %v2268
  %v3899 = vpop.f32.mrf.mxu0
  %v3900 = vadd.f32 %v510, %v3899
  %v3901 = vpop.f32.mrf.mxu0
  %v3902 = vpop.f32.mrf.mxu0
  %v3903 = vadd.f32 %v510, %v3902
  %v3904 = vpop.f32.mrf.mxu0
  %3905 = vmatprep.mubr.bf16.mxu0 0
  %3906 = vmatmul.mubr.bf16.gmra.mxu0 %v2271
  %v3907 = vpop.f32.mrf.mxu0
  %v3908 = vadd.f32 %v510, %v3907
  %v3909 = vpop.f32.mrf.mxu0
  %v3910 = vpop.f32.mrf.mxu0
  %v3911 = vadd.f32 %v510, %v3910
  %v3912 = vpop.f32.mrf.mxu0
  %3913 = vmatprep.mubr.bf16.mxu0 0
  %3914 = vmatmul.mubr.bf16.gmra.mxu0 %v2274
  %v3915 = vpop.f32.mrf.mxu0
  %v3916 = vadd.f32 %v510, %v3915
  %v3917 = vpop.f32.mrf.mxu0
  %v3918 = vpop.f32.mrf.mxu0
  %v3919 = vadd.f32 %v510, %v3918
  %v3920 = vpop.f32.mrf.mxu0
  %3921 = vmatprep.mubr.bf16.mxu0 0
  %3922 = vmatmul.mubr.bf16.gmra.mxu0 %v2277
  %v3923 = vpop.f32.mrf.mxu0
  %v3924 = vadd.f32 %v510, %v3923
  %v3925 = vpop.f32.mrf.mxu0
  %v3926 = vpop.f32.mrf.mxu0
  %v3927 = vadd.f32 %v510, %v3926
  %v3928 = vpop.f32.mrf.mxu0
  %3929 = vmatprep.mubr.bf16.mxu0 0
  %3930 = vmatmul.mubr.bf16.gmra.mxu0 %v2280
  %v3931 = vpop.f32.mrf.mxu0
  %v3932 = vadd.f32 %v510, %v3931
  %v3933 = vpop.f32.mrf.mxu0
  %v3934 = vpop.f32.mrf.mxu0
  %v3935 = vadd.f32 %v510, %v3934
  %v3936 = vpop.f32.mrf.mxu0
  %3937 = vmatprep.mubr.bf16.mxu0 0
  %3938 = vmatmul.mubr.bf16.gmra.mxu0 %v2283
  %v3939 = vpop.f32.mrf.mxu0
  %v3940 = vadd.f32 %v510, %v3939
  %v3941 = vpop.f32.mrf.mxu0
  %v3942 = vpop.f32.mrf.mxu0
  %v3943 = vadd.f32 %v510, %v3942
  %v3944 = vpop.f32.mrf.mxu0
  %3945 = vmatprep.mubr.bf16.mxu0 0
  %3946 = vmatmul.mubr.bf16.gmra.mxu0 %v2286
  %v3947 = vpop.f32.mrf.mxu0
  %v3948 = vadd.f32 %v510, %v3947
  %v3949 = vpop.f32.mrf.mxu0
  %v3950 = vpop.f32.mrf.mxu0
  %v3951 = vadd.f32 %v510, %v3950
  %v3952 = vpop.f32.mrf.mxu0
  %3953 = vmatprep.mubr.bf16.mxu0 0
  %3954 = vmatmul.mubr.bf16.gmra.mxu0 %v2289
  %v3955 = vpop.f32.mrf.mxu0
  %v3956 = vadd.f32 %v510, %v3955
  %v3957 = vpop.f32.mrf.mxu0
  %v3958 = vpop.f32.mrf.mxu0
  %v3959 = vadd.f32 %v510, %v3958
  %v3960 = vpop.f32.mrf.mxu0
  %3961 = vmatprep.mubr.bf16.mxu0 0
  %3962 = vmatmul.mubr.bf16.gmra.mxu0 %v2292
  %v3963 = vpop.f32.mrf.mxu0
  %v3964 = vadd.f32 %v510, %v3963
  %v3965 = vpop.f32.mrf.mxu0
  %v3966 = vpop.f32.mrf.mxu0
  %v3967 = vadd.f32 %v510, %v3966
  %v3968 = vpop.f32.mrf.mxu0
  %3969 = vmatprep.mubr.bf16.mxu0 0
  %3970 = vmatmul.mubr.bf16.gmra.mxu0 %v2295
  %v3971 = vpop.f32.mrf.mxu0
  %v3972 = vadd.f32 %v510, %v3971
  %v3973 = vpop.f32.mrf.mxu0
  %v3974 = vpop.f32.mrf.mxu0
  %v3975 = vadd.f32 %v510, %v3974
  %v3976 = vpop.f32.mrf.mxu0
  %3977 = vmatprep.mubr.bf16.mxu0 0
  %3978 = vmatmul.mubr.bf16.gmra.mxu0 %v2298
  %v3979 = vpop.f32.mrf.mxu0
  %v3980 = vadd.f32 %v510, %v3979
  %v3981 = vpop.f32.mrf.mxu0
  %v3982 = vpop.f32.mrf.mxu0
  %v3983 = vadd.f32 %v510, %v3982
  %v3984 = vpop.f32.mrf.mxu0
  %3985 = vmatprep.mubr.bf16.mxu0 0
  %3986 = vmatmul.mubr.bf16.gmra.mxu0 %v2301
  %v3987 = vpop.f32.mrf.mxu0
  %v3988 = vadd.f32 %v510, %v3987
  %v3989 = vpop.f32.mrf.mxu0
  %v3990 = vpop.f32.mrf.mxu0
  %v3991 = vadd.f32 %v510, %v3990
  %v3992 = vpop.f32.mrf.mxu0
  %3993 = vmatprep.mubr.bf16.mxu0 0
  %3994 = vmatmul.mubr.bf16.gmra.mxu0 %v2304
  %v3995 = vpop.f32.mrf.mxu0
  %v3996 = vadd.f32 %v510, %v3995
  %v3997 = vpop.f32.mrf.mxu0
  %v3998 = vpop.f32.mrf.mxu0
  %v3999 = vadd.f32 %v510, %v3998
  %v4000 = vpop.f32.mrf.mxu0
  %4001 = vmatprep.mubr.bf16.mxu0 0
  %4002 = vmatmul.mubr.bf16.gmra.mxu0 %v2307
  %v4003 = vpop.f32.mrf.mxu0
  %v4004 = vadd.f32 %v510, %v4003
  %v4005 = vpop.f32.mrf.mxu0
  %v4006 = vpop.f32.mrf.mxu0
  %v4007 = vadd.f32 %v510, %v4006
  %v4008 = vpop.f32.mrf.mxu0
  %4009 = vmatprep.mubr.bf16.mxu0 0
  %4010 = vmatmul.mubr.bf16.gmra.mxu0 %v2310
  %v4011 = vpop.f32.mrf.mxu0
  %v4012 = vadd.f32 %v510, %v4011
  %v4013 = vpop.f32.mrf.mxu0
  %v4014 = vpop.f32.mrf.mxu0
  %v4015 = vadd.f32 %v510, %v4014
  %v4016 = vpop.f32.mrf.mxu0
  %4017 = vmatprep.mubr.bf16.mxu0 0
  %4018 = vmatmul.mubr.bf16.gmra.mxu0 %v2313
  %v4019 = vpop.f32.mrf.mxu0
  %v4020 = vadd.f32 %v510, %v4019
  %v4021 = vpop.f32.mrf.mxu0
  %v4022 = vpop.f32.mrf.mxu0
  %v4023 = vadd.f32 %v510, %v4022
  %v4024 = vpop.f32.mrf.mxu0
  %4025 = vmatprep.mubr.bf16.mxu0 0
  %4026 = vmatmul.mubr.bf16.gmra.mxu0 %v2316
  %v4027 = vpop.f32.mrf.mxu0
  %v4028 = vadd.f32 %v510, %v4027
  %v4029 = vpop.f32.mrf.mxu0
  %v4030 = vpop.f32.mrf.mxu0
  %v4031 = vadd.f32 %v510, %v4030
  %v4032 = vpop.f32.mrf.mxu0
  %4033 = vmatprep.mubr.bf16.mxu0 0
  %4034 = vmatmul.mubr.bf16.gmra.mxu0 %v2319
  %v4035 = vpop.f32.mrf.mxu0
  %v4036 = vadd.f32 %v510, %v4035
  %v4037 = vpop.f32.mrf.mxu0
  %v4038 = vpop.f32.mrf.mxu0
  %v4039 = vadd.f32 %v510, %v4038
  %v4040 = vpop.f32.mrf.mxu0
  %4041 = vmatprep.mubr.bf16.mxu0 0
  %4042 = vmatmul.mubr.bf16.gmra.mxu0 %v2322
  %v4043 = vpop.f32.mrf.mxu0
  %v4044 = vadd.f32 %v510, %v4043
  %v4045 = vpop.f32.mrf.mxu0
  %v4046 = vpop.f32.mrf.mxu0
  %v4047 = vadd.f32 %v510, %v4046
  %v4048 = vpop.f32.mrf.mxu0
  %4049 = vmatprep.mubr.bf16.mxu0 0
  %4050 = vmatmul.mubr.bf16.gmra.mxu0 %v2325
  %v4051 = vpop.f32.mrf.mxu0
  %v4052 = vadd.f32 %v510, %v4051
  %v4053 = vpop.f32.mrf.mxu0
  %v4054 = vpop.f32.mrf.mxu0
  %v4055 = vadd.f32 %v510, %v4054
  %v4056 = vpop.f32.mrf.mxu0
  %4057 = vmatprep.mubr.bf16.mxu0 0
  %4058 = vmatmul.mubr.bf16.gmra.mxu0 %v2328
  %v4059 = vpop.f32.mrf.mxu0
  %v4060 = vadd.f32 %v510, %v4059
  %v4061 = vpop.f32.mrf.mxu0
  %v4062 = vpop.f32.mrf.mxu0
  %v4063 = vadd.f32 %v510, %v4062
  %v4064 = vpop.f32.mrf.mxu0
  %4065 = vmatprep.mubr.bf16.mxu0 0
  %4066 = vmatmul.mubr.bf16.gmra.mxu0 %v2331
  %v4067 = vpop.f32.mrf.mxu0
  %v4068 = vadd.f32 %v510, %v4067
  %v4069 = vpop.f32.mrf.mxu0
  %v4070 = vpop.f32.mrf.mxu0
  %v4071 = vadd.f32 %v510, %v4070
  %v4072 = vpop.f32.mrf.mxu0
  %4073 = vmatprep.mubr.bf16.mxu0 0
  %4074 = vmatmul.mubr.bf16.gmra.mxu0 %v2334
  %v4075 = vpop.f32.mrf.mxu0
  %v4076 = vadd.f32 %v510, %v4075
  %v4077 = vpop.f32.mrf.mxu0
  %v4078 = vpop.f32.mrf.mxu0
  %v4079 = vadd.f32 %v510, %v4078
  %v4080 = vpop.f32.mrf.mxu0
  %4081 = vmatprep.mubr.bf16.mxu0 0
  %4082 = vmatmul.mubr.bf16.gmra.mxu0 %v2337
  %v4083 = vpop.f32.mrf.mxu0
  %v4084 = vadd.f32 %v510, %v4083
  %v4085 = vpop.f32.mrf.mxu0
  %v4086 = vpop.f32.mrf.mxu0
  %v4087 = vadd.f32 %v510, %v4086
  %v4088 = vpop.f32.mrf.mxu0
  %4089 = vmatprep.mubr.bf16.mxu0 0
  %4090 = vmatmul.mubr.bf16.gmra.mxu0 %v2340
  %v4091 = vpop.f32.mrf.mxu0
  %v4092 = vadd.f32 %v510, %v4091
  %v4093 = vpop.f32.mrf.mxu0
  %v4094 = vpop.f32.mrf.mxu0
  %v4095 = vadd.f32 %v510, %v4094
  %v4096 = vpop.f32.mrf.mxu0
  %4097 = vmatprep.mubr.bf16.mxu0 0
  %4098 = vmatmul.mubr.bf16.gmra.mxu0 %v2343
  %v4099 = vpop.f32.mrf.mxu0
  %v4100 = vadd.f32 %v510, %v4099
  %v4101 = vpop.f32.mrf.mxu0
  %v4102 = vpop.f32.mrf.mxu0
  %v4103 = vadd.f32 %v510, %v4102
  %v4104 = vpop.f32.mrf.mxu0
  %4105 = vmatprep.mubr.bf16.mxu0 0
  %4106 = vmatmul.mubr.bf16.gmra.mxu0 %v2346
  %v4107 = vpop.f32.mrf.mxu0
  %v4108 = vadd.f32 %v510, %v4107
  %v4109 = vpop.f32.mrf.mxu0
  %v4110 = vpop.f32.mrf.mxu0
  %v4111 = vadd.f32 %v510, %v4110
  %v4112 = vpop.f32.mrf.mxu0
  %4113 = vmatprep.mubr.bf16.mxu0 0
  %4114 = vmatmul.mubr.bf16.gmra.mxu0 %v2349
  %v4115 = vpop.f32.mrf.mxu0
  %v4116 = vadd.f32 %v510, %v4115
  %v4117 = vpop.f32.mrf.mxu0
  %v4118 = vpop.f32.mrf.mxu0
  %v4119 = vadd.f32 %v510, %v4118
  %v4120 = vpop.f32.mrf.mxu0
  %4121 = vmatprep.mubr.bf16.mxu0 0
  %4122 = vmatmul.mubr.bf16.gmra.mxu0 %v2352
  %v4123 = vpop.f32.mrf.mxu0
  %v4124 = vadd.f32 %v510, %v4123
  %v4125 = vpop.f32.mrf.mxu0
  %v4126 = vpop.f32.mrf.mxu0
  %v4127 = vadd.f32 %v510, %v4126
  %v4128 = vpop.f32.mrf.mxu0
  %4129 = vmatprep.mubr.bf16.mxu0 0
  %4130 = vmatmul.mubr.bf16.gmra.mxu0 %v2355
  %v4131 = vpop.f32.mrf.mxu0
  %v4132 = vadd.f32 %v510, %v4131
  %v4133 = vpop.f32.mrf.mxu0
  %v4134 = vpop.f32.mrf.mxu0
  %v4135 = vadd.f32 %v510, %v4134
  %v4136 = vpop.f32.mrf.mxu0
  %4137 = vmatprep.mubr.bf16.mxu0 0
  %4138 = vmatmul.mubr.bf16.gmra.mxu0 %v2358
  %v4139 = vpop.f32.mrf.mxu0
  %v4140 = vadd.f32 %v510, %v4139
  %v4141 = vpop.f32.mrf.mxu0
  %v4142 = vpop.f32.mrf.mxu0
  %v4143 = vadd.f32 %v510, %v4142
  %v4144 = vpop.f32.mrf.mxu0
  %4145 = vmatprep.mubr.bf16.mxu0 0
  %4146 = vmatmul.mubr.bf16.gmra.mxu0 %v2361
  %v4147 = vpop.f32.mrf.mxu0
  %v4148 = vadd.f32 %v510, %v4147
  %v4149 = vpop.f32.mrf.mxu0
  %v4150 = vpop.f32.mrf.mxu0
  %v4151 = vadd.f32 %v510, %v4150
  %v4152 = vpop.f32.mrf.mxu0
  %4153 = vmatprep.mubr.bf16.mxu0 0
  %4154 = vmatmul.mubr.bf16.gmra.mxu0 %v2364
  %v4155 = vpop.f32.mrf.mxu0
  %v4156 = vadd.f32 %v510, %v4155
  %v4157 = vpop.f32.mrf.mxu0
  %v4158 = vpop.f32.mrf.mxu0
  %v4159 = vadd.f32 %v510, %v4158
  %v4160 = vpop.f32.mrf.mxu0
  %4161 = vmatprep.mubr.bf16.mxu0 0
  %4162 = vmatmul.mubr.bf16.gmra.mxu0 %v2367
  %v4163 = vpop.f32.mrf.mxu0
  %v4164 = vadd.f32 %v510, %v4163
  %v4165 = vpop.f32.mrf.mxu0
  %v4166 = vpop.f32.mrf.mxu0
  %v4167 = vadd.f32 %v510, %v4166
  %v4168 = vpop.f32.mrf.mxu0
  %4169 = vmatprep.mubr.bf16.mxu0 0
  %4170 = vmatmul.mubr.bf16.gmra.mxu0 %v2370
  %v4171 = vpop.f32.mrf.mxu0
  %v4172 = vadd.f32 %v510, %v4171
  %v4173 = vpop.f32.mrf.mxu0
  %v4174 = vpop.f32.mrf.mxu0
  %v4175 = vadd.f32 %v510, %v4174
  %v4176 = vpop.f32.mrf.mxu0
  %4177 = vmatprep.mubr.bf16.mxu0 0
  %4178 = vmatmul.mubr.bf16.gmra.mxu0 %v2373
  %v4179 = vpop.f32.mrf.mxu0
  %v4180 = vadd.f32 %v510, %v4179
  %v4181 = vpop.f32.mrf.mxu0
  %v4182 = vpop.f32.mrf.mxu0
  %v4183 = vadd.f32 %v510, %v4182
  %v4184 = vpop.f32.mrf.mxu0
  %4185 = vmatprep.mubr.bf16.mxu0 0
  %4186 = vmatmul.mubr.bf16.gmra.mxu0 %v2376
  %v4187 = vpop.f32.mrf.mxu0
  %v4188 = vadd.f32 %v510, %v4187
  %v4189 = vpop.f32.mrf.mxu0
  %v4190 = vpop.f32.mrf.mxu0
  %v4191 = vadd.f32 %v510, %v4190
  %v4192 = vpop.f32.mrf.mxu0
  %4193 = vmatprep.mubr.bf16.mxu0 0
  %4194 = vmatmul.mubr.bf16.gmra.mxu0 %v2379
  %v4195 = vpop.f32.mrf.mxu0
  %v4196 = vadd.f32 %v510, %v4195
  %v4197 = vpop.f32.mrf.mxu0
  %v4198 = vpop.f32.mrf.mxu0
  %v4199 = vadd.f32 %v510, %v4198
  %v4200 = vpop.f32.mrf.mxu0
  %4201 = vmatprep.mubr.bf16.mxu0 0
  %4202 = vmatmul.mubr.bf16.gmra.mxu0 %v2382
  %v4203 = vpop.f32.mrf.mxu0
  %v4204 = vadd.f32 %v510, %v4203
  %v4205 = vpop.f32.mrf.mxu0
  %v4206 = vpop.f32.mrf.mxu0
  %v4207 = vadd.f32 %v510, %v4206
  %v4208 = vpop.f32.mrf.mxu0
  %4209 = vmatprep.mubr.bf16.mxu0 0
  %4210 = vmatmul.mubr.bf16.gmra.mxu0 %v2385
  %v4211 = vpop.f32.mrf.mxu0
  %v4212 = vadd.f32 %v510, %v4211
  %v4213 = vpop.f32.mrf.mxu0
  %v4214 = vpop.f32.mrf.mxu0
  %v4215 = vadd.f32 %v510, %v4214
  %v4216 = vpop.f32.mrf.mxu0
  %4217 = vmatprep.mubr.bf16.mxu0 0
  %4218 = vmatmul.mubr.bf16.gmra.mxu0 %v2388
  %v4219 = vpop.f32.mrf.mxu0
  %v4220 = vadd.f32 %v510, %v4219
  %v4221 = vpop.f32.mrf.mxu0
  %v4222 = vpop.f32.mrf.mxu0
  %v4223 = vadd.f32 %v510, %v4222
  %v4224 = vpop.f32.mrf.mxu0
  %4225 = vmatprep.mubr.bf16.mxu0 0
  %4226 = vmatmul.mubr.bf16.gmra.mxu0 %v2391
  %v4227 = vpop.f32.mrf.mxu0
  %v4228 = vadd.f32 %v510, %v4227
  %v4229 = vpop.f32.mrf.mxu0
  %v4230 = vpop.f32.mrf.mxu0
  %v4231 = vadd.f32 %v510, %v4230
  %v4232 = vpop.f32.mrf.mxu0
  %4233 = vmatprep.mubr.bf16.mxu0 0
  %4234 = vmatmul.mubr.bf16.gmra.mxu0 %v2394
  %v4235 = vpop.f32.mrf.mxu0
  %v4236 = vadd.f32 %v510, %v4235
  %v4237 = vpop.f32.mrf.mxu0
  %v4238 = vpop.f32.mrf.mxu0
  %v4239 = vadd.f32 %v510, %v4238
  %v4240 = vpop.f32.mrf.mxu0
  %4241 = vmatprep.mubr.bf16.mxu0 0
  %4242 = vmatmul.mubr.bf16.gmra.mxu0 %v2397
  %v4243 = vpop.f32.mrf.mxu0
  %v4244 = vadd.f32 %v510, %v4243
  %v4245 = vpop.f32.mrf.mxu0
  %v4246 = vpop.f32.mrf.mxu0
  %v4247 = vadd.f32 %v510, %v4246
  %v4248 = vpop.f32.mrf.mxu0
  %4249 = vmatprep.mubr.bf16.mxu0 0
  %4250 = vmatmul.mubr.bf16.gmra.mxu0 %v2400
  %v4251 = vpop.f32.mrf.mxu0
  %v4252 = vadd.f32 %v510, %v4251
  %v4253 = vpop.f32.mrf.mxu0
  %v4254 = vpop.f32.mrf.mxu0
  %v4255 = vadd.f32 %v510, %v4254
  %v4256 = vpop.f32.mrf.mxu0
  %4257 = vmatprep.mubr.bf16.mxu0 0
  %4258 = vmatmul.mubr.bf16.gmra.mxu0 %v2403
  %v4259 = vpop.f32.mrf.mxu0
  %v4260 = vadd.f32 %v510, %v4259
  %v4261 = vpop.f32.mrf.mxu0
  %v4262 = vpop.f32.mrf.mxu0
  %v4263 = vadd.f32 %v510, %v4262
  %v4264 = vpop.f32.mrf.mxu0
  %4265 = vmatprep.mubr.bf16.mxu0 0
  %4266 = vmatmul.mubr.bf16.gmra.mxu0 %v2406
  %v4267 = vpop.f32.mrf.mxu0
  %v4268 = vadd.f32 %v510, %v4267
  %v4269 = vpop.f32.mrf.mxu0
  %v4270 = vpop.f32.mrf.mxu0
  %v4271 = vadd.f32 %v510, %v4270
  %v4272 = vpop.f32.mrf.mxu0
  %4273 = vmatprep.mubr.bf16.mxu0 0
  %4274 = vmatmul.mubr.bf16.gmra.mxu0 %v2409
  %v4275 = vpop.f32.mrf.mxu0
  %v4276 = vadd.f32 %v510, %v4275
  %v4277 = vpop.f32.mrf.mxu0
  %v4278 = vpop.f32.mrf.mxu0
  %v4279 = vadd.f32 %v510, %v4278
  %v4280 = vpop.f32.mrf.mxu0
  %4281 = vmatprep.mubr.bf16.mxu0 0
  %4282 = vmatmul.mubr.bf16.gmra.mxu0 %v2412
  %v4283 = vpop.f32.mrf.mxu0
  %v4284 = vadd.f32 %v510, %v4283
  %v4285 = vpop.f32.mrf.mxu0
  %v4286 = vpop.f32.mrf.mxu0
  %v4287 = vadd.f32 %v510, %v4286
  %v4288 = vpop.f32.mrf.mxu0
  %4289 = vmatprep.mubr.bf16.mxu0 0
  %4290 = vmatmul.mubr.bf16.gmra.mxu0 %v2415
  %v4291 = vpop.f32.mrf.mxu0
  %v4292 = vadd.f32 %v510, %v4291
  %v4293 = vpop.f32.mrf.mxu0
  %v4294 = vpop.f32.mrf.mxu0
  %v4295 = vadd.f32 %v510, %v4294
  %v4296 = vpop.f32.mrf.mxu0
  %4297 = vmatprep.mubr.bf16.mxu0 0
  %4298 = vmatmul.mubr.bf16.gmra.mxu0 %v2418
  %v4299 = vpop.f32.mrf.mxu0
  %v4300 = vadd.f32 %v510, %v4299
  %v4301 = vpop.f32.mrf.mxu0
  %v4302 = vpop.f32.mrf.mxu0
  %v4303 = vadd.f32 %v510, %v4302
  %v4304 = vpop.f32.mrf.mxu0
  %4305 = vmatprep.mubr.bf16.mxu0 0
  %4306 = vmatmul.mubr.bf16.gmra.mxu0 %v2421
  %v4307 = vpop.f32.mrf.mxu0
  %v4308 = vadd.f32 %v510, %v4307
  %v4309 = vpop.f32.mrf.mxu0
  %v4310 = vpop.f32.mrf.mxu0
  %v4311 = vadd.f32 %v510, %v4310
  %v4312 = vpop.f32.mrf.mxu0
  %4313 = vmatprep.mubr.bf16.mxu0 0
  %4314 = vmatmul.mubr.bf16.gmra.mxu0 %v2424
  %v4315 = vpop.f32.mrf.mxu0
  %v4316 = vadd.f32 %v510, %v4315
  %v4317 = vpop.f32.mrf.mxu0
  %v4318 = vpop.f32.mrf.mxu0
  %v4319 = vadd.f32 %v510, %v4318
  %v4320 = vpop.f32.mrf.mxu0
  %4321 = vmatprep.mubr.bf16.mxu0 0
  %4322 = vmatmul.mubr.bf16.gmra.mxu0 %v2427
  %v4323 = vpop.f32.mrf.mxu0
  %v4324 = vadd.f32 %v510, %v4323
  %v4325 = vpop.f32.mrf.mxu0
  %v4326 = vpop.f32.mrf.mxu0
  %v4327 = vadd.f32 %v510, %v4326
  %v4328 = vpop.f32.mrf.mxu0
  %4329 = vmatprep.mubr.bf16.mxu0 0
  %4330 = vmatmul.mubr.bf16.gmra.mxu0 %v2430
  %v4331 = vpop.f32.mrf.mxu0
  %v4332 = vadd.f32 %v510, %v4331
  %v4333 = vpop.f32.mrf.mxu0
  %v4334 = vpop.f32.mrf.mxu0
  %v4335 = vadd.f32 %v510, %v4334
  %v4336 = vpop.f32.mrf.mxu0
  %4337 = vmatprep.mubr.bf16.mxu0 0
  %4338 = vmatmul.mubr.bf16.gmra.mxu0 %v2433
  %v4339 = vpop.f32.mrf.mxu0
  %v4340 = vadd.f32 %v510, %v4339
  %v4341 = vpop.f32.mrf.mxu0
  %v4342 = vpop.f32.mrf.mxu0
  %v4343 = vadd.f32 %v510, %v4342
  %v4344 = vpop.f32.mrf.mxu0
  %4345 = vmatprep.mubr.bf16.mxu0 0
  %4346 = vmatmul.mubr.bf16.gmra.mxu0 %v2436
  %v4347 = vpop.f32.mrf.mxu0
  %v4348 = vadd.f32 %v510, %v4347
  %v4349 = vpop.f32.mrf.mxu0
  %v4350 = vpop.f32.mrf.mxu0
  %v4351 = vadd.f32 %v510, %v4350
  %v4352 = vpop.f32.mrf.mxu0
  %4353 = vmatprep.mubr.bf16.mxu0 0
  %4354 = vmatmul.mubr.bf16.gmra.mxu0 %v2439
  %v4355 = vpop.f32.mrf.mxu0
  %v4356 = vadd.f32 %v510, %v4355
  %v4357 = vpop.f32.mrf.mxu0
  %v4358 = vpop.f32.mrf.mxu0
  %v4359 = vadd.f32 %v510, %v4358
  %v4360 = vpop.f32.mrf.mxu0
  %4361 = vmatprep.mubr.bf16.mxu0 0
  %4362 = vmatmul.mubr.bf16.gmra.mxu0 %v2442
  %v4363 = vpop.f32.mrf.mxu0
  %v4364 = vadd.f32 %v510, %v4363
  %v4365 = vpop.f32.mrf.mxu0
  %v4366 = vpop.f32.mrf.mxu0
  %v4367 = vadd.f32 %v510, %v4366
  %v4368 = vpop.f32.mrf.mxu0
  %4369 = vmatprep.mubr.bf16.mxu0 0
  %4370 = vmatmul.mubr.bf16.gmra.mxu0 %v2445
  %v4371 = vpop.f32.mrf.mxu0
  %v4372 = vadd.f32 %v510, %v4371
  %v4373 = vpop.f32.mrf.mxu0
  %v4374 = vpop.f32.mrf.mxu0
  %v4375 = vadd.f32 %v510, %v4374
  %v4376 = vpop.f32.mrf.mxu0
  %4377 = vmatprep.mubr.bf16.mxu0 0
  %4378 = vmatmul.mubr.bf16.gmra.mxu0 %v2448
  %v4379 = vpop.f32.mrf.mxu0
  %v4380 = vadd.f32 %v510, %v4379
  %v4381 = vpop.f32.mrf.mxu0
  %v4382 = vpop.f32.mrf.mxu0
  %v4383 = vadd.f32 %v510, %v4382
  %v4384 = vpop.f32.mrf.mxu0
  %4385 = vmatprep.mubr.bf16.mxu0 0
  %4386 = vmatmul.mubr.bf16.gmra.mxu0 %v2451
  %v4387 = vpop.f32.mrf.mxu0
  %v4388 = vadd.f32 %v510, %v4387
  %v4389 = vpop.f32.mrf.mxu0
  %v4390 = vpop.f32.mrf.mxu0
  %v4391 = vadd.f32 %v510, %v4390
  %v4392 = vpop.f32.mrf.mxu0
  %4393 = vmatprep.mubr.bf16.mxu0 0
  %4394 = vmatmul.mubr.bf16.gmra.mxu0 %v2454
  %v4395 = vpop.f32.mrf.mxu0
  %v4396 = vadd.f32 %v510, %v4395
  %v4397 = vpop.f32.mrf.mxu0
  %v4398 = vpop.f32.mrf.mxu0
  %v4399 = vadd.f32 %v510, %v4398
  %v4400 = vpop.f32.mrf.mxu0
  %4401 = vmatprep.mubr.bf16.mxu0 0
  %4402 = vmatmul.mubr.bf16.gmra.mxu0 %v2457
  %v4403 = vpop.f32.mrf.mxu0
  %v4404 = vadd.f32 %v510, %v4403
  %v4405 = vpop.f32.mrf.mxu0
  %v4406 = vpop.f32.mrf.mxu0
  %v4407 = vadd.f32 %v510, %v4406
  %v4408 = vpop.f32.mrf.mxu0
  %4409 = vmatprep.mubr.bf16.mxu0 0
  %4410 = vmatmul.mubr.bf16.gmra.mxu0 %v2460
  %v4411 = vpop.f32.mrf.mxu0
  %v4412 = vadd.f32 %v510, %v4411
  %v4413 = vpop.f32.mrf.mxu0
  %v4414 = vpop.f32.mrf.mxu0
  %v4415 = vadd.f32 %v510, %v4414
  %v4416 = vpop.f32.mrf.mxu0
  %4417 = vmatprep.mubr.bf16.mxu0 0
  %4418 = vmatmul.mubr.bf16.gmra.mxu0 %v2463
  %v4419 = vpop.f32.mrf.mxu0
  %v4420 = vadd.f32 %v510, %v4419
  %v4421 = vpop.f32.mrf.mxu0
  %v4422 = vpop.f32.mrf.mxu0
  %v4423 = vadd.f32 %v510, %v4422
  %v4424 = vpop.f32.mrf.mxu0
  %4425 = vdwg.mxu0
  %vm4426 = vcmp.ge.f32.partialorder %v2500, 0.0
  %vm4427 = vcmp.ge.f32.partialorder %v2503, 0.0
  %vm4428 = vcmp.ge.f32.partialorder %v2508, 0.0
  %vm4429 = vcmp.ge.f32.partialorder %v2511, 0.0
  %vm4430 = vcmp.ge.f32.partialorder %v2516, 0.0
  %vm4431 = vcmp.ge.f32.partialorder %v2519, 0.0
  %vm4432 = vcmp.ge.f32.partialorder %v2524, 0.0
  %vm4433 = vcmp.ge.f32.partialorder %v2527, 0.0
  %vm4434 = vcmp.ge.f32.partialorder %v2532, 0.0
  %vm4435 = vcmp.ge.f32.partialorder %v2535, 0.0
  %vm4436 = vcmp.ge.f32.partialorder %v2540, 0.0
  %vm4437 = vcmp.ge.f32.partialorder %v2543, 0.0
  %vm4438 = vcmp.ge.f32.partialorder %v2548, 0.0
  %vm4439 = vcmp.ge.f32.partialorder %v2551, 0.0
  %vm4440 = vcmp.ge.f32.partialorder %v2556, 0.0
  %vm4441 = vcmp.ge.f32.partialorder %v2559, 0.0
  %vm4442 = vcmp.ge.f32.partialorder %v2564, 0.0
  %vm4443 = vcmp.ge.f32.partialorder %v2567, 0.0
  %vm4444 = vcmp.ge.f32.partialorder %v2572, 0.0
  %vm4445 = vcmp.ge.f32.partialorder %v2575, 0.0
  %vm4446 = vcmp.ge.f32.partialorder %v2580, 0.0
  %vm4447 = vcmp.ge.f32.partialorder %v2583, 0.0
  %vm4448 = vcmp.ge.f32.partialorder %v2588, 0.0
  %vm4449 = vcmp.ge.f32.partialorder %v2591, 0.0
  %vm4450 = vcmp.ge.f32.partialorder %v2596, 0.0
  %vm4451 = vcmp.ge.f32.partialorder %v2599, 0.0
  %vm4452 = vcmp.ge.f32.partialorder %v2604, 0.0
  %vm4453 = vcmp.ge.f32.partialorder %v2607, 0.0
  %vm4454 = vcmp.ge.f32.partialorder %v2612, 0.0
  %vm4455 = vcmp.ge.f32.partialorder %v2615, 0.0
  %vm4456 = vcmp.ge.f32.partialorder %v2620, 0.0
  %vm4457 = vcmp.ge.f32.partialorder %v2623, 0.0
  %vm4458 = vcmp.ge.f32.partialorder %v2628, 0.0
  %vm4459 = vcmp.ge.f32.partialorder %v2631, 0.0
  %vm4460 = vcmp.ge.f32.partialorder %v2636, 0.0
  %vm4461 = vcmp.ge.f32.partialorder %v2639, 0.0
  %vm4462 = vcmp.ge.f32.partialorder %v2644, 0.0
  %vm4463 = vcmp.ge.f32.partialorder %v2647, 0.0
  %vm4464 = vcmp.ge.f32.partialorder %v2652, 0.0
  %vm4465 = vcmp.ge.f32.partialorder %v2655, 0.0
  %vm4466 = vcmp.ge.f32.partialorder %v2660, 0.0
  %vm4467 = vcmp.ge.f32.partialorder %v2663, 0.0
  %vm4468 = vcmp.ge.f32.partialorder %v2668, 0.0
  %vm4469 = vcmp.ge.f32.partialorder %v2671, 0.0
  %vm4470 = vcmp.ge.f32.partialorder %v2676, 0.0
  %vm4471 = vcmp.ge.f32.partialorder %v2679, 0.0
  %vm4472 = vcmp.ge.f32.partialorder %v2684, 0.0
  %vm4473 = vcmp.ge.f32.partialorder %v2687, 0.0
  %vm4474 = vcmp.ge.f32.partialorder %v2692, 0.0
  %vm4475 = vcmp.ge.f32.partialorder %v2695, 0.0
  %vm4476 = vcmp.ge.f32.partialorder %v2700, 0.0
  %vm4477 = vcmp.ge.f32.partialorder %v2703, 0.0
  %vm4478 = vcmp.ge.f32.partialorder %v2708, 0.0
  %vm4479 = vcmp.ge.f32.partialorder %v2711, 0.0
  %vm4480 = vcmp.ge.f32.partialorder %v2716, 0.0
  %vm4481 = vcmp.ge.f32.partialorder %v2719, 0.0
  %vm4482 = vcmp.ge.f32.partialorder %v2724, 0.0
  %vm4483 = vcmp.ge.f32.partialorder %v2727, 0.0
  %vm4484 = vcmp.ge.f32.partialorder %v2732, 0.0
  %vm4485 = vcmp.ge.f32.partialorder %v2735, 0.0
  %vm4486 = vcmp.ge.f32.partialorder %v2740, 0.0
  %vm4487 = vcmp.ge.f32.partialorder %v2743, 0.0
  %vm4488 = vcmp.ge.f32.partialorder %v2748, 0.0
  %vm4489 = vcmp.ge.f32.partialorder %v2751, 0.0
  %vm4490 = vcmp.ge.f32.partialorder %v2756, 0.0
  %vm4491 = vcmp.ge.f32.partialorder %v2759, 0.0
  %vm4492 = vcmp.ge.f32.partialorder %v2764, 0.0
  %vm4493 = vcmp.ge.f32.partialorder %v2767, 0.0
  %vm4494 = vcmp.ge.f32.partialorder %v2772, 0.0
  %vm4495 = vcmp.ge.f32.partialorder %v2775, 0.0
  %vm4496 = vcmp.ge.f32.partialorder %v2780, 0.0
  %vm4497 = vcmp.ge.f32.partialorder %v2783, 0.0
  %vm4498 = vcmp.ge.f32.partialorder %v2788, 0.0
  %vm4499 = vcmp.ge.f32.partialorder %v2791, 0.0
  %vm4500 = vcmp.ge.f32.partialorder %v2796, 0.0
  %vm4501 = vcmp.ge.f32.partialorder %v2799, 0.0
  %vm4502 = vcmp.ge.f32.partialorder %v2804, 0.0
  %vm4503 = vcmp.ge.f32.partialorder %v2807, 0.0
  %vm4504 = vcmp.ge.f32.partialorder %v2812, 0.0
  %vm4505 = vcmp.ge.f32.partialorder %v2815, 0.0
  %vm4506 = vcmp.ge.f32.partialorder %v2820, 0.0
  %vm4507 = vcmp.ge.f32.partialorder %v2823, 0.0
  %vm4508 = vcmp.ge.f32.partialorder %v2828, 0.0
  %vm4509 = vcmp.ge.f32.partialorder %v2831, 0.0
  %vm4510 = vcmp.ge.f32.partialorder %v2836, 0.0
  %vm4511 = vcmp.ge.f32.partialorder %v2839, 0.0
  %vm4512 = vcmp.ge.f32.partialorder %v2844, 0.0
  %vm4513 = vcmp.ge.f32.partialorder %v2847, 0.0
  %vm4514 = vcmp.ge.f32.partialorder %v2852, 0.0
  %vm4515 = vcmp.ge.f32.partialorder %v2855, 0.0
  %vm4516 = vcmp.ge.f32.partialorder %v2860, 0.0
  %vm4517 = vcmp.ge.f32.partialorder %v2863, 0.0
  %vm4518 = vcmp.ge.f32.partialorder %v2868, 0.0
  %vm4519 = vcmp.ge.f32.partialorder %v2871, 0.0
  %vm4520 = vcmp.ge.f32.partialorder %v2876, 0.0
  %vm4521 = vcmp.ge.f32.partialorder %v2879, 0.0
  %vm4522 = vcmp.ge.f32.partialorder %v2884, 0.0
  %vm4523 = vcmp.ge.f32.partialorder %v2887, 0.0
  %vm4524 = vcmp.ge.f32.partialorder %v2892, 0.0
  %vm4525 = vcmp.ge.f32.partialorder %v2895, 0.0
  %vm4526 = vcmp.ge.f32.partialorder %v2900, 0.0
  %vm4527 = vcmp.ge.f32.partialorder %v2903, 0.0
  %vm4528 = vcmp.ge.f32.partialorder %v2908, 0.0
  %vm4529 = vcmp.ge.f32.partialorder %v2911, 0.0
  %vm4530 = vcmp.ge.f32.partialorder %v2916, 0.0
  %vm4531 = vcmp.ge.f32.partialorder %v2919, 0.0
  %vm4532 = vcmp.ge.f32.partialorder %v2924, 0.0
  %vm4533 = vcmp.ge.f32.partialorder %v2927, 0.0
  %vm4534 = vcmp.ge.f32.partialorder %v2932, 0.0
  %vm4535 = vcmp.ge.f32.partialorder %v2935, 0.0
  %vm4536 = vcmp.ge.f32.partialorder %v2940, 0.0
  %vm4537 = vcmp.ge.f32.partialorder %v2943, 0.0
  %vm4538 = vcmp.ge.f32.partialorder %v2948, 0.0
  %vm4539 = vcmp.ge.f32.partialorder %v2951, 0.0
  %vm4540 = vcmp.ge.f32.partialorder %v2956, 0.0
  %vm4541 = vcmp.ge.f32.partialorder %v2959, 0.0
  %vm4542 = vcmp.ge.f32.partialorder %v2964, 0.0
  %vm4543 = vcmp.ge.f32.partialorder %v2967, 0.0
  %vm4544 = vcmp.ge.f32.partialorder %v2972, 0.0
  %vm4545 = vcmp.ge.f32.partialorder %v2975, 0.0
  %vm4546 = vcmp.ge.f32.partialorder %v2980, 0.0
  %vm4547 = vcmp.ge.f32.partialorder %v2983, 0.0
  %vm4548 = vcmp.ge.f32.partialorder %v2988, 0.0
  %vm4549 = vcmp.ge.f32.partialorder %v2991, 0.0
  %vm4550 = vcmp.ge.f32.partialorder %v2996, 0.0
  %vm4551 = vcmp.ge.f32.partialorder %v2999, 0.0
  %vm4552 = vcmp.ge.f32.partialorder %v3004, 0.0
  %vm4553 = vcmp.ge.f32.partialorder %v3007, 0.0
  %vm4554 = vcmp.ge.f32.partialorder %v3012, 0.0
  %vm4555 = vcmp.ge.f32.partialorder %v3015, 0.0
  %vm4556 = vcmp.ge.f32.partialorder %v3020, 0.0
  %vm4557 = vcmp.ge.f32.partialorder %v3023, 0.0
  %vm4558 = vcmp.ge.f32.partialorder %v3028, 0.0
  %vm4559 = vcmp.ge.f32.partialorder %v3031, 0.0
  %vm4560 = vcmp.ge.f32.partialorder %v3036, 0.0
  %vm4561 = vcmp.ge.f32.partialorder %v3039, 0.0
  %vm4562 = vcmp.ge.f32.partialorder %v3044, 0.0
  %vm4563 = vcmp.ge.f32.partialorder %v3047, 0.0
  %vm4564 = vcmp.ge.f32.partialorder %v3052, 0.0
  %vm4565 = vcmp.ge.f32.partialorder %v3055, 0.0
  %vm4566 = vcmp.ge.f32.partialorder %v3060, 0.0
  %vm4567 = vcmp.ge.f32.partialorder %v3063, 0.0
  %vm4568 = vcmp.ge.f32.partialorder %v3068, 0.0
  %vm4569 = vcmp.ge.f32.partialorder %v3071, 0.0
  %vm4570 = vcmp.ge.f32.partialorder %v3076, 0.0
  %vm4571 = vcmp.ge.f32.partialorder %v3079, 0.0
  %vm4572 = vcmp.ge.f32.partialorder %v3084, 0.0
  %vm4573 = vcmp.ge.f32.partialorder %v3087, 0.0
  %vm4574 = vcmp.ge.f32.partialorder %v3092, 0.0
  %vm4575 = vcmp.ge.f32.partialorder %v3095, 0.0
  %vm4576 = vcmp.ge.f32.partialorder %v3100, 0.0
  %vm4577 = vcmp.ge.f32.partialorder %v3103, 0.0
  %vm4578 = vcmp.ge.f32.partialorder %v3108, 0.0
  %vm4579 = vcmp.ge.f32.partialorder %v3111, 0.0
  %vm4580 = vcmp.ge.f32.partialorder %v3116, 0.0
  %vm4581 = vcmp.ge.f32.partialorder %v3119, 0.0
  %vm4582 = vcmp.ge.f32.partialorder %v3124, 0.0
  %vm4583 = vcmp.ge.f32.partialorder %v3127, 0.0
  %vm4584 = vcmp.ge.f32.partialorder %v3132, 0.0
  %vm4585 = vcmp.ge.f32.partialorder %v3135, 0.0
  %vm4586 = vcmp.ge.f32.partialorder %v3140, 0.0
  %vm4587 = vcmp.ge.f32.partialorder %v3143, 0.0
  %vm4588 = vcmp.ge.f32.partialorder %v3148, 0.0
  %vm4589 = vcmp.ge.f32.partialorder %v3151, 0.0
  %vm4590 = vcmp.ge.f32.partialorder %v3156, 0.0
  %vm4591 = vcmp.ge.f32.partialorder %v3159, 0.0
  %vm4592 = vcmp.ge.f32.partialorder %v3164, 0.0
  %vm4593 = vcmp.ge.f32.partialorder %v3167, 0.0
  %vm4594 = vcmp.ge.f32.partialorder %v3172, 0.0
  %vm4595 = vcmp.ge.f32.partialorder %v3175, 0.0
  %vm4596 = vcmp.ge.f32.partialorder %v3180, 0.0
  %vm4597 = vcmp.ge.f32.partialorder %v3183, 0.0
  %vm4598 = vcmp.ge.f32.partialorder %v3188, 0.0
  %vm4599 = vcmp.ge.f32.partialorder %v3191, 0.0
  %vm4600 = vcmp.ge.f32.partialorder %v3196, 0.0
  %vm4601 = vcmp.ge.f32.partialorder %v3199, 0.0
  %vm4602 = vcmp.ge.f32.partialorder %v3204, 0.0
  %vm4603 = vcmp.ge.f32.partialorder %v3207, 0.0
  %vm4604 = vcmp.ge.f32.partialorder %v3212, 0.0
  %vm4605 = vcmp.ge.f32.partialorder %v3215, 0.0
  %vm4606 = vcmp.ge.f32.partialorder %v3220, 0.0
  %vm4607 = vcmp.ge.f32.partialorder %v3223, 0.0
  %vm4608 = vcmp.ge.f32.partialorder %v3228, 0.0
  %vm4609 = vcmp.ge.f32.partialorder %v3231, 0.0
  %vm4610 = vcmp.ge.f32.partialorder %v3236, 0.0
  %vm4611 = vcmp.ge.f32.partialorder %v3239, 0.0
  %vm4612 = vcmp.ge.f32.partialorder %v3244, 0.0
  %vm4613 = vcmp.ge.f32.partialorder %v3247, 0.0
  %vm4614 = vcmp.ge.f32.partialorder %v3252, 0.0
  %vm4615 = vcmp.ge.f32.partialorder %v3255, 0.0
  %vm4616 = vcmp.ge.f32.partialorder %v3260, 0.0
  %vm4617 = vcmp.ge.f32.partialorder %v3263, 0.0
  %vm4618 = vcmp.ge.f32.partialorder %v3268, 0.0
  %vm4619 = vcmp.ge.f32.partialorder %v3271, 0.0
  %vm4620 = vcmp.ge.f32.partialorder %v3276, 0.0
  %vm4621 = vcmp.ge.f32.partialorder %v3279, 0.0
  %vm4622 = vcmp.ge.f32.partialorder %v3284, 0.0
  %vm4623 = vcmp.ge.f32.partialorder %v3287, 0.0
  %vm4624 = vcmp.ge.f32.partialorder %v3292, 0.0
  %vm4625 = vcmp.ge.f32.partialorder %v3295, 0.0
  %vm4626 = vcmp.ge.f32.partialorder %v3300, 0.0
  %vm4627 = vcmp.ge.f32.partialorder %v3303, 0.0
  %vm4628 = vcmp.ge.f32.partialorder %v3308, 0.0
  %vm4629 = vcmp.ge.f32.partialorder %v3311, 0.0
  %vm4630 = vcmp.ge.f32.partialorder %v3316, 0.0
  %vm4631 = vcmp.ge.f32.partialorder %v3319, 0.0
  %vm4632 = vcmp.ge.f32.partialorder %v3324, 0.0
  %vm4633 = vcmp.ge.f32.partialorder %v3327, 0.0
  %vm4634 = vcmp.ge.f32.partialorder %v3332, 0.0
  %vm4635 = vcmp.ge.f32.partialorder %v3335, 0.0
  %vm4636 = vcmp.ge.f32.partialorder %v3340, 0.0
  %vm4637 = vcmp.ge.f32.partialorder %v3343, 0.0
  %vm4638 = vcmp.ge.f32.partialorder %v3348, 0.0
  %vm4639 = vcmp.ge.f32.partialorder %v3351, 0.0
  %vm4640 = vcmp.ge.f32.partialorder %v3356, 0.0
  %vm4641 = vcmp.ge.f32.partialorder %v3359, 0.0
  %vm4642 = vcmp.ge.f32.partialorder %v3364, 0.0
  %vm4643 = vcmp.ge.f32.partialorder %v3367, 0.0
  %vm4644 = vcmp.ge.f32.partialorder %v3372, 0.0
  %vm4645 = vcmp.ge.f32.partialorder %v3375, 0.0
  %vm4646 = vcmp.ge.f32.partialorder %v3380, 0.0
  %vm4647 = vcmp.ge.f32.partialorder %v3383, 0.0
  %vm4648 = vcmp.ge.f32.partialorder %v3388, 0.0
  %vm4649 = vcmp.ge.f32.partialorder %v3391, 0.0
  %vm4650 = vcmp.ge.f32.partialorder %v3396, 0.0
  %vm4651 = vcmp.ge.f32.partialorder %v3399, 0.0
  %vm4652 = vcmp.ge.f32.partialorder %v3404, 0.0
  %vm4653 = vcmp.ge.f32.partialorder %v3407, 0.0
  %vm4654 = vcmp.ge.f32.partialorder %v3412, 0.0
  %vm4655 = vcmp.ge.f32.partialorder %v3415, 0.0
  %vm4656 = vcmp.ge.f32.partialorder %v3420, 0.0
  %vm4657 = vcmp.ge.f32.partialorder %v3423, 0.0
  %vm4658 = vcmp.ge.f32.partialorder %v3428, 0.0
  %vm4659 = vcmp.ge.f32.partialorder %v3431, 0.0
  %vm4660 = vcmp.ge.f32.partialorder %v3436, 0.0
  %vm4661 = vcmp.ge.f32.partialorder %v3439, 0.0
  %vm4662 = vcmp.ge.f32.partialorder %v3444, 0.0
  %vm4663 = vcmp.ge.f32.partialorder %v3447, 0.0
  %vm4664 = vcmp.ge.f32.partialorder %v3452, 0.0
  %vm4665 = vcmp.ge.f32.partialorder %v3455, 0.0
  %vm4666 = vcmp.ge.f32.partialorder %v3460, 0.0
  %vm4667 = vcmp.ge.f32.partialorder %v3463, 0.0
  %vm4668 = vcmp.ge.f32.partialorder %v3468, 0.0
  %vm4669 = vcmp.ge.f32.partialorder %v3471, 0.0
  %vm4670 = vcmp.ge.f32.partialorder %v3476, 0.0
  %vm4671 = vcmp.ge.f32.partialorder %v3479, 0.0
  %vm4672 = vcmp.ge.f32.partialorder %v3484, 0.0
  %vm4673 = vcmp.ge.f32.partialorder %v3487, 0.0
  %vm4674 = vcmp.ge.f32.partialorder %v3492, 0.0
  %vm4675 = vcmp.ge.f32.partialorder %v3495, 0.0
  %vm4676 = vcmp.ge.f32.partialorder %v3500, 0.0
  %vm4677 = vcmp.ge.f32.partialorder %v3503, 0.0
  %vm4678 = vcmp.ge.f32.partialorder %v3508, 0.0
  %vm4679 = vcmp.ge.f32.partialorder %v3511, 0.0
  %vm4680 = vcmp.ge.f32.partialorder %v3516, 0.0
  %vm4681 = vcmp.ge.f32.partialorder %v3519, 0.0
  %vm4682 = vcmp.ge.f32.partialorder %v3524, 0.0
  %vm4683 = vcmp.ge.f32.partialorder %v3527, 0.0
  %vm4684 = vcmp.ge.f32.partialorder %v3532, 0.0
  %vm4685 = vcmp.ge.f32.partialorder %v3535, 0.0
  %vm4686 = vcmp.ge.f32.partialorder %v3540, 0.0
  %vm4687 = vcmp.ge.f32.partialorder %v3543, 0.0
  %vm4688 = vcmp.ge.f32.partialorder %v3548, 0.0
  %vm4689 = vcmp.ge.f32.partialorder %v3551, 0.0
  %vm4690 = vcmp.ge.f32.partialorder %v3556, 0.0
  %vm4691 = vcmp.ge.f32.partialorder %v3559, 0.0
  %vm4692 = vcmp.ge.f32.partialorder %v3564, 0.0
  %vm4693 = vcmp.ge.f32.partialorder %v3567, 0.0
  %vm4694 = vcmp.ge.f32.partialorder %v3572, 0.0
  %vm4695 = vcmp.ge.f32.partialorder %v3575, 0.0
  %vm4696 = vcmp.ge.f32.partialorder %v3580, 0.0
  %vm4697 = vcmp.ge.f32.partialorder %v3583, 0.0
  %vm4698 = vcmp.ge.f32.partialorder %v3588, 0.0
  %vm4699 = vcmp.ge.f32.partialorder %v3591, 0.0
  %vm4700 = vcmp.ge.f32.partialorder %v3596, 0.0
  %vm4701 = vcmp.ge.f32.partialorder %v3599, 0.0
  %vm4702 = vcmp.ge.f32.partialorder %v3604, 0.0
  %vm4703 = vcmp.ge.f32.partialorder %v3607, 0.0
  %vm4704 = vcmp.ge.f32.partialorder %v3612, 0.0
  %vm4705 = vcmp.ge.f32.partialorder %v3615, 0.0
  %vm4706 = vcmp.ge.f32.partialorder %v3620, 0.0
  %vm4707 = vcmp.ge.f32.partialorder %v3623, 0.0
  %vm4708 = vcmp.ge.f32.partialorder %v3628, 0.0
  %vm4709 = vcmp.ge.f32.partialorder %v3631, 0.0
  %vm4710 = vcmp.ge.f32.partialorder %v3636, 0.0
  %vm4711 = vcmp.ge.f32.partialorder %v3639, 0.0
  %vm4712 = vcmp.ge.f32.partialorder %v3644, 0.0
  %vm4713 = vcmp.ge.f32.partialorder %v3647, 0.0
  %vm4714 = vcmp.ge.f32.partialorder %v3652, 0.0
  %vm4715 = vcmp.ge.f32.partialorder %v3655, 0.0
  %vm4716 = vcmp.ge.f32.partialorder %v3660, 0.0
  %vm4717 = vcmp.ge.f32.partialorder %v3663, 0.0
  %vm4718 = vcmp.ge.f32.partialorder %v3668, 0.0
  %vm4719 = vcmp.ge.f32.partialorder %v3671, 0.0
  %vm4720 = vcmp.ge.f32.partialorder %v3676, 0.0
  %vm4721 = vcmp.ge.f32.partialorder %v3679, 0.0
  %vm4722 = vcmp.ge.f32.partialorder %v3684, 0.0
  %vm4723 = vcmp.ge.f32.partialorder %v3687, 0.0
  %vm4724 = vcmp.ge.f32.partialorder %v3692, 0.0
  %vm4725 = vcmp.ge.f32.partialorder %v3695, 0.0
  %vm4726 = vcmp.ge.f32.partialorder %v3700, 0.0
  %vm4727 = vcmp.ge.f32.partialorder %v3703, 0.0
  %vm4728 = vcmp.ge.f32.partialorder %v3708, 0.0
  %vm4729 = vcmp.ge.f32.partialorder %v3711, 0.0
  %vm4730 = vcmp.ge.f32.partialorder %v3716, 0.0
  %vm4731 = vcmp.ge.f32.partialorder %v3719, 0.0
  %vm4732 = vcmp.ge.f32.partialorder %v3724, 0.0
  %vm4733 = vcmp.ge.f32.partialorder %v3727, 0.0
  %vm4734 = vcmp.ge.f32.partialorder %v3732, 0.0
  %vm4735 = vcmp.ge.f32.partialorder %v3735, 0.0
  %vm4736 = vcmp.ge.f32.partialorder %v3740, 0.0
  %vm4737 = vcmp.ge.f32.partialorder %v3743, 0.0
  %vm4738 = vcmp.ge.f32.partialorder %v3748, 0.0
  %vm4739 = vcmp.ge.f32.partialorder %v3751, 0.0
  %vm4740 = vcmp.ge.f32.partialorder %v3756, 0.0
  %vm4741 = vcmp.ge.f32.partialorder %v3759, 0.0
  %vm4742 = vcmp.ge.f32.partialorder %v3764, 0.0
  %vm4743 = vcmp.ge.f32.partialorder %v3767, 0.0
  %vm4744 = vcmp.ge.f32.partialorder %v3772, 0.0
  %vm4745 = vcmp.ge.f32.partialorder %v3775, 0.0
  %vm4746 = vcmp.ge.f32.partialorder %v3780, 0.0
  %vm4747 = vcmp.ge.f32.partialorder %v3783, 0.0
  %vm4748 = vcmp.ge.f32.partialorder %v3788, 0.0
  %vm4749 = vcmp.ge.f32.partialorder %v3791, 0.0
  %vm4750 = vcmp.ge.f32.partialorder %v3796, 0.0
  %vm4751 = vcmp.ge.f32.partialorder %v3799, 0.0
  %vm4752 = vcmp.ge.f32.partialorder %v3804, 0.0
  %vm4753 = vcmp.ge.f32.partialorder %v3807, 0.0
  %vm4754 = vcmp.ge.f32.partialorder %v3812, 0.0
  %vm4755 = vcmp.ge.f32.partialorder %v3815, 0.0
  %vm4756 = vcmp.ge.f32.partialorder %v3820, 0.0
  %vm4757 = vcmp.ge.f32.partialorder %v3823, 0.0
  %vm4758 = vcmp.ge.f32.partialorder %v3828, 0.0
  %vm4759 = vcmp.ge.f32.partialorder %v3831, 0.0
  %vm4760 = vcmp.ge.f32.partialorder %v3836, 0.0
  %vm4761 = vcmp.ge.f32.partialorder %v3839, 0.0
  %vm4762 = vcmp.ge.f32.partialorder %v3844, 0.0
  %vm4763 = vcmp.ge.f32.partialorder %v3847, 0.0
  %vm4764 = vcmp.ge.f32.partialorder %v3852, 0.0
  %vm4765 = vcmp.ge.f32.partialorder %v3855, 0.0
  %vm4766 = vcmp.ge.f32.partialorder %v3860, 0.0
  %vm4767 = vcmp.ge.f32.partialorder %v3863, 0.0
  %vm4768 = vcmp.ge.f32.partialorder %v3868, 0.0
  %vm4769 = vcmp.ge.f32.partialorder %v3871, 0.0
  %vm4770 = vcmp.ge.f32.partialorder %v3876, 0.0
  %vm4771 = vcmp.ge.f32.partialorder %v3879, 0.0
  %vm4772 = vcmp.ge.f32.partialorder %v3884, 0.0
  %vm4773 = vcmp.ge.f32.partialorder %v3887, 0.0
  %vm4774 = vcmp.ge.f32.partialorder %v3892, 0.0
  %vm4775 = vcmp.ge.f32.partialorder %v3895, 0.0
  %vm4776 = vcmp.ge.f32.partialorder %v3900, 0.0
  %vm4777 = vcmp.ge.f32.partialorder %v3903, 0.0
  %vm4778 = vcmp.ge.f32.partialorder %v3908, 0.0
  %vm4779 = vcmp.ge.f32.partialorder %v3911, 0.0
  %vm4780 = vcmp.ge.f32.partialorder %v3916, 0.0
  %vm4781 = vcmp.ge.f32.partialorder %v3919, 0.0
  %vm4782 = vcmp.ge.f32.partialorder %v3924, 0.0
  %vm4783 = vcmp.ge.f32.partialorder %v3927, 0.0
  %vm4784 = vcmp.ge.f32.partialorder %v3932, 0.0
  %vm4785 = vcmp.ge.f32.partialorder %v3935, 0.0
  %vm4786 = vcmp.ge.f32.partialorder %v3940, 0.0
  %vm4787 = vcmp.ge.f32.partialorder %v3943, 0.0
  %vm4788 = vcmp.ge.f32.partialorder %v3948, 0.0
  %vm4789 = vcmp.ge.f32.partialorder %v3951, 0.0
  %vm4790 = vcmp.ge.f32.partialorder %v3956, 0.0
  %vm4791 = vcmp.ge.f32.partialorder %v3959, 0.0
  %vm4792 = vcmp.ge.f32.partialorder %v3964, 0.0
  %vm4793 = vcmp.ge.f32.partialorder %v3967, 0.0
  %vm4794 = vcmp.ge.f32.partialorder %v3972, 0.0
  %vm4795 = vcmp.ge.f32.partialorder %v3975, 0.0
  %vm4796 = vcmp.ge.f32.partialorder %v3980, 0.0
  %vm4797 = vcmp.ge.f32.partialorder %v3983, 0.0
  %vm4798 = vcmp.ge.f32.partialorder %v3988, 0.0
  %vm4799 = vcmp.ge.f32.partialorder %v3991, 0.0
  %vm4800 = vcmp.ge.f32.partialorder %v3996, 0.0
  %vm4801 = vcmp.ge.f32.partialorder %v3999, 0.0
  %vm4802 = vcmp.ge.f32.partialorder %v4004, 0.0
  %vm4803 = vcmp.ge.f32.partialorder %v4007, 0.0
  %vm4804 = vcmp.ge.f32.partialorder %v4012, 0.0
  %vm4805 = vcmp.ge.f32.partialorder %v4015, 0.0
  %vm4806 = vcmp.ge.f32.partialorder %v4020, 0.0
  %vm4807 = vcmp.ge.f32.partialorder %v4023, 0.0
  %vm4808 = vcmp.ge.f32.partialorder %v4028, 0.0
  %vm4809 = vcmp.ge.f32.partialorder %v4031, 0.0
  %vm4810 = vcmp.ge.f32.partialorder %v4036, 0.0
  %vm4811 = vcmp.ge.f32.partialorder %v4039, 0.0
  %vm4812 = vcmp.ge.f32.partialorder %v4044, 0.0
  %vm4813 = vcmp.ge.f32.partialorder %v4047, 0.0
  %vm4814 = vcmp.ge.f32.partialorder %v4052, 0.0
  %vm4815 = vcmp.ge.f32.partialorder %v4055, 0.0
  %vm4816 = vcmp.ge.f32.partialorder %v4060, 0.0
  %vm4817 = vcmp.ge.f32.partialorder %v4063, 0.0
  %vm4818 = vcmp.ge.f32.partialorder %v4068, 0.0
  %vm4819 = vcmp.ge.f32.partialorder %v4071, 0.0
  %vm4820 = vcmp.ge.f32.partialorder %v4076, 0.0
  %vm4821 = vcmp.ge.f32.partialorder %v4079, 0.0
  %vm4822 = vcmp.ge.f32.partialorder %v4084, 0.0
  %vm4823 = vcmp.ge.f32.partialorder %v4087, 0.0
  %vm4824 = vcmp.ge.f32.partialorder %v4092, 0.0
  %vm4825 = vcmp.ge.f32.partialorder %v4095, 0.0
  %vm4826 = vcmp.ge.f32.partialorder %v4100, 0.0
  %vm4827 = vcmp.ge.f32.partialorder %v4103, 0.0
  %vm4828 = vcmp.ge.f32.partialorder %v4108, 0.0
  %vm4829 = vcmp.ge.f32.partialorder %v4111, 0.0
  %vm4830 = vcmp.ge.f32.partialorder %v4116, 0.0
  %vm4831 = vcmp.ge.f32.partialorder %v4119, 0.0
  %vm4832 = vcmp.ge.f32.partialorder %v4124, 0.0
  %vm4833 = vcmp.ge.f32.partialorder %v4127, 0.0
  %vm4834 = vcmp.ge.f32.partialorder %v4132, 0.0
  %vm4835 = vcmp.ge.f32.partialorder %v4135, 0.0
  %vm4836 = vcmp.ge.f32.partialorder %v4140, 0.0
  %vm4837 = vcmp.ge.f32.partialorder %v4143, 0.0
  %vm4838 = vcmp.ge.f32.partialorder %v4148, 0.0
  %vm4839 = vcmp.ge.f32.partialorder %v4151, 0.0
  %vm4840 = vcmp.ge.f32.partialorder %v4156, 0.0
  %vm4841 = vcmp.ge.f32.partialorder %v4159, 0.0
  %vm4842 = vcmp.ge.f32.partialorder %v4164, 0.0
  %vm4843 = vcmp.ge.f32.partialorder %v4167, 0.0
  %vm4844 = vcmp.ge.f32.partialorder %v4172, 0.0
  %vm4845 = vcmp.ge.f32.partialorder %v4175, 0.0
  %vm4846 = vcmp.ge.f32.partialorder %v4180, 0.0
  %vm4847 = vcmp.ge.f32.partialorder %v4183, 0.0
  %vm4848 = vcmp.ge.f32.partialorder %v4188, 0.0
  %vm4849 = vcmp.ge.f32.partialorder %v4191, 0.0
  %vm4850 = vcmp.ge.f32.partialorder %v4196, 0.0
  %vm4851 = vcmp.ge.f32.partialorder %v4199, 0.0
  %vm4852 = vcmp.ge.f32.partialorder %v4204, 0.0
  %vm4853 = vcmp.ge.f32.partialorder %v4207, 0.0
  %vm4854 = vcmp.ge.f32.partialorder %v4212, 0.0
  %vm4855 = vcmp.ge.f32.partialorder %v4215, 0.0
  %vm4856 = vcmp.ge.f32.partialorder %v4220, 0.0
  %vm4857 = vcmp.ge.f32.partialorder %v4223, 0.0
  %vm4858 = vcmp.ge.f32.partialorder %v4228, 0.0
  %vm4859 = vcmp.ge.f32.partialorder %v4231, 0.0
  %vm4860 = vcmp.ge.f32.partialorder %v4236, 0.0
  %vm4861 = vcmp.ge.f32.partialorder %v4239, 0.0
  %vm4862 = vcmp.ge.f32.partialorder %v4244, 0.0
  %vm4863 = vcmp.ge.f32.partialorder %v4247, 0.0
  %vm4864 = vcmp.ge.f32.partialorder %v4252, 0.0
  %vm4865 = vcmp.ge.f32.partialorder %v4255, 0.0
  %vm4866 = vcmp.ge.f32.partialorder %v4260, 0.0
  %vm4867 = vcmp.ge.f32.partialorder %v4263, 0.0
  %vm4868 = vcmp.ge.f32.partialorder %v4268, 0.0
  %vm4869 = vcmp.ge.f32.partialorder %v4271, 0.0
  %vm4870 = vcmp.ge.f32.partialorder %v4276, 0.0
  %vm4871 = vcmp.ge.f32.partialorder %v4279, 0.0
  %vm4872 = vcmp.ge.f32.partialorder %v4284, 0.0
  %vm4873 = vcmp.ge.f32.partialorder %v4287, 0.0
  %vm4874 = vcmp.ge.f32.partialorder %v4292, 0.0
  %vm4875 = vcmp.ge.f32.partialorder %v4295, 0.0
  %vm4876 = vcmp.ge.f32.partialorder %v4300, 0.0
  %vm4877 = vcmp.ge.f32.partialorder %v4303, 0.0
  %vm4878 = vcmp.ge.f32.partialorder %v4308, 0.0
  %vm4879 = vcmp.ge.f32.partialorder %v4311, 0.0
  %vm4880 = vcmp.ge.f32.partialorder %v4316, 0.0
  %vm4881 = vcmp.ge.f32.partialorder %v4319, 0.0
  %vm4882 = vcmp.ge.f32.partialorder %v4324, 0.0
  %vm4883 = vcmp.ge.f32.partialorder %v4327, 0.0
  %vm4884 = vcmp.ge.f32.partialorder %v4332, 0.0
  %vm4885 = vcmp.ge.f32.partialorder %v4335, 0.0
  %vm4886 = vcmp.ge.f32.partialorder %v4340, 0.0
  %vm4887 = vcmp.ge.f32.partialorder %v4343, 0.0
  %vm4888 = vcmp.ge.f32.partialorder %v4348, 0.0
  %vm4889 = vcmp.ge.f32.partialorder %v4351, 0.0
  %vm4890 = vcmp.ge.f32.partialorder %v4356, 0.0
  %vm4891 = vcmp.ge.f32.partialorder %v4359, 0.0
  %vm4892 = vcmp.ge.f32.partialorder %v4364, 0.0
  %vm4893 = vcmp.ge.f32.partialorder %v4367, 0.0
  %vm4894 = vcmp.ge.f32.partialorder %v4372, 0.0
  %vm4895 = vcmp.ge.f32.partialorder %v4375, 0.0
  %vm4896 = vcmp.ge.f32.partialorder %v4380, 0.0
  %vm4897 = vcmp.ge.f32.partialorder %v4383, 0.0
  %vm4898 = vcmp.ge.f32.partialorder %v4388, 0.0
  %vm4899 = vcmp.ge.f32.partialorder %v4391, 0.0
  %vm4900 = vcmp.ge.f32.partialorder %v4396, 0.0
  %vm4901 = vcmp.ge.f32.partialorder %v4399, 0.0
  %vm4902 = vcmp.ge.f32.partialorder %v4404, 0.0
  %vm4903 = vcmp.ge.f32.partialorder %v4407, 0.0
  %vm4904 = vcmp.ge.f32.partialorder %v4412, 0.0
  %vm4905 = vcmp.ge.f32.partialorder %v4415, 0.0
  %vm4906 = vcmp.ge.f32.partialorder %v4420, 0.0
  %vm4907 = vcmp.ge.f32.partialorder %v4423, 0.0
  %v4908 = vmul.f32 %v2500, 0.01
  %v4909 = vmul.f32 %v2503, 0.01
  %v4910 = vmul.f32 %v2508, 0.01
  %v4911 = vmul.f32 %v2511, 0.01
  %v4912 = vmul.f32 %v2516, 0.01
  %v4913 = vmul.f32 %v2519, 0.01
  %v4914 = vmul.f32 %v2524, 0.01
  %v4915 = vmul.f32 %v2527, 0.01
  %v4916 = vmul.f32 %v2532, 0.01
  %v4917 = vmul.f32 %v2535, 0.01
  %v4918 = vmul.f32 %v2540, 0.01
  %v4919 = vmul.f32 %v2543, 0.01
  %v4920 = vmul.f32 %v2548, 0.01
  %v4921 = vmul.f32 %v2551, 0.01
  %v4922 = vmul.f32 %v2556, 0.01
  %v4923 = vmul.f32 %v2559, 0.01
  %v4924 = vmul.f32 %v2564, 0.01
  %v4925 = vmul.f32 %v2567, 0.01
  %v4926 = vmul.f32 %v2572, 0.01
  %v4927 = vmul.f32 %v2575, 0.01
  %v4928 = vmul.f32 %v2580, 0.01
  %v4929 = vmul.f32 %v2583, 0.01
  %v4930 = vmul.f32 %v2588, 0.01
  %v4931 = vmul.f32 %v2591, 0.01
  %v4932 = vmul.f32 %v2596, 0.01
  %v4933 = vmul.f32 %v2599, 0.01
  %v4934 = vmul.f32 %v2604, 0.01
  %v4935 = vmul.f32 %v2607, 0.01
  %v4936 = vmul.f32 %v2612, 0.01
  %v4937 = vmul.f32 %v2615, 0.01
  %v4938 = vmul.f32 %v2620, 0.01
  %v4939 = vmul.f32 %v2623, 0.01
  %v4940 = vmul.f32 %v2628, 0.01
  %v4941 = vmul.f32 %v2631, 0.01
  %v4942 = vmul.f32 %v2636, 0.01
  %v4943 = vmul.f32 %v2639, 0.01
  %v4944 = vmul.f32 %v2644, 0.01
  %v4945 = vmul.f32 %v2647, 0.01
  %v4946 = vmul.f32 %v2652, 0.01
  %v4947 = vmul.f32 %v2655, 0.01
  %v4948 = vmul.f32 %v2660, 0.01
  %v4949 = vmul.f32 %v2663, 0.01
  %v4950 = vmul.f32 %v2668, 0.01
  %v4951 = vmul.f32 %v2671, 0.01
  %v4952 = vmul.f32 %v2676, 0.01
  %v4953 = vmul.f32 %v2679, 0.01
  %v4954 = vmul.f32 %v2684, 0.01
  %v4955 = vmul.f32 %v2687, 0.01
  %v4956 = vmul.f32 %v2692, 0.01
  %v4957 = vmul.f32 %v2695, 0.01
  %v4958 = vmul.f32 %v2700, 0.01
  %v4959 = vmul.f32 %v2703, 0.01
  %v4960 = vmul.f32 %v2708, 0.01
  %v4961 = vmul.f32 %v2711, 0.01
  %v4962 = vmul.f32 %v2716, 0.01
  %v4963 = vmul.f32 %v2719, 0.01
  %v4964 = vmul.f32 %v2724, 0.01
  %v4965 = vmul.f32 %v2727, 0.01
  %v4966 = vmul.f32 %v2732, 0.01
  %v4967 = vmul.f32 %v2735, 0.01
  %v4968 = vmul.f32 %v2740, 0.01
  %v4969 = vmul.f32 %v2743, 0.01
  %v4970 = vmul.f32 %v2748, 0.01
  %v4971 = vmul.f32 %v2751, 0.01
  %v4972 = vmul.f32 %v2756, 0.01
  %v4973 = vmul.f32 %v2759, 0.01
  %v4974 = vmul.f32 %v2764, 0.01
  %v4975 = vmul.f32 %v2767, 0.01
  %v4976 = vmul.f32 %v2772, 0.01
  %v4977 = vmul.f32 %v2775, 0.01
  %v4978 = vmul.f32 %v2780, 0.01
  %v4979 = vmul.f32 %v2783, 0.01
  %v4980 = vmul.f32 %v2788, 0.01
  %v4981 = vmul.f32 %v2791, 0.01
  %v4982 = vmul.f32 %v2796, 0.01
  %v4983 = vmul.f32 %v2799, 0.01
  %v4984 = vmul.f32 %v2804, 0.01
  %v4985 = vmul.f32 %v2807, 0.01
  %v4986 = vmul.f32 %v2812, 0.01
  %v4987 = vmul.f32 %v2815, 0.01
  %v4988 = vmul.f32 %v2820, 0.01
  %v4989 = vmul.f32 %v2823, 0.01
  %v4990 = vmul.f32 %v2828, 0.01
  %v4991 = vmul.f32 %v2831, 0.01
  %v4992 = vmul.f32 %v2836, 0.01
  %v4993 = vmul.f32 %v2839, 0.01
  %v4994 = vmul.f32 %v2844, 0.01
  %v4995 = vmul.f32 %v2847, 0.01
  %v4996 = vmul.f32 %v2852, 0.01
  %v4997 = vmul.f32 %v2855, 0.01
  %v4998 = vmul.f32 %v2860, 0.01
  %v4999 = vmul.f32 %v2863, 0.01
  %v5000 = vmul.f32 %v2868, 0.01
  %v5001 = vmul.f32 %v2871, 0.01
  %v5002 = vmul.f32 %v2876, 0.01
  %v5003 = vmul.f32 %v2879, 0.01
  %v5004 = vmul.f32 %v2884, 0.01
  %v5005 = vmul.f32 %v2887, 0.01
  %v5006 = vmul.f32 %v2892, 0.01
  %v5007 = vmul.f32 %v2895, 0.01
  %v5008 = vmul.f32 %v2900, 0.01
  %v5009 = vmul.f32 %v2903, 0.01
  %v5010 = vmul.f32 %v2908, 0.01
  %v5011 = vmul.f32 %v2911, 0.01
  %v5012 = vmul.f32 %v2916, 0.01
  %v5013 = vmul.f32 %v2919, 0.01
  %v5014 = vmul.f32 %v2924, 0.01
  %v5015 = vmul.f32 %v2927, 0.01
  %v5016 = vmul.f32 %v2932, 0.01
  %v5017 = vmul.f32 %v2935, 0.01
  %v5018 = vmul.f32 %v2940, 0.01
  %v5019 = vmul.f32 %v2943, 0.01
  %v5020 = vmul.f32 %v2948, 0.01
  %v5021 = vmul.f32 %v2951, 0.01
  %v5022 = vmul.f32 %v2956, 0.01
  %v5023 = vmul.f32 %v2959, 0.01
  %v5024 = vmul.f32 %v2964, 0.01
  %v5025 = vmul.f32 %v2967, 0.01
  %v5026 = vmul.f32 %v2972, 0.01
  %v5027 = vmul.f32 %v2975, 0.01
  %v5028 = vmul.f32 %v2980, 0.01
  %v5029 = vmul.f32 %v2983, 0.01
  %v5030 = vmul.f32 %v2988, 0.01
  %v5031 = vmul.f32 %v2991, 0.01
  %v5032 = vmul.f32 %v2996, 0.01
  %v5033 = vmul.f32 %v2999, 0.01
  %v5034 = vmul.f32 %v3004, 0.01
  %v5035 = vmul.f32 %v3007, 0.01
  %v5036 = vmul.f32 %v3012, 0.01
  %v5037 = vmul.f32 %v3015, 0.01
  %v5038 = vmul.f32 %v3020, 0.01
  %v5039 = vmul.f32 %v3023, 0.01
  %v5040 = vmul.f32 %v3028, 0.01
  %v5041 = vmul.f32 %v3031, 0.01
  %v5042 = vmul.f32 %v3036, 0.01
  %v5043 = vmul.f32 %v3039, 0.01
  %v5044 = vmul.f32 %v3044, 0.01
  %v5045 = vmul.f32 %v3047, 0.01
  %v5046 = vmul.f32 %v3052, 0.01
  %v5047 = vmul.f32 %v3055, 0.01
  %v5048 = vmul.f32 %v3060, 0.01
  %v5049 = vmul.f32 %v3063, 0.01
  %v5050 = vmul.f32 %v3068, 0.01
  %v5051 = vmul.f32 %v3071, 0.01
  %v5052 = vmul.f32 %v3076, 0.01
  %v5053 = vmul.f32 %v3079, 0.01
  %v5054 = vmul.f32 %v3084, 0.01
  %v5055 = vmul.f32 %v3087, 0.01
  %v5056 = vmul.f32 %v3092, 0.01
  %v5057 = vmul.f32 %v3095, 0.01
  %v5058 = vmul.f32 %v3100, 0.01
  %v5059 = vmul.f32 %v3103, 0.01
  %v5060 = vmul.f32 %v3108, 0.01
  %v5061 = vmul.f32 %v3111, 0.01
  %v5062 = vmul.f32 %v3116, 0.01
  %v5063 = vmul.f32 %v3119, 0.01
  %v5064 = vmul.f32 %v3124, 0.01
  %v5065 = vmul.f32 %v3127, 0.01
  %v5066 = vmul.f32 %v3132, 0.01
  %v5067 = vmul.f32 %v3135, 0.01
  %v5068 = vmul.f32 %v3140, 0.01
  %v5069 = vmul.f32 %v3143, 0.01
  %v5070 = vmul.f32 %v3148, 0.01
  %v5071 = vmul.f32 %v3151, 0.01
  %v5072 = vmul.f32 %v3156, 0.01
  %v5073 = vmul.f32 %v3159, 0.01
  %v5074 = vmul.f32 %v3164, 0.01
  %v5075 = vmul.f32 %v3167, 0.01
  %v5076 = vmul.f32 %v3172, 0.01
  %v5077 = vmul.f32 %v3175, 0.01
  %v5078 = vmul.f32 %v3180, 0.01
  %v5079 = vmul.f32 %v3183, 0.01
  %v5080 = vmul.f32 %v3188, 0.01
  %v5081 = vmul.f32 %v3191, 0.01
  %v5082 = vmul.f32 %v3196, 0.01
  %v5083 = vmul.f32 %v3199, 0.01
  %v5084 = vmul.f32 %v3204, 0.01
  %v5085 = vmul.f32 %v3207, 0.01
  %v5086 = vmul.f32 %v3212, 0.01
  %v5087 = vmul.f32 %v3215, 0.01
  %v5088 = vmul.f32 %v3220, 0.01
  %v5089 = vmul.f32 %v3223, 0.01
  %v5090 = vmul.f32 %v3228, 0.01
  %v5091 = vmul.f32 %v3231, 0.01
  %v5092 = vmul.f32 %v3236, 0.01
  %v5093 = vmul.f32 %v3239, 0.01
  %v5094 = vmul.f32 %v3244, 0.01
  %v5095 = vmul.f32 %v3247, 0.01
  %v5096 = vmul.f32 %v3252, 0.01
  %v5097 = vmul.f32 %v3255, 0.01
  %v5098 = vmul.f32 %v3260, 0.01
  %v5099 = vmul.f32 %v3263, 0.01
  %v5100 = vmul.f32 %v3268, 0.01
  %v5101 = vmul.f32 %v3271, 0.01
  %v5102 = vmul.f32 %v3276, 0.01
  %v5103 = vmul.f32 %v3279, 0.01
  %v5104 = vmul.f32 %v3284, 0.01
  %v5105 = vmul.f32 %v3287, 0.01
  %v5106 = vmul.f32 %v3292, 0.01
  %v5107 = vmul.f32 %v3295, 0.01
  %v5108 = vmul.f32 %v3300, 0.01
  %v5109 = vmul.f32 %v3303, 0.01
  %v5110 = vmul.f32 %v3308, 0.01
  %v5111 = vmul.f32 %v3311, 0.01
  %v5112 = vmul.f32 %v3316, 0.01
  %v5113 = vmul.f32 %v3319, 0.01
  %v5114 = vmul.f32 %v3324, 0.01
  %v5115 = vmul.f32 %v3327, 0.01
  %v5116 = vmul.f32 %v3332, 0.01
  %v5117 = vmul.f32 %v3335, 0.01
  %v5118 = vmul.f32 %v3340, 0.01
  %v5119 = vmul.f32 %v3343, 0.01
  %v5120 = vmul.f32 %v3348, 0.01
  %v5121 = vmul.f32 %v3351, 0.01
  %v5122 = vmul.f32 %v3356, 0.01
  %v5123 = vmul.f32 %v3359, 0.01
  %v5124 = vmul.f32 %v3364, 0.01
  %v5125 = vmul.f32 %v3367, 0.01
  %v5126 = vmul.f32 %v3372, 0.01
  %v5127 = vmul.f32 %v3375, 0.01
  %v5128 = vmul.f32 %v3380, 0.01
  %v5129 = vmul.f32 %v3383, 0.01
  %v5130 = vmul.f32 %v3388, 0.01
  %v5131 = vmul.f32 %v3391, 0.01
  %v5132 = vmul.f32 %v3396, 0.01
  %v5133 = vmul.f32 %v3399, 0.01
  %v5134 = vmul.f32 %v3404, 0.01
  %v5135 = vmul.f32 %v3407, 0.01
  %v5136 = vmul.f32 %v3412, 0.01
  %v5137 = vmul.f32 %v3415, 0.01
  %v5138 = vmul.f32 %v3420, 0.01
  %v5139 = vmul.f32 %v3423, 0.01
  %v5140 = vmul.f32 %v3428, 0.01
  %v5141 = vmul.f32 %v3431, 0.01
  %v5142 = vmul.f32 %v3436, 0.01
  %v5143 = vmul.f32 %v3439, 0.01
  %v5144 = vmul.f32 %v3444, 0.01
  %v5145 = vmul.f32 %v3447, 0.01
  %v5146 = vmul.f32 %v3452, 0.01
  %v5147 = vmul.f32 %v3455, 0.01
  %v5148 = vmul.f32 %v3460, 0.01
  %v5149 = vmul.f32 %v3463, 0.01
  %v5150 = vmul.f32 %v3468, 0.01
  %v5151 = vmul.f32 %v3471, 0.01
  %v5152 = vmul.f32 %v3476, 0.01
  %v5153 = vmul.f32 %v3479, 0.01
  %v5154 = vmul.f32 %v3484, 0.01
  %v5155 = vmul.f32 %v3487, 0.01
  %v5156 = vmul.f32 %v3492, 0.01
  %v5157 = vmul.f32 %v3495, 0.01
  %v5158 = vmul.f32 %v3500, 0.01
  %v5159 = vmul.f32 %v3503, 0.01
  %v5160 = vmul.f32 %v3508, 0.01
  %v5161 = vmul.f32 %v3511, 0.01
  %v5162 = vmul.f32 %v3516, 0.01
  %v5163 = vmul.f32 %v3519, 0.01
  %v5164 = vmul.f32 %v3524, 0.01
  %v5165 = vmul.f32 %v3527, 0.01
  %v5166 = vmul.f32 %v3532, 0.01
  %v5167 = vmul.f32 %v3535, 0.01
  %v5168 = vmul.f32 %v3540, 0.01
  %v5169 = vmul.f32 %v3543, 0.01
  %v5170 = vmul.f32 %v3548, 0.01
  %v5171 = vmul.f32 %v3551, 0.01
  %v5172 = vmul.f32 %v3556, 0.01
  %v5173 = vmul.f32 %v3559, 0.01
  %v5174 = vmul.f32 %v3564, 0.01
  %v5175 = vmul.f32 %v3567, 0.01
  %v5176 = vmul.f32 %v3572, 0.01
  %v5177 = vmul.f32 %v3575, 0.01
  %v5178 = vmul.f32 %v3580, 0.01
  %v5179 = vmul.f32 %v3583, 0.01
  %v5180 = vmul.f32 %v3588, 0.01
  %v5181 = vmul.f32 %v3591, 0.01
  %v5182 = vmul.f32 %v3596, 0.01
  %v5183 = vmul.f32 %v3599, 0.01
  %v5184 = vmul.f32 %v3604, 0.01
  %v5185 = vmul.f32 %v3607, 0.01
  %v5186 = vmul.f32 %v3612, 0.01
  %v5187 = vmul.f32 %v3615, 0.01
  %v5188 = vmul.f32 %v3620, 0.01
  %v5189 = vmul.f32 %v3623, 0.01
  %v5190 = vmul.f32 %v3628, 0.01
  %v5191 = vmul.f32 %v3631, 0.01
  %v5192 = vmul.f32 %v3636, 0.01
  %v5193 = vmul.f32 %v3639, 0.01
  %v5194 = vmul.f32 %v3644, 0.01
  %v5195 = vmul.f32 %v3647, 0.01
  %v5196 = vmul.f32 %v3652, 0.01
  %v5197 = vmul.f32 %v3655, 0.01
  %v5198 = vmul.f32 %v3660, 0.01
  %v5199 = vmul.f32 %v3663, 0.01
  %v5200 = vmul.f32 %v3668, 0.01
  %v5201 = vmul.f32 %v3671, 0.01
  %v5202 = vmul.f32 %v3676, 0.01
  %v5203 = vmul.f32 %v3679, 0.01
  %v5204 = vmul.f32 %v3684, 0.01
  %v5205 = vmul.f32 %v3687, 0.01
  %v5206 = vmul.f32 %v3692, 0.01
  %v5207 = vmul.f32 %v3695, 0.01
  %v5208 = vmul.f32 %v3700, 0.01
  %v5209 = vmul.f32 %v3703, 0.01
  %v5210 = vmul.f32 %v3708, 0.01
  %v5211 = vmul.f32 %v3711, 0.01
  %v5212 = vmul.f32 %v3716, 0.01
  %v5213 = vmul.f32 %v3719, 0.01
  %v5214 = vmul.f32 %v3724, 0.01
  %v5215 = vmul.f32 %v3727, 0.01
  %v5216 = vmul.f32 %v3732, 0.01
  %v5217 = vmul.f32 %v3735, 0.01
  %v5218 = vmul.f32 %v3740, 0.01
  %v5219 = vmul.f32 %v3743, 0.01
  %v5220 = vmul.f32 %v3748, 0.01
  %v5221 = vmul.f32 %v3751, 0.01
  %v5222 = vmul.f32 %v3756, 0.01
  %v5223 = vmul.f32 %v3759, 0.01
  %v5224 = vmul.f32 %v3764, 0.01
  %v5225 = vmul.f32 %v3767, 0.01
  %v5226 = vmul.f32 %v3772, 0.01
  %v5227 = vmul.f32 %v3775, 0.01
  %v5228 = vmul.f32 %v3780, 0.01
  %v5229 = vmul.f32 %v3783, 0.01
  %v5230 = vmul.f32 %v3788, 0.01
  %v5231 = vmul.f32 %v3791, 0.01
  %v5232 = vmul.f32 %v3796, 0.01
  %v5233 = vmul.f32 %v3799, 0.01
  %v5234 = vmul.f32 %v3804, 0.01
  %v5235 = vmul.f32 %v3807, 0.01
  %v5236 = vmul.f32 %v3812, 0.01
  %v5237 = vmul.f32 %v3815, 0.01
  %v5238 = vmul.f32 %v3820, 0.01
  %v5239 = vmul.f32 %v3823, 0.01
  %v5240 = vmul.f32 %v3828, 0.01
  %v5241 = vmul.f32 %v3831, 0.01
  %v5242 = vmul.f32 %v3836, 0.01
  %v5243 = vmul.f32 %v3839, 0.01
  %v5244 = vmul.f32 %v3844, 0.01
  %v5245 = vmul.f32 %v3847, 0.01
  %v5246 = vmul.f32 %v3852, 0.01
  %v5247 = vmul.f32 %v3855, 0.01
  %v5248 = vmul.f32 %v3860, 0.01
  %v5249 = vmul.f32 %v3863, 0.01
  %v5250 = vmul.f32 %v3868, 0.01
  %v5251 = vmul.f32 %v3871, 0.01
  %v5252 = vmul.f32 %v3876, 0.01
  %v5253 = vmul.f32 %v3879, 0.01
  %v5254 = vmul.f32 %v3884, 0.01
  %v5255 = vmul.f32 %v3887, 0.01
  %v5256 = vmul.f32 %v3892, 0.01
  %v5257 = vmul.f32 %v3895, 0.01
  %v5258 = vmul.f32 %v3900, 0.01
  %v5259 = vmul.f32 %v3903, 0.01
  %v5260 = vmul.f32 %v3908, 0.01
  %v5261 = vmul.f32 %v3911, 0.01
  %v5262 = vmul.f32 %v3916, 0.01
  %v5263 = vmul.f32 %v3919, 0.01
  %v5264 = vmul.f32 %v3924, 0.01
  %v5265 = vmul.f32 %v3927, 0.01
  %v5266 = vmul.f32 %v3932, 0.01
  %v5267 = vmul.f32 %v3935, 0.01
  %v5268 = vmul.f32 %v3940, 0.01
  %v5269 = vmul.f32 %v3943, 0.01
  %v5270 = vmul.f32 %v3948, 0.01
  %v5271 = vmul.f32 %v3951, 0.01
  %v5272 = vmul.f32 %v3956, 0.01
  %v5273 = vmul.f32 %v3959, 0.01
  %v5274 = vmul.f32 %v3964, 0.01
  %v5275 = vmul.f32 %v3967, 0.01
  %v5276 = vmul.f32 %v3972, 0.01
  %v5277 = vmul.f32 %v3975, 0.01
  %v5278 = vmul.f32 %v3980, 0.01
  %v5279 = vmul.f32 %v3983, 0.01
  %v5280 = vmul.f32 %v3988, 0.01
  %v5281 = vmul.f32 %v3991, 0.01
  %v5282 = vmul.f32 %v3996, 0.01
  %v5283 = vmul.f32 %v3999, 0.01
  %v5284 = vmul.f32 %v4004, 0.01
  %v5285 = vmul.f32 %v4007, 0.01
  %v5286 = vmul.f32 %v4012, 0.01
  %v5287 = vmul.f32 %v4015, 0.01
  %v5288 = vmul.f32 %v4020, 0.01
  %v5289 = vmul.f32 %v4023, 0.01
  %v5290 = vmul.f32 %v4028, 0.01
  %v5291 = vmul.f32 %v4031, 0.01
  %v5292 = vmul.f32 %v4036, 0.01
  %v5293 = vmul.f32 %v4039, 0.01
  %v5294 = vmul.f32 %v4044, 0.01
  %v5295 = vmul.f32 %v4047, 0.01
  %v5296 = vmul.f32 %v4052, 0.01
  %v5297 = vmul.f32 %v4055, 0.01
  %v5298 = vmul.f32 %v4060, 0.01
  %v5299 = vmul.f32 %v4063, 0.01
  %v5300 = vmul.f32 %v4068, 0.01
  %v5301 = vmul.f32 %v4071, 0.01
  %v5302 = vmul.f32 %v4076, 0.01
  %v5303 = vmul.f32 %v4079, 0.01
  %v5304 = vmul.f32 %v4084, 0.01
  %v5305 = vmul.f32 %v4087, 0.01
  %v5306 = vmul.f32 %v4092, 0.01
  %v5307 = vmul.f32 %v4095, 0.01
  %v5308 = vmul.f32 %v4100, 0.01
  %v5309 = vmul.f32 %v4103, 0.01
  %v5310 = vmul.f32 %v4108, 0.01
  %v5311 = vmul.f32 %v4111, 0.01
  %v5312 = vmul.f32 %v4116, 0.01
  %v5313 = vmul.f32 %v4119, 0.01
  %v5314 = vmul.f32 %v4124, 0.01
  %v5315 = vmul.f32 %v4127, 0.01
  %v5316 = vmul.f32 %v4132, 0.01
  %v5317 = vmul.f32 %v4135, 0.01
  %v5318 = vmul.f32 %v4140, 0.01
  %v5319 = vmul.f32 %v4143, 0.01
  %v5320 = vmul.f32 %v4148, 0.01
  %v5321 = vmul.f32 %v4151, 0.01
  %v5322 = vmul.f32 %v4156, 0.01
  %v5323 = vmul.f32 %v4159, 0.01
  %v5324 = vmul.f32 %v4164, 0.01
  %v5325 = vmul.f32 %v4167, 0.01
  %v5326 = vmul.f32 %v4172, 0.01
  %v5327 = vmul.f32 %v4175, 0.01
  %v5328 = vmul.f32 %v4180, 0.01
  %v5329 = vmul.f32 %v4183, 0.01
  %v5330 = vmul.f32 %v4188, 0.01
  %v5331 = vmul.f32 %v4191, 0.01
  %v5332 = vmul.f32 %v4196, 0.01
  %v5333 = vmul.f32 %v4199, 0.01
  %v5334 = vmul.f32 %v4204, 0.01
  %v5335 = vmul.f32 %v4207, 0.01
  %v5336 = vmul.f32 %v4212, 0.01
  %v5337 = vmul.f32 %v4215, 0.01
  %v5338 = vmul.f32 %v4220, 0.01
  %v5339 = vmul.f32 %v4223, 0.01
  %v5340 = vmul.f32 %v4228, 0.01
  %v5341 = vmul.f32 %v4231, 0.01
  %v5342 = vmul.f32 %v4236, 0.01
  %v5343 = vmul.f32 %v4239, 0.01
  %v5344 = vmul.f32 %v4244, 0.01
  %v5345 = vmul.f32 %v4247, 0.01
  %v5346 = vmul.f32 %v4252, 0.01
  %v5347 = vmul.f32 %v4255, 0.01
  %v5348 = vmul.f32 %v4260, 0.01
  %v5349 = vmul.f32 %v4263, 0.01
  %v5350 = vmul.f32 %v4268, 0.01
  %v5351 = vmul.f32 %v4271, 0.01
  %v5352 = vmul.f32 %v4276, 0.01
  %v5353 = vmul.f32 %v4279, 0.01
  %v5354 = vmul.f32 %v4284, 0.01
  %v5355 = vmul.f32 %v4287, 0.01
  %v5356 = vmul.f32 %v4292, 0.01
  %v5357 = vmul.f32 %v4295, 0.01
  %v5358 = vmul.f32 %v4300, 0.01
  %v5359 = vmul.f32 %v4303, 0.01
  %v5360 = vmul.f32 %v4308, 0.01
  %v5361 = vmul.f32 %v4311, 0.01
  %v5362 = vmul.f32 %v4316, 0.01
  %v5363 = vmul.f32 %v4319, 0.01
  %v5364 = vmul.f32 %v4324, 0.01
  %v5365 = vmul.f32 %v4327, 0.01
  %v5366 = vmul.f32 %v4332, 0.01
  %v5367 = vmul.f32 %v4335, 0.01
  %v5368 = vmul.f32 %v4340, 0.01
  %v5369 = vmul.f32 %v4343, 0.01
  %v5370 = vmul.f32 %v4348, 0.01
  %v5371 = vmul.f32 %v4351, 0.01
  %v5372 = vmul.f32 %v4356, 0.01
  %v5373 = vmul.f32 %v4359, 0.01
  %v5374 = vmul.f32 %v4364, 0.01
  %v5375 = vmul.f32 %v4367, 0.01
  %v5376 = vmul.f32 %v4372, 0.01
  %v5377 = vmul.f32 %v4375, 0.01
  %v5378 = vmul.f32 %v4380, 0.01
  %v5379 = vmul.f32 %v4383, 0.01
  %v5380 = vmul.f32 %v4388, 0.01
  %v5381 = vmul.f32 %v4391, 0.01
  %v5382 = vmul.f32 %v4396, 0.01
  %v5383 = vmul.f32 %v4399, 0.01
  %v5384 = vmul.f32 %v4404, 0.01
  %v5385 = vmul.f32 %v4407, 0.01
  %v5386 = vmul.f32 %v4412, 0.01
  %v5387 = vmul.f32 %v4415, 0.01
  %v5388 = vmul.f32 %v4420, 0.01
  %v5389 = vmul.f32 %v4423, 0.01
  %v5390 = vsel %vm4426, %v2500, %v4908
  %v5391 = vsel %vm4427, %v2503, %v4909
  %v5392 = vsel %vm4428, %v2508, %v4910
  %v5393 = vsel %vm4429, %v2511, %v4911
  %v5394 = vsel %vm4430, %v2516, %v4912
  %v5395 = vsel %vm4431, %v2519, %v4913
  %v5396 = vsel %vm4432, %v2524, %v4914
  %v5397 = vsel %vm4433, %v2527, %v4915
  %v5398 = vsel %vm4434, %v2532, %v4916
  %v5399 = vsel %vm4435, %v2535, %v4917
  %v5400 = vsel %vm4436, %v2540, %v4918
  %v5401 = vsel %vm4437, %v2543, %v4919
  %v5402 = vsel %vm4438, %v2548, %v4920
  %v5403 = vsel %vm4439, %v2551, %v4921
  %v5404 = vsel %vm4440, %v2556, %v4922
  %v5405 = vsel %vm4441, %v2559, %v4923
  %v5406 = vsel %vm4442, %v2564, %v4924
  %v5407 = vsel %vm4443, %v2567, %v4925
  %v5408 = vsel %vm4444, %v2572, %v4926
  %v5409 = vsel %vm4445, %v2575, %v4927
  %v5410 = vsel %vm4446, %v2580, %v4928
  %v5411 = vsel %vm4447, %v2583, %v4929
  %v5412 = vsel %vm4448, %v2588, %v4930
  %v5413 = vsel %vm4449, %v2591, %v4931
  %v5414 = vsel %vm4450, %v2596, %v4932
  %v5415 = vsel %vm4451, %v2599, %v4933
  %v5416 = vsel %vm4452, %v2604, %v4934
  %v5417 = vsel %vm4453, %v2607, %v4935
  %v5418 = vsel %vm4454, %v2612, %v4936
  %v5419 = vsel %vm4455, %v2615, %v4937
  %v5420 = vsel %vm4456, %v2620, %v4938
  %v5421 = vsel %vm4457, %v2623, %v4939
  %v5422 = vsel %vm4458, %v2628, %v4940
  %v5423 = vsel %vm4459, %v2631, %v4941
  %v5424 = vsel %vm4460, %v2636, %v4942
  %v5425 = vsel %vm4461, %v2639, %v4943
  %v5426 = vsel %vm4462, %v2644, %v4944
  %v5427 = vsel %vm4463, %v2647, %v4945
  %v5428 = vsel %vm4464, %v2652, %v4946
  %v5429 = vsel %vm4465, %v2655, %v4947
  %v5430 = vsel %vm4466, %v2660, %v4948
  %v5431 = vsel %vm4467, %v2663, %v4949
  %v5432 = vsel %vm4468, %v2668, %v4950
  %v5433 = vsel %vm4469, %v2671, %v4951
  %v5434 = vsel %vm4470, %v2676, %v4952
  %v5435 = vsel %vm4471, %v2679, %v4953
  %v5436 = vsel %vm4472, %v2684, %v4954
  %v5437 = vsel %vm4473, %v2687, %v4955
  %v5438 = vsel %vm4474, %v2692, %v4956
  %v5439 = vsel %vm4475, %v2695, %v4957
  %v5440 = vsel %vm4476, %v2700, %v4958
  %v5441 = vsel %vm4477, %v2703, %v4959
  %v5442 = vsel %vm4478, %v2708, %v4960
  %v5443 = vsel %vm4479, %v2711, %v4961
  %v5444 = vsel %vm4480, %v2716, %v4962
  %v5445 = vsel %vm4481, %v2719, %v4963
  %v5446 = vsel %vm4482, %v2724, %v4964
  %v5447 = vsel %vm4483, %v2727, %v4965
  %v5448 = vsel %vm4484, %v2732, %v4966
  %v5449 = vsel %vm4485, %v2735, %v4967
  %v5450 = vsel %vm4486, %v2740, %v4968
  %v5451 = vsel %vm4487, %v2743, %v4969
  %v5452 = vsel %vm4488, %v2748, %v4970
  %v5453 = vsel %vm4489, %v2751, %v4971
  %v5454 = vsel %vm4490, %v2756, %v4972
  %v5455 = vsel %vm4491, %v2759, %v4973
  %v5456 = vsel %vm4492, %v2764, %v4974
  %v5457 = vsel %vm4493, %v2767, %v4975
  %v5458 = vsel %vm4494, %v2772, %v4976
  %v5459 = vsel %vm4495, %v2775, %v4977
  %v5460 = vsel %vm4496, %v2780, %v4978
  %v5461 = vsel %vm4497, %v2783, %v4979
  %v5462 = vsel %vm4498, %v2788, %v4980
  %v5463 = vsel %vm4499, %v2791, %v4981
  %v5464 = vsel %vm4500, %v2796, %v4982
  %v5465 = vsel %vm4501, %v2799, %v4983
  %v5466 = vsel %vm4502, %v2804, %v4984
  %v5467 = vsel %vm4503, %v2807, %v4985
  %v5468 = vsel %vm4504, %v2812, %v4986
  %v5469 = vsel %vm4505, %v2815, %v4987
  %v5470 = vsel %vm4506, %v2820, %v4988
  %v5471 = vsel %vm4507, %v2823, %v4989
  %v5472 = vsel %vm4508, %v2828, %v4990
  %v5473 = vsel %vm4509, %v2831, %v4991
  %v5474 = vsel %vm4510, %v2836, %v4992
  %v5475 = vsel %vm4511, %v2839, %v4993
  %v5476 = vsel %vm4512, %v2844, %v4994
  %v5477 = vsel %vm4513, %v2847, %v4995
  %v5478 = vsel %vm4514, %v2852, %v4996
  %v5479 = vsel %vm4515, %v2855, %v4997
  %v5480 = vsel %vm4516, %v2860, %v4998
  %v5481 = vsel %vm4517, %v2863, %v4999
  %v5482 = vsel %vm4518, %v2868, %v5000
  %v5483 = vsel %vm4519, %v2871, %v5001
  %v5484 = vsel %vm4520, %v2876, %v5002
  %v5485 = vsel %vm4521, %v2879, %v5003
  %v5486 = vsel %vm4522, %v2884, %v5004
  %v5487 = vsel %vm4523, %v2887, %v5005
  %v5488 = vsel %vm4524, %v2892, %v5006
  %v5489 = vsel %vm4525, %v2895, %v5007
  %v5490 = vsel %vm4526, %v2900, %v5008
  %v5491 = vsel %vm4527, %v2903, %v5009
  %v5492 = vsel %vm4528, %v2908, %v5010
  %v5493 = vsel %vm4529, %v2911, %v5011
  %v5494 = vsel %vm4530, %v2916, %v5012
  %v5495 = vsel %vm4531, %v2919, %v5013
  %v5496 = vsel %vm4532, %v2924, %v5014
  %v5497 = vsel %vm4533, %v2927, %v5015
  %v5498 = vsel %vm4534, %v2932, %v5016
  %v5499 = vsel %vm4535, %v2935, %v5017
  %v5500 = vsel %vm4536, %v2940, %v5018
  %v5501 = vsel %vm4537, %v2943, %v5019
  %v5502 = vsel %vm4538, %v2948, %v5020
  %v5503 = vsel %vm4539, %v2951, %v5021
  %v5504 = vsel %vm4540, %v2956, %v5022
  %v5505 = vsel %vm4541, %v2959, %v5023
  %v5506 = vsel %vm4542, %v2964, %v5024
  %v5507 = vsel %vm4543, %v2967, %v5025
  %v5508 = vsel %vm4544, %v2972, %v5026
  %v5509 = vsel %vm4545, %v2975, %v5027
  %v5510 = vsel %vm4546, %v2980, %v5028
  %v5511 = vsel %vm4547, %v2983, %v5029
  %v5512 = vsel %vm4548, %v2988, %v5030
  %v5513 = vsel %vm4549, %v2991, %v5031
  %v5514 = vsel %vm4550, %v2996, %v5032
  %v5515 = vsel %vm4551, %v2999, %v5033
  %v5516 = vsel %vm4552, %v3004, %v5034
  %v5517 = vsel %vm4553, %v3007, %v5035
  %v5518 = vsel %vm4554, %v3012, %v5036
  %v5519 = vsel %vm4555, %v3015, %v5037
  %v5520 = vsel %vm4556, %v3020, %v5038
  %v5521 = vsel %vm4557, %v3023, %v5039
  %v5522 = vsel %vm4558, %v3028, %v5040
  %v5523 = vsel %vm4559, %v3031, %v5041
  %v5524 = vsel %vm4560, %v3036, %v5042
  %v5525 = vsel %vm4561, %v3039, %v5043
  %v5526 = vsel %vm4562, %v3044, %v5044
  %v5527 = vsel %vm4563, %v3047, %v5045
  %v5528 = vsel %vm4564, %v3052, %v5046
  %v5529 = vsel %vm4565, %v3055, %v5047
  %v5530 = vsel %vm4566, %v3060, %v5048
  %v5531 = vsel %vm4567, %v3063, %v5049
  %v5532 = vsel %vm4568, %v3068, %v5050
  %v5533 = vsel %vm4569, %v3071, %v5051
  %v5534 = vsel %vm4570, %v3076, %v5052
  %v5535 = vsel %vm4571, %v3079, %v5053
  %v5536 = vsel %vm4572, %v3084, %v5054
  %v5537 = vsel %vm4573, %v3087, %v5055
  %v5538 = vsel %vm4574, %v3092, %v5056
  %v5539 = vsel %vm4575, %v3095, %v5057
  %v5540 = vsel %vm4576, %v3100, %v5058
  %v5541 = vsel %vm4577, %v3103, %v5059
  %v5542 = vsel %vm4578, %v3108, %v5060
  %v5543 = vsel %vm4579, %v3111, %v5061
  %v5544 = vsel %vm4580, %v3116, %v5062
  %v5545 = vsel %vm4581, %v3119, %v5063
  %v5546 = vsel %vm4582, %v3124, %v5064
  %v5547 = vsel %vm4583, %v3127, %v5065
  %v5548 = vsel %vm4584, %v3132, %v5066
  %v5549 = vsel %vm4585, %v3135, %v5067
  %v5550 = vsel %vm4586, %v3140, %v5068
  %v5551 = vsel %vm4587, %v3143, %v5069
  %v5552 = vsel %vm4588, %v3148, %v5070
  %v5553 = vsel %vm4589, %v3151, %v5071
  %v5554 = vsel %vm4590, %v3156, %v5072
  %v5555 = vsel %vm4591, %v3159, %v5073
  %v5556 = vsel %vm4592, %v3164, %v5074
  %v5557 = vsel %vm4593, %v3167, %v5075
  %v5558 = vsel %vm4594, %v3172, %v5076
  %v5559 = vsel %vm4595, %v3175, %v5077
  %v5560 = vsel %vm4596, %v3180, %v5078
  %v5561 = vsel %vm4597, %v3183, %v5079
  %v5562 = vsel %vm4598, %v3188, %v5080
  %v5563 = vsel %vm4599, %v3191, %v5081
  %v5564 = vsel %vm4600, %v3196, %v5082
  %v5565 = vsel %vm4601, %v3199, %v5083
  %v5566 = vsel %vm4602, %v3204, %v5084
  %v5567 = vsel %vm4603, %v3207, %v5085
  %v5568 = vsel %vm4604, %v3212, %v5086
  %v5569 = vsel %vm4605, %v3215, %v5087
  %v5570 = vsel %vm4606, %v3220, %v5088
  %v5571 = vsel %vm4607, %v3223, %v5089
  %v5572 = vsel %vm4608, %v3228, %v5090
  %v5573 = vsel %vm4609, %v3231, %v5091
  %v5574 = vsel %vm4610, %v3236, %v5092
  %v5575 = vsel %vm4611, %v3239, %v5093
  %v5576 = vsel %vm4612, %v3244, %v5094
  %v5577 = vsel %vm4613, %v3247, %v5095
  %v5578 = vsel %vm4614, %v3252, %v5096
  %v5579 = vsel %vm4615, %v3255, %v5097
  %v5580 = vsel %vm4616, %v3260, %v5098
  %v5581 = vsel %vm4617, %v3263, %v5099
  %v5582 = vsel %vm4618, %v3268, %v5100
  %v5583 = vsel %vm4619, %v3271, %v5101
  %v5584 = vsel %vm4620, %v3276, %v5102
  %v5585 = vsel %vm4621, %v3279, %v5103
  %v5586 = vsel %vm4622, %v3284, %v5104
  %v5587 = vsel %vm4623, %v3287, %v5105
  %v5588 = vsel %vm4624, %v3292, %v5106
  %v5589 = vsel %vm4625, %v3295, %v5107
  %v5590 = vsel %vm4626, %v3300, %v5108
  %v5591 = vsel %vm4627, %v3303, %v5109
  %v5592 = vsel %vm4628, %v3308, %v5110
  %v5593 = vsel %vm4629, %v3311, %v5111
  %v5594 = vsel %vm4630, %v3316, %v5112
  %v5595 = vsel %vm4631, %v3319, %v5113
  %v5596 = vsel %vm4632, %v3324, %v5114
  %v5597 = vsel %vm4633, %v3327, %v5115
  %v5598 = vsel %vm4634, %v3332, %v5116
  %v5599 = vsel %vm4635, %v3335, %v5117
  %v5600 = vsel %vm4636, %v3340, %v5118
  %v5601 = vsel %vm4637, %v3343, %v5119
  %v5602 = vsel %vm4638, %v3348, %v5120
  %v5603 = vsel %vm4639, %v3351, %v5121
  %v5604 = vsel %vm4640, %v3356, %v5122
  %v5605 = vsel %vm4641, %v3359, %v5123
  %v5606 = vsel %vm4642, %v3364, %v5124
  %v5607 = vsel %vm4643, %v3367, %v5125
  %v5608 = vsel %vm4644, %v3372, %v5126
  %v5609 = vsel %vm4645, %v3375, %v5127
  %v5610 = vsel %vm4646, %v3380, %v5128
  %v5611 = vsel %vm4647, %v3383, %v5129
  %v5612 = vsel %vm4648, %v3388, %v5130
  %v5613 = vsel %vm4649, %v3391, %v5131
  %v5614 = vsel %vm4650, %v3396, %v5132
  %v5615 = vsel %vm4651, %v3399, %v5133
  %v5616 = vsel %vm4652, %v3404, %v5134
  %v5617 = vsel %vm4653, %v3407, %v5135
  %v5618 = vsel %vm4654, %v3412, %v5136
  %v5619 = vsel %vm4655, %v3415, %v5137
  %v5620 = vsel %vm4656, %v3420, %v5138
  %v5621 = vsel %vm4657, %v3423, %v5139
  %v5622 = vsel %vm4658, %v3428, %v5140
  %v5623 = vsel %vm4659, %v3431, %v5141
  %v5624 = vsel %vm4660, %v3436, %v5142
  %v5625 = vsel %vm4661, %v3439, %v5143
  %v5626 = vsel %vm4662, %v3444, %v5144
  %v5627 = vsel %vm4663, %v3447, %v5145
  %v5628 = vsel %vm4664, %v3452, %v5146
  %v5629 = vsel %vm4665, %v3455, %v5147
  %v5630 = vsel %vm4666, %v3460, %v5148
  %v5631 = vsel %vm4667, %v3463, %v5149
  %v5632 = vsel %vm4668, %v3468, %v5150
  %v5633 = vsel %vm4669, %v3471, %v5151
  %v5634 = vsel %vm4670, %v3476, %v5152
  %v5635 = vsel %vm4671, %v3479, %v5153
  %v5636 = vsel %vm4672, %v3484, %v5154
  %v5637 = vsel %vm4673, %v3487, %v5155
  %v5638 = vsel %vm4674, %v3492, %v5156
  %v5639 = vsel %vm4675, %v3495, %v5157
  %v5640 = vsel %vm4676, %v3500, %v5158
  %v5641 = vsel %vm4677, %v3503, %v5159
  %v5642 = vsel %vm4678, %v3508, %v5160
  %v5643 = vsel %vm4679, %v3511, %v5161
  %v5644 = vsel %vm4680, %v3516, %v5162
  %v5645 = vsel %vm4681, %v3519, %v5163
  %v5646 = vsel %vm4682, %v3524, %v5164
  %v5647 = vsel %vm4683, %v3527, %v5165
  %v5648 = vsel %vm4684, %v3532, %v5166
  %v5649 = vsel %vm4685, %v3535, %v5167
  %v5650 = vsel %vm4686, %v3540, %v5168
  %v5651 = vsel %vm4687, %v3543, %v5169
  %v5652 = vsel %vm4688, %v3548, %v5170
  %v5653 = vsel %vm4689, %v3551, %v5171
  %v5654 = vsel %vm4690, %v3556, %v5172
  %v5655 = vsel %vm4691, %v3559, %v5173
  %v5656 = vsel %vm4692, %v3564, %v5174
  %v5657 = vsel %vm4693, %v3567, %v5175
  %v5658 = vsel %vm4694, %v3572, %v5176
  %v5659 = vsel %vm4695, %v3575, %v5177
  %v5660 = vsel %vm4696, %v3580, %v5178
  %v5661 = vsel %vm4697, %v3583, %v5179
  %v5662 = vsel %vm4698, %v3588, %v5180
  %v5663 = vsel %vm4699, %v3591, %v5181
  %v5664 = vsel %vm4700, %v3596, %v5182
  %v5665 = vsel %vm4701, %v3599, %v5183
  %v5666 = vsel %vm4702, %v3604, %v5184
  %v5667 = vsel %vm4703, %v3607, %v5185
  %v5668 = vsel %vm4704, %v3612, %v5186
  %v5669 = vsel %vm4705, %v3615, %v5187
  %v5670 = vsel %vm4706, %v3620, %v5188
  %v5671 = vsel %vm4707, %v3623, %v5189
  %v5672 = vsel %vm4708, %v3628, %v5190
  %v5673 = vsel %vm4709, %v3631, %v5191
  %v5674 = vsel %vm4710, %v3636, %v5192
  %v5675 = vsel %vm4711, %v3639, %v5193
  %v5676 = vsel %vm4712, %v3644, %v5194
  %v5677 = vsel %vm4713, %v3647, %v5195
  %v5678 = vsel %vm4714, %v3652, %v5196
  %v5679 = vsel %vm4715, %v3655, %v5197
  %v5680 = vsel %vm4716, %v3660, %v5198
  %v5681 = vsel %vm4717, %v3663, %v5199
  %v5682 = vsel %vm4718, %v3668, %v5200
  %v5683 = vsel %vm4719, %v3671, %v5201
  %v5684 = vsel %vm4720, %v3676, %v5202
  %v5685 = vsel %vm4721, %v3679, %v5203
  %v5686 = vsel %vm4722, %v3684, %v5204
  %v5687 = vsel %vm4723, %v3687, %v5205
  %v5688 = vsel %vm4724, %v3692, %v5206
  %v5689 = vsel %vm4725, %v3695, %v5207
  %v5690 = vsel %vm4726, %v3700, %v5208
  %v5691 = vsel %vm4727, %v3703, %v5209
  %v5692 = vsel %vm4728, %v3708, %v5210
  %v5693 = vsel %vm4729, %v3711, %v5211
  %v5694 = vsel %vm4730, %v3716, %v5212
  %v5695 = vsel %vm4731, %v3719, %v5213
  %v5696 = vsel %vm4732, %v3724, %v5214
  %v5697 = vsel %vm4733, %v3727, %v5215
  %v5698 = vsel %vm4734, %v3732, %v5216
  %v5699 = vsel %vm4735, %v3735, %v5217
  %v5700 = vsel %vm4736, %v3740, %v5218
  %v5701 = vsel %vm4737, %v3743, %v5219
  %v5702 = vsel %vm4738, %v3748, %v5220
  %v5703 = vsel %vm4739, %v3751, %v5221
  %v5704 = vsel %vm4740, %v3756, %v5222
  %v5705 = vsel %vm4741, %v3759, %v5223
  %v5706 = vsel %vm4742, %v3764, %v5224
  %v5707 = vsel %vm4743, %v3767, %v5225
  %v5708 = vsel %vm4744, %v3772, %v5226
  %v5709 = vsel %vm4745, %v3775, %v5227
  %v5710 = vsel %vm4746, %v3780, %v5228
  %v5711 = vsel %vm4747, %v3783, %v5229
  %v5712 = vsel %vm4748, %v3788, %v5230
  %v5713 = vsel %vm4749, %v3791, %v5231
  %v5714 = vsel %vm4750, %v3796, %v5232
  %v5715 = vsel %vm4751, %v3799, %v5233
  %v5716 = vsel %vm4752, %v3804, %v5234
  %v5717 = vsel %vm4753, %v3807, %v5235
  %v5718 = vsel %vm4754, %v3812, %v5236
  %v5719 = vsel %vm4755, %v3815, %v5237
  %v5720 = vsel %vm4756, %v3820, %v5238
  %v5721 = vsel %vm4757, %v3823, %v5239
  %v5722 = vsel %vm4758, %v3828, %v5240
  %v5723 = vsel %vm4759, %v3831, %v5241
  %v5724 = vsel %vm4760, %v3836, %v5242
  %v5725 = vsel %vm4761, %v3839, %v5243
  %v5726 = vsel %vm4762, %v3844, %v5244
  %v5727 = vsel %vm4763, %v3847, %v5245
  %v5728 = vsel %vm4764, %v3852, %v5246
  %v5729 = vsel %vm4765, %v3855, %v5247
  %v5730 = vsel %vm4766, %v3860, %v5248
  %v5731 = vsel %vm4767, %v3863, %v5249
  %v5732 = vsel %vm4768, %v3868, %v5250
  %v5733 = vsel %vm4769, %v3871, %v5251
  %v5734 = vsel %vm4770, %v3876, %v5252
  %v5735 = vsel %vm4771, %v3879, %v5253
  %v5736 = vsel %vm4772, %v3884, %v5254
  %v5737 = vsel %vm4773, %v3887, %v5255
  %v5738 = vsel %vm4774, %v3892, %v5256
  %v5739 = vsel %vm4775, %v3895, %v5257
  %v5740 = vsel %vm4776, %v3900, %v5258
  %v5741 = vsel %vm4777, %v3903, %v5259
  %v5742 = vsel %vm4778, %v3908, %v5260
  %v5743 = vsel %vm4779, %v3911, %v5261
  %v5744 = vsel %vm4780, %v3916, %v5262
  %v5745 = vsel %vm4781, %v3919, %v5263
  %v5746 = vsel %vm4782, %v3924, %v5264
  %v5747 = vsel %vm4783, %v3927, %v5265
  %v5748 = vsel %vm4784, %v3932, %v5266
  %v5749 = vsel %vm4785, %v3935, %v5267
  %v5750 = vsel %vm4786, %v3940, %v5268
  %v5751 = vsel %vm4787, %v3943, %v5269
  %v5752 = vsel %vm4788, %v3948, %v5270
  %v5753 = vsel %vm4789, %v3951, %v5271
  %v5754 = vsel %vm4790, %v3956, %v5272
  %v5755 = vsel %vm4791, %v3959, %v5273
  %v5756 = vsel %vm4792, %v3964, %v5274
  %v5757 = vsel %vm4793, %v3967, %v5275
  %v5758 = vsel %vm4794, %v3972, %v5276
  %v5759 = vsel %vm4795, %v3975, %v5277
  %v5760 = vsel %vm4796, %v3980, %v5278
  %v5761 = vsel %vm4797, %v3983, %v5279
  %v5762 = vsel %vm4798, %v3988, %v5280
  %v5763 = vsel %vm4799, %v3991, %v5281
  %v5764 = vsel %vm4800, %v3996, %v5282
  %v5765 = vsel %vm4801, %v3999, %v5283
  %v5766 = vsel %vm4802, %v4004, %v5284
  %v5767 = vsel %vm4803, %v4007, %v5285
  %v5768 = vsel %vm4804, %v4012, %v5286
  %v5769 = vsel %vm4805, %v4015, %v5287
  %v5770 = vsel %vm4806, %v4020, %v5288
  %v5771 = vsel %vm4807, %v4023, %v5289
  %v5772 = vsel %vm4808, %v4028, %v5290
  %v5773 = vsel %vm4809, %v4031, %v5291
  %v5774 = vsel %vm4810, %v4036, %v5292
  %v5775 = vsel %vm4811, %v4039, %v5293
  %v5776 = vsel %vm4812, %v4044, %v5294
  %v5777 = vsel %vm4813, %v4047, %v5295
  %v5778 = vsel %vm4814, %v4052, %v5296
  %v5779 = vsel %vm4815, %v4055, %v5297
  %v5780 = vsel %vm4816, %v4060, %v5298
  %v5781 = vsel %vm4817, %v4063, %v5299
  %v5782 = vsel %vm4818, %v4068, %v5300
  %v5783 = vsel %vm4819, %v4071, %v5301
  %v5784 = vsel %vm4820, %v4076, %v5302
  %v5785 = vsel %vm4821, %v4079, %v5303
  %v5786 = vsel %vm4822, %v4084, %v5304
  %v5787 = vsel %vm4823, %v4087, %v5305
  %v5788 = vsel %vm4824, %v4092, %v5306
  %v5789 = vsel %vm4825, %v4095, %v5307
  %v5790 = vsel %vm4826, %v4100, %v5308
  %v5791 = vsel %vm4827, %v4103, %v5309
  %v5792 = vsel %vm4828, %v4108, %v5310
  %v5793 = vsel %vm4829, %v4111, %v5311
  %v5794 = vsel %vm4830, %v4116, %v5312
  %v5795 = vsel %vm4831, %v4119, %v5313
  %v5796 = vsel %vm4832, %v4124, %v5314
  %v5797 = vsel %vm4833, %v4127, %v5315
  %v5798 = vsel %vm4834, %v4132, %v5316
  %v5799 = vsel %vm4835, %v4135, %v5317
  %v5800 = vsel %vm4836, %v4140, %v5318
  %v5801 = vsel %vm4837, %v4143, %v5319
  %v5802 = vsel %vm4838, %v4148, %v5320
  %v5803 = vsel %vm4839, %v4151, %v5321
  %v5804 = vsel %vm4840, %v4156, %v5322
  %v5805 = vsel %vm4841, %v4159, %v5323
  %v5806 = vsel %vm4842, %v4164, %v5324
  %v5807 = vsel %vm4843, %v4167, %v5325
  %v5808 = vsel %vm4844, %v4172, %v5326
  %v5809 = vsel %vm4845, %v4175, %v5327
  %v5810 = vsel %vm4846, %v4180, %v5328
  %v5811 = vsel %vm4847, %v4183, %v5329
  %v5812 = vsel %vm4848, %v4188, %v5330
  %v5813 = vsel %vm4849, %v4191, %v5331
  %v5814 = vsel %vm4850, %v4196, %v5332
  %v5815 = vsel %vm4851, %v4199, %v5333
  %v5816 = vsel %vm4852, %v4204, %v5334
  %v5817 = vsel %vm4853, %v4207, %v5335
  %v5818 = vsel %vm4854, %v4212, %v5336
  %v5819 = vsel %vm4855, %v4215, %v5337
  %v5820 = vsel %vm4856, %v4220, %v5338
  %v5821 = vsel %vm4857, %v4223, %v5339
  %v5822 = vsel %vm4858, %v4228, %v5340
  %v5823 = vsel %vm4859, %v4231, %v5341
  %v5824 = vsel %vm4860, %v4236, %v5342
  %v5825 = vsel %vm4861, %v4239, %v5343
  %v5826 = vsel %vm4862, %v4244, %v5344
  %v5827 = vsel %vm4863, %v4247, %v5345
  %v5828 = vsel %vm4864, %v4252, %v5346
  %v5829 = vsel %vm4865, %v4255, %v5347
  %v5830 = vsel %vm4866, %v4260, %v5348
  %v5831 = vsel %vm4867, %v4263, %v5349
  %v5832 = vsel %vm4868, %v4268, %v5350
  %v5833 = vsel %vm4869, %v4271, %v5351
  %v5834 = vsel %vm4870, %v4276, %v5352
  %v5835 = vsel %vm4871, %v4279, %v5353
  %v5836 = vsel %vm4872, %v4284, %v5354
  %v5837 = vsel %vm4873, %v4287, %v5355
  %v5838 = vsel %vm4874, %v4292, %v5356
  %v5839 = vsel %vm4875, %v4295, %v5357
  %v5840 = vsel %vm4876, %v4300, %v5358
  %v5841 = vsel %vm4877, %v4303, %v5359
  %v5842 = vsel %vm4878, %v4308, %v5360
  %v5843 = vsel %vm4879, %v4311, %v5361
  %v5844 = vsel %vm4880, %v4316, %v5362
  %v5845 = vsel %vm4881, %v4319, %v5363
  %v5846 = vsel %vm4882, %v4324, %v5364
  %v5847 = vsel %vm4883, %v4327, %v5365
  %v5848 = vsel %vm4884, %v4332, %v5366
  %v5849 = vsel %vm4885, %v4335, %v5367
  %v5850 = vsel %vm4886, %v4340, %v5368
  %v5851 = vsel %vm4887, %v4343, %v5369
  %v5852 = vsel %vm4888, %v4348, %v5370
  %v5853 = vsel %vm4889, %v4351, %v5371
  %v5854 = vsel %vm4890, %v4356, %v5372
  %v5855 = vsel %vm4891, %v4359, %v5373
  %v5856 = vsel %vm4892, %v4364, %v5374
  %v5857 = vsel %vm4893, %v4367, %v5375
  %v5858 = vsel %vm4894, %v4372, %v5376
  %v5859 = vsel %vm4895, %v4375, %v5377
  %v5860 = vsel %vm4896, %v4380, %v5378
  %v5861 = vsel %vm4897, %v4383, %v5379
  %v5862 = vsel %vm4898, %v4388, %v5380
  %v5863 = vsel %vm4899, %v4391, %v5381
  %v5864 = vsel %vm4900, %v4396, %v5382
  %v5865 = vsel %vm4901, %v4399, %v5383
  %v5866 = vsel %vm4902, %v4404, %v5384
  %v5867 = vsel %vm4903, %v4407, %v5385
  %v5868 = vsel %vm4904, %v4412, %v5386
  %v5869 = vsel %vm4905, %v4415, %v5387
  %v5870 = vsel %vm4906, %v4420, %v5388
  %v5871 = vsel %vm4907, %v4423, %v5389
  %v5872 = vpack.c.bf16 %v5391, %v5390
  %v5873 = vpack.c.bf16 %v5393, %v5392
  %v5874 = vpack.c.bf16 %v5395, %v5394
  %v5875 = vpack.c.bf16 %v5397, %v5396
  %v5876 = vpack.c.bf16 %v5399, %v5398
  %v5877 = vpack.c.bf16 %v5401, %v5400
  %v5878 = vpack.c.bf16 %v5403, %v5402
  %v5879 = vpack.c.bf16 %v5405, %v5404
  %v5880 = vpack.c.bf16 %v5407, %v5406
  %v5881 = vpack.c.bf16 %v5409, %v5408
  %v5882 = vpack.c.bf16 %v5411, %v5410
  %v5883 = vpack.c.bf16 %v5413, %v5412
  %v5884 = vpack.c.bf16 %v5415, %v5414
  %v5885 = vpack.c.bf16 %v5417, %v5416
  %v5886 = vpack.c.bf16 %v5419, %v5418
  %v5887 = vpack.c.bf16 %v5421, %v5420
  %v5888 = vpack.c.bf16 %v5423, %v5422
  %v5889 = vpack.c.bf16 %v5425, %v5424
  %v5890 = vpack.c.bf16 %v5427, %v5426
  %v5891 = vpack.c.bf16 %v5429, %v5428
  %v5892 = vpack.c.bf16 %v5431, %v5430
  %v5893 = vpack.c.bf16 %v5433, %v5432
  %v5894 = vpack.c.bf16 %v5435, %v5434
  %v5895 = vpack.c.bf16 %v5437, %v5436
  %v5896 = vpack.c.bf16 %v5439, %v5438
  %v5897 = vpack.c.bf16 %v5441, %v5440
  %v5898 = vpack.c.bf16 %v5443, %v5442
  %v5899 = vpack.c.bf16 %v5445, %v5444
  %v5900 = vpack.c.bf16 %v5447, %v5446
  %v5901 = vpack.c.bf16 %v5449, %v5448
  %v5902 = vpack.c.bf16 %v5451, %v5450
  %v5903 = vpack.c.bf16 %v5453, %v5452
  %v5904 = vpack.c.bf16 %v5455, %v5454
  %v5905 = vpack.c.bf16 %v5457, %v5456
  %v5906 = vpack.c.bf16 %v5459, %v5458
  %v5907 = vpack.c.bf16 %v5461, %v5460
  %v5908 = vpack.c.bf16 %v5463, %v5462
  %v5909 = vpack.c.bf16 %v5465, %v5464
  %v5910 = vpack.c.bf16 %v5467, %v5466
  %v5911 = vpack.c.bf16 %v5469, %v5468
  %v5912 = vpack.c.bf16 %v5471, %v5470
  %v5913 = vpack.c.bf16 %v5473, %v5472
  %v5914 = vpack.c.bf16 %v5475, %v5474
  %v5915 = vpack.c.bf16 %v5477, %v5476
  %v5916 = vpack.c.bf16 %v5479, %v5478
  %v5917 = vpack.c.bf16 %v5481, %v5480
  %v5918 = vpack.c.bf16 %v5483, %v5482
  %v5919 = vpack.c.bf16 %v5485, %v5484
  %v5920 = vpack.c.bf16 %v5487, %v5486
  %v5921 = vpack.c.bf16 %v5489, %v5488
  %v5922 = vpack.c.bf16 %v5491, %v5490
  %v5923 = vpack.c.bf16 %v5493, %v5492
  %v5924 = vpack.c.bf16 %v5495, %v5494
  %v5925 = vpack.c.bf16 %v5497, %v5496
  %v5926 = vpack.c.bf16 %v5499, %v5498
  %v5927 = vpack.c.bf16 %v5501, %v5500
  %v5928 = vpack.c.bf16 %v5503, %v5502
  %v5929 = vpack.c.bf16 %v5505, %v5504
  %v5930 = vpack.c.bf16 %v5507, %v5506
  %v5931 = vpack.c.bf16 %v5509, %v5508
  %v5932 = vpack.c.bf16 %v5511, %v5510
  %v5933 = vpack.c.bf16 %v5513, %v5512
  %v5934 = vpack.c.bf16 %v5515, %v5514
  %v5935 = vpack.c.bf16 %v5517, %v5516
  %v5936 = vpack.c.bf16 %v5519, %v5518
  %v5937 = vpack.c.bf16 %v5521, %v5520
  %v5938 = vpack.c.bf16 %v5523, %v5522
  %v5939 = vpack.c.bf16 %v5525, %v5524
  %v5940 = vpack.c.bf16 %v5527, %v5526
  %v5941 = vpack.c.bf16 %v5529, %v5528
  %v5942 = vpack.c.bf16 %v5531, %v5530
  %v5943 = vpack.c.bf16 %v5533, %v5532
  %v5944 = vpack.c.bf16 %v5535, %v5534
  %v5945 = vpack.c.bf16 %v5537, %v5536
  %v5946 = vpack.c.bf16 %v5539, %v5538
  %v5947 = vpack.c.bf16 %v5541, %v5540
  %v5948 = vpack.c.bf16 %v5543, %v5542
  %v5949 = vpack.c.bf16 %v5545, %v5544
  %v5950 = vpack.c.bf16 %v5547, %v5546
  %v5951 = vpack.c.bf16 %v5549, %v5548
  %v5952 = vpack.c.bf16 %v5551, %v5550
  %v5953 = vpack.c.bf16 %v5553, %v5552
  %v5954 = vpack.c.bf16 %v5555, %v5554
  %v5955 = vpack.c.bf16 %v5557, %v5556
  %v5956 = vpack.c.bf16 %v5559, %v5558
  %v5957 = vpack.c.bf16 %v5561, %v5560
  %v5958 = vpack.c.bf16 %v5563, %v5562
  %v5959 = vpack.c.bf16 %v5565, %v5564
  %v5960 = vpack.c.bf16 %v5567, %v5566
  %v5961 = vpack.c.bf16 %v5569, %v5568
  %v5962 = vpack.c.bf16 %v5571, %v5570
  %v5963 = vpack.c.bf16 %v5573, %v5572
  %v5964 = vpack.c.bf16 %v5575, %v5574
  %v5965 = vpack.c.bf16 %v5577, %v5576
  %v5966 = vpack.c.bf16 %v5579, %v5578
  %v5967 = vpack.c.bf16 %v5581, %v5580
  %v5968 = vpack.c.bf16 %v5583, %v5582
  %v5969 = vpack.c.bf16 %v5585, %v5584
  %v5970 = vpack.c.bf16 %v5587, %v5586
  %v5971 = vpack.c.bf16 %v5589, %v5588
  %v5972 = vpack.c.bf16 %v5591, %v5590
  %v5973 = vpack.c.bf16 %v5593, %v5592
  %v5974 = vpack.c.bf16 %v5595, %v5594
  %v5975 = vpack.c.bf16 %v5597, %v5596
  %v5976 = vpack.c.bf16 %v5599, %v5598
  %v5977 = vpack.c.bf16 %v5601, %v5600
  %v5978 = vpack.c.bf16 %v5603, %v5602
  %v5979 = vpack.c.bf16 %v5605, %v5604
  %v5980 = vpack.c.bf16 %v5607, %v5606
  %v5981 = vpack.c.bf16 %v5609, %v5608
  %v5982 = vpack.c.bf16 %v5611, %v5610
  %v5983 = vpack.c.bf16 %v5613, %v5612
  %v5984 = vpack.c.bf16 %v5615, %v5614
  %v5985 = vpack.c.bf16 %v5617, %v5616
  %v5986 = vpack.c.bf16 %v5619, %v5618
  %v5987 = vpack.c.bf16 %v5621, %v5620
  %v5988 = vpack.c.bf16 %v5623, %v5622
  %v5989 = vpack.c.bf16 %v5625, %v5624
  %v5990 = vpack.c.bf16 %v5627, %v5626
  %v5991 = vpack.c.bf16 %v5629, %v5628
  %v5992 = vpack.c.bf16 %v5631, %v5630
  %v5993 = vpack.c.bf16 %v5633, %v5632
  %v5994 = vpack.c.bf16 %v5635, %v5634
  %v5995 = vpack.c.bf16 %v5637, %v5636
  %v5996 = vpack.c.bf16 %v5639, %v5638
  %v5997 = vpack.c.bf16 %v5641, %v5640
  %v5998 = vpack.c.bf16 %v5643, %v5642
  %v5999 = vpack.c.bf16 %v5645, %v5644
  %v6000 = vpack.c.bf16 %v5647, %v5646
  %v6001 = vpack.c.bf16 %v5649, %v5648
  %v6002 = vpack.c.bf16 %v5651, %v5650
  %v6003 = vpack.c.bf16 %v5653, %v5652
  %v6004 = vpack.c.bf16 %v5655, %v5654
  %v6005 = vpack.c.bf16 %v5657, %v5656
  %v6006 = vpack.c.bf16 %v5659, %v5658
  %v6007 = vpack.c.bf16 %v5661, %v5660
  %v6008 = vpack.c.bf16 %v5663, %v5662
  %v6009 = vpack.c.bf16 %v5665, %v5664
  %v6010 = vpack.c.bf16 %v5667, %v5666
  %v6011 = vpack.c.bf16 %v5669, %v5668
  %v6012 = vpack.c.bf16 %v5671, %v5670
  %v6013 = vpack.c.bf16 %v5673, %v5672
  %v6014 = vpack.c.bf16 %v5675, %v5674
  %v6015 = vpack.c.bf16 %v5677, %v5676
  %v6016 = vpack.c.bf16 %v5679, %v5678
  %v6017 = vpack.c.bf16 %v5681, %v5680
  %v6018 = vpack.c.bf16 %v5683, %v5682
  %v6019 = vpack.c.bf16 %v5685, %v5684
  %v6020 = vpack.c.bf16 %v5687, %v5686
  %v6021 = vpack.c.bf16 %v5689, %v5688
  %v6022 = vpack.c.bf16 %v5691, %v5690
  %v6023 = vpack.c.bf16 %v5693, %v5692
  %v6024 = vpack.c.bf16 %v5695, %v5694
  %v6025 = vpack.c.bf16 %v5697, %v5696
  %v6026 = vpack.c.bf16 %v5699, %v5698
  %v6027 = vpack.c.bf16 %v5701, %v5700
  %v6028 = vpack.c.bf16 %v5703, %v5702
  %v6029 = vpack.c.bf16 %v5705, %v5704
  %v6030 = vpack.c.bf16 %v5707, %v5706
  %v6031 = vpack.c.bf16 %v5709, %v5708
  %v6032 = vpack.c.bf16 %v5711, %v5710
  %v6033 = vpack.c.bf16 %v5713, %v5712
  %v6034 = vpack.c.bf16 %v5715, %v5714
  %v6035 = vpack.c.bf16 %v5717, %v5716
  %v6036 = vpack.c.bf16 %v5719, %v5718
  %v6037 = vpack.c.bf16 %v5721, %v5720
  %v6038 = vpack.c.bf16 %v5723, %v5722
  %v6039 = vpack.c.bf16 %v5725, %v5724
  %v6040 = vpack.c.bf16 %v5727, %v5726
  %v6041 = vpack.c.bf16 %v5729, %v5728
  %v6042 = vpack.c.bf16 %v5731, %v5730
  %v6043 = vpack.c.bf16 %v5733, %v5732
  %v6044 = vpack.c.bf16 %v5735, %v5734
  %v6045 = vpack.c.bf16 %v5737, %v5736
  %v6046 = vpack.c.bf16 %v5739, %v5738
  %v6047 = vpack.c.bf16 %v5741, %v5740
  %v6048 = vpack.c.bf16 %v5743, %v5742
  %v6049 = vpack.c.bf16 %v5745, %v5744
  %v6050 = vpack.c.bf16 %v5747, %v5746
  %v6051 = vpack.c.bf16 %v5749, %v5748
  %v6052 = vpack.c.bf16 %v5751, %v5750
  %v6053 = vpack.c.bf16 %v5753, %v5752
  %v6054 = vpack.c.bf16 %v5755, %v5754
  %v6055 = vpack.c.bf16 %v5757, %v5756
  %v6056 = vpack.c.bf16 %v5759, %v5758
  %v6057 = vpack.c.bf16 %v5761, %v5760
  %v6058 = vpack.c.bf16 %v5763, %v5762
  %v6059 = vpack.c.bf16 %v5765, %v5764
  %v6060 = vpack.c.bf16 %v5767, %v5766
  %v6061 = vpack.c.bf16 %v5769, %v5768
  %v6062 = vpack.c.bf16 %v5771, %v5770
  %v6063 = vpack.c.bf16 %v5773, %v5772
  %v6064 = vpack.c.bf16 %v5775, %v5774
  %v6065 = vpack.c.bf16 %v5777, %v5776
  %v6066 = vpack.c.bf16 %v5779, %v5778
  %v6067 = vpack.c.bf16 %v5781, %v5780
  %v6068 = vpack.c.bf16 %v5783, %v5782
  %v6069 = vpack.c.bf16 %v5785, %v5784
  %v6070 = vpack.c.bf16 %v5787, %v5786
  %v6071 = vpack.c.bf16 %v5789, %v5788
  %v6072 = vpack.c.bf16 %v5791, %v5790
  %v6073 = vpack.c.bf16 %v5793, %v5792
  %v6074 = vpack.c.bf16 %v5795, %v5794
  %v6075 = vpack.c.bf16 %v5797, %v5796
  %v6076 = vpack.c.bf16 %v5799, %v5798
  %v6077 = vpack.c.bf16 %v5801, %v5800
  %v6078 = vpack.c.bf16 %v5803, %v5802
  %v6079 = vpack.c.bf16 %v5805, %v5804
  %v6080 = vpack.c.bf16 %v5807, %v5806
  %v6081 = vpack.c.bf16 %v5809, %v5808
  %v6082 = vpack.c.bf16 %v5811, %v5810
  %v6083 = vpack.c.bf16 %v5813, %v5812
  %v6084 = vpack.c.bf16 %v5815, %v5814
  %v6085 = vpack.c.bf16 %v5817, %v5816
  %v6086 = vpack.c.bf16 %v5819, %v5818
  %v6087 = vpack.c.bf16 %v5821, %v5820
  %v6088 = vpack.c.bf16 %v5823, %v5822
  %v6089 = vpack.c.bf16 %v5825, %v5824
  %v6090 = vpack.c.bf16 %v5827, %v5826
  %v6091 = vpack.c.bf16 %v5829, %v5828
  %v6092 = vpack.c.bf16 %v5831, %v5830
  %v6093 = vpack.c.bf16 %v5833, %v5832
  %v6094 = vpack.c.bf16 %v5835, %v5834
  %v6095 = vpack.c.bf16 %v5837, %v5836
  %v6096 = vpack.c.bf16 %v5839, %v5838
  %v6097 = vpack.c.bf16 %v5841, %v5840
  %v6098 = vpack.c.bf16 %v5843, %v5842
  %v6099 = vpack.c.bf16 %v5845, %v5844
  %v6100 = vpack.c.bf16 %v5847, %v5846
  %v6101 = vpack.c.bf16 %v5849, %v5848
  %v6102 = vpack.c.bf16 %v5851, %v5850
  %v6103 = vpack.c.bf16 %v5853, %v5852
  %v6104 = vpack.c.bf16 %v5855, %v5854
  %v6105 = vpack.c.bf16 %v5857, %v5856
  %v6106 = vpack.c.bf16 %v5859, %v5858
  %v6107 = vpack.c.bf16 %v5861, %v5860
  %v6108 = vpack.c.bf16 %v5863, %v5862
  %v6109 = vpack.c.bf16 %v5865, %v5864
  %v6110 = vpack.c.bf16 %v5867, %v5866
  %v6111 = vpack.c.bf16 %v5869, %v5868
  %v6112 = vpack.c.bf16 %v5871, %v5870
  %v6354 = vunpack.c.l.b16 %v5872
  %v6355 = vunpack.c.h.b16 %v5872
  %v6356 = vunpack.c.l.b16 %v5873
  %v6357 = vunpack.c.h.b16 %v5873
  %v6358 = vunpack.c.l.b16 %v5874
  %v6359 = vunpack.c.h.b16 %v5874
  %v6360 = vunpack.c.l.b16 %v5875
  %v6361 = vunpack.c.h.b16 %v5875
  %v6362 = vunpack.c.l.b16 %v5876
  %v6363 = vunpack.c.h.b16 %v5876
  %v6364 = vunpack.c.l.b16 %v5877
  %v6365 = vunpack.c.h.b16 %v5877
  %v6366 = vunpack.c.l.b16 %v5878
  %v6367 = vunpack.c.h.b16 %v5878
  %v6368 = vunpack.c.l.b16 %v5879
  %v6369 = vunpack.c.h.b16 %v5879
  %v6370 = vunpack.c.l.b16 %v5880
  %v6371 = vunpack.c.h.b16 %v5880
  %v6372 = vunpack.c.l.b16 %v5881
  %v6373 = vunpack.c.h.b16 %v5881
  %v6374 = vunpack.c.l.b16 %v5882
  %v6375 = vunpack.c.h.b16 %v5882
  %v6376 = vunpack.c.l.b16 %v5883
  %v6377 = vunpack.c.h.b16 %v5883
  %v6378 = vunpack.c.l.b16 %v5884
  %v6379 = vunpack.c.h.b16 %v5884
  %v6380 = vunpack.c.l.b16 %v5885
  %v6381 = vunpack.c.h.b16 %v5885
  %v6382 = vunpack.c.l.b16 %v5886
  %v6383 = vunpack.c.h.b16 %v5886
  %v6384 = vunpack.c.l.b16 %v5887
  %v6385 = vunpack.c.h.b16 %v5887
  %v6386 = vunpack.c.l.b16 %v5888
  %v6387 = vunpack.c.h.b16 %v5888
  %v6388 = vunpack.c.l.b16 %v5889
  %v6389 = vunpack.c.h.b16 %v5889
  %v6390 = vunpack.c.l.b16 %v5890
  %v6391 = vunpack.c.h.b16 %v5890
  %v6392 = vunpack.c.l.b16 %v5891
  %v6393 = vunpack.c.h.b16 %v5891
  %v6394 = vunpack.c.l.b16 %v5892
  %v6395 = vunpack.c.h.b16 %v5892
  %v6396 = vunpack.c.l.b16 %v5893
  %v6397 = vunpack.c.h.b16 %v5893
  %v6398 = vunpack.c.l.b16 %v5894
  %v6399 = vunpack.c.h.b16 %v5894
  %v6400 = vunpack.c.l.b16 %v5895
  %v6401 = vunpack.c.h.b16 %v5895
  %v6402 = vunpack.c.l.b16 %v5896
  %v6403 = vunpack.c.h.b16 %v5896
  %v6404 = vunpack.c.l.b16 %v5897
  %v6405 = vunpack.c.h.b16 %v5897
  %v6406 = vunpack.c.l.b16 %v5898
  %v6407 = vunpack.c.h.b16 %v5898
  %v6408 = vunpack.c.l.b16 %v5899
  %v6409 = vunpack.c.h.b16 %v5899
  %v6410 = vunpack.c.l.b16 %v5900
  %v6411 = vunpack.c.h.b16 %v5900
  %v6412 = vunpack.c.l.b16 %v5901
  %v6413 = vunpack.c.h.b16 %v5901
  %v6414 = vunpack.c.l.b16 %v5902
  %v6415 = vunpack.c.h.b16 %v5902
  %v6416 = vunpack.c.l.b16 %v5903
  %v6417 = vunpack.c.h.b16 %v5903
  %v6418 = vunpack.c.l.b16 %v5904
  %v6419 = vunpack.c.h.b16 %v5904
  %v6420 = vunpack.c.l.b16 %v5905
  %v6421 = vunpack.c.h.b16 %v5905
  %v6422 = vunpack.c.l.b16 %v5906
  %v6423 = vunpack.c.h.b16 %v5906
  %v6424 = vunpack.c.l.b16 %v5907
  %v6425 = vunpack.c.h.b16 %v5907
  %v6426 = vunpack.c.l.b16 %v5908
  %v6427 = vunpack.c.h.b16 %v5908
  %v6428 = vunpack.c.l.b16 %v5909
  %v6429 = vunpack.c.h.b16 %v5909
  %v6430 = vunpack.c.l.b16 %v5910
  %v6431 = vunpack.c.h.b16 %v5910
  %v6432 = vunpack.c.l.b16 %v5911
  %v6433 = vunpack.c.h.b16 %v5911
  %v6434 = vunpack.c.l.b16 %v5912
  %v6435 = vunpack.c.h.b16 %v5912
  %v6436 = vunpack.c.l.b16 %v5913
  %v6437 = vunpack.c.h.b16 %v5913
  %v6438 = vunpack.c.l.b16 %v5914
  %v6439 = vunpack.c.h.b16 %v5914
  %v6440 = vunpack.c.l.b16 %v5915
  %v6441 = vunpack.c.h.b16 %v5915
  %v6442 = vunpack.c.l.b16 %v5916
  %v6443 = vunpack.c.h.b16 %v5916
  %v6444 = vunpack.c.l.b16 %v5917
  %v6445 = vunpack.c.h.b16 %v5917
  %v6446 = vunpack.c.l.b16 %v5918
  %v6447 = vunpack.c.h.b16 %v5918
  %v6448 = vunpack.c.l.b16 %v5919
  %v6449 = vunpack.c.h.b16 %v5919
  %v6450 = vunpack.c.l.b16 %v5920
  %v6451 = vunpack.c.h.b16 %v5920
  %v6452 = vunpack.c.l.b16 %v5921
  %v6453 = vunpack.c.h.b16 %v5921
  %v6454 = vunpack.c.l.b16 %v5922
  %v6455 = vunpack.c.h.b16 %v5922
  %v6456 = vunpack.c.l.b16 %v5923
  %v6457 = vunpack.c.h.b16 %v5923
  %v6458 = vunpack.c.l.b16 %v5924
  %v6459 = vunpack.c.h.b16 %v5924
  %v6460 = vunpack.c.l.b16 %v5925
  %v6461 = vunpack.c.h.b16 %v5925
  %v6462 = vunpack.c.l.b16 %v5926
  %v6463 = vunpack.c.h.b16 %v5926
  %v6464 = vunpack.c.l.b16 %v5927
  %v6465 = vunpack.c.h.b16 %v5927
  %v6466 = vunpack.c.l.b16 %v5928
  %v6467 = vunpack.c.h.b16 %v5928
  %v6468 = vunpack.c.l.b16 %v5929
  %v6469 = vunpack.c.h.b16 %v5929
  %v6470 = vunpack.c.l.b16 %v5930
  %v6471 = vunpack.c.h.b16 %v5930
  %v6472 = vunpack.c.l.b16 %v5931
  %v6473 = vunpack.c.h.b16 %v5931
  %v6474 = vunpack.c.l.b16 %v5932
  %v6475 = vunpack.c.h.b16 %v5932
  %v6476 = vunpack.c.l.b16 %v5933
  %v6477 = vunpack.c.h.b16 %v5933
  %v6478 = vunpack.c.l.b16 %v5934
  %v6479 = vunpack.c.h.b16 %v5934
  %v6480 = vunpack.c.l.b16 %v5935
  %v6481 = vunpack.c.h.b16 %v5935
  %v6482 = vunpack.c.l.b16 %v5936
  %v6483 = vunpack.c.h.b16 %v5936
  %v6484 = vunpack.c.l.b16 %v5937
  %v6485 = vunpack.c.h.b16 %v5937
  %v6486 = vunpack.c.l.b16 %v5938
  %v6487 = vunpack.c.h.b16 %v5938
  %v6488 = vunpack.c.l.b16 %v5939
  %v6489 = vunpack.c.h.b16 %v5939
  %v6490 = vunpack.c.l.b16 %v5940
  %v6491 = vunpack.c.h.b16 %v5940
  %v6492 = vunpack.c.l.b16 %v5941
  %v6493 = vunpack.c.h.b16 %v5941
  %v6494 = vunpack.c.l.b16 %v5942
  %v6495 = vunpack.c.h.b16 %v5942
  %v6496 = vunpack.c.l.b16 %v5943
  %v6497 = vunpack.c.h.b16 %v5943
  %v6498 = vunpack.c.l.b16 %v5944
  %v6499 = vunpack.c.h.b16 %v5944
  %v6500 = vunpack.c.l.b16 %v5945
  %v6501 = vunpack.c.h.b16 %v5945
  %v6502 = vunpack.c.l.b16 %v5946
  %v6503 = vunpack.c.h.b16 %v5946
  %v6504 = vunpack.c.l.b16 %v5947
  %v6505 = vunpack.c.h.b16 %v5947
  %v6506 = vunpack.c.l.b16 %v5948
  %v6507 = vunpack.c.h.b16 %v5948
  %v6508 = vunpack.c.l.b16 %v5949
  %v6509 = vunpack.c.h.b16 %v5949
  %v6510 = vunpack.c.l.b16 %v5950
  %v6511 = vunpack.c.h.b16 %v5950
  %v6512 = vunpack.c.l.b16 %v5951
  %v6513 = vunpack.c.h.b16 %v5951
  %v6514 = vunpack.c.l.b16 %v5952
  %v6515 = vunpack.c.h.b16 %v5952
  %v6516 = vunpack.c.l.b16 %v5953
  %v6517 = vunpack.c.h.b16 %v5953
  %v6518 = vunpack.c.l.b16 %v5954
  %v6519 = vunpack.c.h.b16 %v5954
  %v6520 = vunpack.c.l.b16 %v5955
  %v6521 = vunpack.c.h.b16 %v5955
  %v6522 = vunpack.c.l.b16 %v5956
  %v6523 = vunpack.c.h.b16 %v5956
  %v6524 = vunpack.c.l.b16 %v5957
  %v6525 = vunpack.c.h.b16 %v5957
  %v6526 = vunpack.c.l.b16 %v5958
  %v6527 = vunpack.c.h.b16 %v5958
  %v6528 = vunpack.c.l.b16 %v5959
  %v6529 = vunpack.c.h.b16 %v5959
  %v6530 = vunpack.c.l.b16 %v5960
  %v6531 = vunpack.c.h.b16 %v5960
  %v6532 = vunpack.c.l.b16 %v5961
  %v6533 = vunpack.c.h.b16 %v5961
  %v6534 = vunpack.c.l.b16 %v5962
  %v6535 = vunpack.c.h.b16 %v5962
  %v6536 = vunpack.c.l.b16 %v5963
  %v6537 = vunpack.c.h.b16 %v5963
  %v6538 = vunpack.c.l.b16 %v5964
  %v6539 = vunpack.c.h.b16 %v5964
  %v6540 = vunpack.c.l.b16 %v5965
  %v6541 = vunpack.c.h.b16 %v5965
  %v6542 = vunpack.c.l.b16 %v5966
  %v6543 = vunpack.c.h.b16 %v5966
  %v6544 = vunpack.c.l.b16 %v5967
  %v6545 = vunpack.c.h.b16 %v5967
  %v6546 = vunpack.c.l.b16 %v5968
  %v6547 = vunpack.c.h.b16 %v5968
  %v6548 = vunpack.c.l.b16 %v5969
  %v6549 = vunpack.c.h.b16 %v5969
  %v6550 = vunpack.c.l.b16 %v5970
  %v6551 = vunpack.c.h.b16 %v5970
  %v6552 = vunpack.c.l.b16 %v5971
  %v6553 = vunpack.c.h.b16 %v5971
  %v6554 = vunpack.c.l.b16 %v5972
  %v6555 = vunpack.c.h.b16 %v5972
  %v6556 = vunpack.c.l.b16 %v5973
  %v6557 = vunpack.c.h.b16 %v5973
  %v6558 = vunpack.c.l.b16 %v5974
  %v6559 = vunpack.c.h.b16 %v5974
  %v6560 = vunpack.c.l.b16 %v5975
  %v6561 = vunpack.c.h.b16 %v5975
  %v6562 = vunpack.c.l.b16 %v5976
  %v6563 = vunpack.c.h.b16 %v5976
  %v6564 = vunpack.c.l.b16 %v5977
  %v6565 = vunpack.c.h.b16 %v5977
  %v6566 = vunpack.c.l.b16 %v5978
  %v6567 = vunpack.c.h.b16 %v5978
  %v6568 = vunpack.c.l.b16 %v5979
  %v6569 = vunpack.c.h.b16 %v5979
  %v6570 = vunpack.c.l.b16 %v5980
  %v6571 = vunpack.c.h.b16 %v5980
  %v6572 = vunpack.c.l.b16 %v5981
  %v6573 = vunpack.c.h.b16 %v5981
  %v6574 = vunpack.c.l.b16 %v5982
  %v6575 = vunpack.c.h.b16 %v5982
  %v6576 = vunpack.c.l.b16 %v5983
  %v6577 = vunpack.c.h.b16 %v5983
  %v6578 = vunpack.c.l.b16 %v5984
  %v6579 = vunpack.c.h.b16 %v5984
  %v6580 = vunpack.c.l.b16 %v5985
  %v6581 = vunpack.c.h.b16 %v5985
  %v6582 = vunpack.c.l.b16 %v5986
  %v6583 = vunpack.c.h.b16 %v5986
  %v6584 = vunpack.c.l.b16 %v5987
  %v6585 = vunpack.c.h.b16 %v5987
  %v6586 = vunpack.c.l.b16 %v5988
  %v6587 = vunpack.c.h.b16 %v5988
  %v6588 = vunpack.c.l.b16 %v5989
  %v6589 = vunpack.c.h.b16 %v5989
  %v6590 = vunpack.c.l.b16 %v5990
  %v6591 = vunpack.c.h.b16 %v5990
  %v6592 = vunpack.c.l.b16 %v5991
  %v6593 = vunpack.c.h.b16 %v5991
  %v6594 = vunpack.c.l.b16 %v5992
  %v6595 = vunpack.c.h.b16 %v5992
  %v6596 = vunpack.c.l.b16 %v5993
  %v6597 = vunpack.c.h.b16 %v5993
  %v6598 = vunpack.c.l.b16 %v5994
  %v6599 = vunpack.c.h.b16 %v5994
  %v6600 = vunpack.c.l.b16 %v5995
  %v6601 = vunpack.c.h.b16 %v5995
  %v6602 = vunpack.c.l.b16 %v5996
  %v6603 = vunpack.c.h.b16 %v5996
  %v6604 = vunpack.c.l.b16 %v5997
  %v6605 = vunpack.c.h.b16 %v5997
  %v6606 = vunpack.c.l.b16 %v5998
  %v6607 = vunpack.c.h.b16 %v5998
  %v6608 = vunpack.c.l.b16 %v5999
  %v6609 = vunpack.c.h.b16 %v5999
  %v6610 = vunpack.c.l.b16 %v6000
  %v6611 = vunpack.c.h.b16 %v6000
  %v6612 = vunpack.c.l.b16 %v6001
  %v6613 = vunpack.c.h.b16 %v6001
  %v6614 = vunpack.c.l.b16 %v6002
  %v6615 = vunpack.c.h.b16 %v6002
  %v6616 = vunpack.c.l.b16 %v6003
  %v6617 = vunpack.c.h.b16 %v6003
  %v6618 = vunpack.c.l.b16 %v6004
  %v6619 = vunpack.c.h.b16 %v6004
  %v6620 = vunpack.c.l.b16 %v6005
  %v6621 = vunpack.c.h.b16 %v6005
  %v6622 = vunpack.c.l.b16 %v6006
  %v6623 = vunpack.c.h.b16 %v6006
  %v6624 = vunpack.c.l.b16 %v6007
  %v6625 = vunpack.c.h.b16 %v6007
  %v6626 = vunpack.c.l.b16 %v6008
  %v6627 = vunpack.c.h.b16 %v6008
  %v6628 = vunpack.c.l.b16 %v6009
  %v6629 = vunpack.c.h.b16 %v6009
  %v6630 = vunpack.c.l.b16 %v6010
  %v6631 = vunpack.c.h.b16 %v6010
  %v6632 = vunpack.c.l.b16 %v6011
  %v6633 = vunpack.c.h.b16 %v6011
  %v6634 = vunpack.c.l.b16 %v6012
  %v6635 = vunpack.c.h.b16 %v6012
  %v6636 = vunpack.c.l.b16 %v6013
  %v6637 = vunpack.c.h.b16 %v6013
  %v6638 = vunpack.c.l.b16 %v6014
  %v6639 = vunpack.c.h.b16 %v6014
  %v6640 = vunpack.c.l.b16 %v6015
  %v6641 = vunpack.c.h.b16 %v6015
  %v6642 = vunpack.c.l.b16 %v6016
  %v6643 = vunpack.c.h.b16 %v6016
  %v6644 = vunpack.c.l.b16 %v6017
  %v6645 = vunpack.c.h.b16 %v6017
  %v6646 = vunpack.c.l.b16 %v6018
  %v6647 = vunpack.c.h.b16 %v6018
  %v6648 = vunpack.c.l.b16 %v6019
  %v6649 = vunpack.c.h.b16 %v6019
  %v6650 = vunpack.c.l.b16 %v6020
  %v6651 = vunpack.c.h.b16 %v6020
  %v6652 = vunpack.c.l.b16 %v6021
  %v6653 = vunpack.c.h.b16 %v6021
  %v6654 = vunpack.c.l.b16 %v6022
  %v6655 = vunpack.c.h.b16 %v6022
  %v6656 = vunpack.c.l.b16 %v6023
  %v6657 = vunpack.c.h.b16 %v6023
  %v6658 = vunpack.c.l.b16 %v6024
  %v6659 = vunpack.c.h.b16 %v6024
  %v6660 = vunpack.c.l.b16 %v6025
  %v6661 = vunpack.c.h.b16 %v6025
  %v6662 = vunpack.c.l.b16 %v6026
  %v6663 = vunpack.c.h.b16 %v6026
  %v6664 = vunpack.c.l.b16 %v6027
  %v6665 = vunpack.c.h.b16 %v6027
  %v6666 = vunpack.c.l.b16 %v6028
  %v6667 = vunpack.c.h.b16 %v6028
  %v6668 = vunpack.c.l.b16 %v6029
  %v6669 = vunpack.c.h.b16 %v6029
  %v6670 = vunpack.c.l.b16 %v6030
  %v6671 = vunpack.c.h.b16 %v6030
  %v6672 = vunpack.c.l.b16 %v6031
  %v6673 = vunpack.c.h.b16 %v6031
  %v6674 = vunpack.c.l.b16 %v6032
  %v6675 = vunpack.c.h.b16 %v6032
  %v6676 = vunpack.c.l.b16 %v6033
  %v6677 = vunpack.c.h.b16 %v6033
  %v6678 = vunpack.c.l.b16 %v6034
  %v6679 = vunpack.c.h.b16 %v6034
  %v6680 = vunpack.c.l.b16 %v6035
  %v6681 = vunpack.c.h.b16 %v6035
  %v6682 = vunpack.c.l.b16 %v6036
  %v6683 = vunpack.c.h.b16 %v6036
  %v6684 = vunpack.c.l.b16 %v6037
  %v6685 = vunpack.c.h.b16 %v6037
  %v6686 = vunpack.c.l.b16 %v6038
  %v6687 = vunpack.c.h.b16 %v6038
  %v6688 = vunpack.c.l.b16 %v6039
  %v6689 = vunpack.c.h.b16 %v6039
  %v6690 = vunpack.c.l.b16 %v6040
  %v6691 = vunpack.c.h.b16 %v6040
  %v6692 = vunpack.c.l.b16 %v6041
  %v6693 = vunpack.c.h.b16 %v6041
  %v6694 = vunpack.c.l.b16 %v6042
  %v6695 = vunpack.c.h.b16 %v6042
  %v6696 = vunpack.c.l.b16 %v6043
  %v6697 = vunpack.c.h.b16 %v6043
  %v6698 = vunpack.c.l.b16 %v6044
  %v6699 = vunpack.c.h.b16 %v6044
  %v6700 = vunpack.c.l.b16 %v6045
  %v6701 = vunpack.c.h.b16 %v6045
  %v6702 = vunpack.c.l.b16 %v6046
  %v6703 = vunpack.c.h.b16 %v6046
  %v6704 = vunpack.c.l.b16 %v6047
  %v6705 = vunpack.c.h.b16 %v6047
  %v6706 = vunpack.c.l.b16 %v6048
  %v6707 = vunpack.c.h.b16 %v6048
  %v6708 = vunpack.c.l.b16 %v6049
  %v6709 = vunpack.c.h.b16 %v6049
  %v6710 = vunpack.c.l.b16 %v6050
  %v6711 = vunpack.c.h.b16 %v6050
  %v6712 = vunpack.c.l.b16 %v6051
  %v6713 = vunpack.c.h.b16 %v6051
  %v6714 = vunpack.c.l.b16 %v6052
  %v6715 = vunpack.c.h.b16 %v6052
  %v6716 = vunpack.c.l.b16 %v6053
  %v6717 = vunpack.c.h.b16 %v6053
  %v6718 = vunpack.c.l.b16 %v6054
  %v6719 = vunpack.c.h.b16 %v6054
  %v6720 = vunpack.c.l.b16 %v6055
  %v6721 = vunpack.c.h.b16 %v6055
  %v6722 = vunpack.c.l.b16 %v6056
  %v6723 = vunpack.c.h.b16 %v6056
  %v6724 = vunpack.c.l.b16 %v6057
  %v6725 = vunpack.c.h.b16 %v6057
  %v6726 = vunpack.c.l.b16 %v6058
  %v6727 = vunpack.c.h.b16 %v6058
  %v6728 = vunpack.c.l.b16 %v6059
  %v6729 = vunpack.c.h.b16 %v6059
  %v6730 = vunpack.c.l.b16 %v6060
  %v6731 = vunpack.c.h.b16 %v6060
  %v6732 = vunpack.c.l.b16 %v6061
  %v6733 = vunpack.c.h.b16 %v6061
  %v6734 = vunpack.c.l.b16 %v6062
  %v6735 = vunpack.c.h.b16 %v6062
  %v6736 = vunpack.c.l.b16 %v6063
  %v6737 = vunpack.c.h.b16 %v6063
  %v6738 = vunpack.c.l.b16 %v6064
  %v6739 = vunpack.c.h.b16 %v6064
  %v6740 = vunpack.c.l.b16 %v6065
  %v6741 = vunpack.c.h.b16 %v6065
  %v6742 = vunpack.c.l.b16 %v6066
  %v6743 = vunpack.c.h.b16 %v6066
  %v6744 = vunpack.c.l.b16 %v6067
  %v6745 = vunpack.c.h.b16 %v6067
  %v6746 = vunpack.c.l.b16 %v6068
  %v6747 = vunpack.c.h.b16 %v6068
  %v6748 = vunpack.c.l.b16 %v6069
  %v6749 = vunpack.c.h.b16 %v6069
  %v6750 = vunpack.c.l.b16 %v6070
  %v6751 = vunpack.c.h.b16 %v6070
  %v6752 = vunpack.c.l.b16 %v6071
  %v6753 = vunpack.c.h.b16 %v6071
  %v6754 = vunpack.c.l.b16 %v6072
  %v6755 = vunpack.c.h.b16 %v6072
  %v6756 = vunpack.c.l.b16 %v6073
  %v6757 = vunpack.c.h.b16 %v6073
  %v6758 = vunpack.c.l.b16 %v6074
  %v6759 = vunpack.c.h.b16 %v6074
  %v6760 = vunpack.c.l.b16 %v6075
  %v6761 = vunpack.c.h.b16 %v6075
  %v6762 = vunpack.c.l.b16 %v6076
  %v6763 = vunpack.c.h.b16 %v6076
  %v6764 = vunpack.c.l.b16 %v6077
  %v6765 = vunpack.c.h.b16 %v6077
  %v6766 = vunpack.c.l.b16 %v6078
  %v6767 = vunpack.c.h.b16 %v6078
  %v6768 = vunpack.c.l.b16 %v6079
  %v6769 = vunpack.c.h.b16 %v6079
  %v6770 = vunpack.c.l.b16 %v6080
  %v6771 = vunpack.c.h.b16 %v6080
  %v6772 = vunpack.c.l.b16 %v6081
  %v6773 = vunpack.c.h.b16 %v6081
  %v6774 = vunpack.c.l.b16 %v6082
  %v6775 = vunpack.c.h.b16 %v6082
  %v6776 = vunpack.c.l.b16 %v6083
  %v6777 = vunpack.c.h.b16 %v6083
  %v6778 = vunpack.c.l.b16 %v6084
  %v6779 = vunpack.c.h.b16 %v6084
  %v6780 = vunpack.c.l.b16 %v6085
  %v6781 = vunpack.c.h.b16 %v6085
  %v6782 = vunpack.c.l.b16 %v6086
  %v6783 = vunpack.c.h.b16 %v6086
  %v6784 = vunpack.c.l.b16 %v6087
  %v6785 = vunpack.c.h.b16 %v6087
  %v6786 = vunpack.c.l.b16 %v6088
  %v6787 = vunpack.c.h.b16 %v6088
  %v6788 = vunpack.c.l.b16 %v6089
  %v6789 = vunpack.c.h.b16 %v6089
  %v6790 = vunpack.c.l.b16 %v6090
  %v6791 = vunpack.c.h.b16 %v6090
  %v6792 = vunpack.c.l.b16 %v6091
  %v6793 = vunpack.c.h.b16 %v6091
  %v6794 = vunpack.c.l.b16 %v6092
  %v6795 = vunpack.c.h.b16 %v6092
  %v6796 = vunpack.c.l.b16 %v6093
  %v6797 = vunpack.c.h.b16 %v6093
  %v6798 = vunpack.c.l.b16 %v6094
  %v6799 = vunpack.c.h.b16 %v6094
  %v6800 = vunpack.c.l.b16 %v6095
  %v6801 = vunpack.c.h.b16 %v6095
  %v6802 = vunpack.c.l.b16 %v6096
  %v6803 = vunpack.c.h.b16 %v6096
  %v6804 = vunpack.c.l.b16 %v6097
  %v6805 = vunpack.c.h.b16 %v6097
  %v6806 = vunpack.c.l.b16 %v6098
  %v6807 = vunpack.c.h.b16 %v6098
  %v6808 = vunpack.c.l.b16 %v6099
  %v6809 = vunpack.c.h.b16 %v6099
  %v6810 = vunpack.c.l.b16 %v6100
  %v6811 = vunpack.c.h.b16 %v6100
  %v6812 = vunpack.c.l.b16 %v6101
  %v6813 = vunpack.c.h.b16 %v6101
  %v6814 = vunpack.c.l.b16 %v6102
  %v6815 = vunpack.c.h.b16 %v6102
  %v6816 = vunpack.c.l.b16 %v6103
  %v6817 = vunpack.c.h.b16 %v6103
  %v6818 = vunpack.c.l.b16 %v6104
  %v6819 = vunpack.c.h.b16 %v6104
  %v6820 = vunpack.c.l.b16 %v6105
  %v6821 = vunpack.c.h.b16 %v6105
  %v6822 = vunpack.c.l.b16 %v6106
  %v6823 = vunpack.c.h.b16 %v6106
  %v6824 = vunpack.c.l.b16 %v6107
  %v6825 = vunpack.c.h.b16 %v6107
  %v6826 = vunpack.c.l.b16 %v6108
  %v6827 = vunpack.c.h.b16 %v6108
  %v6828 = vunpack.c.l.b16 %v6109
  %v6829 = vunpack.c.h.b16 %v6109
  %v6830 = vunpack.c.l.b16 %v6110
  %v6831 = vunpack.c.h.b16 %v6110
  %v6832 = vunpack.c.l.b16 %v6111
  %v6833 = vunpack.c.h.b16 %v6111
  %v6834 = vunpack.c.l.b16 %v6112
  %v6835 = vunpack.c.h.b16 %v6112
  %v6836 = vpack.c.b16 %v6354, %v6354
  %v6837 = vpack.c.b16 %v6355, %v6355
  %v6838 = vpack.c.b16 %v6356, %v6356
  %v6839 = vpack.c.b16 %v6357, %v6357
  %v6840 = vpack.c.b16 %v6358, %v6358
  %v6841 = vpack.c.b16 %v6359, %v6359
  %v6842 = vpack.c.b16 %v6360, %v6360
  %v6843 = vpack.c.b16 %v6361, %v6361
  %v6844 = vpack.c.b16 %v6362, %v6362
  %v6845 = vpack.c.b16 %v6363, %v6363
  %v6846 = vpack.c.b16 %v6364, %v6364
  %v6847 = vpack.c.b16 %v6365, %v6365
  %v6848 = vpack.c.b16 %v6366, %v6366
  %v6849 = vpack.c.b16 %v6367, %v6367
  %v6850 = vpack.c.b16 %v6368, %v6368
  %v6851 = vpack.c.b16 %v6369, %v6369
  %v6852 = vpack.c.b16 %v6370, %v6370
  %v6853 = vpack.c.b16 %v6371, %v6371
  %v6854 = vpack.c.b16 %v6372, %v6372
  %v6855 = vpack.c.b16 %v6373, %v6373
  %v6856 = vpack.c.b16 %v6374, %v6374
  %v6857 = vpack.c.b16 %v6375, %v6375
  %v6858 = vpack.c.b16 %v6376, %v6376
  %v6859 = vpack.c.b16 %v6377, %v6377
  %v6860 = vpack.c.b16 %v6378, %v6378
  %v6861 = vpack.c.b16 %v6379, %v6379
  %v6862 = vpack.c.b16 %v6380, %v6380
  %v6863 = vpack.c.b16 %v6381, %v6381
  %v6864 = vpack.c.b16 %v6382, %v6382
  %v6865 = vpack.c.b16 %v6383, %v6383
  %v6866 = vpack.c.b16 %v6384, %v6384
  %v6867 = vpack.c.b16 %v6385, %v6385
  %v6868 = vpack.c.b16 %v6386, %v6386
  %v6869 = vpack.c.b16 %v6387, %v6387
  %v6870 = vpack.c.b16 %v6388, %v6388
  %v6871 = vpack.c.b16 %v6389, %v6389
  %v6872 = vpack.c.b16 %v6390, %v6390
  %v6873 = vpack.c.b16 %v6391, %v6391
  %v6874 = vpack.c.b16 %v6392, %v6392
  %v6875 = vpack.c.b16 %v6393, %v6393
  %v6876 = vpack.c.b16 %v6394, %v6394
  %v6877 = vpack.c.b16 %v6395, %v6395
  %v6878 = vpack.c.b16 %v6396, %v6396
  %v6879 = vpack.c.b16 %v6397, %v6397
  %v6880 = vpack.c.b16 %v6398, %v6398
  %v6881 = vpack.c.b16 %v6399, %v6399
  %v6882 = vpack.c.b16 %v6400, %v6400
  %v6883 = vpack.c.b16 %v6401, %v6401
  %v6884 = vpack.c.b16 %v6402, %v6402
  %v6885 = vpack.c.b16 %v6403, %v6403
  %v6886 = vpack.c.b16 %v6404, %v6404
  %v6887 = vpack.c.b16 %v6405, %v6405
  %v6888 = vpack.c.b16 %v6406, %v6406
  %v6889 = vpack.c.b16 %v6407, %v6407
  %v6890 = vpack.c.b16 %v6408, %v6408
  %v6891 = vpack.c.b16 %v6409, %v6409
  %v6892 = vpack.c.b16 %v6410, %v6410
  %v6893 = vpack.c.b16 %v6411, %v6411
  %v6894 = vpack.c.b16 %v6412, %v6412
  %v6895 = vpack.c.b16 %v6413, %v6413
  %v6896 = vpack.c.b16 %v6414, %v6414
  %v6897 = vpack.c.b16 %v6415, %v6415
  %v6898 = vpack.c.b16 %v6416, %v6416
  %v6899 = vpack.c.b16 %v6417, %v6417
  %v6900 = vpack.c.b16 %v6418, %v6418
  %v6901 = vpack.c.b16 %v6419, %v6419
  %v6902 = vpack.c.b16 %v6420, %v6420
  %v6903 = vpack.c.b16 %v6421, %v6421
  %v6904 = vpack.c.b16 %v6422, %v6422
  %v6905 = vpack.c.b16 %v6423, %v6423
  %v6906 = vpack.c.b16 %v6424, %v6424
  %v6907 = vpack.c.b16 %v6425, %v6425
  %v6908 = vpack.c.b16 %v6426, %v6426
  %v6909 = vpack.c.b16 %v6427, %v6427
  %v6910 = vpack.c.b16 %v6428, %v6428
  %v6911 = vpack.c.b16 %v6429, %v6429
  %v6912 = vpack.c.b16 %v6430, %v6430
  %v6913 = vpack.c.b16 %v6431, %v6431
  %v6914 = vpack.c.b16 %v6432, %v6432
  %v6915 = vpack.c.b16 %v6433, %v6433
  %v6916 = vpack.c.b16 %v6434, %v6434
  %v6917 = vpack.c.b16 %v6435, %v6435
  %v6918 = vpack.c.b16 %v6436, %v6436
  %v6919 = vpack.c.b16 %v6437, %v6437
  %v6920 = vpack.c.b16 %v6438, %v6438
  %v6921 = vpack.c.b16 %v6439, %v6439
  %v6922 = vpack.c.b16 %v6440, %v6440
  %v6923 = vpack.c.b16 %v6441, %v6441
  %v6924 = vpack.c.b16 %v6442, %v6442
  %v6925 = vpack.c.b16 %v6443, %v6443
  %v6926 = vpack.c.b16 %v6444, %v6444
  %v6927 = vpack.c.b16 %v6445, %v6445
  %v6928 = vpack.c.b16 %v6446, %v6446
  %v6929 = vpack.c.b16 %v6447, %v6447
  %v6930 = vpack.c.b16 %v6448, %v6448
  %v6931 = vpack.c.b16 %v6449, %v6449
  %v6932 = vpack.c.b16 %v6450, %v6450
  %v6933 = vpack.c.b16 %v6451, %v6451
  %v6934 = vpack.c.b16 %v6452, %v6452
  %v6935 = vpack.c.b16 %v6453, %v6453
  %v6936 = vpack.c.b16 %v6454, %v6454
  %v6937 = vpack.c.b16 %v6455, %v6455
  %v6938 = vpack.c.b16 %v6456, %v6456
  %v6939 = vpack.c.b16 %v6457, %v6457
  %v6940 = vpack.c.b16 %v6458, %v6458
  %v6941 = vpack.c.b16 %v6459, %v6459
  %v6942 = vpack.c.b16 %v6460, %v6460
  %v6943 = vpack.c.b16 %v6461, %v6461
  %v6944 = vpack.c.b16 %v6462, %v6462
  %v6945 = vpack.c.b16 %v6463, %v6463
  %v6946 = vpack.c.b16 %v6464, %v6464
  %v6947 = vpack.c.b16 %v6465, %v6465
  %v6948 = vpack.c.b16 %v6466, %v6466
  %v6949 = vpack.c.b16 %v6467, %v6467
  %v6950 = vpack.c.b16 %v6468, %v6468
  %v6951 = vpack.c.b16 %v6469, %v6469
  %v6952 = vpack.c.b16 %v6470, %v6470
  %v6953 = vpack.c.b16 %v6471, %v6471
  %v6954 = vpack.c.b16 %v6472, %v6472
  %v6955 = vpack.c.b16 %v6473, %v6473
  %v6956 = vpack.c.b16 %v6474, %v6474
  %v6957 = vpack.c.b16 %v6475, %v6475
  %v6958 = vpack.c.b16 %v6476, %v6476
  %v6959 = vpack.c.b16 %v6477, %v6477
  %v6960 = vpack.c.b16 %v6478, %v6478
  %v6961 = vpack.c.b16 %v6479, %v6479
  %v6962 = vpack.c.b16 %v6480, %v6480
  %v6963 = vpack.c.b16 %v6481, %v6481
  %v6964 = vpack.c.b16 %v6482, %v6482
  %v6965 = vpack.c.b16 %v6483, %v6483
  %v6966 = vpack.c.b16 %v6484, %v6484
  %v6967 = vpack.c.b16 %v6485, %v6485
  %v6968 = vpack.c.b16 %v6486, %v6486
  %v6969 = vpack.c.b16 %v6487, %v6487
  %v6970 = vpack.c.b16 %v6488, %v6488
  %v6971 = vpack.c.b16 %v6489, %v6489
  %v6972 = vpack.c.b16 %v6490, %v6490
  %v6973 = vpack.c.b16 %v6491, %v6491
  %v6974 = vpack.c.b16 %v6492, %v6492
  %v6975 = vpack.c.b16 %v6493, %v6493
  %v6976 = vpack.c.b16 %v6494, %v6494
  %v6977 = vpack.c.b16 %v6495, %v6495
  %v6978 = vpack.c.b16 %v6496, %v6496
  %v6979 = vpack.c.b16 %v6497, %v6497
  %v6980 = vpack.c.b16 %v6498, %v6498
  %v6981 = vpack.c.b16 %v6499, %v6499
  %v6982 = vpack.c.b16 %v6500, %v6500
  %v6983 = vpack.c.b16 %v6501, %v6501
  %v6984 = vpack.c.b16 %v6502, %v6502
  %v6985 = vpack.c.b16 %v6503, %v6503
  %v6986 = vpack.c.b16 %v6504, %v6504
  %v6987 = vpack.c.b16 %v6505, %v6505
  %v6988 = vpack.c.b16 %v6506, %v6506
  %v6989 = vpack.c.b16 %v6507, %v6507
  %v6990 = vpack.c.b16 %v6508, %v6508
  %v6991 = vpack.c.b16 %v6509, %v6509
  %v6992 = vpack.c.b16 %v6510, %v6510
  %v6993 = vpack.c.b16 %v6511, %v6511
  %v6994 = vpack.c.b16 %v6512, %v6512
  %v6995 = vpack.c.b16 %v6513, %v6513
  %v6996 = vpack.c.b16 %v6514, %v6514
  %v6997 = vpack.c.b16 %v6515, %v6515
  %v6998 = vpack.c.b16 %v6516, %v6516
  %v6999 = vpack.c.b16 %v6517, %v6517
  %v7000 = vpack.c.b16 %v6518, %v6518
  %v7001 = vpack.c.b16 %v6519, %v6519
  %v7002 = vpack.c.b16 %v6520, %v6520
  %v7003 = vpack.c.b16 %v6521, %v6521
  %v7004 = vpack.c.b16 %v6522, %v6522
  %v7005 = vpack.c.b16 %v6523, %v6523
  %v7006 = vpack.c.b16 %v6524, %v6524
  %v7007 = vpack.c.b16 %v6525, %v6525
  %v7008 = vpack.c.b16 %v6526, %v6526
  %v7009 = vpack.c.b16 %v6527, %v6527
  %v7010 = vpack.c.b16 %v6528, %v6528
  %v7011 = vpack.c.b16 %v6529, %v6529
  %v7012 = vpack.c.b16 %v6530, %v6530
  %v7013 = vpack.c.b16 %v6531, %v6531
  %v7014 = vpack.c.b16 %v6532, %v6532
  %v7015 = vpack.c.b16 %v6533, %v6533
  %v7016 = vpack.c.b16 %v6534, %v6534
  %v7017 = vpack.c.b16 %v6535, %v6535
  %v7018 = vpack.c.b16 %v6536, %v6536
  %v7019 = vpack.c.b16 %v6537, %v6537
  %v7020 = vpack.c.b16 %v6538, %v6538
  %v7021 = vpack.c.b16 %v6539, %v6539
  %v7022 = vpack.c.b16 %v6540, %v6540
  %v7023 = vpack.c.b16 %v6541, %v6541
  %v7024 = vpack.c.b16 %v6542, %v6542
  %v7025 = vpack.c.b16 %v6543, %v6543
  %v7026 = vpack.c.b16 %v6544, %v6544
  %v7027 = vpack.c.b16 %v6545, %v6545
  %v7028 = vpack.c.b16 %v6546, %v6546
  %v7029 = vpack.c.b16 %v6547, %v6547
  %v7030 = vpack.c.b16 %v6548, %v6548
  %v7031 = vpack.c.b16 %v6549, %v6549
  %v7032 = vpack.c.b16 %v6550, %v6550
  %v7033 = vpack.c.b16 %v6551, %v6551
  %v7034 = vpack.c.b16 %v6552, %v6552
  %v7035 = vpack.c.b16 %v6553, %v6553
  %v7036 = vpack.c.b16 %v6554, %v6554
  %v7037 = vpack.c.b16 %v6555, %v6555
  %v7038 = vpack.c.b16 %v6556, %v6556
  %v7039 = vpack.c.b16 %v6557, %v6557
  %v7040 = vpack.c.b16 %v6558, %v6558
  %v7041 = vpack.c.b16 %v6559, %v6559
  %v7042 = vpack.c.b16 %v6560, %v6560
  %v7043 = vpack.c.b16 %v6561, %v6561
  %v7044 = vpack.c.b16 %v6562, %v6562
  %v7045 = vpack.c.b16 %v6563, %v6563
  %v7046 = vpack.c.b16 %v6564, %v6564
  %v7047 = vpack.c.b16 %v6565, %v6565
  %v7048 = vpack.c.b16 %v6566, %v6566
  %v7049 = vpack.c.b16 %v6567, %v6567
  %v7050 = vpack.c.b16 %v6568, %v6568
  %v7051 = vpack.c.b16 %v6569, %v6569
  %v7052 = vpack.c.b16 %v6570, %v6570
  %v7053 = vpack.c.b16 %v6571, %v6571
  %v7054 = vpack.c.b16 %v6572, %v6572
  %v7055 = vpack.c.b16 %v6573, %v6573
  %v7056 = vpack.c.b16 %v6574, %v6574
  %v7057 = vpack.c.b16 %v6575, %v6575
  %v7058 = vpack.c.b16 %v6576, %v6576
  %v7059 = vpack.c.b16 %v6577, %v6577
  %v7060 = vpack.c.b16 %v6578, %v6578
  %v7061 = vpack.c.b16 %v6579, %v6579
  %v7062 = vpack.c.b16 %v6580, %v6580
  %v7063 = vpack.c.b16 %v6581, %v6581
  %v7064 = vpack.c.b16 %v6582, %v6582
  %v7065 = vpack.c.b16 %v6583, %v6583
  %v7066 = vpack.c.b16 %v6584, %v6584
  %v7067 = vpack.c.b16 %v6585, %v6585
  %v7068 = vpack.c.b16 %v6586, %v6586
  %v7069 = vpack.c.b16 %v6587, %v6587
  %v7070 = vpack.c.b16 %v6588, %v6588
  %v7071 = vpack.c.b16 %v6589, %v6589
  %v7072 = vpack.c.b16 %v6590, %v6590
  %v7073 = vpack.c.b16 %v6591, %v6591
  %v7074 = vpack.c.b16 %v6592, %v6592
  %v7075 = vpack.c.b16 %v6593, %v6593
  %v7076 = vpack.c.b16 %v6594, %v6594
  %v7077 = vpack.c.b16 %v6595, %v6595
  %v7078 = vpack.c.b16 %v6596, %v6596
  %v7079 = vpack.c.b16 %v6597, %v6597
  %v7080 = vpack.c.b16 %v6598, %v6598
  %v7081 = vpack.c.b16 %v6599, %v6599
  %v7082 = vpack.c.b16 %v6600, %v6600
  %v7083 = vpack.c.b16 %v6601, %v6601
  %v7084 = vpack.c.b16 %v6602, %v6602
  %v7085 = vpack.c.b16 %v6603, %v6603
  %v7086 = vpack.c.b16 %v6604, %v6604
  %v7087 = vpack.c.b16 %v6605, %v6605
  %v7088 = vpack.c.b16 %v6606, %v6606
  %v7089 = vpack.c.b16 %v6607, %v6607
  %v7090 = vpack.c.b16 %v6608, %v6608
  %v7091 = vpack.c.b16 %v6609, %v6609
  %v7092 = vpack.c.b16 %v6610, %v6610
  %v7093 = vpack.c.b16 %v6611, %v6611
  %v7094 = vpack.c.b16 %v6612, %v6612
  %v7095 = vpack.c.b16 %v6613, %v6613
  %v7096 = vpack.c.b16 %v6614, %v6614
  %v7097 = vpack.c.b16 %v6615, %v6615
  %v7098 = vpack.c.b16 %v6616, %v6616
  %v7099 = vpack.c.b16 %v6617, %v6617
  %v7100 = vpack.c.b16 %v6618, %v6618
  %v7101 = vpack.c.b16 %v6619, %v6619
  %v7102 = vpack.c.b16 %v6620, %v6620
  %v7103 = vpack.c.b16 %v6621, %v6621
  %v7104 = vpack.c.b16 %v6622, %v6622
  %v7105 = vpack.c.b16 %v6623, %v6623
  %v7106 = vpack.c.b16 %v6624, %v6624
  %v7107 = vpack.c.b16 %v6625, %v6625
  %v7108 = vpack.c.b16 %v6626, %v6626
  %v7109 = vpack.c.b16 %v6627, %v6627
  %v7110 = vpack.c.b16 %v6628, %v6628
  %v7111 = vpack.c.b16 %v6629, %v6629
  %v7112 = vpack.c.b16 %v6630, %v6630
  %v7113 = vpack.c.b16 %v6631, %v6631
  %v7114 = vpack.c.b16 %v6632, %v6632
  %v7115 = vpack.c.b16 %v6633, %v6633
  %v7116 = vpack.c.b16 %v6634, %v6634
  %v7117 = vpack.c.b16 %v6635, %v6635
  %v7118 = vpack.c.b16 %v6636, %v6636
  %v7119 = vpack.c.b16 %v6637, %v6637
  %v7120 = vpack.c.b16 %v6638, %v6638
  %v7121 = vpack.c.b16 %v6639, %v6639
  %v7122 = vpack.c.b16 %v6640, %v6640
  %v7123 = vpack.c.b16 %v6641, %v6641
  %v7124 = vpack.c.b16 %v6642, %v6642
  %v7125 = vpack.c.b16 %v6643, %v6643
  %v7126 = vpack.c.b16 %v6644, %v6644
  %v7127 = vpack.c.b16 %v6645, %v6645
  %v7128 = vpack.c.b16 %v6646, %v6646
  %v7129 = vpack.c.b16 %v6647, %v6647
  %v7130 = vpack.c.b16 %v6648, %v6648
  %v7131 = vpack.c.b16 %v6649, %v6649
  %v7132 = vpack.c.b16 %v6650, %v6650
  %v7133 = vpack.c.b16 %v6651, %v6651
  %v7134 = vpack.c.b16 %v6652, %v6652
  %v7135 = vpack.c.b16 %v6653, %v6653
  %v7136 = vpack.c.b16 %v6654, %v6654
  %v7137 = vpack.c.b16 %v6655, %v6655
  %v7138 = vpack.c.b16 %v6656, %v6656
  %v7139 = vpack.c.b16 %v6657, %v6657
  %v7140 = vpack.c.b16 %v6658, %v6658
  %v7141 = vpack.c.b16 %v6659, %v6659
  %v7142 = vpack.c.b16 %v6660, %v6660
  %v7143 = vpack.c.b16 %v6661, %v6661
  %v7144 = vpack.c.b16 %v6662, %v6662
  %v7145 = vpack.c.b16 %v6663, %v6663
  %v7146 = vpack.c.b16 %v6664, %v6664
  %v7147 = vpack.c.b16 %v6665, %v6665
  %v7148 = vpack.c.b16 %v6666, %v6666
  %v7149 = vpack.c.b16 %v6667, %v6667
  %v7150 = vpack.c.b16 %v6668, %v6668
  %v7151 = vpack.c.b16 %v6669, %v6669
  %v7152 = vpack.c.b16 %v6670, %v6670
  %v7153 = vpack.c.b16 %v6671, %v6671
  %v7154 = vpack.c.b16 %v6672, %v6672
  %v7155 = vpack.c.b16 %v6673, %v6673
  %v7156 = vpack.c.b16 %v6674, %v6674
  %v7157 = vpack.c.b16 %v6675, %v6675
  %v7158 = vpack.c.b16 %v6676, %v6676
  %v7159 = vpack.c.b16 %v6677, %v6677
  %v7160 = vpack.c.b16 %v6678, %v6678
  %v7161 = vpack.c.b16 %v6679, %v6679
  %v7162 = vpack.c.b16 %v6680, %v6680
  %v7163 = vpack.c.b16 %v6681, %v6681
  %v7164 = vpack.c.b16 %v6682, %v6682
  %v7165 = vpack.c.b16 %v6683, %v6683
  %v7166 = vpack.c.b16 %v6684, %v6684
  %v7167 = vpack.c.b16 %v6685, %v6685
  %v7168 = vpack.c.b16 %v6686, %v6686
  %v7169 = vpack.c.b16 %v6687, %v6687
  %v7170 = vpack.c.b16 %v6688, %v6688
  %v7171 = vpack.c.b16 %v6689, %v6689
  %v7172 = vpack.c.b16 %v6690, %v6690
  %v7173 = vpack.c.b16 %v6691, %v6691
  %v7174 = vpack.c.b16 %v6692, %v6692
  %v7175 = vpack.c.b16 %v6693, %v6693
  %v7176 = vpack.c.b16 %v6694, %v6694
  %v7177 = vpack.c.b16 %v6695, %v6695
  %v7178 = vpack.c.b16 %v6696, %v6696
  %v7179 = vpack.c.b16 %v6697, %v6697
  %v7180 = vpack.c.b16 %v6698, %v6698
  %v7181 = vpack.c.b16 %v6699, %v6699
  %v7182 = vpack.c.b16 %v6700, %v6700
  %v7183 = vpack.c.b16 %v6701, %v6701
  %v7184 = vpack.c.b16 %v6702, %v6702
  %v7185 = vpack.c.b16 %v6703, %v6703
  %v7186 = vpack.c.b16 %v6704, %v6704
  %v7187 = vpack.c.b16 %v6705, %v6705
  %v7188 = vpack.c.b16 %v6706, %v6706
  %v7189 = vpack.c.b16 %v6707, %v6707
  %v7190 = vpack.c.b16 %v6708, %v6708
  %v7191 = vpack.c.b16 %v6709, %v6709
  %v7192 = vpack.c.b16 %v6710, %v6710
  %v7193 = vpack.c.b16 %v6711, %v6711
  %v7194 = vpack.c.b16 %v6712, %v6712
  %v7195 = vpack.c.b16 %v6713, %v6713
  %v7196 = vpack.c.b16 %v6714, %v6714
  %v7197 = vpack.c.b16 %v6715, %v6715
  %v7198 = vpack.c.b16 %v6716, %v6716
  %v7199 = vpack.c.b16 %v6717, %v6717
  %v7200 = vpack.c.b16 %v6718, %v6718
  %v7201 = vpack.c.b16 %v6719, %v6719
  %v7202 = vpack.c.b16 %v6720, %v6720
  %v7203 = vpack.c.b16 %v6721, %v6721
  %v7204 = vpack.c.b16 %v6722, %v6722
  %v7205 = vpack.c.b16 %v6723, %v6723
  %v7206 = vpack.c.b16 %v6724, %v6724
  %v7207 = vpack.c.b16 %v6725, %v6725
  %v7208 = vpack.c.b16 %v6726, %v6726
  %v7209 = vpack.c.b16 %v6727, %v6727
  %v7210 = vpack.c.b16 %v6728, %v6728
  %v7211 = vpack.c.b16 %v6729, %v6729
  %v7212 = vpack.c.b16 %v6730, %v6730
  %v7213 = vpack.c.b16 %v6731, %v6731
  %v7214 = vpack.c.b16 %v6732, %v6732
  %v7215 = vpack.c.b16 %v6733, %v6733
  %v7216 = vpack.c.b16 %v6734, %v6734
  %v7217 = vpack.c.b16 %v6735, %v6735
  %v7218 = vpack.c.b16 %v6736, %v6736
  %v7219 = vpack.c.b16 %v6737, %v6737
  %v7220 = vpack.c.b16 %v6738, %v6738
  %v7221 = vpack.c.b16 %v6739, %v6739
  %v7222 = vpack.c.b16 %v6740, %v6740
  %v7223 = vpack.c.b16 %v6741, %v6741
  %v7224 = vpack.c.b16 %v6742, %v6742
  %v7225 = vpack.c.b16 %v6743, %v6743
  %v7226 = vpack.c.b16 %v6744, %v6744
  %v7227 = vpack.c.b16 %v6745, %v6745
  %v7228 = vpack.c.b16 %v6746, %v6746
  %v7229 = vpack.c.b16 %v6747, %v6747
  %v7230 = vpack.c.b16 %v6748, %v6748
  %v7231 = vpack.c.b16 %v6749, %v6749
  %v7232 = vpack.c.b16 %v6750, %v6750
  %v7233 = vpack.c.b16 %v6751, %v6751
  %v7234 = vpack.c.b16 %v6752, %v6752
  %v7235 = vpack.c.b16 %v6753, %v6753
  %v7236 = vpack.c.b16 %v6754, %v6754
  %v7237 = vpack.c.b16 %v6755, %v6755
  %v7238 = vpack.c.b16 %v6756, %v6756
  %v7239 = vpack.c.b16 %v6757, %v6757
  %v7240 = vpack.c.b16 %v6758, %v6758
  %v7241 = vpack.c.b16 %v6759, %v6759
  %v7242 = vpack.c.b16 %v6760, %v6760
  %v7243 = vpack.c.b16 %v6761, %v6761
  %v7244 = vpack.c.b16 %v6762, %v6762
  %v7245 = vpack.c.b16 %v6763, %v6763
  %v7246 = vpack.c.b16 %v6764, %v6764
  %v7247 = vpack.c.b16 %v6765, %v6765
  %v7248 = vpack.c.b16 %v6766, %v6766
  %v7249 = vpack.c.b16 %v6767, %v6767
  %v7250 = vpack.c.b16 %v6768, %v6768
  %v7251 = vpack.c.b16 %v6769, %v6769
  %v7252 = vpack.c.b16 %v6770, %v6770
  %v7253 = vpack.c.b16 %v6771, %v6771
  %v7254 = vpack.c.b16 %v6772, %v6772
  %v7255 = vpack.c.b16 %v6773, %v6773
  %v7256 = vpack.c.b16 %v6774, %v6774
  %v7257 = vpack.c.b16 %v6775, %v6775
  %v7258 = vpack.c.b16 %v6776, %v6776
  %v7259 = vpack.c.b16 %v6777, %v6777
  %v7260 = vpack.c.b16 %v6778, %v6778
  %v7261 = vpack.c.b16 %v6779, %v6779
  %v7262 = vpack.c.b16 %v6780, %v6780
  %v7263 = vpack.c.b16 %v6781, %v6781
  %v7264 = vpack.c.b16 %v6782, %v6782
  %v7265 = vpack.c.b16 %v6783, %v6783
  %v7266 = vpack.c.b16 %v6784, %v6784
  %v7267 = vpack.c.b16 %v6785, %v6785
  %v7268 = vpack.c.b16 %v6786, %v6786
  %v7269 = vpack.c.b16 %v6787, %v6787
  %v7270 = vpack.c.b16 %v6788, %v6788
  %v7271 = vpack.c.b16 %v6789, %v6789
  %v7272 = vpack.c.b16 %v6790, %v6790
  %v7273 = vpack.c.b16 %v6791, %v6791
  %v7274 = vpack.c.b16 %v6792, %v6792
  %v7275 = vpack.c.b16 %v6793, %v6793
  %v7276 = vpack.c.b16 %v6794, %v6794
  %v7277 = vpack.c.b16 %v6795, %v6795
  %v7278 = vpack.c.b16 %v6796, %v6796
  %v7279 = vpack.c.b16 %v6797, %v6797
  %v7280 = vpack.c.b16 %v6798, %v6798
  %v7281 = vpack.c.b16 %v6799, %v6799
  %v7282 = vpack.c.b16 %v6800, %v6800
  %v7283 = vpack.c.b16 %v6801, %v6801
  %v7284 = vpack.c.b16 %v6802, %v6802
  %v7285 = vpack.c.b16 %v6803, %v6803
  %v7286 = vpack.c.b16 %v6804, %v6804
  %v7287 = vpack.c.b16 %v6805, %v6805
  %v7288 = vpack.c.b16 %v6806, %v6806
  %v7289 = vpack.c.b16 %v6807, %v6807
  %v7290 = vpack.c.b16 %v6808, %v6808
  %v7291 = vpack.c.b16 %v6809, %v6809
  %v7292 = vpack.c.b16 %v6810, %v6810
  %v7293 = vpack.c.b16 %v6811, %v6811
  %v7294 = vpack.c.b16 %v6812, %v6812
  %v7295 = vpack.c.b16 %v6813, %v6813
  %v7296 = vpack.c.b16 %v6814, %v6814
  %v7297 = vpack.c.b16 %v6815, %v6815
  %v7298 = vpack.c.b16 %v6816, %v6816
  %v7299 = vpack.c.b16 %v6817, %v6817
  %v7300 = vpack.c.b16 %v6818, %v6818
  %v7301 = vpack.c.b16 %v6819, %v6819
  %v7302 = vpack.c.b16 %v6820, %v6820
  %v7303 = vpack.c.b16 %v6821, %v6821
  %v7304 = vpack.c.b16 %v6822, %v6822
  %v7305 = vpack.c.b16 %v6823, %v6823
  %v7306 = vpack.c.b16 %v6824, %v6824
  %v7307 = vpack.c.b16 %v6825, %v6825
  %v7308 = vpack.c.b16 %v6826, %v6826
  %v7309 = vpack.c.b16 %v6827, %v6827
  %v7310 = vpack.c.b16 %v6828, %v6828
  %v7311 = vpack.c.b16 %v6829, %v6829
  %v7312 = vpack.c.b16 %v6830, %v6830
  %v7313 = vpack.c.b16 %v6831, %v6831
  %v7314 = vpack.c.b16 %v6832, %v6832
  %v7315 = vpack.c.b16 %v6833, %v6833
  %v7316 = vpack.c.b16 %v6834, %v6834
  %v7317 = vpack.c.b16 %v6835, %v6835
  %vm7800 = vcmask 257024
  %7801 = vst.msk [vmem:[%s3] sm:$0xf] %vm7800, %v6836
  %7802 = vst.msk [vmem:[%s3 + $0x4] sm:$0xf] %vm7800, %v6837
  %7803 = vst.msk [vmem:[%s3 + $0x8] sm:$0xf] %vm7800, %v6838
  %7804 = vst.msk [vmem:[%s3 + $0xc] sm:$0xf] %vm7800, %v6839
  %7805 = vst.msk [vmem:[%s3 + $0x10] sm:$0xf] %vm7800, %v6840
  %7806 = vst.msk [vmem:[%s3 + $0x14] sm:$0xf] %vm7800, %v6841
  %7807 = vst.msk [vmem:[%s3 + $0x18] sm:$0xf] %vm7800, %v6842
  %7808 = vst.msk [vmem:[%s3 + $0x1c] sm:$0xf] %vm7800, %v6843
  %7809 = vst.msk [vmem:[%s3 + $0x20] sm:$0xf] %vm7800, %v6844
  %7810 = vst.msk [vmem:[%s3 + $0x24] sm:$0xf] %vm7800, %v6845
  %7811 = vst.msk [vmem:[%s3 + $0x28] sm:$0xf] %vm7800, %v6846
  %7812 = vst.msk [vmem:[%s3 + $0x2c] sm:$0xf] %vm7800, %v6847
  %7813 = vst.msk [vmem:[%s3 + $0x30] sm:$0xf] %vm7800, %v6848
  %7814 = vst.msk [vmem:[%s3 + $0x34] sm:$0xf] %vm7800, %v6849
  %7815 = vst.msk [vmem:[%s3 + $0x38] sm:$0xf] %vm7800, %v6850
  %7816 = vst.msk [vmem:[%s3 + $0x3c] sm:$0xf] %vm7800, %v6851
  %7817 = vst.msk [vmem:[%s3 + $0x40] sm:$0xf] %vm7800, %v6852
  %7818 = vst.msk [vmem:[%s3 + $0x44] sm:$0xf] %vm7800, %v6853
  %7819 = vst.msk [vmem:[%s3 + $0x48] sm:$0xf] %vm7800, %v6854
  %7820 = vst.msk [vmem:[%s3 + $0x4c] sm:$0xf] %vm7800, %v6855
  %7821 = vst.msk [vmem:[%s3 + $0x50] sm:$0xf] %vm7800, %v6856
  %7822 = vst.msk [vmem:[%s3 + $0x54] sm:$0xf] %vm7800, %v6857
  %7823 = vst.msk [vmem:[%s3 + $0x58] sm:$0xf] %vm7800, %v6858
  %7824 = vst.msk [vmem:[%s3 + $0x5c] sm:$0xf] %vm7800, %v6859
  %7825 = vst.msk [vmem:[%s3 + $0x60] sm:$0xf] %vm7800, %v6860
  %7826 = vst.msk [vmem:[%s3 + $0x64] sm:$0xf] %vm7800, %v6861
  %7827 = vst.msk [vmem:[%s3 + $0x68] sm:$0xf] %vm7800, %v6862
  %7828 = vst.msk [vmem:[%s3 + $0x6c] sm:$0xf] %vm7800, %v6863
  %7829 = vst.msk [vmem:[%s3 + $0x70] sm:$0xf] %vm7800, %v6864
  %7830 = vst.msk [vmem:[%s3 + $0x74] sm:$0xf] %vm7800, %v6865
  %7831 = vst.msk [vmem:[%s3 + $0x78] sm:$0xf] %vm7800, %v6866
  %7832 = vst.msk [vmem:[%s3 + $0x7c] sm:$0xf] %vm7800, %v6867
  %7833 = vst.msk [vmem:[%s3 + $0x80] sm:$0xf] %vm7800, %v6868
  %7834 = vst.msk [vmem:[%s3 + $0x84] sm:$0xf] %vm7800, %v6869
  %7835 = vst.msk [vmem:[%s3 + $0x88] sm:$0xf] %vm7800, %v6870
  %7836 = vst.msk [vmem:[%s3 + $0x8c] sm:$0xf] %vm7800, %v6871
  %7837 = vst.msk [vmem:[%s3 + $0x90] sm:$0xf] %vm7800, %v6872
  %7838 = vst.msk [vmem:[%s3 + $0x94] sm:$0xf] %vm7800, %v6873
  %7839 = vst.msk [vmem:[%s3 + $0x98] sm:$0xf] %vm7800, %v6874
  %7840 = vst.msk [vmem:[%s3 + $0x9c] sm:$0xf] %vm7800, %v6875
  %7841 = vst.msk [vmem:[%s3 + $0xa0] sm:$0xf] %vm7800, %v6876
  %7842 = vst.msk [vmem:[%s3 + $0xa4] sm:$0xf] %vm7800, %v6877
  %7843 = vst.msk [vmem:[%s3 + $0xa8] sm:$0xf] %vm7800, %v6878
  %7844 = vst.msk [vmem:[%s3 + $0xac] sm:$0xf] %vm7800, %v6879
  %7845 = vst.msk [vmem:[%s3 + $0xb0] sm:$0xf] %vm7800, %v6880
  %7846 = vst.msk [vmem:[%s3 + $0xb4] sm:$0xf] %vm7800, %v6881
  %7847 = vst.msk [vmem:[%s3 + $0xb8] sm:$0xf] %vm7800, %v6882
  %7848 = vst.msk [vmem:[%s3 + $0xbc] sm:$0xf] %vm7800, %v6883
  %7849 = vst.msk [vmem:[%s3 + $0xc0] sm:$0xf] %vm7800, %v6884
  %7850 = vst.msk [vmem:[%s3 + $0xc4] sm:$0xf] %vm7800, %v6885
  %7851 = vst.msk [vmem:[%s3 + $0xc8] sm:$0xf] %vm7800, %v6886
  %7852 = vst.msk [vmem:[%s3 + $0xcc] sm:$0xf] %vm7800, %v6887
  %7853 = vst.msk [vmem:[%s3 + $0xd0] sm:$0xf] %vm7800, %v6888
  %7854 = vst.msk [vmem:[%s3 + $0xd4] sm:$0xf] %vm7800, %v6889
  %7855 = vst.msk [vmem:[%s3 + $0xd8] sm:$0xf] %vm7800, %v6890
  %7856 = vst.msk [vmem:[%s3 + $0xdc] sm:$0xf] %vm7800, %v6891
  %7857 = vst.msk [vmem:[%s3 + $0xe0] sm:$0xf] %vm7800, %v6892
  %7858 = vst.msk [vmem:[%s3 + $0xe4] sm:$0xf] %vm7800, %v6893
  %7859 = vst.msk [vmem:[%s3 + $0xe8] sm:$0xf] %vm7800, %v6894
  %7860 = vst.msk [vmem:[%s3 + $0xec] sm:$0xf] %vm7800, %v6895
  %7861 = vst.msk [vmem:[%s3 + $0xf0] sm:$0xf] %vm7800, %v6896
  %7862 = vst.msk [vmem:[%s3 + $0xf4] sm:$0xf] %vm7800, %v6897
  %7863 = vst.msk [vmem:[%s3 + $0xf8] sm:$0xf] %vm7800, %v6898
  %7864 = vst.msk [vmem:[%s3 + $0xfc] sm:$0xf] %vm7800, %v6899
  %7865 = vst.msk [vmem:[%s3 + $0x100] sm:$0xf] %vm7800, %v6900
  %7866 = vst.msk [vmem:[%s3 + $0x104] sm:$0xf] %vm7800, %v6901
  %7867 = vst.msk [vmem:[%s3 + $0x108] sm:$0xf] %vm7800, %v6902
  %7868 = vst.msk [vmem:[%s3 + $0x10c] sm:$0xf] %vm7800, %v6903
  %7869 = vst.msk [vmem:[%s3 + $0x110] sm:$0xf] %vm7800, %v6904
  %7870 = vst.msk [vmem:[%s3 + $0x114] sm:$0xf] %vm7800, %v6905
  %7871 = vst.msk [vmem:[%s3 + $0x118] sm:$0xf] %vm7800, %v6906
  %7872 = vst.msk [vmem:[%s3 + $0x11c] sm:$0xf] %vm7800, %v6907
  %7873 = vst.msk [vmem:[%s3 + $0x120] sm:$0xf] %vm7800, %v6908
  %7874 = vst.msk [vmem:[%s3 + $0x124] sm:$0xf] %vm7800, %v6909
  %7875 = vst.msk [vmem:[%s3 + $0x128] sm:$0xf] %vm7800, %v6910
  %7876 = vst.msk [vmem:[%s3 + $0x12c] sm:$0xf] %vm7800, %v6911
  %7877 = vst.msk [vmem:[%s3 + $0x130] sm:$0xf] %vm7800, %v6912
  %7878 = vst.msk [vmem:[%s3 + $0x134] sm:$0xf] %vm7800, %v6913
  %7879 = vst.msk [vmem:[%s3 + $0x138] sm:$0xf] %vm7800, %v6914
  %7880 = vst.msk [vmem:[%s3 + $0x13c] sm:$0xf] %vm7800, %v6915
  %7881 = vst.msk [vmem:[%s3 + $0x140] sm:$0xf] %vm7800, %v6916
  %7882 = vst.msk [vmem:[%s3 + $0x144] sm:$0xf] %vm7800, %v6917
  %7883 = vst.msk [vmem:[%s3 + $0x148] sm:$0xf] %vm7800, %v6918
  %7884 = vst.msk [vmem:[%s3 + $0x14c] sm:$0xf] %vm7800, %v6919
  %7885 = vst.msk [vmem:[%s3 + $0x150] sm:$0xf] %vm7800, %v6920
  %7886 = vst.msk [vmem:[%s3 + $0x154] sm:$0xf] %vm7800, %v6921
  %7887 = vst.msk [vmem:[%s3 + $0x158] sm:$0xf] %vm7800, %v6922
  %7888 = vst.msk [vmem:[%s3 + $0x15c] sm:$0xf] %vm7800, %v6923
  %7889 = vst.msk [vmem:[%s3 + $0x160] sm:$0xf] %vm7800, %v6924
  %7890 = vst.msk [vmem:[%s3 + $0x164] sm:$0xf] %vm7800, %v6925
  %7891 = vst.msk [vmem:[%s3 + $0x168] sm:$0xf] %vm7800, %v6926
  %7892 = vst.msk [vmem:[%s3 + $0x16c] sm:$0xf] %vm7800, %v6927
  %7893 = vst.msk [vmem:[%s3 + $0x170] sm:$0xf] %vm7800, %v6928
  %7894 = vst.msk [vmem:[%s3 + $0x174] sm:$0xf] %vm7800, %v6929
  %7895 = vst.msk [vmem:[%s3 + $0x178] sm:$0xf] %vm7800, %v6930
  %7896 = vst.msk [vmem:[%s3 + $0x17c] sm:$0xf] %vm7800, %v6931
  %7897 = vst.msk [vmem:[%s3 + $0x180] sm:$0xf] %vm7800, %v6932
  %7898 = vst.msk [vmem:[%s3 + $0x184] sm:$0xf] %vm7800, %v6933
  %7899 = vst.msk [vmem:[%s3 + $0x188] sm:$0xf] %vm7800, %v6934
  %7900 = vst.msk [vmem:[%s3 + $0x18c] sm:$0xf] %vm7800, %v6935
  %7901 = vst.msk [vmem:[%s3 + $0x190] sm:$0xf] %vm7800, %v6936
  %7902 = vst.msk [vmem:[%s3 + $0x194] sm:$0xf] %vm7800, %v6937
  %7903 = vst.msk [vmem:[%s3 + $0x198] sm:$0xf] %vm7800, %v6938
  %7904 = vst.msk [vmem:[%s3 + $0x19c] sm:$0xf] %vm7800, %v6939
  %7905 = vst.msk [vmem:[%s3 + $0x1a0] sm:$0xf] %vm7800, %v6940
  %7906 = vst.msk [vmem:[%s3 + $0x1a4] sm:$0xf] %vm7800, %v6941
  %7907 = vst.msk [vmem:[%s3 + $0x1a8] sm:$0xf] %vm7800, %v6942
  %7908 = vst.msk [vmem:[%s3 + $0x1ac] sm:$0xf] %vm7800, %v6943
  %7909 = vst.msk [vmem:[%s3 + $0x1b0] sm:$0xf] %vm7800, %v6944
  %7910 = vst.msk [vmem:[%s3 + $0x1b4] sm:$0xf] %vm7800, %v6945
  %7911 = vst.msk [vmem:[%s3 + $0x1b8] sm:$0xf] %vm7800, %v6946
  %7912 = vst.msk [vmem:[%s3 + $0x1bc] sm:$0xf] %vm7800, %v6947
  %7913 = vst.msk [vmem:[%s3 + $0x1c0] sm:$0xf] %vm7800, %v6948
  %7914 = vst.msk [vmem:[%s3 + $0x1c4] sm:$0xf] %vm7800, %v6949
  %7915 = vst.msk [vmem:[%s3 + $0x1c8] sm:$0xf] %vm7800, %v6950
  %7916 = vst.msk [vmem:[%s3 + $0x1cc] sm:$0xf] %vm7800, %v6951
  %7917 = vst.msk [vmem:[%s3 + $0x1d0] sm:$0xf] %vm7800, %v6952
  %7918 = vst.msk [vmem:[%s3 + $0x1d4] sm:$0xf] %vm7800, %v6953
  %7919 = vst.msk [vmem:[%s3 + $0x1d8] sm:$0xf] %vm7800, %v6954
  %7920 = vst.msk [vmem:[%s3 + $0x1dc] sm:$0xf] %vm7800, %v6955
  %7921 = vst.msk [vmem:[%s3 + $0x1e0] sm:$0xf] %vm7800, %v6956
  %7922 = vst.msk [vmem:[%s3 + $0x1e4] sm:$0xf] %vm7800, %v6957
  %7923 = vst.msk [vmem:[%s3 + $0x1e8] sm:$0xf] %vm7800, %v6958
  %7924 = vst.msk [vmem:[%s3 + $0x1ec] sm:$0xf] %vm7800, %v6959
  %7925 = vst.msk [vmem:[%s3 + $0x1f0] sm:$0xf] %vm7800, %v6960
  %7926 = vst.msk [vmem:[%s3 + $0x1f4] sm:$0xf] %vm7800, %v6961
  %7927 = vst.msk [vmem:[%s3 + $0x1f8] sm:$0xf] %vm7800, %v6962
  %7928 = vst.msk [vmem:[%s3 + $0x1fc] sm:$0xf] %vm7800, %v6963
  %7929 = vst.msk [vmem:[%s3 + $0x200] sm:$0xf] %vm7800, %v6964
  %7930 = vst.msk [vmem:[%s3 + $0x204] sm:$0xf] %vm7800, %v6965
  %7931 = vst.msk [vmem:[%s3 + $0x208] sm:$0xf] %vm7800, %v6966
  %7932 = vst.msk [vmem:[%s3 + $0x20c] sm:$0xf] %vm7800, %v6967
  %7933 = vst.msk [vmem:[%s3 + $0x210] sm:$0xf] %vm7800, %v6968
  %7934 = vst.msk [vmem:[%s3 + $0x214] sm:$0xf] %vm7800, %v6969
  %7935 = vst.msk [vmem:[%s3 + $0x218] sm:$0xf] %vm7800, %v6970
  %7936 = vst.msk [vmem:[%s3 + $0x21c] sm:$0xf] %vm7800, %v6971
  %7937 = vst.msk [vmem:[%s3 + $0x220] sm:$0xf] %vm7800, %v6972
  %7938 = vst.msk [vmem:[%s3 + $0x224] sm:$0xf] %vm7800, %v6973
  %7939 = vst.msk [vmem:[%s3 + $0x228] sm:$0xf] %vm7800, %v6974
  %7940 = vst.msk [vmem:[%s3 + $0x22c] sm:$0xf] %vm7800, %v6975
  %7941 = vst.msk [vmem:[%s3 + $0x230] sm:$0xf] %vm7800, %v6976
  %7942 = vst.msk [vmem:[%s3 + $0x234] sm:$0xf] %vm7800, %v6977
  %7943 = vst.msk [vmem:[%s3 + $0x238] sm:$0xf] %vm7800, %v6978
  %7944 = vst.msk [vmem:[%s3 + $0x23c] sm:$0xf] %vm7800, %v6979
  %7945 = vst.msk [vmem:[%s3 + $0x240] sm:$0xf] %vm7800, %v6980
  %7946 = vst.msk [vmem:[%s3 + $0x244] sm:$0xf] %vm7800, %v6981
  %7947 = vst.msk [vmem:[%s3 + $0x248] sm:$0xf] %vm7800, %v6982
  %7948 = vst.msk [vmem:[%s3 + $0x24c] sm:$0xf] %vm7800, %v6983
  %7949 = vst.msk [vmem:[%s3 + $0x250] sm:$0xf] %vm7800, %v6984
  %7950 = vst.msk [vmem:[%s3 + $0x254] sm:$0xf] %vm7800, %v6985
  %7951 = vst.msk [vmem:[%s3 + $0x258] sm:$0xf] %vm7800, %v6986
  %7952 = vst.msk [vmem:[%s3 + $0x25c] sm:$0xf] %vm7800, %v6987
  %7953 = vst.msk [vmem:[%s3 + $0x260] sm:$0xf] %vm7800, %v6988
  %7954 = vst.msk [vmem:[%s3 + $0x264] sm:$0xf] %vm7800, %v6989
  %7955 = vst.msk [vmem:[%s3 + $0x268] sm:$0xf] %vm7800, %v6990
  %7956 = vst.msk [vmem:[%s3 + $0x26c] sm:$0xf] %vm7800, %v6991
  %7957 = vst.msk [vmem:[%s3 + $0x270] sm:$0xf] %vm7800, %v6992
  %7958 = vst.msk [vmem:[%s3 + $0x274] sm:$0xf] %vm7800, %v6993
  %7959 = vst.msk [vmem:[%s3 + $0x278] sm:$0xf] %vm7800, %v6994
  %7960 = vst.msk [vmem:[%s3 + $0x27c] sm:$0xf] %vm7800, %v6995
  %7961 = vst.msk [vmem:[%s3 + $0x280] sm:$0xf] %vm7800, %v6996
  %7962 = vst.msk [vmem:[%s3 + $0x284] sm:$0xf] %vm7800, %v6997
  %7963 = vst.msk [vmem:[%s3 + $0x288] sm:$0xf] %vm7800, %v6998
  %7964 = vst.msk [vmem:[%s3 + $0x28c] sm:$0xf] %vm7800, %v6999
  %7965 = vst.msk [vmem:[%s3 + $0x290] sm:$0xf] %vm7800, %v7000
  %7966 = vst.msk [vmem:[%s3 + $0x294] sm:$0xf] %vm7800, %v7001
  %7967 = vst.msk [vmem:[%s3 + $0x298] sm:$0xf] %vm7800, %v7002
  %7968 = vst.msk [vmem:[%s3 + $0x29c] sm:$0xf] %vm7800, %v7003
  %7969 = vst.msk [vmem:[%s3 + $0x2a0] sm:$0xf] %vm7800, %v7004
  %7970 = vst.msk [vmem:[%s3 + $0x2a4] sm:$0xf] %vm7800, %v7005
  %7971 = vst.msk [vmem:[%s3 + $0x2a8] sm:$0xf] %vm7800, %v7006
  %7972 = vst.msk [vmem:[%s3 + $0x2ac] sm:$0xf] %vm7800, %v7007
  %7973 = vst.msk [vmem:[%s3 + $0x2b0] sm:$0xf] %vm7800, %v7008
  %7974 = vst.msk [vmem:[%s3 + $0x2b4] sm:$0xf] %vm7800, %v7009
  %7975 = vst.msk [vmem:[%s3 + $0x2b8] sm:$0xf] %vm7800, %v7010
  %7976 = vst.msk [vmem:[%s3 + $0x2bc] sm:$0xf] %vm7800, %v7011
  %7977 = vst.msk [vmem:[%s3 + $0x2c0] sm:$0xf] %vm7800, %v7012
  %7978 = vst.msk [vmem:[%s3 + $0x2c4] sm:$0xf] %vm7800, %v7013
  %7979 = vst.msk [vmem:[%s3 + $0x2c8] sm:$0xf] %vm7800, %v7014
  %7980 = vst.msk [vmem:[%s3 + $0x2cc] sm:$0xf] %vm7800, %v7015
  %7981 = vst.msk [vmem:[%s3 + $0x2d0] sm:$0xf] %vm7800, %v7016
  %7982 = vst.msk [vmem:[%s3 + $0x2d4] sm:$0xf] %vm7800, %v7017
  %7983 = vst.msk [vmem:[%s3 + $0x2d8] sm:$0xf] %vm7800, %v7018
  %7984 = vst.msk [vmem:[%s3 + $0x2dc] sm:$0xf] %vm7800, %v7019
  %7985 = vst.msk [vmem:[%s3 + $0x2e0] sm:$0xf] %vm7800, %v7020
  %7986 = vst.msk [vmem:[%s3 + $0x2e4] sm:$0xf] %vm7800, %v7021
  %7987 = vst.msk [vmem:[%s3 + $0x2e8] sm:$0xf] %vm7800, %v7022
  %7988 = vst.msk [vmem:[%s3 + $0x2ec] sm:$0xf] %vm7800, %v7023
  %7989 = vst.msk [vmem:[%s3 + $0x2f0] sm:$0xf] %vm7800, %v7024
  %7990 = vst.msk [vmem:[%s3 + $0x2f4] sm:$0xf] %vm7800, %v7025
  %7991 = vst.msk [vmem:[%s3 + $0x2f8] sm:$0xf] %vm7800, %v7026
  %7992 = vst.msk [vmem:[%s3 + $0x2fc] sm:$0xf] %vm7800, %v7027
  %7993 = vst.msk [vmem:[%s3 + $0x300] sm:$0xf] %vm7800, %v7028
  %7994 = vst.msk [vmem:[%s3 + $0x304] sm:$0xf] %vm7800, %v7029
  %7995 = vst.msk [vmem:[%s3 + $0x308] sm:$0xf] %vm7800, %v7030
  %7996 = vst.msk [vmem:[%s3 + $0x30c] sm:$0xf] %vm7800, %v7031
  %7997 = vst.msk [vmem:[%s3 + $0x310] sm:$0xf] %vm7800, %v7032
  %7998 = vst.msk [vmem:[%s3 + $0x314] sm:$0xf] %vm7800, %v7033
  %7999 = vst.msk [vmem:[%s3 + $0x318] sm:$0xf] %vm7800, %v7034
  %8000 = vst.msk [vmem:[%s3 + $0x31c] sm:$0xf] %vm7800, %v7035
  %8001 = vst.msk [vmem:[%s3 + $0x320] sm:$0xf] %vm7800, %v7036
  %8002 = vst.msk [vmem:[%s3 + $0x324] sm:$0xf] %vm7800, %v7037
  %8003 = vst.msk [vmem:[%s3 + $0x328] sm:$0xf] %vm7800, %v7038
  %8004 = vst.msk [vmem:[%s3 + $0x32c] sm:$0xf] %vm7800, %v7039
  %8005 = vst.msk [vmem:[%s3 + $0x330] sm:$0xf] %vm7800, %v7040
  %8006 = vst.msk [vmem:[%s3 + $0x334] sm:$0xf] %vm7800, %v7041
  %8007 = vst.msk [vmem:[%s3 + $0x338] sm:$0xf] %vm7800, %v7042
  %8008 = vst.msk [vmem:[%s3 + $0x33c] sm:$0xf] %vm7800, %v7043
  %8009 = vst.msk [vmem:[%s3 + $0x340] sm:$0xf] %vm7800, %v7044
  %8010 = vst.msk [vmem:[%s3 + $0x344] sm:$0xf] %vm7800, %v7045
  %8011 = vst.msk [vmem:[%s3 + $0x348] sm:$0xf] %vm7800, %v7046
  %8012 = vst.msk [vmem:[%s3 + $0x34c] sm:$0xf] %vm7800, %v7047
  %8013 = vst.msk [vmem:[%s3 + $0x350] sm:$0xf] %vm7800, %v7048
  %8014 = vst.msk [vmem:[%s3 + $0x354] sm:$0xf] %vm7800, %v7049
  %8015 = vst.msk [vmem:[%s3 + $0x358] sm:$0xf] %vm7800, %v7050
  %8016 = vst.msk [vmem:[%s3 + $0x35c] sm:$0xf] %vm7800, %v7051
  %8017 = vst.msk [vmem:[%s3 + $0x360] sm:$0xf] %vm7800, %v7052
  %8018 = vst.msk [vmem:[%s3 + $0x364] sm:$0xf] %vm7800, %v7053
  %8019 = vst.msk [vmem:[%s3 + $0x368] sm:$0xf] %vm7800, %v7054
  %8020 = vst.msk [vmem:[%s3 + $0x36c] sm:$0xf] %vm7800, %v7055
  %8021 = vst.msk [vmem:[%s3 + $0x370] sm:$0xf] %vm7800, %v7056
  %8022 = vst.msk [vmem:[%s3 + $0x374] sm:$0xf] %vm7800, %v7057
  %8023 = vst.msk [vmem:[%s3 + $0x378] sm:$0xf] %vm7800, %v7058
  %8024 = vst.msk [vmem:[%s3 + $0x37c] sm:$0xf] %vm7800, %v7059
  %8025 = vst.msk [vmem:[%s3 + $0x380] sm:$0xf] %vm7800, %v7060
  %8026 = vst.msk [vmem:[%s3 + $0x384] sm:$0xf] %vm7800, %v7061
  %8027 = vst.msk [vmem:[%s3 + $0x388] sm:$0xf] %vm7800, %v7062
  %8028 = vst.msk [vmem:[%s3 + $0x38c] sm:$0xf] %vm7800, %v7063
  %8029 = vst.msk [vmem:[%s3 + $0x390] sm:$0xf] %vm7800, %v7064
  %8030 = vst.msk [vmem:[%s3 + $0x394] sm:$0xf] %vm7800, %v7065
  %8031 = vst.msk [vmem:[%s3 + $0x398] sm:$0xf] %vm7800, %v7066
  %8032 = vst.msk [vmem:[%s3 + $0x39c] sm:$0xf] %vm7800, %v7067
  %8033 = vst.msk [vmem:[%s3 + $0x3a0] sm:$0xf] %vm7800, %v7068
  %8034 = vst.msk [vmem:[%s3 + $0x3a4] sm:$0xf] %vm7800, %v7069
  %8035 = vst.msk [vmem:[%s3 + $0x3a8] sm:$0xf] %vm7800, %v7070
  %8036 = vst.msk [vmem:[%s3 + $0x3ac] sm:$0xf] %vm7800, %v7071
  %8037 = vst.msk [vmem:[%s3 + $0x3b0] sm:$0xf] %vm7800, %v7072
  %8038 = vst.msk [vmem:[%s3 + $0x3b4] sm:$0xf] %vm7800, %v7073
  %8039 = vst.msk [vmem:[%s3 + $0x3b8] sm:$0xf] %vm7800, %v7074
  %8040 = vst.msk [vmem:[%s3 + $0x3bc] sm:$0xf] %vm7800, %v7075
  %8041 = vst.msk [vmem:[%s3 + $0x3c0] sm:$0xf] %vm7800, %v7076
  %8042 = vst.msk [vmem:[%s3 + $0x3c4] sm:$0xf] %vm7800, %v7077
  %8043 = vst.msk [vmem:[%s3 + $0x3c8] sm:$0xf] %vm7800, %v7078
  %8044 = vst.msk [vmem:[%s3 + $0x3cc] sm:$0xf] %vm7800, %v7079
  %8045 = vst.msk [vmem:[%s3 + $0x3d0] sm:$0xf] %vm7800, %v7080
  %8046 = vst.msk [vmem:[%s3 + $0x3d4] sm:$0xf] %vm7800, %v7081
  %8047 = vst.msk [vmem:[%s3 + $0x3d8] sm:$0xf] %vm7800, %v7082
  %8048 = vst.msk [vmem:[%s3 + $0x3dc] sm:$0xf] %vm7800, %v7083
  %8049 = vst.msk [vmem:[%s3 + $0x3e0] sm:$0xf] %vm7800, %v7084
  %8050 = vst.msk [vmem:[%s3 + $0x3e4] sm:$0xf] %vm7800, %v7085
  %8051 = vst.msk [vmem:[%s3 + $0x3e8] sm:$0xf] %vm7800, %v7086
  %8052 = vst.msk [vmem:[%s3 + $0x3ec] sm:$0xf] %vm7800, %v7087
  %8053 = vst.msk [vmem:[%s3 + $0x3f0] sm:$0xf] %vm7800, %v7088
  %8054 = vst.msk [vmem:[%s3 + $0x3f4] sm:$0xf] %vm7800, %v7089
  %8055 = vst.msk [vmem:[%s3 + $0x3f8] sm:$0xf] %vm7800, %v7090
  %8056 = vst.msk [vmem:[%s3 + $0x3fc] sm:$0xf] %vm7800, %v7091
  %8057 = vst.msk [vmem:[%s3 + $0x400] sm:$0xf] %vm7800, %v7092
  %8058 = vst.msk [vmem:[%s3 + $0x404] sm:$0xf] %vm7800, %v7093
  %8059 = vst.msk [vmem:[%s3 + $0x408] sm:$0xf] %vm7800, %v7094
  %8060 = vst.msk [vmem:[%s3 + $0x40c] sm:$0xf] %vm7800, %v7095
  %8061 = vst.msk [vmem:[%s3 + $0x410] sm:$0xf] %vm7800, %v7096
  %8062 = vst.msk [vmem:[%s3 + $0x414] sm:$0xf] %vm7800, %v7097
  %8063 = vst.msk [vmem:[%s3 + $0x418] sm:$0xf] %vm7800, %v7098
  %8064 = vst.msk [vmem:[%s3 + $0x41c] sm:$0xf] %vm7800, %v7099
  %8065 = vst.msk [vmem:[%s3 + $0x420] sm:$0xf] %vm7800, %v7100
  %8066 = vst.msk [vmem:[%s3 + $0x424] sm:$0xf] %vm7800, %v7101
  %8067 = vst.msk [vmem:[%s3 + $0x428] sm:$0xf] %vm7800, %v7102
  %8068 = vst.msk [vmem:[%s3 + $0x42c] sm:$0xf] %vm7800, %v7103
  %8069 = vst.msk [vmem:[%s3 + $0x430] sm:$0xf] %vm7800, %v7104
  %8070 = vst.msk [vmem:[%s3 + $0x434] sm:$0xf] %vm7800, %v7105
  %8071 = vst.msk [vmem:[%s3 + $0x438] sm:$0xf] %vm7800, %v7106
  %8072 = vst.msk [vmem:[%s3 + $0x43c] sm:$0xf] %vm7800, %v7107
  %8073 = vst.msk [vmem:[%s3 + $0x440] sm:$0xf] %vm7800, %v7108
  %8074 = vst.msk [vmem:[%s3 + $0x444] sm:$0xf] %vm7800, %v7109
  %8075 = vst.msk [vmem:[%s3 + $0x448] sm:$0xf] %vm7800, %v7110
  %8076 = vst.msk [vmem:[%s3 + $0x44c] sm:$0xf] %vm7800, %v7111
  %8077 = vst.msk [vmem:[%s3 + $0x450] sm:$0xf] %vm7800, %v7112
  %8078 = vst.msk [vmem:[%s3 + $0x454] sm:$0xf] %vm7800, %v7113
  %8079 = vst.msk [vmem:[%s3 + $0x458] sm:$0xf] %vm7800, %v7114
  %8080 = vst.msk [vmem:[%s3 + $0x45c] sm:$0xf] %vm7800, %v7115
  %8081 = vst.msk [vmem:[%s3 + $0x460] sm:$0xf] %vm7800, %v7116
  %8082 = vst.msk [vmem:[%s3 + $0x464] sm:$0xf] %vm7800, %v7117
  %8083 = vst.msk [vmem:[%s3 + $0x468] sm:$0xf] %vm7800, %v7118
  %8084 = vst.msk [vmem:[%s3 + $0x46c] sm:$0xf] %vm7800, %v7119
  %8085 = vst.msk [vmem:[%s3 + $0x470] sm:$0xf] %vm7800, %v7120
  %8086 = vst.msk [vmem:[%s3 + $0x474] sm:$0xf] %vm7800, %v7121
  %8087 = vst.msk [vmem:[%s3 + $0x478] sm:$0xf] %vm7800, %v7122
  %8088 = vst.msk [vmem:[%s3 + $0x47c] sm:$0xf] %vm7800, %v7123
  %8089 = vst.msk [vmem:[%s3 + $0x480] sm:$0xf] %vm7800, %v7124
  %8090 = vst.msk [vmem:[%s3 + $0x484] sm:$0xf] %vm7800, %v7125
  %8091 = vst.msk [vmem:[%s3 + $0x488] sm:$0xf] %vm7800, %v7126
  %8092 = vst.msk [vmem:[%s3 + $0x48c] sm:$0xf] %vm7800, %v7127
  %8093 = vst.msk [vmem:[%s3 + $0x490] sm:$0xf] %vm7800, %v7128
  %8094 = vst.msk [vmem:[%s3 + $0x494] sm:$0xf] %vm7800, %v7129
  %8095 = vst.msk [vmem:[%s3 + $0x498] sm:$0xf] %vm7800, %v7130
  %8096 = vst.msk [vmem:[%s3 + $0x49c] sm:$0xf] %vm7800, %v7131
  %8097 = vst.msk [vmem:[%s3 + $0x4a0] sm:$0xf] %vm7800, %v7132
  %8098 = vst.msk [vmem:[%s3 + $0x4a4] sm:$0xf] %vm7800, %v7133
  %8099 = vst.msk [vmem:[%s3 + $0x4a8] sm:$0xf] %vm7800, %v7134
  %8100 = vst.msk [vmem:[%s3 + $0x4ac] sm:$0xf] %vm7800, %v7135
  %8101 = vst.msk [vmem:[%s3 + $0x4b0] sm:$0xf] %vm7800, %v7136
  %8102 = vst.msk [vmem:[%s3 + $0x4b4] sm:$0xf] %vm7800, %v7137
  %8103 = vst.msk [vmem:[%s3 + $0x4b8] sm:$0xf] %vm7800, %v7138
  %8104 = vst.msk [vmem:[%s3 + $0x4bc] sm:$0xf] %vm7800, %v7139
  %8105 = vst.msk [vmem:[%s3 + $0x4c0] sm:$0xf] %vm7800, %v7140
  %8106 = vst.msk [vmem:[%s3 + $0x4c4] sm:$0xf] %vm7800, %v7141
  %8107 = vst.msk [vmem:[%s3 + $0x4c8] sm:$0xf] %vm7800, %v7142
  %8108 = vst.msk [vmem:[%s3 + $0x4cc] sm:$0xf] %vm7800, %v7143
  %8109 = vst.msk [vmem:[%s3 + $0x4d0] sm:$0xf] %vm7800, %v7144
  %8110 = vst.msk [vmem:[%s3 + $0x4d4] sm:$0xf] %vm7800, %v7145
  %8111 = vst.msk [vmem:[%s3 + $0x4d8] sm:$0xf] %vm7800, %v7146
  %8112 = vst.msk [vmem:[%s3 + $0x4dc] sm:$0xf] %vm7800, %v7147
  %8113 = vst.msk [vmem:[%s3 + $0x4e0] sm:$0xf] %vm7800, %v7148
  %8114 = vst.msk [vmem:[%s3 + $0x4e4] sm:$0xf] %vm7800, %v7149
  %8115 = vst.msk [vmem:[%s3 + $0x4e8] sm:$0xf] %vm7800, %v7150
  %8116 = vst.msk [vmem:[%s3 + $0x4ec] sm:$0xf] %vm7800, %v7151
  %8117 = vst.msk [vmem:[%s3 + $0x4f0] sm:$0xf] %vm7800, %v7152
  %8118 = vst.msk [vmem:[%s3 + $0x4f4] sm:$0xf] %vm7800, %v7153
  %8119 = vst.msk [vmem:[%s3 + $0x4f8] sm:$0xf] %vm7800, %v7154
  %8120 = vst.msk [vmem:[%s3 + $0x4fc] sm:$0xf] %vm7800, %v7155
  %8121 = vst.msk [vmem:[%s3 + $0x500] sm:$0xf] %vm7800, %v7156
  %8122 = vst.msk [vmem:[%s3 + $0x504] sm:$0xf] %vm7800, %v7157
  %8123 = vst.msk [vmem:[%s3 + $0x508] sm:$0xf] %vm7800, %v7158
  %8124 = vst.msk [vmem:[%s3 + $0x50c] sm:$0xf] %vm7800, %v7159
  %8125 = vst.msk [vmem:[%s3 + $0x510] sm:$0xf] %vm7800, %v7160
  %8126 = vst.msk [vmem:[%s3 + $0x514] sm:$0xf] %vm7800, %v7161
  %8127 = vst.msk [vmem:[%s3 + $0x518] sm:$0xf] %vm7800, %v7162
  %8128 = vst.msk [vmem:[%s3 + $0x51c] sm:$0xf] %vm7800, %v7163
  %8129 = vst.msk [vmem:[%s3 + $0x520] sm:$0xf] %vm7800, %v7164
  %8130 = vst.msk [vmem:[%s3 + $0x524] sm:$0xf] %vm7800, %v7165
  %8131 = vst.msk [vmem:[%s3 + $0x528] sm:$0xf] %vm7800, %v7166
  %8132 = vst.msk [vmem:[%s3 + $0x52c] sm:$0xf] %vm7800, %v7167
  %8133 = vst.msk [vmem:[%s3 + $0x530] sm:$0xf] %vm7800, %v7168
  %8134 = vst.msk [vmem:[%s3 + $0x534] sm:$0xf] %vm7800, %v7169
  %8135 = vst.msk [vmem:[%s3 + $0x538] sm:$0xf] %vm7800, %v7170
  %8136 = vst.msk [vmem:[%s3 + $0x53c] sm:$0xf] %vm7800, %v7171
  %8137 = vst.msk [vmem:[%s3 + $0x540] sm:$0xf] %vm7800, %v7172
  %8138 = vst.msk [vmem:[%s3 + $0x544] sm:$0xf] %vm7800, %v7173
  %8139 = vst.msk [vmem:[%s3 + $0x548] sm:$0xf] %vm7800, %v7174
  %8140 = vst.msk [vmem:[%s3 + $0x54c] sm:$0xf] %vm7800, %v7175
  %8141 = vst.msk [vmem:[%s3 + $0x550] sm:$0xf] %vm7800, %v7176
  %8142 = vst.msk [vmem:[%s3 + $0x554] sm:$0xf] %vm7800, %v7177
  %8143 = vst.msk [vmem:[%s3 + $0x558] sm:$0xf] %vm7800, %v7178
  %8144 = vst.msk [vmem:[%s3 + $0x55c] sm:$0xf] %vm7800, %v7179
  %8145 = vst.msk [vmem:[%s3 + $0x560] sm:$0xf] %vm7800, %v7180
  %8146 = vst.msk [vmem:[%s3 + $0x564] sm:$0xf] %vm7800, %v7181
  %8147 = vst.msk [vmem:[%s3 + $0x568] sm:$0xf] %vm7800, %v7182
  %8148 = vst.msk [vmem:[%s3 + $0x56c] sm:$0xf] %vm7800, %v7183
  %8149 = vst.msk [vmem:[%s3 + $0x570] sm:$0xf] %vm7800, %v7184
  %8150 = vst.msk [vmem:[%s3 + $0x574] sm:$0xf] %vm7800, %v7185
  %8151 = vst.msk [vmem:[%s3 + $0x578] sm:$0xf] %vm7800, %v7186
  %8152 = vst.msk [vmem:[%s3 + $0x57c] sm:$0xf] %vm7800, %v7187
  %8153 = vst.msk [vmem:[%s3 + $0x580] sm:$0xf] %vm7800, %v7188
  %8154 = vst.msk [vmem:[%s3 + $0x584] sm:$0xf] %vm7800, %v7189
  %8155 = vst.msk [vmem:[%s3 + $0x588] sm:$0xf] %vm7800, %v7190
  %8156 = vst.msk [vmem:[%s3 + $0x58c] sm:$0xf] %vm7800, %v7191
  %8157 = vst.msk [vmem:[%s3 + $0x590] sm:$0xf] %vm7800, %v7192
  %8158 = vst.msk [vmem:[%s3 + $0x594] sm:$0xf] %vm7800, %v7193
  %8159 = vst.msk [vmem:[%s3 + $0x598] sm:$0xf] %vm7800, %v7194
  %8160 = vst.msk [vmem:[%s3 + $0x59c] sm:$0xf] %vm7800, %v7195
  %8161 = vst.msk [vmem:[%s3 + $0x5a0] sm:$0xf] %vm7800, %v7196
  %8162 = vst.msk [vmem:[%s3 + $0x5a4] sm:$0xf] %vm7800, %v7197
  %8163 = vst.msk [vmem:[%s3 + $0x5a8] sm:$0xf] %vm7800, %v7198
  %8164 = vst.msk [vmem:[%s3 + $0x5ac] sm:$0xf] %vm7800, %v7199
  %8165 = vst.msk [vmem:[%s3 + $0x5b0] sm:$0xf] %vm7800, %v7200
  %8166 = vst.msk [vmem:[%s3 + $0x5b4] sm:$0xf] %vm7800, %v7201
  %8167 = vst.msk [vmem:[%s3 + $0x5b8] sm:$0xf] %vm7800, %v7202
  %8168 = vst.msk [vmem:[%s3 + $0x5bc] sm:$0xf] %vm7800, %v7203
  %8169 = vst.msk [vmem:[%s3 + $0x5c0] sm:$0xf] %vm7800, %v7204
  %8170 = vst.msk [vmem:[%s3 + $0x5c4] sm:$0xf] %vm7800, %v7205
  %8171 = vst.msk [vmem:[%s3 + $0x5c8] sm:$0xf] %vm7800, %v7206
  %8172 = vst.msk [vmem:[%s3 + $0x5cc] sm:$0xf] %vm7800, %v7207
  %8173 = vst.msk [vmem:[%s3 + $0x5d0] sm:$0xf] %vm7800, %v7208
  %8174 = vst.msk [vmem:[%s3 + $0x5d4] sm:$0xf] %vm7800, %v7209
  %8175 = vst.msk [vmem:[%s3 + $0x5d8] sm:$0xf] %vm7800, %v7210
  %8176 = vst.msk [vmem:[%s3 + $0x5dc] sm:$0xf] %vm7800, %v7211
  %8177 = vst.msk [vmem:[%s3 + $0x5e0] sm:$0xf] %vm7800, %v7212
  %8178 = vst.msk [vmem:[%s3 + $0x5e4] sm:$0xf] %vm7800, %v7213
  %8179 = vst.msk [vmem:[%s3 + $0x5e8] sm:$0xf] %vm7800, %v7214
  %8180 = vst.msk [vmem:[%s3 + $0x5ec] sm:$0xf] %vm7800, %v7215
  %8181 = vst.msk [vmem:[%s3 + $0x5f0] sm:$0xf] %vm7800, %v7216
  %8182 = vst.msk [vmem:[%s3 + $0x5f4] sm:$0xf] %vm7800, %v7217
  %8183 = vst.msk [vmem:[%s3 + $0x5f8] sm:$0xf] %vm7800, %v7218
  %8184 = vst.msk [vmem:[%s3 + $0x5fc] sm:$0xf] %vm7800, %v7219
  %8185 = vst.msk [vmem:[%s3 + $0x600] sm:$0xf] %vm7800, %v7220
  %8186 = vst.msk [vmem:[%s3 + $0x604] sm:$0xf] %vm7800, %v7221
  %8187 = vst.msk [vmem:[%s3 + $0x608] sm:$0xf] %vm7800, %v7222
  %8188 = vst.msk [vmem:[%s3 + $0x60c] sm:$0xf] %vm7800, %v7223
  %8189 = vst.msk [vmem:[%s3 + $0x610] sm:$0xf] %vm7800, %v7224
  %8190 = vst.msk [vmem:[%s3 + $0x614] sm:$0xf] %vm7800, %v7225
  %8191 = vst.msk [vmem:[%s3 + $0x618] sm:$0xf] %vm7800, %v7226
  %8192 = vst.msk [vmem:[%s3 + $0x61c] sm:$0xf] %vm7800, %v7227
  %8193 = vst.msk [vmem:[%s3 + $0x620] sm:$0xf] %vm7800, %v7228
  %8194 = vst.msk [vmem:[%s3 + $0x624] sm:$0xf] %vm7800, %v7229
  %8195 = vst.msk [vmem:[%s3 + $0x628] sm:$0xf] %vm7800, %v7230
  %8196 = vst.msk [vmem:[%s3 + $0x62c] sm:$0xf] %vm7800, %v7231
  %8197 = vst.msk [vmem:[%s3 + $0x630] sm:$0xf] %vm7800, %v7232
  %8198 = vst.msk [vmem:[%s3 + $0x634] sm:$0xf] %vm7800, %v7233
  %8199 = vst.msk [vmem:[%s3 + $0x638] sm:$0xf] %vm7800, %v7234
  %8200 = vst.msk [vmem:[%s3 + $0x63c] sm:$0xf] %vm7800, %v7235
  %8201 = vst.msk [vmem:[%s3 + $0x640] sm:$0xf] %vm7800, %v7236
  %8202 = vst.msk [vmem:[%s3 + $0x644] sm:$0xf] %vm7800, %v7237
  %8203 = vst.msk [vmem:[%s3 + $0x648] sm:$0xf] %vm7800, %v7238
  %8204 = vst.msk [vmem:[%s3 + $0x64c] sm:$0xf] %vm7800, %v7239
  %8205 = vst.msk [vmem:[%s3 + $0x650] sm:$0xf] %vm7800, %v7240
  %8206 = vst.msk [vmem:[%s3 + $0x654] sm:$0xf] %vm7800, %v7241
  %8207 = vst.msk [vmem:[%s3 + $0x658] sm:$0xf] %vm7800, %v7242
  %8208 = vst.msk [vmem:[%s3 + $0x65c] sm:$0xf] %vm7800, %v7243
  %8209 = vst.msk [vmem:[%s3 + $0x660] sm:$0xf] %vm7800, %v7244
  %8210 = vst.msk [vmem:[%s3 + $0x664] sm:$0xf] %vm7800, %v7245
  %8211 = vst.msk [vmem:[%s3 + $0x668] sm:$0xf] %vm7800, %v7246
  %8212 = vst.msk [vmem:[%s3 + $0x66c] sm:$0xf] %vm7800, %v7247
  %8213 = vst.msk [vmem:[%s3 + $0x670] sm:$0xf] %vm7800, %v7248
  %8214 = vst.msk [vmem:[%s3 + $0x674] sm:$0xf] %vm7800, %v7249
  %8215 = vst.msk [vmem:[%s3 + $0x678] sm:$0xf] %vm7800, %v7250
  %8216 = vst.msk [vmem:[%s3 + $0x67c] sm:$0xf] %vm7800, %v7251
  %8217 = vst.msk [vmem:[%s3 + $0x680] sm:$0xf] %vm7800, %v7252
  %8218 = vst.msk [vmem:[%s3 + $0x684] sm:$0xf] %vm7800, %v7253
  %8219 = vst.msk [vmem:[%s3 + $0x688] sm:$0xf] %vm7800, %v7254
  %8220 = vst.msk [vmem:[%s3 + $0x68c] sm:$0xf] %vm7800, %v7255
  %8221 = vst.msk [vmem:[%s3 + $0x690] sm:$0xf] %vm7800, %v7256
  %8222 = vst.msk [vmem:[%s3 + $0x694] sm:$0xf] %vm7800, %v7257
  %8223 = vst.msk [vmem:[%s3 + $0x698] sm:$0xf] %vm7800, %v7258
  %8224 = vst.msk [vmem:[%s3 + $0x69c] sm:$0xf] %vm7800, %v7259
  %8225 = vst.msk [vmem:[%s3 + $0x6a0] sm:$0xf] %vm7800, %v7260
  %8226 = vst.msk [vmem:[%s3 + $0x6a4] sm:$0xf] %vm7800, %v7261
  %8227 = vst.msk [vmem:[%s3 + $0x6a8] sm:$0xf] %vm7800, %v7262
  %8228 = vst.msk [vmem:[%s3 + $0x6ac] sm:$0xf] %vm7800, %v7263
  %8229 = vst.msk [vmem:[%s3 + $0x6b0] sm:$0xf] %vm7800, %v7264
  %8230 = vst.msk [vmem:[%s3 + $0x6b4] sm:$0xf] %vm7800, %v7265
  %8231 = vst.msk [vmem:[%s3 + $0x6b8] sm:$0xf] %vm7800, %v7266
  %8232 = vst.msk [vmem:[%s3 + $0x6bc] sm:$0xf] %vm7800, %v7267
  %8233 = vst.msk [vmem:[%s3 + $0x6c0] sm:$0xf] %vm7800, %v7268
  %8234 = vst.msk [vmem:[%s3 + $0x6c4] sm:$0xf] %vm7800, %v7269
  %8235 = vst.msk [vmem:[%s3 + $0x6c8] sm:$0xf] %vm7800, %v7270
  %8236 = vst.msk [vmem:[%s3 + $0x6cc] sm:$0xf] %vm7800, %v7271
  %8237 = vst.msk [vmem:[%s3 + $0x6d0] sm:$0xf] %vm7800, %v7272
  %8238 = vst.msk [vmem:[%s3 + $0x6d4] sm:$0xf] %vm7800, %v7273
  %8239 = vst.msk [vmem:[%s3 + $0x6d8] sm:$0xf] %vm7800, %v7274
  %8240 = vst.msk [vmem:[%s3 + $0x6dc] sm:$0xf] %vm7800, %v7275
  %8241 = vst.msk [vmem:[%s3 + $0x6e0] sm:$0xf] %vm7800, %v7276
  %8242 = vst.msk [vmem:[%s3 + $0x6e4] sm:$0xf] %vm7800, %v7277
  %8243 = vst.msk [vmem:[%s3 + $0x6e8] sm:$0xf] %vm7800, %v7278
  %8244 = vst.msk [vmem:[%s3 + $0x6ec] sm:$0xf] %vm7800, %v7279
  %8245 = vst.msk [vmem:[%s3 + $0x6f0] sm:$0xf] %vm7800, %v7280
  %8246 = vst.msk [vmem:[%s3 + $0x6f4] sm:$0xf] %vm7800, %v7281
  %8247 = vst.msk [vmem:[%s3 + $0x6f8] sm:$0xf] %vm7800, %v7282
  %8248 = vst.msk [vmem:[%s3 + $0x6fc] sm:$0xf] %vm7800, %v7283
  %8249 = vst.msk [vmem:[%s3 + $0x700] sm:$0xf] %vm7800, %v7284
  %8250 = vst.msk [vmem:[%s3 + $0x704] sm:$0xf] %vm7800, %v7285
  %8251 = vst.msk [vmem:[%s3 + $0x708] sm:$0xf] %vm7800, %v7286
  %8252 = vst.msk [vmem:[%s3 + $0x70c] sm:$0xf] %vm7800, %v7287
  %8253 = vst.msk [vmem:[%s3 + $0x710] sm:$0xf] %vm7800, %v7288
  %8254 = vst.msk [vmem:[%s3 + $0x714] sm:$0xf] %vm7800, %v7289
  %8255 = vst.msk [vmem:[%s3 + $0x718] sm:$0xf] %vm7800, %v7290
  %8256 = vst.msk [vmem:[%s3 + $0x71c] sm:$0xf] %vm7800, %v7291
  %8257 = vst.msk [vmem:[%s3 + $0x720] sm:$0xf] %vm7800, %v7292
  %8258 = vst.msk [vmem:[%s3 + $0x724] sm:$0xf] %vm7800, %v7293
  %8259 = vst.msk [vmem:[%s3 + $0x728] sm:$0xf] %vm7800, %v7294
  %8260 = vst.msk [vmem:[%s3 + $0x72c] sm:$0xf] %vm7800, %v7295
  %8261 = vst.msk [vmem:[%s3 + $0x730] sm:$0xf] %vm7800, %v7296
  %8262 = vst.msk [vmem:[%s3 + $0x734] sm:$0xf] %vm7800, %v7297
  %8263 = vst.msk [vmem:[%s3 + $0x738] sm:$0xf] %vm7800, %v7298
  %8264 = vst.msk [vmem:[%s3 + $0x73c] sm:$0xf] %vm7800, %v7299
  %8265 = vst.msk [vmem:[%s3 + $0x740] sm:$0xf] %vm7800, %v7300
  %8266 = vst.msk [vmem:[%s3 + $0x744] sm:$0xf] %vm7800, %v7301
  %8267 = vst.msk [vmem:[%s3 + $0x748] sm:$0xf] %vm7800, %v7302
  %8268 = vst.msk [vmem:[%s3 + $0x74c] sm:$0xf] %vm7800, %v7303
  %8269 = vst.msk [vmem:[%s3 + $0x750] sm:$0xf] %vm7800, %v7304
  %8270 = vst.msk [vmem:[%s3 + $0x754] sm:$0xf] %vm7800, %v7305
  %8271 = vst.msk [vmem:[%s3 + $0x758] sm:$0xf] %vm7800, %v7306
  %8272 = vst.msk [vmem:[%s3 + $0x75c] sm:$0xf] %vm7800, %v7307
  %8273 = vst.msk [vmem:[%s3 + $0x760] sm:$0xf] %vm7800, %v7308
  %8274 = vst.msk [vmem:[%s3 + $0x764] sm:$0xf] %vm7800, %v7309
  %8275 = vst.msk [vmem:[%s3 + $0x768] sm:$0xf] %vm7800, %v7310
  %8276 = vst.msk [vmem:[%s3 + $0x76c] sm:$0xf] %vm7800, %v7311
  %8277 = vst.msk [vmem:[%s3 + $0x770] sm:$0xf] %vm7800, %v7312
  %8278 = vst.msk [vmem:[%s3 + $0x774] sm:$0xf] %vm7800, %v7313
  %8279 = vst.msk [vmem:[%s3 + $0x778] sm:$0xf] %vm7800, %v7314
  %8280 = vst.msk [vmem:[%s3 + $0x77c] sm:$0xf] %vm7800, %v7315
  %8281 = vst.msk [vmem:[%s3 + $0x780] sm:$0xf] %vm7800, %v7316
  %vm8282 = vcmask 256000
  %8283 = vst.msk [vmem:[%s3 + $0x784] sm:$0x7] %vm8282, %v7317
  // Predicated region
  $region14: #{actor_forward.3} parent=0 // pred_check
    _
  $region15: #{actor_forward.3} parent=0 // pred_check_branch
    %8285 = sbr.rel (0) target = $region17
  $region16: #{actor_forward.3} parent=0 // pred_region
    _
  $region17: #{actor_forward.3} parent=0 // pred_fallthru
    _
  // Predicated region
  $region18: #{actor_forward.3} parent=0 // pred_check
    _
  $region19: #{actor_forward.3} parent=0 // pred_check_branch
    %8287 = sbr.rel (0) target = $region21
  $region20: #{actor_forward.3} parent=0 // pred_region
    _
  $region21: #{actor_forward.3} parent=0 // pred_fallthru
    _

// kernel: actor_forward.4
$region0: #{actor_forward.4}
  #allocation0 [shape = 'u32[]', space=smem, size = 0x4, offset = 0x4, fixed_abs, tag = 'smem constant byte address 0x4 - core index']
  #allocation1 [shape = 'u32[144,128]{1,0:T(1,128)}', space=vmem, size = 0x12000, scoped, tag = 'internal scratch']
  %s0 = inlined_call_operand.vmem [shape: bf16[220,128], index: 0, kind: input, shape index: {}]
  %s1 = inlined_call_operand.vmem [shape: bf16[220,128], index: 1, kind: input, shape index: {}]
  %s2 = inlined_call_operand.vmem [shape: bf16[220,128], index: 2, kind: input, shape index: {}]
  %s3 = inlined_call_operand.vmem [shape: bf16[220,128], index: 3, kind: input, shape index: {}]
  %s4 = inlined_call_operand.vmem [shape: bf16[128,64], index: 4, kind: input, shape index: {}]
  %s5 = inlined_call_operand.vmem [shape: f32[1,64], index: 5, kind: input, shape index: {}]
  %s6 = inlined_call_operand.vmem [shape: bf16[220,64], index: 6, kind: output, shape index: {}]
  %s7 = sld [smem:[#allocation0]]
  $region34: #{actor_forward.4} parent=0
    _
  %s9 = ssub.s32 1, %s7
  %s10 = scalar_select 0, %s9, %s7
  // Predicated region
  $region2: #{actor_forward.4} parent=0 // pred_check
    _
  $region3: #{actor_forward.4} parent=0 // pred_check_branch
    %12 = sbr.rel (0) target = $region5
  $region4: #{actor_forward.4} parent=0 // pred_region
    _
  $region5: #{actor_forward.4} parent=0 // pred_fallthru
    _
  // Predicated region
  $region6: #{actor_forward.4} parent=0 // pred_check
    _
  $region7: #{actor_forward.4} parent=0 // pred_check_branch
    %14 = sbr.rel (0) target = $region9
  $region8: #{actor_forward.4} parent=0 // pred_region
    _
  $region9: #{actor_forward.4} parent=0 // pred_fallthru
    _
  // Predicated region
  $region10: #{actor_forward.4} parent=0 // pred_check
    _
  $region11: #{actor_forward.4} parent=0 // pred_check_branch
    %16 = sbr.rel (0) target = $region13
  $region12: #{actor_forward.4} parent=0 // pred_region
    _
  $region13: #{actor_forward.4} parent=0 // pred_fallthru
    _
  // Predicated region
  $region14: #{actor_forward.4} parent=0 // pred_check
    _
  $region15: #{actor_forward.4} parent=0 // pred_check_branch
    %18 = sbr.rel (0) target = $region17
  $region16: #{actor_forward.4} parent=0 // pred_region
    _
  $region17: #{actor_forward.4} parent=0 // pred_fallthru
    _
  // Predicated region
  $region18: #{actor_forward.4} parent=0 // pred_check
    _
  $region19: #{actor_forward.4} parent=0 // pred_check_branch
    %20 = sbr.rel (0) target = $region21
  $region20: #{actor_forward.4} parent=0 // pred_region
    _
  $region21: #{actor_forward.4} parent=0 // pred_fallthru
    _
  // Predicated region
  $region22: #{actor_forward.4} parent=0 // pred_check
    _
  $region23: #{actor_forward.4} parent=0 // pred_check_branch
    %22 = sbr.rel (0) target = $region25
  $region24: #{actor_forward.4} parent=0 // pred_region
    _
  $region25: #{actor_forward.4} parent=0 // pred_fallthru
    _
  %v24 = vld [vmem:[%s4] sm:$0xf]
  %v25 = vld [vmem:[%s4 + $0x4] sm:$0xf]
  %v26 = vld [vmem:[%s4 + $0x8] sm:$0xf]
  %v27 = vld [vmem:[%s4 + $0xc] sm:$0xf]
  %v28 = vld [vmem:[%s4 + $0x10] sm:$0xf]
  %v29 = vld [vmem:[%s4 + $0x14] sm:$0xf]
  %v30 = vld [vmem:[%s4 + $0x18] sm:$0xf]
  %v31 = vld [vmem:[%s4 + $0x1c] sm:$0xf]
  %v32 = vld [vmem:[%s4 + $0x20] sm:$0xf]
  %v33 = vld [vmem:[%s4 + $0x24] sm:$0xf]
  %v34 = vld [vmem:[%s4 + $0x28] sm:$0xf]
  %v35 = vld [vmem:[%s4 + $0x2c] sm:$0xf]
  %v36 = vld [vmem:[%s4 + $0x30] sm:$0xf]
  %v37 = vld [vmem:[%s4 + $0x34] sm:$0xf]
  %v38 = vld [vmem:[%s4 + $0x38] sm:$0xf]
  %v39 = vld [vmem:[%s4 + $0x3c] sm:$0xf]
  %v40 = vld [vmem:[%s0] sm:$0xf]
  %v41 = vld [vmem:[%s0 + $0x4] sm:$0xf]
  %v42 = vld [vmem:[%s0 + $0x8] sm:$0xf]
  %v43 = vld [vmem:[%s0 + $0xc] sm:$0xf]
  %v44 = vld [vmem:[%s0 + $0x10] sm:$0xf]
  %v45 = vld [vmem:[%s0 + $0x14] sm:$0xf]
  %v46 = vld [vmem:[%s0 + $0x18] sm:$0xf]
  %v47 = vld [vmem:[%s0 + $0x1c] sm:$0xf]
  %v48 = vld [vmem:[%s0 + $0x20] sm:$0xf]
  %v49 = vld [vmem:[%s0 + $0x24] sm:$0xf]
  %v50 = vld [vmem:[%s0 + $0x28] sm:$0xf]
  %v51 = vld [vmem:[%s0 + $0x2c] sm:$0xf]
  %v52 = vld [vmem:[%s0 + $0x30] sm:$0xf]
  %v53 = vld [vmem:[%s0 + $0x34] sm:$0xf]
  %v54 = vld [vmem:[%s0 + $0x38] sm:$0xf]
  %v55 = vld [vmem:[%s0 + $0x3c] sm:$0xf]
  %v56 = vld [vmem:[%s0 + $0x40] sm:$0xf]
  %v57 = vld [vmem:[%s0 + $0x44] sm:$0xf]
  %v58 = vld [vmem:[%s0 + $0x48] sm:$0xf]
  %v59 = vld [vmem:[%s0 + $0x4c] sm:$0xf]
  %v60 = vld [vmem:[%s0 + $0x50] sm:$0xf]
  %v61 = vld [vmem:[%s0 + $0x54] sm:$0xf]
  %v62 = vld [vmem:[%s0 + $0x58] sm:$0xf]
  %v63 = vld [vmem:[%s0 + $0x5c] sm:$0xf]
  %v64 = vld [vmem:[%s0 + $0x60] sm:$0xf]
  %v65 = vld [vmem:[%s0 + $0x64] sm:$0xf]
  %v66 = vld [vmem:[%s0 + $0x68] sm:$0xf]
  %v67 = vld [vmem:[%s0 + $0x6c] sm:$0x3]
  %v96 = vunpack.c.l.b16 %v40
  %v97 = vunpack.c.l.b16 %v41
  %v98 = vunpack.c.l.b16 %v42
  %v99 = vunpack.c.l.b16 %v43
  %v100 = vunpack.c.l.b16 %v44
  %v101 = vunpack.c.l.b16 %v45
  %v102 = vunpack.c.l.b16 %v46
  %v103 = vunpack.c.l.b16 %v47
  %v104 = vunpack.c.l.b16 %v48
  %v105 = vunpack.c.l.b16 %v49
  %v106 = vunpack.c.l.b16 %v50
  %v107 = vunpack.c.l.b16 %v51
  %v108 = vunpack.c.l.b16 %v52
  %v109 = vunpack.c.l.b16 %v53
  %v110 = vunpack.c.l.b16 %v54
  %v111 = vunpack.c.l.b16 %v55
  %v112 = vunpack.c.l.b16 %v56
  %v113 = vunpack.c.l.b16 %v57
  %v114 = vunpack.c.l.b16 %v58
  %v115 = vunpack.c.l.b16 %v59
  %v116 = vunpack.c.l.b16 %v60
  %v117 = vunpack.c.l.b16 %v61
  %v118 = vunpack.c.l.b16 %v62
  %v119 = vunpack.c.l.b16 %v63
  %v120 = vunpack.c.l.b16 %v64
  %v121 = vunpack.c.l.b16 %v65
  %v122 = vunpack.c.l.b16 %v66
  %v123 = vunpack.c.l.b16 %v67
  %v124 = vpack.c.b16 %v97, %v96
  %v125 = vpack.c.b16 %v99, %v98
  %v126 = vpack.c.b16 %v101, %v100
  %v127 = vpack.c.b16 %v103, %v102
  %v128 = vpack.c.b16 %v105, %v104
  %v129 = vpack.c.b16 %v107, %v106
  %v130 = vpack.c.b16 %v109, %v108
  %v131 = vpack.c.b16 %v111, %v110
  %v132 = vpack.c.b16 %v113, %v112
  %v133 = vpack.c.b16 %v115, %v114
  %v134 = vpack.c.b16 %v117, %v116
  %v135 = vpack.c.b16 %v119, %v118
  %v136 = vpack.c.b16 %v121, %v120
  %v137 = vpack.c.b16 %v123, %v122
  %v168 = vunpack.c.l.b16 %v24
  %v169 = vunpack.c.l.b16 %v25
  %v170 = vunpack.c.l.b16 %v26
  %v171 = vunpack.c.l.b16 %v27
  %v172 = vunpack.c.l.b16 %v28
  %v173 = vunpack.c.l.b16 %v29
  %v174 = vunpack.c.l.b16 %v30
  %v175 = vunpack.c.l.b16 %v31
  %v176 = vunpack.c.l.b16 %v32
  %v177 = vunpack.c.l.b16 %v33
  %v178 = vunpack.c.l.b16 %v34
  %v179 = vunpack.c.l.b16 %v35
  %v180 = vunpack.c.l.b16 %v36
  %v181 = vunpack.c.l.b16 %v37
  %v182 = vunpack.c.l.b16 %v38
  %v183 = vunpack.c.l.b16 %v39
  %v184 = vpack.c.b16 %v169, %v168
  %v185 = vpack.c.b16 %v171, %v170
  %v186 = vpack.c.b16 %v173, %v172
  %v187 = vpack.c.b16 %v175, %v174
  %v188 = vpack.c.b16 %v177, %v176
  %v189 = vpack.c.b16 %v179, %v178
  %v190 = vpack.c.b16 %v181, %v180
  %v191 = vpack.c.b16 %v183, %v182
  %200 = vmatprep.subr.bf16.mxu0 0
  %201 = vmatpush1.bf16.msra.mxu0 %v191
  %202 = vmatprep.subr.bf16.mxu0 0
  %203 = vmatpush1.bf16.msra.mxu0 %v190
  %204 = vmatprep.subr.bf16.mxu0 0
  %205 = vmatpush1.bf16.msra.mxu0 %v189
  %206 = vmatprep.subr.bf16.mxu0 0
  %207 = vmatpush1.bf16.msra.mxu0 %v188
  %208 = vmatprep.subr.bf16.mxu0 0
  %209 = vmatpush1.bf16.msra.mxu0 %v187
  %210 = vmatprep.subr.bf16.mxu0 0
  %211 = vmatpush1.bf16.msra.mxu0 %v186
  %212 = vmatprep.subr.bf16.mxu0 0
  %213 = vmatpush1.bf16.msra.mxu0 %v185
  %214 = vmatprep.subr.bf16.mxu0 0
  %215 = vmatpush1.bf16.msra.mxu0 %v184
  %216 = vmatprep.subr.bf16.mxu0 0
  %217 = vmatpush2.bf16.msra.mxu0 0
  %218 = vmatprep.subr.bf16.mxu0 0
  %219 = vmatpush2.bf16.msra.mxu0 0
  %220 = vmatprep.subr.bf16.mxu0 0
  %221 = vmatpush2.bf16.msra.mxu0 0
  %222 = vmatprep.subr.bf16.mxu0 0
  %223 = vmatpush2.bf16.msra.mxu0 0
  %224 = vmatprep.subr.bf16.mxu0 0
  %225 = vmatpush2.bf16.msra.mxu0 0
  %226 = vmatprep.subr.bf16.mxu0 0
  %227 = vmatpush2.bf16.msra.mxu0 0
  %228 = vmatprep.subr.bf16.mxu0 0
  %229 = vmatpush2.bf16.msra.mxu0 0
  %230 = vmatprep.subr.bf16.mxu0 0
  %231 = vmatpush2.bf16.msra.mxu0 0
  %232 = vmatprep.mubr.bf16.mxu0 0
  %233 = vmatmul.mubr.bf16.gmra.mxu0 %v124
  %v234 = vpop.f32.mrf.mxu0
  %v235 = vadd.f32 0.0, %v234
  %v236 = vpop.f32.mrf.mxu0
  %v237 = vpop.f32.mrf.mxu0
  %v238 = vadd.f32 0.0, %v237
  %v239 = vpop.f32.mrf.mxu0
  %240 = vmatprep.mubr.bf16.mxu0 0
  %241 = vmatmul.mubr.bf16.gmra.mxu0 %v125
  %v242 = vpop.f32.mrf.mxu0
  %v243 = vadd.f32 0.0, %v242
  %v244 = vpop.f32.mrf.mxu0
  %v245 = vpop.f32.mrf.mxu0
  %v246 = vadd.f32 0.0, %v245
  %v247 = vpop.f32.mrf.mxu0
  %248 = vmatprep.mubr.bf16.mxu0 0
  %249 = vmatmul.mubr.bf16.gmra.mxu0 %v126
  %v250 = vpop.f32.mrf.mxu0
  %v251 = vadd.f32 0.0, %v250
  %v252 = vpop.f32.mrf.mxu0
  %v253 = vpop.f32.mrf.mxu0
  %v254 = vadd.f32 0.0, %v253
  %v255 = vpop.f32.mrf.mxu0
  %256 = vmatprep.mubr.bf16.mxu0 0
  %257 = vmatmul.mubr.bf16.gmra.mxu0 %v127
  %v258 = vpop.f32.mrf.mxu0
  %v259 = vadd.f32 0.0, %v258
  %v260 = vpop.f32.mrf.mxu0
  %v261 = vpop.f32.mrf.mxu0
  %v262 = vadd.f32 0.0, %v261
  %v263 = vpop.f32.mrf.mxu0
  %264 = vmatprep.mubr.bf16.mxu0 0
  %265 = vmatmul.mubr.bf16.gmra.mxu0 %v128
  %v266 = vpop.f32.mrf.mxu0
  %v267 = vadd.f32 0.0, %v266
  %v268 = vpop.f32.mrf.mxu0
  %v269 = vpop.f32.mrf.mxu0
  %v270 = vadd.f32 0.0, %v269
  %v271 = vpop.f32.mrf.mxu0
  %272 = vmatprep.mubr.bf16.mxu0 0
  %273 = vmatmul.mubr.bf16.gmra.mxu0 %v129
  %v274 = vpop.f32.mrf.mxu0
  %v275 = vadd.f32 0.0, %v274
  %v276 = vpop.f32.mrf.mxu0
  %v277 = vpop.f32.mrf.mxu0
  %v278 = vadd.f32 0.0, %v277
  %v279 = vpop.f32.mrf.mxu0
  %280 = vmatprep.mubr.bf16.mxu0 0
  %281 = vmatmul.mubr.bf16.gmra.mxu0 %v130
  %v282 = vpop.f32.mrf.mxu0
  %v283 = vadd.f32 0.0, %v282
  %v284 = vpop.f32.mrf.mxu0
  %v285 = vpop.f32.mrf.mxu0
  %v286 = vadd.f32 0.0, %v285
  %v287 = vpop.f32.mrf.mxu0
  %288 = vmatprep.mubr.bf16.mxu0 0
  %289 = vmatmul.mubr.bf16.gmra.mxu0 %v131
  %v290 = vpop.f32.mrf.mxu0
  %v291 = vadd.f32 0.0, %v290
  %v292 = vpop.f32.mrf.mxu0
  %v293 = vpop.f32.mrf.mxu0
  %v294 = vadd.f32 0.0, %v293
  %v295 = vpop.f32.mrf.mxu0
  %296 = vmatprep.mubr.bf16.mxu0 0
  %297 = vmatmul.mubr.bf16.gmra.mxu0 %v132
  %v298 = vpop.f32.mrf.mxu0
  %v299 = vadd.f32 0.0, %v298
  %v300 = vpop.f32.mrf.mxu0
  %v301 = vpop.f32.mrf.mxu0
  %v302 = vadd.f32 0.0, %v301
  %v303 = vpop.f32.mrf.mxu0
  %304 = vmatprep.mubr.bf16.mxu0 0
  %305 = vmatmul.mubr.bf16.gmra.mxu0 %v133
  %v306 = vpop.f32.mrf.mxu0
  %v307 = vadd.f32 0.0, %v306
  %v308 = vpop.f32.mrf.mxu0
  %v309 = vpop.f32.mrf.mxu0
  %v310 = vadd.f32 0.0, %v309
  %v311 = vpop.f32.mrf.mxu0
  %312 = vmatprep.mubr.bf16.mxu0 0
  %313 = vmatmul.mubr.bf16.gmra.mxu0 %v134
  %v314 = vpop.f32.mrf.mxu0
  %v315 = vadd.f32 0.0, %v314
  %v316 = vpop.f32.mrf.mxu0
  %v317 = vpop.f32.mrf.mxu0
  %v318 = vadd.f32 0.0, %v317
  %v319 = vpop.f32.mrf.mxu0
  %320 = vmatprep.mubr.bf16.mxu0 0
  %321 = vmatmul.mubr.bf16.gmra.mxu0 %v135
  %v322 = vpop.f32.mrf.mxu0
  %v323 = vadd.f32 0.0, %v322
  %v324 = vpop.f32.mrf.mxu0
  %v325 = vpop.f32.mrf.mxu0
  %v326 = vadd.f32 0.0, %v325
  %v327 = vpop.f32.mrf.mxu0
  %328 = vmatprep.mubr.bf16.mxu0 0
  %329 = vmatmul.mubr.bf16.gmra.mxu0 %v136
  %v330 = vpop.f32.mrf.mxu0
  %v331 = vadd.f32 0.0, %v330
  %v332 = vpop.f32.mrf.mxu0
  %v333 = vpop.f32.mrf.mxu0
  %v334 = vadd.f32 0.0, %v333
  %v335 = vpop.f32.mrf.mxu0
  %336 = vmatprep.mubr.bf16.mxu0 0
  %337 = vmatmul.mubr.bf16.gmra.mxu0 %v137
  %v338 = vpop.f32.mrf.mxu0
  %v339 = vadd.f32 0.0, %v338
  %v340 = vpop.f32.mrf.mxu0
  %v341 = vpop.f32.mrf.mxu0
  %v342 = vadd.f32 0.0, %v341
  %v343 = vpop.f32.mrf.mxu0
  %344 = vdwg.mxu0
  %v345 = vld [vmem:[%s1] sm:$0xf]
  %v346 = vld [vmem:[%s1 + $0x4] sm:$0xf]
  %v347 = vld [vmem:[%s1 + $0x8] sm:$0xf]
  %v348 = vld [vmem:[%s1 + $0xc] sm:$0xf]
  %v349 = vld [vmem:[%s1 + $0x10] sm:$0xf]
  %v350 = vld [vmem:[%s1 + $0x14] sm:$0xf]
  %v351 = vld [vmem:[%s1 + $0x18] sm:$0xf]
  %v352 = vld [vmem:[%s1 + $0x1c] sm:$0xf]
  %v353 = vld [vmem:[%s1 + $0x20] sm:$0xf]
  %v354 = vld [vmem:[%s1 + $0x24] sm:$0xf]
  %v355 = vld [vmem:[%s1 + $0x28] sm:$0xf]
  %v356 = vld [vmem:[%s1 + $0x2c] sm:$0xf]
  %v357 = vld [vmem:[%s1 + $0x30] sm:$0xf]
  %v358 = vld [vmem:[%s1 + $0x34] sm:$0xf]
  %v359 = vld [vmem:[%s1 + $0x38] sm:$0xf]
  %v360 = vld [vmem:[%s1 + $0x3c] sm:$0xf]
  %v361 = vld [vmem:[%s1 + $0x40] sm:$0xf]
  %v362 = vld [vmem:[%s1 + $0x44] sm:$0xf]
  %v363 = vld [vmem:[%s1 + $0x48] sm:$0xf]
  %v364 = vld [vmem:[%s1 + $0x4c] sm:$0xf]
  %v365 = vld [vmem:[%s1 + $0x50] sm:$0xf]
  %v366 = vld [vmem:[%s1 + $0x54] sm:$0xf]
  %v367 = vld [vmem:[%s1 + $0x58] sm:$0xf]
  %v368 = vld [vmem:[%s1 + $0x5c] sm:$0xf]
  %v369 = vld [vmem:[%s1 + $0x60] sm:$0xf]
  %v370 = vld [vmem:[%s1 + $0x64] sm:$0xf]
  %v371 = vld [vmem:[%s1 + $0x68] sm:$0xf]
  %v372 = vld [vmem:[%s1 + $0x6c] sm:$0x3]
  %v401 = vunpack.c.l.b16 %v345
  %v402 = vunpack.c.l.b16 %v346
  %v403 = vunpack.c.l.b16 %v347
  %v404 = vunpack.c.l.b16 %v348
  %v405 = vunpack.c.l.b16 %v349
  %v406 = vunpack.c.l.b16 %v350
  %v407 = vunpack.c.l.b16 %v351
  %v408 = vunpack.c.l.b16 %v352
  %v409 = vunpack.c.l.b16 %v353
  %v410 = vunpack.c.l.b16 %v354
  %v411 = vunpack.c.l.b16 %v355
  %v412 = vunpack.c.l.b16 %v356
  %v413 = vunpack.c.l.b16 %v357
  %v414 = vunpack.c.l.b16 %v358
  %v415 = vunpack.c.l.b16 %v359
  %v416 = vunpack.c.l.b16 %v360
  %v417 = vunpack.c.l.b16 %v361
  %v418 = vunpack.c.l.b16 %v362
  %v419 = vunpack.c.l.b16 %v363
  %v420 = vunpack.c.l.b16 %v364
  %v421 = vunpack.c.l.b16 %v365
  %v422 = vunpack.c.l.b16 %v366
  %v423 = vunpack.c.l.b16 %v367
  %v424 = vunpack.c.l.b16 %v368
  %v425 = vunpack.c.l.b16 %v369
  %v426 = vunpack.c.l.b16 %v370
  %v427 = vunpack.c.l.b16 %v371
  %v428 = vunpack.c.l.b16 %v372
  %v429 = vpack.c.b16 %v402, %v401
  %v430 = vpack.c.b16 %v404, %v403
  %v431 = vpack.c.b16 %v406, %v405
  %v432 = vpack.c.b16 %v408, %v407
  %v433 = vpack.c.b16 %v410, %v409
  %v434 = vpack.c.b16 %v412, %v411
  %v435 = vpack.c.b16 %v414, %v413
  %v436 = vpack.c.b16 %v416, %v415
  %v437 = vpack.c.b16 %v418, %v417
  %v438 = vpack.c.b16 %v420, %v419
  %v439 = vpack.c.b16 %v422, %v421
  %v440 = vpack.c.b16 %v424, %v423
  %v441 = vpack.c.b16 %v426, %v425
  %v442 = vpack.c.b16 %v428, %v427
  %457 = vmatprep.subr.bf16.mxu0 0
  %458 = vmatpush1.bf16.msra.mxu0 %v191
  %459 = vmatprep.subr.bf16.mxu0 0
  %460 = vmatpush1.bf16.msra.mxu0 %v190
  %461 = vmatprep.subr.bf16.mxu0 0
  %462 = vmatpush1.bf16.msra.mxu0 %v189
  %463 = vmatprep.subr.bf16.mxu0 0
  %464 = vmatpush1.bf16.msra.mxu0 %v188
  %465 = vmatprep.subr.bf16.mxu0 0
  %466 = vmatpush1.bf16.msra.mxu0 %v187
  %467 = vmatprep.subr.bf16.mxu0 0
  %468 = vmatpush1.bf16.msra.mxu0 %v186
  %469 = vmatprep.subr.bf16.mxu0 0
  %470 = vmatpush1.bf16.msra.mxu0 %v185
  %471 = vmatprep.subr.bf16.mxu0 0
  %472 = vmatpush1.bf16.msra.mxu0 %v184
  %473 = vmatprep.subr.bf16.mxu0 0
  %474 = vmatpush2.bf16.msra.mxu0 0
  %475 = vmatprep.subr.bf16.mxu0 0
  %476 = vmatpush2.bf16.msra.mxu0 0
  %477 = vmatprep.subr.bf16.mxu0 0
  %478 = vmatpush2.bf16.msra.mxu0 0
  %479 = vmatprep.subr.bf16.mxu0 0
  %480 = vmatpush2.bf16.msra.mxu0 0
  %481 = vmatprep.subr.bf16.mxu0 0
  %482 = vmatpush2.bf16.msra.mxu0 0
  %483 = vmatprep.subr.bf16.mxu0 0
  %484 = vmatpush2.bf16.msra.mxu0 0
  %485 = vmatprep.subr.bf16.mxu0 0
  %486 = vmatpush2.bf16.msra.mxu0 0
  %487 = vmatprep.subr.bf16.mxu0 0
  %488 = vmatpush2.bf16.msra.mxu0 0
  %489 = vmatprep.mubr.bf16.mxu0 0
  %490 = vmatmul.mubr.bf16.gmra.mxu0 %v429
  %v491 = vpop.f32.mrf.mxu0
  %v492 = vadd.f32 0.0, %v491
  %v493 = vpop.f32.mrf.mxu0
  %v494 = vpop.f32.mrf.mxu0
  %v495 = vadd.f32 0.0, %v494
  %v496 = vpop.f32.mrf.mxu0
  %497 = vmatprep.mubr.bf16.mxu0 0
  %498 = vmatmul.mubr.bf16.gmra.mxu0 %v430
  %v499 = vpop.f32.mrf.mxu0
  %v500 = vadd.f32 0.0, %v499
  %v501 = vpop.f32.mrf.mxu0
  %v502 = vpop.f32.mrf.mxu0
  %v503 = vadd.f32 0.0, %v502
  %v504 = vpop.f32.mrf.mxu0
  %505 = vmatprep.mubr.bf16.mxu0 0
  %506 = vmatmul.mubr.bf16.gmra.mxu0 %v431
  %v507 = vpop.f32.mrf.mxu0
  %v508 = vadd.f32 0.0, %v507
  %v509 = vpop.f32.mrf.mxu0
  %v510 = vpop.f32.mrf.mxu0
  %v511 = vadd.f32 0.0, %v510
  %v512 = vpop.f32.mrf.mxu0
  %513 = vmatprep.mubr.bf16.mxu0 0
  %514 = vmatmul.mubr.bf16.gmra.mxu0 %v432
  %v515 = vpop.f32.mrf.mxu0
  %v516 = vadd.f32 0.0, %v515
  %v517 = vpop.f32.mrf.mxu0
  %v518 = vpop.f32.mrf.mxu0
  %v519 = vadd.f32 0.0, %v518
  %v520 = vpop.f32.mrf.mxu0
  %521 = vmatprep.mubr.bf16.mxu0 0
  %522 = vmatmul.mubr.bf16.gmra.mxu0 %v433
  %v523 = vpop.f32.mrf.mxu0
  %v524 = vadd.f32 0.0, %v523
  %v525 = vpop.f32.mrf.mxu0
  %v526 = vpop.f32.mrf.mxu0
  %v527 = vadd.f32 0.0, %v526
  %v528 = vpop.f32.mrf.mxu0
  %529 = vmatprep.mubr.bf16.mxu0 0
  %530 = vmatmul.mubr.bf16.gmra.mxu0 %v434
  %v531 = vpop.f32.mrf.mxu0
  %v532 = vadd.f32 0.0, %v531
  %v533 = vpop.f32.mrf.mxu0
  %v534 = vpop.f32.mrf.mxu0
  %v535 = vadd.f32 0.0, %v534
  %v536 = vpop.f32.mrf.mxu0
  %537 = vmatprep.mubr.bf16.mxu0 0
  %538 = vmatmul.mubr.bf16.gmra.mxu0 %v435
  %v539 = vpop.f32.mrf.mxu0
  %v540 = vadd.f32 0.0, %v539
  %v541 = vpop.f32.mrf.mxu0
  %v542 = vpop.f32.mrf.mxu0
  %v543 = vadd.f32 0.0, %v542
  %v544 = vpop.f32.mrf.mxu0
  %545 = vmatprep.mubr.bf16.mxu0 0
  %546 = vmatmul.mubr.bf16.gmra.mxu0 %v436
  %v547 = vpop.f32.mrf.mxu0
  %v548 = vadd.f32 0.0, %v547
  %v549 = vpop.f32.mrf.mxu0
  %v550 = vpop.f32.mrf.mxu0
  %v551 = vadd.f32 0.0, %v550
  %v552 = vpop.f32.mrf.mxu0
  %553 = vmatprep.mubr.bf16.mxu0 0
  %554 = vmatmul.mubr.bf16.gmra.mxu0 %v437
  %v555 = vpop.f32.mrf.mxu0
  %v556 = vadd.f32 0.0, %v555
  %v557 = vpop.f32.mrf.mxu0
  %v558 = vpop.f32.mrf.mxu0
  %v559 = vadd.f32 0.0, %v558
  %v560 = vpop.f32.mrf.mxu0
  %561 = vmatprep.mubr.bf16.mxu0 0
  %562 = vmatmul.mubr.bf16.gmra.mxu0 %v438
  %v563 = vpop.f32.mrf.mxu0
  %v564 = vadd.f32 0.0, %v563
  %v565 = vpop.f32.mrf.mxu0
  %v566 = vpop.f32.mrf.mxu0
  %v567 = vadd.f32 0.0, %v566
  %v568 = vpop.f32.mrf.mxu0
  %569 = vmatprep.mubr.bf16.mxu0 0
  %570 = vmatmul.mubr.bf16.gmra.mxu0 %v439
  %v571 = vpop.f32.mrf.mxu0
  %v572 = vadd.f32 0.0, %v571
  %v573 = vpop.f32.mrf.mxu0
  %v574 = vpop.f32.mrf.mxu0
  %v575 = vadd.f32 0.0, %v574
  %v576 = vpop.f32.mrf.mxu0
  %577 = vmatprep.mubr.bf16.mxu0 0
  %578 = vmatmul.mubr.bf16.gmra.mxu0 %v440
  %v579 = vpop.f32.mrf.mxu0
  %v580 = vadd.f32 0.0, %v579
  %v581 = vpop.f32.mrf.mxu0
  %v582 = vpop.f32.mrf.mxu0
  %v583 = vadd.f32 0.0, %v582
  %v584 = vpop.f32.mrf.mxu0
  %585 = vmatprep.mubr.bf16.mxu0 0
  %586 = vmatmul.mubr.bf16.gmra.mxu0 %v441
  %v587 = vpop.f32.mrf.mxu0
  %v588 = vadd.f32 0.0, %v587
  %v589 = vpop.f32.mrf.mxu0
  %v590 = vpop.f32.mrf.mxu0
  %v591 = vadd.f32 0.0, %v590
  %v592 = vpop.f32.mrf.mxu0
  %593 = vmatprep.mubr.bf16.mxu0 0
  %594 = vmatmul.mubr.bf16.gmra.mxu0 %v442
  %v595 = vpop.f32.mrf.mxu0
  %v596 = vadd.f32 0.0, %v595
  %v597 = vpop.f32.mrf.mxu0
  %v598 = vpop.f32.mrf.mxu0
  %v599 = vadd.f32 0.0, %v598
  %v600 = vpop.f32.mrf.mxu0
  %601 = vdwg.mxu0
  %v602 = vmax.f32 %v235, %v492
  %v603 = vmax.f32 %v238, %v495
  %v604 = vmax.f32 %v243, %v500
  %v605 = vmax.f32 %v246, %v503
  %v606 = vmax.f32 %v251, %v508
  %v607 = vmax.f32 %v254, %v511
  %v608 = vmax.f32 %v259, %v516
  %v609 = vmax.f32 %v262, %v519
  %v610 = vmax.f32 %v267, %v524
  %v611 = vmax.f32 %v270, %v527
  %v612 = vmax.f32 %v275, %v532
  %v613 = vmax.f32 %v278, %v535
  %v614 = vmax.f32 %v283, %v540
  %v615 = vmax.f32 %v286, %v543
  %v616 = vmax.f32 %v291, %v548
  %v617 = vmax.f32 %v294, %v551
  %v618 = vmax.f32 %v299, %v556
  %v619 = vmax.f32 %v302, %v559
  %v620 = vmax.f32 %v307, %v564
  %v621 = vmax.f32 %v310, %v567
  %v622 = vmax.f32 %v315, %v572
  %v623 = vmax.f32 %v318, %v575
  %v624 = vmax.f32 %v323, %v580
  %v625 = vmax.f32 %v326, %v583
  %v626 = vmax.f32 %v331, %v588
  %v627 = vmax.f32 %v334, %v591
  %v628 = vmax.f32 %v339, %v596
  %v629 = vmax.f32 %v342, %v599
  %v630 = vld [vmem:[%s2] sm:$0xf]
  %v631 = vld [vmem:[%s2 + $0x4] sm:$0xf]
  %v632 = vld [vmem:[%s2 + $0x8] sm:$0xf]
  %v633 = vld [vmem:[%s2 + $0xc] sm:$0xf]
  %v634 = vld [vmem:[%s2 + $0x10] sm:$0xf]
  %v635 = vld [vmem:[%s2 + $0x14] sm:$0xf]
  %v636 = vld [vmem:[%s2 + $0x18] sm:$0xf]
  %v637 = vld [vmem:[%s2 + $0x1c] sm:$0xf]
  %v638 = vld [vmem:[%s2 + $0x20] sm:$0xf]
  %v639 = vld [vmem:[%s2 + $0x24] sm:$0xf]
  %v640 = vld [vmem:[%s2 + $0x28] sm:$0xf]
  %v641 = vld [vmem:[%s2 + $0x2c] sm:$0xf]
  %v642 = vld [vmem:[%s2 + $0x30] sm:$0xf]
  %v643 = vld [vmem:[%s2 + $0x34] sm:$0xf]
  %v644 = vld [vmem:[%s2 + $0x38] sm:$0xf]
  %v645 = vld [vmem:[%s2 + $0x3c] sm:$0xf]
  %v646 = vld [vmem:[%s2 + $0x40] sm:$0xf]
  %v647 = vld [vmem:[%s2 + $0x44] sm:$0xf]
  %v648 = vld [vmem:[%s2 + $0x48] sm:$0xf]
  %v649 = vld [vmem:[%s2 + $0x4c] sm:$0xf]
  %v650 = vld [vmem:[%s2 + $0x50] sm:$0xf]
  %v651 = vld [vmem:[%s2 + $0x54] sm:$0xf]
  %v652 = vld [vmem:[%s2 + $0x58] sm:$0xf]
  %v653 = vld [vmem:[%s2 + $0x5c] sm:$0xf]
  %v654 = vld [vmem:[%s2 + $0x60] sm:$0xf]
  %v655 = vld [vmem:[%s2 + $0x64] sm:$0xf]
  %v656 = vld [vmem:[%s2 + $0x68] sm:$0xf]
  %v657 = vld [vmem:[%s2 + $0x6c] sm:$0x3]
  %v686 = vunpack.c.l.b16 %v630
  %v687 = vunpack.c.l.b16 %v631
  %v688 = vunpack.c.l.b16 %v632
  %v689 = vunpack.c.l.b16 %v633
  %v690 = vunpack.c.l.b16 %v634
  %v691 = vunpack.c.l.b16 %v635
  %v692 = vunpack.c.l.b16 %v636
  %v693 = vunpack.c.l.b16 %v637
  %v694 = vunpack.c.l.b16 %v638
  %v695 = vunpack.c.l.b16 %v639
  %v696 = vunpack.c.l.b16 %v640
  %v697 = vunpack.c.l.b16 %v641
  %v698 = vunpack.c.l.b16 %v642
  %v699 = vunpack.c.l.b16 %v643
  %v700 = vunpack.c.l.b16 %v644
  %v701 = vunpack.c.l.b16 %v645
  %v702 = vunpack.c.l.b16 %v646
  %v703 = vunpack.c.l.b16 %v647
  %v704 = vunpack.c.l.b16 %v648
  %v705 = vunpack.c.l.b16 %v649
  %v706 = vunpack.c.l.b16 %v650
  %v707 = vunpack.c.l.b16 %v651
  %v708 = vunpack.c.l.b16 %v652
  %v709 = vunpack.c.l.b16 %v653
  %v710 = vunpack.c.l.b16 %v654
  %v711 = vunpack.c.l.b16 %v655
  %v712 = vunpack.c.l.b16 %v656
  %v713 = vunpack.c.l.b16 %v657
  %v714 = vpack.c.b16 %v687, %v686
  %v715 = vpack.c.b16 %v689, %v688
  %v716 = vpack.c.b16 %v691, %v690
  %v717 = vpack.c.b16 %v693, %v692
  %v718 = vpack.c.b16 %v695, %v694
  %v719 = vpack.c.b16 %v697, %v696
  %v720 = vpack.c.b16 %v699, %v698
  %v721 = vpack.c.b16 %v701, %v700
  %v722 = vpack.c.b16 %v703, %v702
  %v723 = vpack.c.b16 %v705, %v704
  %v724 = vpack.c.b16 %v707, %v706
  %v725 = vpack.c.b16 %v709, %v708
  %v726 = vpack.c.b16 %v711, %v710
  %v727 = vpack.c.b16 %v713, %v712
  %742 = vmatprep.subr.bf16.mxu0 0
  %743 = vmatpush1.bf16.msra.mxu0 %v191
  %744 = vmatprep.subr.bf16.mxu0 0
  %745 = vmatpush1.bf16.msra.mxu0 %v190
  %746 = vmatprep.subr.bf16.mxu0 0
  %747 = vmatpush1.bf16.msra.mxu0 %v189
  %748 = vmatprep.subr.bf16.mxu0 0
  %749 = vmatpush1.bf16.msra.mxu0 %v188
  %750 = vmatprep.subr.bf16.mxu0 0
  %751 = vmatpush1.bf16.msra.mxu0 %v187
  %752 = vmatprep.subr.bf16.mxu0 0
  %753 = vmatpush1.bf16.msra.mxu0 %v186
  %754 = vmatprep.subr.bf16.mxu0 0
  %755 = vmatpush1.bf16.msra.mxu0 %v185
  %756 = vmatprep.subr.bf16.mxu0 0
  %757 = vmatpush1.bf16.msra.mxu0 %v184
  %758 = vmatprep.subr.bf16.mxu0 0
  %759 = vmatpush2.bf16.msra.mxu0 0
  %760 = vmatprep.subr.bf16.mxu0 0
  %761 = vmatpush2.bf16.msra.mxu0 0
  %762 = vmatprep.subr.bf16.mxu0 0
  %763 = vmatpush2.bf16.msra.mxu0 0
  %764 = vmatprep.subr.bf16.mxu0 0
  %765 = vmatpush2.bf16.msra.mxu0 0
  %766 = vmatprep.subr.bf16.mxu0 0
  %767 = vmatpush2.bf16.msra.mxu0 0
  %768 = vmatprep.subr.bf16.mxu0 0
  %769 = vmatpush2.bf16.msra.mxu0 0
  %770 = vmatprep.subr.bf16.mxu0 0
  %771 = vmatpush2.bf16.msra.mxu0 0
  %772 = vmatprep.subr.bf16.mxu0 0
  %773 = vmatpush2.bf16.msra.mxu0 0
  %774 = vmatprep.mubr.bf16.mxu0 0
  %775 = vmatmul.mubr.bf16.gmra.mxu0 %v714
  %v776 = vpop.f32.mrf.mxu0
  %v777 = vadd.f32 0.0, %v776
  %v778 = vpop.f32.mrf.mxu0
  %v779 = vpop.f32.mrf.mxu0
  %v780 = vadd.f32 0.0, %v779
  %v781 = vpop.f32.mrf.mxu0
  %782 = vmatprep.mubr.bf16.mxu0 0
  %783 = vmatmul.mubr.bf16.gmra.mxu0 %v715
  %v784 = vpop.f32.mrf.mxu0
  %v785 = vadd.f32 0.0, %v784
  %v786 = vpop.f32.mrf.mxu0
  %v787 = vpop.f32.mrf.mxu0
  %v788 = vadd.f32 0.0, %v787
  %v789 = vpop.f32.mrf.mxu0
  %790 = vmatprep.mubr.bf16.mxu0 0
  %791 = vmatmul.mubr.bf16.gmra.mxu0 %v716
  %v792 = vpop.f32.mrf.mxu0
  %v793 = vadd.f32 0.0, %v792
  %v794 = vpop.f32.mrf.mxu0
  %v795 = vpop.f32.mrf.mxu0
  %v796 = vadd.f32 0.0, %v795
  %v797 = vpop.f32.mrf.mxu0
  %798 = vmatprep.mubr.bf16.mxu0 0
  %799 = vmatmul.mubr.bf16.gmra.mxu0 %v717
  %v800 = vpop.f32.mrf.mxu0
  %v801 = vadd.f32 0.0, %v800
  %v802 = vpop.f32.mrf.mxu0
  %v803 = vpop.f32.mrf.mxu0
  %v804 = vadd.f32 0.0, %v803
  %v805 = vpop.f32.mrf.mxu0
  %806 = vmatprep.mubr.bf16.mxu0 0
  %807 = vmatmul.mubr.bf16.gmra.mxu0 %v718
  %v808 = vpop.f32.mrf.mxu0
  %v809 = vadd.f32 0.0, %v808
  %v810 = vpop.f32.mrf.mxu0
  %v811 = vpop.f32.mrf.mxu0
  %v812 = vadd.f32 0.0, %v811
  %v813 = vpop.f32.mrf.mxu0
  %814 = vmatprep.mubr.bf16.mxu0 0
  %815 = vmatmul.mubr.bf16.gmra.mxu0 %v719
  %v816 = vpop.f32.mrf.mxu0
  %v817 = vadd.f32 0.0, %v816
  %v818 = vpop.f32.mrf.mxu0
  %v819 = vpop.f32.mrf.mxu0
  %v820 = vadd.f32 0.0, %v819
  %v821 = vpop.f32.mrf.mxu0
  %822 = vmatprep.mubr.bf16.mxu0 0
  %823 = vmatmul.mubr.bf16.gmra.mxu0 %v720
  %v824 = vpop.f32.mrf.mxu0
  %v825 = vadd.f32 0.0, %v824
  %v826 = vpop.f32.mrf.mxu0
  %v827 = vpop.f32.mrf.mxu0
  %v828 = vadd.f32 0.0, %v827
  %v829 = vpop.f32.mrf.mxu0
  %830 = vmatprep.mubr.bf16.mxu0 0
  %831 = vmatmul.mubr.bf16.gmra.mxu0 %v721
  %v832 = vpop.f32.mrf.mxu0
  %v833 = vadd.f32 0.0, %v832
  %v834 = vpop.f32.mrf.mxu0
  %v835 = vpop.f32.mrf.mxu0
  %v836 = vadd.f32 0.0, %v835
  %v837 = vpop.f32.mrf.mxu0
  %838 = vmatprep.mubr.bf16.mxu0 0
  %839 = vmatmul.mubr.bf16.gmra.mxu0 %v722
  %v840 = vpop.f32.mrf.mxu0
  %v841 = vadd.f32 0.0, %v840
  %v842 = vpop.f32.mrf.mxu0
  %v843 = vpop.f32.mrf.mxu0
  %v844 = vadd.f32 0.0, %v843
  %v845 = vpop.f32.mrf.mxu0
  %846 = vmatprep.mubr.bf16.mxu0 0
  %847 = vmatmul.mubr.bf16.gmra.mxu0 %v723
  %v848 = vpop.f32.mrf.mxu0
  %v849 = vadd.f32 0.0, %v848
  %v850 = vpop.f32.mrf.mxu0
  %v851 = vpop.f32.mrf.mxu0
  %v852 = vadd.f32 0.0, %v851
  %v853 = vpop.f32.mrf.mxu0
  %854 = vmatprep.mubr.bf16.mxu0 0
  %855 = vmatmul.mubr.bf16.gmra.mxu0 %v724
  %v856 = vpop.f32.mrf.mxu0
  %v857 = vadd.f32 0.0, %v856
  %v858 = vpop.f32.mrf.mxu0
  %v859 = vpop.f32.mrf.mxu0
  %v860 = vadd.f32 0.0, %v859
  %v861 = vpop.f32.mrf.mxu0
  %862 = vmatprep.mubr.bf16.mxu0 0
  %863 = vmatmul.mubr.bf16.gmra.mxu0 %v725
  %v864 = vpop.f32.mrf.mxu0
  %v865 = vadd.f32 0.0, %v864
  %v866 = vpop.f32.mrf.mxu0
  %v867 = vpop.f32.mrf.mxu0
  %v868 = vadd.f32 0.0, %v867
  %v869 = vpop.f32.mrf.mxu0
  %870 = vmatprep.mubr.bf16.mxu0 0
  %871 = vmatmul.mubr.bf16.gmra.mxu0 %v726
  %v872 = vpop.f32.mrf.mxu0
  %v873 = vadd.f32 0.0, %v872
  %v874 = vpop.f32.mrf.mxu0
  %v875 = vpop.f32.mrf.mxu0
  %v876 = vadd.f32 0.0, %v875
  %v877 = vpop.f32.mrf.mxu0
  %878 = vmatprep.mubr.bf16.mxu0 0
  %879 = vmatmul.mubr.bf16.gmra.mxu0 %v727
  %v880 = vpop.f32.mrf.mxu0
  %v881 = vadd.f32 0.0, %v880
  %v882 = vpop.f32.mrf.mxu0
  %v883 = vpop.f32.mrf.mxu0
  %v884 = vadd.f32 0.0, %v883
  %v885 = vpop.f32.mrf.mxu0
  %886 = vdwg.mxu0
  %v887 = vmax.f32 %v602, %v777
  %v888 = vmax.f32 %v603, %v780
  %v889 = vmax.f32 %v604, %v785
  %v890 = vmax.f32 %v605, %v788
  %v891 = vmax.f32 %v606, %v793
  %v892 = vmax.f32 %v607, %v796
  %v893 = vmax.f32 %v608, %v801
  %v894 = vmax.f32 %v609, %v804
  %v895 = vmax.f32 %v610, %v809
  %v896 = vmax.f32 %v611, %v812
  %v897 = vmax.f32 %v612, %v817
  %v898 = vmax.f32 %v613, %v820
  %v899 = vmax.f32 %v614, %v825
  %v900 = vmax.f32 %v615, %v828
  %v901 = vmax.f32 %v616, %v833
  %v902 = vmax.f32 %v617, %v836
  %v903 = vmax.f32 %v618, %v841
  %v904 = vmax.f32 %v619, %v844
  %v905 = vmax.f32 %v620, %v849
  %v906 = vmax.f32 %v621, %v852
  %v907 = vmax.f32 %v622, %v857
  %v908 = vmax.f32 %v623, %v860
  %v909 = vmax.f32 %v624, %v865
  %v910 = vmax.f32 %v625, %v868
  %v911 = vmax.f32 %v626, %v873
  %v912 = vmax.f32 %v627, %v876
  %v913 = vmax.f32 %v628, %v881
  %v914 = vmax.f32 %v629, %v884
  %v915 = vld [vmem:[%s3] sm:$0xf]
  %v916 = vld [vmem:[%s3 + $0x4] sm:$0xf]
  %v917 = vld [vmem:[%s3 + $0x8] sm:$0xf]
  %v918 = vld [vmem:[%s3 + $0xc] sm:$0xf]
  %v919 = vld [vmem:[%s3 + $0x10] sm:$0xf]
  %v920 = vld [vmem:[%s3 + $0x14] sm:$0xf]
  %v921 = vld [vmem:[%s3 + $0x18] sm:$0xf]
  %v922 = vld [vmem:[%s3 + $0x1c] sm:$0xf]
  %v923 = vld [vmem:[%s3 + $0x20] sm:$0xf]
  %v924 = vld [vmem:[%s3 + $0x24] sm:$0xf]
  %v925 = vld [vmem:[%s3 + $0x28] sm:$0xf]
  %v926 = vld [vmem:[%s3 + $0x2c] sm:$0xf]
  %v927 = vld [vmem:[%s3 + $0x30] sm:$0xf]
  %v928 = vld [vmem:[%s3 + $0x34] sm:$0xf]
  %v929 = vld [vmem:[%s3 + $0x38] sm:$0xf]
  %v930 = vld [vmem:[%s3 + $0x3c] sm:$0xf]
  %v931 = vld [vmem:[%s3 + $0x40] sm:$0xf]
  %v932 = vld [vmem:[%s3 + $0x44] sm:$0xf]
  %v933 = vld [vmem:[%s3 + $0x48] sm:$0xf]
  %v934 = vld [vmem:[%s3 + $0x4c] sm:$0xf]
  %v935 = vld [vmem:[%s3 + $0x50] sm:$0xf]
  %v936 = vld [vmem:[%s3 + $0x54] sm:$0xf]
  %v937 = vld [vmem:[%s3 + $0x58] sm:$0xf]
  %v938 = vld [vmem:[%s3 + $0x5c] sm:$0xf]
  %v939 = vld [vmem:[%s3 + $0x60] sm:$0xf]
  %v940 = vld [vmem:[%s3 + $0x64] sm:$0xf]
  %v941 = vld [vmem:[%s3 + $0x68] sm:$0xf]
  %v942 = vld [vmem:[%s3 + $0x6c] sm:$0x3]
  %v971 = vunpack.c.l.b16 %v915
  %v972 = vunpack.c.l.b16 %v916
  %v973 = vunpack.c.l.b16 %v917
  %v974 = vunpack.c.l.b16 %v918
  %v975 = vunpack.c.l.b16 %v919
  %v976 = vunpack.c.l.b16 %v920
  %v977 = vunpack.c.l.b16 %v921
  %v978 = vunpack.c.l.b16 %v922
  %v979 = vunpack.c.l.b16 %v923
  %v980 = vunpack.c.l.b16 %v924
  %v981 = vunpack.c.l.b16 %v925
  %v982 = vunpack.c.l.b16 %v926
  %v983 = vunpack.c.l.b16 %v927
  %v984 = vunpack.c.l.b16 %v928
  %v985 = vunpack.c.l.b16 %v929
  %v986 = vunpack.c.l.b16 %v930
  %v987 = vunpack.c.l.b16 %v931
  %v988 = vunpack.c.l.b16 %v932
  %v989 = vunpack.c.l.b16 %v933
  %v990 = vunpack.c.l.b16 %v934
  %v991 = vunpack.c.l.b16 %v935
  %v992 = vunpack.c.l.b16 %v936
  %v993 = vunpack.c.l.b16 %v937
  %v994 = vunpack.c.l.b16 %v938
  %v995 = vunpack.c.l.b16 %v939
  %v996 = vunpack.c.l.b16 %v940
  %v997 = vunpack.c.l.b16 %v941
  %v998 = vunpack.c.l.b16 %v942
  %v999 = vpack.c.b16 %v972, %v971
  %v1000 = vpack.c.b16 %v974, %v973
  %v1001 = vpack.c.b16 %v976, %v975
  %v1002 = vpack.c.b16 %v978, %v977
  %v1003 = vpack.c.b16 %v980, %v979
  %v1004 = vpack.c.b16 %v982, %v981
  %v1005 = vpack.c.b16 %v984, %v983
  %v1006 = vpack.c.b16 %v986, %v985
  %v1007 = vpack.c.b16 %v988, %v987
  %v1008 = vpack.c.b16 %v990, %v989
  %v1009 = vpack.c.b16 %v992, %v991
  %v1010 = vpack.c.b16 %v994, %v993
  %v1011 = vpack.c.b16 %v996, %v995
  %v1012 = vpack.c.b16 %v998, %v997
  %1027 = vmatprep.subr.bf16.mxu0 0
  %1028 = vmatpush1.bf16.msra.mxu0 %v191
  %1029 = vmatprep.subr.bf16.mxu0 0
  %1030 = vmatpush1.bf16.msra.mxu0 %v190
  %1031 = vmatprep.subr.bf16.mxu0 0
  %1032 = vmatpush1.bf16.msra.mxu0 %v189
  %1033 = vmatprep.subr.bf16.mxu0 0
  %1034 = vmatpush1.bf16.msra.mxu0 %v188
  %1035 = vmatprep.subr.bf16.mxu0 0
  %1036 = vmatpush1.bf16.msra.mxu0 %v187
  %1037 = vmatprep.subr.bf16.mxu0 0
  %1038 = vmatpush1.bf16.msra.mxu0 %v186
  %1039 = vmatprep.subr.bf16.mxu0 0
  %1040 = vmatpush1.bf16.msra.mxu0 %v185
  %1041 = vmatprep.subr.bf16.mxu0 0
  %1042 = vmatpush1.bf16.msra.mxu0 %v184
  %1043 = vmatprep.subr.bf16.mxu0 0
  %1044 = vmatpush2.bf16.msra.mxu0 0
  %1045 = vmatprep.subr.bf16.mxu0 0
  %1046 = vmatpush2.bf16.msra.mxu0 0
  %1047 = vmatprep.subr.bf16.mxu0 0
  %1048 = vmatpush2.bf16.msra.mxu0 0
  %1049 = vmatprep.subr.bf16.mxu0 0
  %1050 = vmatpush2.bf16.msra.mxu0 0
  %1051 = vmatprep.subr.bf16.mxu0 0
  %1052 = vmatpush2.bf16.msra.mxu0 0
  %1053 = vmatprep.subr.bf16.mxu0 0
  %1054 = vmatpush2.bf16.msra.mxu0 0
  %1055 = vmatprep.subr.bf16.mxu0 0
  %1056 = vmatpush2.bf16.msra.mxu0 0
  %1057 = vmatprep.subr.bf16.mxu0 0
  %1058 = vmatpush2.bf16.msra.mxu0 0
  %1059 = vmatprep.mubr.bf16.mxu0 0
  %1060 = vmatmul.mubr.bf16.gmra.mxu0 %v999
  %v1061 = vpop.f32.mrf.mxu0
  %v1062 = vadd.f32 0.0, %v1061
  %v1063 = vpop.f32.mrf.mxu0
  %v1064 = vpop.f32.mrf.mxu0
  %v1065 = vadd.f32 0.0, %v1064
  %v1066 = vpop.f32.mrf.mxu0
  %1067 = vmatprep.mubr.bf16.mxu0 0
  %1068 = vmatmul.mubr.bf16.gmra.mxu0 %v1000
  %v1069 = vpop.f32.mrf.mxu0
  %v1070 = vadd.f32 0.0, %v1069
  %v1071 = vpop.f32.mrf.mxu0
  %v1072 = vpop.f32.mrf.mxu0
  %v1073 = vadd.f32 0.0, %v1072
  %v1074 = vpop.f32.mrf.mxu0
  %1075 = vmatprep.mubr.bf16.mxu0 0
  %1076 = vmatmul.mubr.bf16.gmra.mxu0 %v1001
  %v1077 = vpop.f32.mrf.mxu0
  %v1078 = vadd.f32 0.0, %v1077
  %v1079 = vpop.f32.mrf.mxu0
  %v1080 = vpop.f32.mrf.mxu0
  %v1081 = vadd.f32 0.0, %v1080
  %v1082 = vpop.f32.mrf.mxu0
  %1083 = vmatprep.mubr.bf16.mxu0 0
  %1084 = vmatmul.mubr.bf16.gmra.mxu0 %v1002
  %v1085 = vpop.f32.mrf.mxu0
  %v1086 = vadd.f32 0.0, %v1085
  %v1087 = vpop.f32.mrf.mxu0
  %v1088 = vpop.f32.mrf.mxu0
  %v1089 = vadd.f32 0.0, %v1088
  %v1090 = vpop.f32.mrf.mxu0
  %1091 = vmatprep.mubr.bf16.mxu0 0
  %1092 = vmatmul.mubr.bf16.gmra.mxu0 %v1003
  %v1093 = vpop.f32.mrf.mxu0
  %v1094 = vadd.f32 0.0, %v1093
  %v1095 = vpop.f32.mrf.mxu0
  %v1096 = vpop.f32.mrf.mxu0
  %v1097 = vadd.f32 0.0, %v1096
  %v1098 = vpop.f32.mrf.mxu0
  %1099 = vmatprep.mubr.bf16.mxu0 0
  %1100 = vmatmul.mubr.bf16.gmra.mxu0 %v1004
  %v1101 = vpop.f32.mrf.mxu0
  %v1102 = vadd.f32 0.0, %v1101
  %v1103 = vpop.f32.mrf.mxu0
  %v1104 = vpop.f32.mrf.mxu0
  %v1105 = vadd.f32 0.0, %v1104
  %v1106 = vpop.f32.mrf.mxu0
  %1107 = vmatprep.mubr.bf16.mxu0 0
  %1108 = vmatmul.mubr.bf16.gmra.mxu0 %v1005
  %v1109 = vpop.f32.mrf.mxu0
  %v1110 = vadd.f32 0.0, %v1109
  %v1111 = vpop.f32.mrf.mxu0
  %v1112 = vpop.f32.mrf.mxu0
  %v1113 = vadd.f32 0.0, %v1112
  %v1114 = vpop.f32.mrf.mxu0
  %1115 = vmatprep.mubr.bf16.mxu0 0
  %1116 = vmatmul.mubr.bf16.gmra.mxu0 %v1006
  %v1117 = vpop.f32.mrf.mxu0
  %v1118 = vadd.f32 0.0, %v1117
  %v1119 = vpop.f32.mrf.mxu0
  %v1120 = vpop.f32.mrf.mxu0
  %v1121 = vadd.f32 0.0, %v1120
  %v1122 = vpop.f32.mrf.mxu0
  %1123 = vmatprep.mubr.bf16.mxu0 0
  %1124 = vmatmul.mubr.bf16.gmra.mxu0 %v1007
  %v1125 = vpop.f32.mrf.mxu0
  %v1126 = vadd.f32 0.0, %v1125
  %v1127 = vpop.f32.mrf.mxu0
  %v1128 = vpop.f32.mrf.mxu0
  %v1129 = vadd.f32 0.0, %v1128
  %v1130 = vpop.f32.mrf.mxu0
  %1131 = vmatprep.mubr.bf16.mxu0 0
  %1132 = vmatmul.mubr.bf16.gmra.mxu0 %v1008
  %v1133 = vpop.f32.mrf.mxu0
  %v1134 = vadd.f32 0.0, %v1133
  %v1135 = vpop.f32.mrf.mxu0
  %v1136 = vpop.f32.mrf.mxu0
  %v1137 = vadd.f32 0.0, %v1136
  %v1138 = vpop.f32.mrf.mxu0
  %1139 = vmatprep.mubr.bf16.mxu0 0
  %1140 = vmatmul.mubr.bf16.gmra.mxu0 %v1009
  %v1141 = vpop.f32.mrf.mxu0
  %v1142 = vadd.f32 0.0, %v1141
  %v1143 = vpop.f32.mrf.mxu0
  %v1144 = vpop.f32.mrf.mxu0
  %v1145 = vadd.f32 0.0, %v1144
  %v1146 = vpop.f32.mrf.mxu0
  %1147 = vmatprep.mubr.bf16.mxu0 0
  %1148 = vmatmul.mubr.bf16.gmra.mxu0 %v1010
  %v1149 = vpop.f32.mrf.mxu0
  %v1150 = vadd.f32 0.0, %v1149
  %v1151 = vpop.f32.mrf.mxu0
  %v1152 = vpop.f32.mrf.mxu0
  %v1153 = vadd.f32 0.0, %v1152
  %v1154 = vpop.f32.mrf.mxu0
  %1155 = vmatprep.mubr.bf16.mxu0 0
  %1156 = vmatmul.mubr.bf16.gmra.mxu0 %v1011
  %v1157 = vpop.f32.mrf.mxu0
  %v1158 = vadd.f32 0.0, %v1157
  %v1159 = vpop.f32.mrf.mxu0
  %v1160 = vpop.f32.mrf.mxu0
  %v1161 = vadd.f32 0.0, %v1160
  %v1162 = vpop.f32.mrf.mxu0
  %1163 = vmatprep.mubr.bf16.mxu0 0
  %1164 = vmatmul.mubr.bf16.gmra.mxu0 %v1012
  %v1165 = vpop.f32.mrf.mxu0
  %v1166 = vadd.f32 0.0, %v1165
  %v1167 = vpop.f32.mrf.mxu0
  %v1168 = vpop.f32.mrf.mxu0
  %v1169 = vadd.f32 0.0, %v1168
  %v1170 = vpop.f32.mrf.mxu0
  %1171 = vdwg.mxu0
  %v1172 = vmax.f32 %v887, %v1062
  %v1173 = vmax.f32 %v888, %v1065
  %v1174 = vmax.f32 %v889, %v1070
  %v1175 = vmax.f32 %v890, %v1073
  %v1176 = vmax.f32 %v891, %v1078
  %v1177 = vmax.f32 %v892, %v1081
  %v1178 = vmax.f32 %v893, %v1086
  %v1179 = vmax.f32 %v894, %v1089
  %v1180 = vmax.f32 %v895, %v1094
  %v1181 = vmax.f32 %v896, %v1097
  %v1182 = vmax.f32 %v897, %v1102
  %v1183 = vmax.f32 %v898, %v1105
  %v1184 = vmax.f32 %v899, %v1110
  %v1185 = vmax.f32 %v900, %v1113
  %v1186 = vmax.f32 %v901, %v1118
  %v1187 = vmax.f32 %v902, %v1121
  %v1188 = vmax.f32 %v903, %v1126
  %v1189 = vmax.f32 %v904, %v1129
  %v1190 = vmax.f32 %v905, %v1134
  %v1191 = vmax.f32 %v906, %v1137
  %v1192 = vmax.f32 %v907, %v1142
  %v1193 = vmax.f32 %v908, %v1145
  %v1194 = vmax.f32 %v909, %v1150
  %v1195 = vmax.f32 %v910, %v1153
  %v1196 = vmax.f32 %v911, %v1158
  %v1197 = vmax.f32 %v912, %v1161
  %v1198 = vmax.f32 %v913, %v1166
  %v1199 = vmax.f32 %v914, %v1169
  %v1200 = vld [vmem:[%s5] sm:$0x1]
  %v1202 = vlaneseq
  %v1203 = vshrl.u32 %v1202, 7
  %v1204 = vsub.s32 0, %v1203
  %v1205 = vrot.slane %v1200, %v1204
  %v1207 = vadd.f32 %v1172, %v1205
  %v1208 = vadd.f32 %v1173, %v1205
  %v1209 = vadd.f32 %v1174, %v1205
  %v1210 = vadd.f32 %v1175, %v1205
  %v1211 = vadd.f32 %v1176, %v1205
  %v1212 = vadd.f32 %v1177, %v1205
  %v1213 = vadd.f32 %v1178, %v1205
  %v1214 = vadd.f32 %v1179, %v1205
  %v1215 = vadd.f32 %v1180, %v1205
  %v1216 = vadd.f32 %v1181, %v1205
  %v1217 = vadd.f32 %v1182, %v1205
  %v1218 = vadd.f32 %v1183, %v1205
  %v1219 = vadd.f32 %v1184, %v1205
  %v1220 = vadd.f32 %v1185, %v1205
  %v1221 = vadd.f32 %v1186, %v1205
  %v1222 = vadd.f32 %v1187, %v1205
  %v1223 = vadd.f32 %v1188, %v1205
  %v1224 = vadd.f32 %v1189, %v1205
  %v1225 = vadd.f32 %v1190, %v1205
  %v1226 = vadd.f32 %v1191, %v1205
  %v1227 = vadd.f32 %v1192, %v1205
  %v1228 = vadd.f32 %v1193, %v1205
  %v1229 = vadd.f32 %v1194, %v1205
  %v1230 = vadd.f32 %v1195, %v1205
  %v1231 = vadd.f32 %v1196, %v1205
  %v1232 = vadd.f32 %v1197, %v1205
  %v1233 = vadd.f32 %v1198, %v1205
  %v1234 = vadd.f32 %v1199, %v1205
  %v1235 = vpack.c.bf16 %v1208, %v1207
  %v1236 = vpack.c.bf16 %v1210, %v1209
  %v1237 = vpack.c.bf16 %v1212, %v1211
  %v1238 = vpack.c.bf16 %v1214, %v1213
  %v1239 = vpack.c.bf16 %v1216, %v1215
  %v1240 = vpack.c.bf16 %v1218, %v1217
  %v1241 = vpack.c.bf16 %v1220, %v1219
  %v1242 = vpack.c.bf16 %v1222, %v1221
  %v1243 = vpack.c.bf16 %v1224, %v1223
  %v1244 = vpack.c.bf16 %v1226, %v1225
  %v1245 = vpack.c.bf16 %v1228, %v1227
  %v1246 = vpack.c.bf16 %v1230, %v1229
  %v1247 = vpack.c.bf16 %v1232, %v1231
  %v1248 = vpack.c.bf16 %v1234, %v1233
  %v1263 = vunpack.c.l.b16 %v1235
  %v1264 = vunpack.c.h.b16 %v1235
  %v1265 = vunpack.c.l.b16 %v1236
  %v1266 = vunpack.c.h.b16 %v1236
  %v1267 = vunpack.c.l.b16 %v1237
  %v1268 = vunpack.c.h.b16 %v1237
  %v1269 = vunpack.c.l.b16 %v1238
  %v1270 = vunpack.c.h.b16 %v1238
  %v1271 = vunpack.c.l.b16 %v1239
  %v1272 = vunpack.c.h.b16 %v1239
  %v1273 = vunpack.c.l.b16 %v1240
  %v1274 = vunpack.c.h.b16 %v1240
  %v1275 = vunpack.c.l.b16 %v1241
  %v1276 = vunpack.c.h.b16 %v1241
  %v1277 = vunpack.c.l.b16 %v1242
  %v1278 = vunpack.c.h.b16 %v1242
  %v1279 = vunpack.c.l.b16 %v1243
  %v1280 = vunpack.c.h.b16 %v1243
  %v1281 = vunpack.c.l.b16 %v1244
  %v1282 = vunpack.c.h.b16 %v1244
  %v1283 = vunpack.c.l.b16 %v1245
  %v1284 = vunpack.c.h.b16 %v1245
  %v1285 = vunpack.c.l.b16 %v1246
  %v1286 = vunpack.c.h.b16 %v1246
  %v1287 = vunpack.c.l.b16 %v1247
  %v1288 = vunpack.c.h.b16 %v1247
  %v1289 = vunpack.c.l.b16 %v1248
  %v1290 = vunpack.c.h.b16 %v1248
  %v1291 = vpack.c.b16 %v1263, %v1263
  %v1292 = vpack.c.b16 %v1264, %v1264
  %v1293 = vpack.c.b16 %v1265, %v1265
  %v1294 = vpack.c.b16 %v1266, %v1266
  %v1295 = vpack.c.b16 %v1267, %v1267
  %v1296 = vpack.c.b16 %v1268, %v1268
  %v1297 = vpack.c.b16 %v1269, %v1269
  %v1298 = vpack.c.b16 %v1270, %v1270
  %v1299 = vpack.c.b16 %v1271, %v1271
  %v1300 = vpack.c.b16 %v1272, %v1272
  %v1301 = vpack.c.b16 %v1273, %v1273
  %v1302 = vpack.c.b16 %v1274, %v1274
  %v1303 = vpack.c.b16 %v1275, %v1275
  %v1304 = vpack.c.b16 %v1276, %v1276
  %v1305 = vpack.c.b16 %v1277, %v1277
  %v1306 = vpack.c.b16 %v1278, %v1278
  %v1307 = vpack.c.b16 %v1279, %v1279
  %v1308 = vpack.c.b16 %v1280, %v1280
  %v1309 = vpack.c.b16 %v1281, %v1281
  %v1310 = vpack.c.b16 %v1282, %v1282
  %v1311 = vpack.c.b16 %v1283, %v1283
  %v1312 = vpack.c.b16 %v1284, %v1284
  %v1313 = vpack.c.b16 %v1285, %v1285
  %v1314 = vpack.c.b16 %v1286, %v1286
  %v1315 = vpack.c.b16 %v1287, %v1287
  %v1316 = vpack.c.b16 %v1288, %v1288
  %v1317 = vpack.c.b16 %v1289, %v1289
  %v1318 = vpack.c.b16 %v1290, %v1290
  %vm1347 = vcmask 519168
  %1348 = vst.msk [vmem:[%s6] sm:$0xf] %vm1347, %v1291
  %1349 = vst.msk [vmem:[%s6 + $0x4] sm:$0xf] %vm1347, %v1292
  %1350 = vst.msk [vmem:[%s6 + $0x8] sm:$0xf] %vm1347, %v1293
  %1351 = vst.msk [vmem:[%s6 + $0xc] sm:$0xf] %vm1347, %v1294
  %1352 = vst.msk [vmem:[%s6 + $0x10] sm:$0xf] %vm1347, %v1295
  %1353 = vst.msk [vmem:[%s6 + $0x14] sm:$0xf] %vm1347, %v1296
  %1354 = vst.msk [vmem:[%s6 + $0x18] sm:$0xf] %vm1347, %v1297
  %1355 = vst.msk [vmem:[%s6 + $0x1c] sm:$0xf] %vm1347, %v1298
  %1356 = vst.msk [vmem:[%s6 + $0x20] sm:$0xf] %vm1347, %v1299
  %1357 = vst.msk [vmem:[%s6 + $0x24] sm:$0xf] %vm1347, %v1300
  %1358 = vst.msk [vmem:[%s6 + $0x28] sm:$0xf] %vm1347, %v1301
  %1359 = vst.msk [vmem:[%s6 + $0x2c] sm:$0xf] %vm1347, %v1302
  %1360 = vst.msk [vmem:[%s6 + $0x30] sm:$0xf] %vm1347, %v1303
  %1361 = vst.msk [vmem:[%s6 + $0x34] sm:$0xf] %vm1347, %v1304
  %1362 = vst.msk [vmem:[%s6 + $0x38] sm:$0xf] %vm1347, %v1305
  %1363 = vst.msk [vmem:[%s6 + $0x3c] sm:$0xf] %vm1347, %v1306
  %1364 = vst.msk [vmem:[%s6 + $0x40] sm:$0xf] %vm1347, %v1307
  %1365 = vst.msk [vmem:[%s6 + $0x44] sm:$0xf] %vm1347, %v1308
  %1366 = vst.msk [vmem:[%s6 + $0x48] sm:$0xf] %vm1347, %v1309
  %1367 = vst.msk [vmem:[%s6 + $0x4c] sm:$0xf] %vm1347, %v1310
  %1368 = vst.msk [vmem:[%s6 + $0x50] sm:$0xf] %vm1347, %v1311
  %1369 = vst.msk [vmem:[%s6 + $0x54] sm:$0xf] %vm1347, %v1312
  %1370 = vst.msk [vmem:[%s6 + $0x58] sm:$0xf] %vm1347, %v1313
  %1371 = vst.msk [vmem:[%s6 + $0x5c] sm:$0xf] %vm1347, %v1314
  %1372 = vst.msk [vmem:[%s6 + $0x60] sm:$0xf] %vm1347, %v1315
  %1373 = vst.msk [vmem:[%s6 + $0x64] sm:$0xf] %vm1347, %v1316
  %1374 = vst.msk [vmem:[%s6 + $0x68] sm:$0xf] %vm1347, %v1317
  %vm1375 = vcmask 517120
  %1376 = vst.msk [vmem:[%s6 + $0x6c] sm:$0x3] %vm1375, %v1318
  // Predicated region
  $region26: #{actor_forward.4} parent=0 // pred_check
    _
  $region27: #{actor_forward.4} parent=0 // pred_check_branch
    %1378 = sbr.rel (0) target = $region29
  $region28: #{actor_forward.4} parent=0 // pred_region
    _
  $region29: #{actor_forward.4} parent=0 // pred_fallthru
    _
  // Predicated region
  $region30: #{actor_forward.4} parent=0 // pred_check
    _
  $region31: #{actor_forward.4} parent=0 // pred_check_branch
    %1380 = sbr.rel (0) target = $region33
  $region32: #{actor_forward.4} parent=0 // pred_region
    _
  $region33: #{actor_forward.4} parent=0 // pred_fallthru
    _

// kernel: actor_forward.5
$region0: #{actor_forward.5}
  #allocation0 [shape = 'u32[]', space=smem, size = 0x4, offset = 0x4, fixed_abs, tag = 'smem constant byte address 0x4 - core index']
  #allocation1 [shape = 'u32[144,128]{1,0:T(1,128)}', space=vmem, size = 0x12000, scoped, tag = 'internal scratch']
  %s0 = inlined_call_operand.vmem [shape: bf16[40,256], index: 0, kind: input, shape index: {}]
  %s1 = inlined_call_operand.vmem [shape: bf16[40,256], index: 1, kind: input, shape index: {}]
  %s2 = inlined_call_operand.vmem [shape: bf16[40,256], index: 2, kind: input, shape index: {}]
  %s3 = inlined_call_operand.vmem [shape: bf16[40,256], index: 3, kind: input, shape index: {}]
  %s4 = inlined_call_operand.vmem [shape: bf16[256,64], index: 4, kind: input, shape index: {}]
  %s5 = inlined_call_operand.vmem [shape: f32[1,64], index: 5, kind: input, shape index: {}]
  %s6 = inlined_call_operand.vmem [shape: bf16[1280,256], index: 6, kind: input, shape index: {}]
  %s7 = inlined_call_operand.vmem [shape: f32[1,256], index: 7, kind: input, shape index: {}]
  %s8 = inlined_call_operand.vmem [shape: bf16[256,64], index: 8, kind: input, shape index: {}]
  %s9 = inlined_call_operand.vmem [shape: f32[1,64], index: 9, kind: input, shape index: {}]
  %s10 = inlined_call_operand.vmem [shape: bf16[64,64], index: 10, kind: input, shape index: {}]
  %s11 = inlined_call_operand.vmem [shape: f32[1,64], index: 11, kind: input, shape index: {}]
  %s12 = inlined_call_operand.vmem [shape: bf16[64,6], index: 12, kind: input, shape index: {}]
  %s13 = inlined_call_operand.vmem [shape: f32[1,6], index: 13, kind: input, shape index: {}]
  %s14 = inlined_call_operand.hbm [shape: f32[2,3], index: 14, kind: output, shape index: {0}]
  %s15 = inlined_call_operand.hbm [shape: f32[2,3], index: 15, kind: output, shape index: {1}]
  %16 = xla_tuple %s14, %s15
  %s17 = sld [smem:[#allocation0]]
  $region74: #{actor_forward.5} parent=0
    _
  %s19 = ssub.s32 1, %s17
  %s20 = scalar_select 0, %s19, %s17
  $region1: #{actor_forward.5} parent=0
    #allocation2 [shape = 'u8[1024]{0}', space=vmem, size = 0x400, scoped, tag = 'output window, operand 0, single buffered']
    #allocation3 [shape = 's32[1]{0}', space=sflag, size = 0x4, scoped, tag = 'scoped memory for actor_forward.5']
    #allocation4 [shape = 'u8[1024]{0}', space=vmem, size = 0x400, scoped, tag = 'output window, operand 1, single buffered']
    #allocation5 [shape = 's32[1]{0}', space=sflag, size = 0x4, scoped, tag = 'scoped memory for actor_forward.5']
    %21 = vsyncpa [#allocation3], 0
    %22 = vsyncpa [#allocation5], 0
    // Predicated region
    $region2: #{actor_forward.5} parent=1 // pred_check
      _
    $region3: #{actor_forward.5} parent=1 // pred_check_branch
      %24 = sbr.rel (0) target = $region5
    $region4: #{actor_forward.5} parent=1 // pred_region
      _
    $region5: #{actor_forward.5} parent=1 // pred_fallthru
      _
    // Predicated region
    $region6: #{actor_forward.5} parent=1 // pred_check
      _
    $region7: #{actor_forward.5} parent=1 // pred_check_branch
      %26 = sbr.rel (0) target = $region9
    $region8: #{actor_forward.5} parent=1 // pred_region
      _
    $region9: #{actor_forward.5} parent=1 // pred_fallthru
      _
    // Predicated region
    $region10: #{actor_forward.5} parent=1 // pred_check
      _
    $region11: #{actor_forward.5} parent=1 // pred_check_branch
      %28 = sbr.rel (0) target = $region13
    $region12: #{actor_forward.5} parent=1 // pred_region
      _
    $region13: #{actor_forward.5} parent=1 // pred_fallthru
      _
    // Predicated region
    $region14: #{actor_forward.5} parent=1 // pred_check
      _
    $region15: #{actor_forward.5} parent=1 // pred_check_branch
      %30 = sbr.rel (0) target = $region17
    $region16: #{actor_forward.5} parent=1 // pred_region
      _
    $region17: #{actor_forward.5} parent=1 // pred_fallthru
      _
    // Predicated region
    $region18: #{actor_forward.5} parent=1 // pred_check
      _
    $region19: #{actor_forward.5} parent=1 // pred_check_branch
      %32 = sbr.rel (0) target = $region21
    $region20: #{actor_forward.5} parent=1 // pred_region
      _
    $region21: #{actor_forward.5} parent=1 // pred_fallthru
      _
    // Predicated region
    $region22: #{actor_forward.5} parent=1 // pred_check
      _
    $region23: #{actor_forward.5} parent=1 // pred_check_branch
      %34 = sbr.rel (0) target = $region25
    $region24: #{actor_forward.5} parent=1 // pred_region
      _
    $region25: #{actor_forward.5} parent=1 // pred_fallthru
      _
    // Predicated region
    $region26: #{actor_forward.5} parent=1 // pred_check
      _
    $region27: #{actor_forward.5} parent=1 // pred_check_branch
      %36 = sbr.rel (0) target = $region29
    $region28: #{actor_forward.5} parent=1 // pred_region
      _
    $region29: #{actor_forward.5} parent=1 // pred_fallthru
      _
    // Predicated region
    $region30: #{actor_forward.5} parent=1 // pred_check
      _
    $region31: #{actor_forward.5} parent=1 // pred_check_branch
      %38 = sbr.rel (0) target = $region33
    $region32: #{actor_forward.5} parent=1 // pred_region
      _
    $region33: #{actor_forward.5} parent=1 // pred_fallthru
      _
    // Predicated region
    $region34: #{actor_forward.5} parent=1 // pred_check
      _
    $region35: #{actor_forward.5} parent=1 // pred_check_branch
      %40 = sbr.rel (0) target = $region37
    $region36: #{actor_forward.5} parent=1 // pred_region
      _
    $region37: #{actor_forward.5} parent=1 // pred_fallthru
      _
    // Predicated region
    $region38: #{actor_forward.5} parent=1 // pred_check
      _
    $region39: #{actor_forward.5} parent=1 // pred_check_branch
      %42 = sbr.rel (0) target = $region41
    $region40: #{actor_forward.5} parent=1 // pred_region
      _
    $region41: #{actor_forward.5} parent=1 // pred_fallthru
      _
    // Predicated region
    $region42: #{actor_forward.5} parent=1 // pred_check
      _
    $region43: #{actor_forward.5} parent=1 // pred_check_branch
      %44 = sbr.rel (0) target = $region45
    $region44: #{actor_forward.5} parent=1 // pred_region
      _
    $region45: #{actor_forward.5} parent=1 // pred_fallthru
      _
    // Predicated region
    $region46: #{actor_forward.5} parent=1 // pred_check
      _
    $region47: #{actor_forward.5} parent=1 // pred_check_branch
      %46 = sbr.rel (0) target = $region49
    $region48: #{actor_forward.5} parent=1 // pred_region
      _
    $region49: #{actor_forward.5} parent=1 // pred_fallthru
      _
    // Predicated region
    $region50: #{actor_forward.5} parent=1 // pred_check
      _
    $region51: #{actor_forward.5} parent=1 // pred_check_branch
      %48 = sbr.rel (0) target = $region53
    $region52: #{actor_forward.5} parent=1 // pred_region
      _
    $region53: #{actor_forward.5} parent=1 // pred_fallthru
      _
    // Predicated region
    $region54: #{actor_forward.5} parent=1 // pred_check
      _
    $region55: #{actor_forward.5} parent=1 // pred_check_branch
      %50 = sbr.rel (0) target = $region57
    $region56: #{actor_forward.5} parent=1 // pred_region
      _
    $region57: #{actor_forward.5} parent=1 // pred_fallthru
      _
    %v52 = vld [vmem:[%s4] sm:$0xf]
    %v53 = vld [vmem:[%s4 + $0x4] sm:$0xf]
    %v54 = vld [vmem:[%s4 + $0x8] sm:$0xf]
    %v55 = vld [vmem:[%s4 + $0xc] sm:$0xf]
    %v56 = vld [vmem:[%s4 + $0x10] sm:$0xf]
    %v57 = vld [vmem:[%s4 + $0x14] sm:$0xf]
    %v58 = vld [vmem:[%s4 + $0x18] sm:$0xf]
    %v59 = vld [vmem:[%s4 + $0x1c] sm:$0xf]
    %v60 = vld [vmem:[%s4 + $0x20] sm:$0xf]
    %v61 = vld [vmem:[%s4 + $0x24] sm:$0xf]
    %v62 = vld [vmem:[%s4 + $0x28] sm:$0xf]
    %v63 = vld [vmem:[%s4 + $0x2c] sm:$0xf]
    %v64 = vld [vmem:[%s4 + $0x30] sm:$0xf]
    %v65 = vld [vmem:[%s4 + $0x34] sm:$0xf]
    %v66 = vld [vmem:[%s4 + $0x38] sm:$0xf]
    %v67 = vld [vmem:[%s4 + $0x3c] sm:$0xf]
    %v68 = vld [vmem:[%s4 + $0x40] sm:$0xf]
    %v69 = vld [vmem:[%s4 + $0x44] sm:$0xf]
    %v70 = vld [vmem:[%s4 + $0x48] sm:$0xf]
    %v71 = vld [vmem:[%s4 + $0x4c] sm:$0xf]
    %v72 = vld [vmem:[%s4 + $0x50] sm:$0xf]
    %v73 = vld [vmem:[%s4 + $0x54] sm:$0xf]
    %v74 = vld [vmem:[%s4 + $0x58] sm:$0xf]
    %v75 = vld [vmem:[%s4 + $0x5c] sm:$0xf]
    %v76 = vld [vmem:[%s4 + $0x60] sm:$0xf]
    %v77 = vld [vmem:[%s4 + $0x64] sm:$0xf]
    %v78 = vld [vmem:[%s4 + $0x68] sm:$0xf]
    %v79 = vld [vmem:[%s4 + $0x6c] sm:$0xf]
    %v80 = vld [vmem:[%s4 + $0x70] sm:$0xf]
    %v81 = vld [vmem:[%s4 + $0x74] sm:$0xf]
    %v82 = vld [vmem:[%s4 + $0x78] sm:$0xf]
    %v83 = vld [vmem:[%s4 + $0x7c] sm:$0xf]
    %v84 = vld [vmem:[%s0] sm:$0xff]
    %v85 = vld [vmem:[%s0 + $0x8] sm:$0xff]
    %v86 = vld [vmem:[%s0 + $0x10] sm:$0xff]
    %v87 = vld [vmem:[%s0 + $0x18] sm:$0xff]
    %v88 = vld [vmem:[%s0 + $0x20] sm:$0xff]
    %v94 = vunpack.c.l.b16 %v84
    %v95 = vunpack.c.h.b16 %v84
    %v96 = vunpack.c.l.b16 %v85
    %v97 = vunpack.c.h.b16 %v85
    %v98 = vunpack.c.l.b16 %v86
    %v99 = vunpack.c.h.b16 %v86
    %v100 = vunpack.c.l.b16 %v87
    %v101 = vunpack.c.h.b16 %v87
    %v102 = vunpack.c.l.b16 %v88
    %v103 = vunpack.c.h.b16 %v88
    %v104 = vpack.c.b16 %v96, %v94
    %v105 = vpack.c.b16 %v97, %v95
    %v106 = vpack.c.b16 %v100, %v98
    %v107 = vpack.c.b16 %v101, %v99
    %v108 = vpack.c.b16 %v102, %v102
    %v109 = vpack.c.b16 %v103, %v103
    %v148 = vunpack.c.l.b16 %v52
    %v149 = vunpack.c.l.b16 %v53
    %v150 = vunpack.c.l.b16 %v54
    %v151 = vunpack.c.l.b16 %v55
    %v152 = vunpack.c.l.b16 %v56
    %v153 = vunpack.c.l.b16 %v57
    %v154 = vunpack.c.l.b16 %v58
    %v155 = vunpack.c.l.b16 %v59
    %v156 = vunpack.c.l.b16 %v60
    %v157 = vunpack.c.l.b16 %v61
    %v158 = vunpack.c.l.b16 %v62
    %v159 = vunpack.c.l.b16 %v63
    %v160 = vunpack.c.l.b16 %v64
    %v161 = vunpack.c.l.b16 %v65
    %v162 = vunpack.c.l.b16 %v66
    %v163 = vunpack.c.l.b16 %v67
    %v164 = vunpack.c.l.b16 %v68
    %v165 = vunpack.c.l.b16 %v69
    %v166 = vunpack.c.l.b16 %v70
    %v167 = vunpack.c.l.b16 %v71
    %v168 = vunpack.c.l.b16 %v72
    %v169 = vunpack.c.l.b16 %v73
    %v170 = vunpack.c.l.b16 %v74
    %v171 = vunpack.c.l.b16 %v75
    %v172 = vunpack.c.l.b16 %v76
    %v173 = vunpack.c.l.b16 %v77
    %v174 = vunpack.c.l.b16 %v78
    %v175 = vunpack.c.l.b16 %v79
    %v176 = vunpack.c.l.b16 %v80
    %v177 = vunpack.c.l.b16 %v81
    %v178 = vunpack.c.l.b16 %v82
    %v179 = vunpack.c.l.b16 %v83
    %v180 = vpack.c.b16 %v149, %v148
    %v181 = vpack.c.b16 %v151, %v150
    %v182 = vpack.c.b16 %v153, %v152
    %v183 = vpack.c.b16 %v155, %v154
    %v184 = vpack.c.b16 %v157, %v156
    %v185 = vpack.c.b16 %v159, %v158
    %v186 = vpack.c.b16 %v161, %v160
    %v187 = vpack.c.b16 %v163, %v162
    %v188 = vpack.c.b16 %v165, %v164
    %v189 = vpack.c.b16 %v167, %v166
    %v190 = vpack.c.b16 %v169, %v168
    %v191 = vpack.c.b16 %v171, %v170
    %v192 = vpack.c.b16 %v173, %v172
    %v193 = vpack.c.b16 %v175, %v174
    %v194 = vpack.c.b16 %v177, %v176
    %v195 = vpack.c.b16 %v179, %v178
    %212 = vmatprep.subr.bf16.mxu0 0
    %213 = vmatpush1.bf16.msra.mxu0 %v187
    %214 = vmatprep.subr.bf16.mxu0 0
    %215 = vmatpush1.bf16.msra.mxu0 %v186
    %216 = vmatprep.subr.bf16.mxu0 0
    %217 = vmatpush1.bf16.msra.mxu0 %v185
    %218 = vmatprep.subr.bf16.mxu0 0
    %219 = vmatpush1.bf16.msra.mxu0 %v184
    %220 = vmatprep.subr.bf16.mxu0 0
    %221 = vmatpush1.bf16.msra.mxu0 %v183
    %222 = vmatprep.subr.bf16.mxu0 0
    %223 = vmatpush1.bf16.msra.mxu0 %v182
    %224 = vmatprep.subr.bf16.mxu0 0
    %225 = vmatpush1.bf16.msra.mxu0 %v181
    %226 = vmatprep.subr.bf16.mxu0 0
    %227 = vmatpush1.bf16.msra.mxu0 %v180
    %228 = vmatprep.subr.bf16.mxu0 0
    %229 = vmatpush2.bf16.msra.mxu0 %v195
    %230 = vmatprep.subr.bf16.mxu0 0
    %231 = vmatpush2.bf16.msra.mxu0 %v194
    %232 = vmatprep.subr.bf16.mxu0 0
    %233 = vmatpush2.bf16.msra.mxu0 %v193
    %234 = vmatprep.subr.bf16.mxu0 0
    %235 = vmatpush2.bf16.msra.mxu0 %v192
    %236 = vmatprep.subr.bf16.mxu0 0
    %237 = vmatpush2.bf16.msra.mxu0 %v191
    %238 = vmatprep.subr.bf16.mxu0 0
    %239 = vmatpush2.bf16.msra.mxu0 %v190
    %240 = vmatprep.subr.bf16.mxu0 0
    %241 = vmatpush2.bf16.msra.mxu0 %v189
    %242 = vmatprep.subr.bf16.mxu0 0
    %243 = vmatpush2.bf16.msra.mxu0 %v188
    %244 = vmatprep.mubr.bf16.mxu0 %v105
    %245 = vmatmul.mubr.bf16.gmra.mxu0 %v104
    %v246 = vpop.f32.mrf.mxu0
    %v247 = vadd.f32 0.0, %v246
    %v248 = vpop.f32.mrf.mxu0
    %v249 = vpop.f32.mrf.mxu0
    %v250 = vadd.f32 0.0, %v249
    %v251 = vpop.f32.mrf.mxu0
    %252 = vmatprep.mubr.bf16.mxu0 %v107
    %253 = vmatmul.mubr.bf16.gmra.mxu0 %v106
    %v254 = vpop.f32.mrf.mxu0
    %v255 = vadd.f32 0.0, %v254
    %v256 = vpop.f32.mrf.mxu0
    %v257 = vpop.f32.mrf.mxu0
    %v258 = vadd.f32 0.0, %v257
    %v259 = vpop.f32.mrf.mxu0
    %260 = vmatprep.mubr.bf16.mxu0 %v109
    %261 = vmatmul.mubr.bf16.gmra.mxu0 %v108
    %v262 = vpop.f32.mrf.mxu0
    %v263 = vadd.f32 0.0, %v262
    %v264 = vpop.f32.mrf.mxu0
    %v265 = vpop.f32.mrf.mxu0
    %v266 = vpop.f32.mrf.mxu0
    %267 = vdwg.mxu0
    %v268 = vld [vmem:[%s1] sm:$0xff]
    %v269 = vld [vmem:[%s1 + $0x8] sm:$0xff]
    %v270 = vld [vmem:[%s1 + $0x10] sm:$0xff]
    %v271 = vld [vmem:[%s1 + $0x18] sm:$0xff]
    %v272 = vld [vmem:[%s1 + $0x20] sm:$0xff]
    %v278 = vunpack.c.l.b16 %v268
    %v279 = vunpack.c.h.b16 %v268
    %v280 = vunpack.c.l.b16 %v269
    %v281 = vunpack.c.h.b16 %v269
    %v282 = vunpack.c.l.b16 %v270
    %v283 = vunpack.c.h.b16 %v270
    %v284 = vunpack.c.l.b16 %v271
    %v285 = vunpack.c.h.b16 %v271
    %v286 = vunpack.c.l.b16 %v272
    %v287 = vunpack.c.h.b16 %v272
    %v288 = vpack.c.b16 %v280, %v278
    %v289 = vpack.c.b16 %v281, %v279
    %v290 = vpack.c.b16 %v284, %v282
    %v291 = vpack.c.b16 %v285, %v283
    %v292 = vpack.c.b16 %v286, %v286
    %v293 = vpack.c.b16 %v287, %v287
    %300 = vmatprep.subr.bf16.mxu0 0
    %301 = vmatpush1.bf16.msra.mxu0 %v187
    %302 = vmatprep.subr.bf16.mxu0 0
    %303 = vmatpush1.bf16.msra.mxu0 %v186
    %304 = vmatprep.subr.bf16.mxu0 0
    %305 = vmatpush1.bf16.msra.mxu0 %v185
    %306 = vmatprep.subr.bf16.mxu0 0
    %307 = vmatpush1.bf16.msra.mxu0 %v184
    %308 = vmatprep.subr.bf16.mxu0 0
    %309 = vmatpush1.bf16.msra.mxu0 %v183
    %310 = vmatprep.subr.bf16.mxu0 0
    %311 = vmatpush1.bf16.msra.mxu0 %v182
    %312 = vmatprep.subr.bf16.mxu0 0
    %313 = vmatpush1.bf16.msra.mxu0 %v181
    %314 = vmatprep.subr.bf16.mxu0 0
    %315 = vmatpush1.bf16.msra.mxu0 %v180
    %316 = vmatprep.subr.bf16.mxu0 0
    %317 = vmatpush2.bf16.msra.mxu0 %v195
    %318 = vmatprep.subr.bf16.mxu0 0
    %319 = vmatpush2.bf16.msra.mxu0 %v194
    %320 = vmatprep.subr.bf16.mxu0 0
    %321 = vmatpush2.bf16.msra.mxu0 %v193
    %322 = vmatprep.subr.bf16.mxu0 0
    %323 = vmatpush2.bf16.msra.mxu0 %v192
    %324 = vmatprep.subr.bf16.mxu0 0
    %325 = vmatpush2.bf16.msra.mxu0 %v191
    %326 = vmatprep.subr.bf16.mxu0 0
    %327 = vmatpush2.bf16.msra.mxu0 %v190
    %328 = vmatprep.subr.bf16.mxu0 0
    %329 = vmatpush2.bf16.msra.mxu0 %v189
    %330 = vmatprep.subr.bf16.mxu0 0
    %331 = vmatpush2.bf16.msra.mxu0 %v188
    %332 = vmatprep.mubr.bf16.mxu0 %v289
    %333 = vmatmul.mubr.bf16.gmra.mxu0 %v288
    %v334 = vpop.f32.mrf.mxu0
    %v335 = vadd.f32 0.0, %v334
    %v336 = vpop.f32.mrf.mxu0
    %v337 = vpop.f32.mrf.mxu0
    %v338 = vadd.f32 0.0, %v337
    %v339 = vpop.f32.mrf.mxu0
    %340 = vmatprep.mubr.bf16.mxu0 %v291
    %341 = vmatmul.mubr.bf16.gmra.mxu0 %v290
    %v342 = vpop.f32.mrf.mxu0
    %v343 = vadd.f32 0.0, %v342
    %v344 = vpop.f32.mrf.mxu0
    %v345 = vpop.f32.mrf.mxu0
    %v346 = vadd.f32 0.0, %v345
    %v347 = vpop.f32.mrf.mxu0
    %348 = vmatprep.mubr.bf16.mxu0 %v293
    %349 = vmatmul.mubr.bf16.gmra.mxu0 %v292
    %v350 = vpop.f32.mrf.mxu0
    %v351 = vadd.f32 0.0, %v350
    %v352 = vpop.f32.mrf.mxu0
    %v353 = vpop.f32.mrf.mxu0
    %v354 = vpop.f32.mrf.mxu0
    %355 = vdwg.mxu0
    %v356 = vmax.f32 %v247, %v335
    %v357 = vmax.f32 %v250, %v338
    %v358 = vmax.f32 %v255, %v343
    %v359 = vmax.f32 %v258, %v346
    %v360 = vmax.f32 %v263, %v351
    %v361 = vld [vmem:[%s2] sm:$0xff]
    %v362 = vld [vmem:[%s2 + $0x8] sm:$0xff]
    %v363 = vld [vmem:[%s2 + $0x10] sm:$0xff]
    %v364 = vld [vmem:[%s2 + $0x18] sm:$0xff]
    %v365 = vld [vmem:[%s2 + $0x20] sm:$0xff]
    %v371 = vunpack.c.l.b16 %v361
    %v372 = vunpack.c.h.b16 %v361
    %v373 = vunpack.c.l.b16 %v362
    %v374 = vunpack.c.h.b16 %v362
    %v375 = vunpack.c.l.b16 %v363
    %v376 = vunpack.c.h.b16 %v363
    %v377 = vunpack.c.l.b16 %v364
    %v378 = vunpack.c.h.b16 %v364
    %v379 = vunpack.c.l.b16 %v365
    %v380 = vunpack.c.h.b16 %v365
    %v381 = vpack.c.b16 %v373, %v371
    %v382 = vpack.c.b16 %v374, %v372
    %v383 = vpack.c.b16 %v377, %v375
    %v384 = vpack.c.b16 %v378, %v376
    %v385 = vpack.c.b16 %v379, %v379
    %v386 = vpack.c.b16 %v380, %v380
    %393 = vmatprep.subr.bf16.mxu0 0
    %394 = vmatpush1.bf16.msra.mxu0 %v187
    %395 = vmatprep.subr.bf16.mxu0 0
    %396 = vmatpush1.bf16.msra.mxu0 %v186
    %397 = vmatprep.subr.bf16.mxu0 0
    %398 = vmatpush1.bf16.msra.mxu0 %v185
    %399 = vmatprep.subr.bf16.mxu0 0
    %400 = vmatpush1.bf16.msra.mxu0 %v184
    %401 = vmatprep.subr.bf16.mxu0 0
    %402 = vmatpush1.bf16.msra.mxu0 %v183
    %403 = vmatprep.subr.bf16.mxu0 0
    %404 = vmatpush1.bf16.msra.mxu0 %v182
    %405 = vmatprep.subr.bf16.mxu0 0
    %406 = vmatpush1.bf16.msra.mxu0 %v181
    %407 = vmatprep.subr.bf16.mxu0 0
    %408 = vmatpush1.bf16.msra.mxu0 %v180
    %409 = vmatprep.subr.bf16.mxu0 0
    %410 = vmatpush2.bf16.msra.mxu0 %v195
    %411 = vmatprep.subr.bf16.mxu0 0
    %412 = vmatpush2.bf16.msra.mxu0 %v194
    %413 = vmatprep.subr.bf16.mxu0 0
    %414 = vmatpush2.bf16.msra.mxu0 %v193
    %415 = vmatprep.subr.bf16.mxu0 0
    %416 = vmatpush2.bf16.msra.mxu0 %v192
    %417 = vmatprep.subr.bf16.mxu0 0
    %418 = vmatpush2.bf16.msra.mxu0 %v191
    %419 = vmatprep.subr.bf16.mxu0 0
    %420 = vmatpush2.bf16.msra.mxu0 %v190
    %421 = vmatprep.subr.bf16.mxu0 0
    %422 = vmatpush2.bf16.msra.mxu0 %v189
    %423 = vmatprep.subr.bf16.mxu0 0
    %424 = vmatpush2.bf16.msra.mxu0 %v188
    %425 = vmatprep.mubr.bf16.mxu0 %v382
    %426 = vmatmul.mubr.bf16.gmra.mxu0 %v381
    %v427 = vpop.f32.mrf.mxu0
    %v428 = vadd.f32 0.0, %v427
    %v429 = vpop.f32.mrf.mxu0
    %v430 = vpop.f32.mrf.mxu0
    %v431 = vadd.f32 0.0, %v430
    %v432 = vpop.f32.mrf.mxu0
    %433 = vmatprep.mubr.bf16.mxu0 %v384
    %434 = vmatmul.mubr.bf16.gmra.mxu0 %v383
    %v435 = vpop.f32.mrf.mxu0
    %v436 = vadd.f32 0.0, %v435
    %v437 = vpop.f32.mrf.mxu0
    %v438 = vpop.f32.mrf.mxu0
    %v439 = vadd.f32 0.0, %v438
    %v440 = vpop.f32.mrf.mxu0
    %441 = vmatprep.mubr.bf16.mxu0 %v386
    %442 = vmatmul.mubr.bf16.gmra.mxu0 %v385
    %v443 = vpop.f32.mrf.mxu0
    %v444 = vadd.f32 0.0, %v443
    %v445 = vpop.f32.mrf.mxu0
    %v446 = vpop.f32.mrf.mxu0
    %v447 = vpop.f32.mrf.mxu0
    %448 = vdwg.mxu0
    %v449 = vmax.f32 %v356, %v428
    %v450 = vmax.f32 %v357, %v431
    %v451 = vmax.f32 %v358, %v436
    %v452 = vmax.f32 %v359, %v439
    %v453 = vmax.f32 %v360, %v444
    %v454 = vld [vmem:[%s3] sm:$0xff]
    %v455 = vld [vmem:[%s3 + $0x8] sm:$0xff]
    %v456 = vld [vmem:[%s3 + $0x10] sm:$0xff]
    %v457 = vld [vmem:[%s3 + $0x18] sm:$0xff]
    %v458 = vld [vmem:[%s3 + $0x20] sm:$0xff]
    %v464 = vunpack.c.l.b16 %v454
    %v465 = vunpack.c.h.b16 %v454
    %v466 = vunpack.c.l.b16 %v455
    %v467 = vunpack.c.h.b16 %v455
    %v468 = vunpack.c.l.b16 %v456
    %v469 = vunpack.c.h.b16 %v456
    %v470 = vunpack.c.l.b16 %v457
    %v471 = vunpack.c.h.b16 %v457
    %v472 = vunpack.c.l.b16 %v458
    %v473 = vunpack.c.h.b16 %v458
    %v474 = vpack.c.b16 %v466, %v464
    %v475 = vpack.c.b16 %v467, %v465
    %v476 = vpack.c.b16 %v470, %v468
    %v477 = vpack.c.b16 %v471, %v469
    %v478 = vpack.c.b16 %v472, %v472
    %v479 = vpack.c.b16 %v473, %v473
    %486 = vmatprep.subr.bf16.mxu0 0
    %487 = vmatpush1.bf16.msra.mxu0 %v187
    %488 = vmatprep.subr.bf16.mxu0 0
    %489 = vmatpush1.bf16.msra.mxu0 %v186
    %490 = vmatprep.subr.bf16.mxu0 0
    %491 = vmatpush1.bf16.msra.mxu0 %v185
    %492 = vmatprep.subr.bf16.mxu0 0
    %493 = vmatpush1.bf16.msra.mxu0 %v184
    %494 = vmatprep.subr.bf16.mxu0 0
    %495 = vmatpush1.bf16.msra.mxu0 %v183
    %496 = vmatprep.subr.bf16.mxu0 0
    %497 = vmatpush1.bf16.msra.mxu0 %v182
    %498 = vmatprep.subr.bf16.mxu0 0
    %499 = vmatpush1.bf16.msra.mxu0 %v181
    %500 = vmatprep.subr.bf16.mxu0 0
    %501 = vmatpush1.bf16.msra.mxu0 %v180
    %502 = vmatprep.subr.bf16.mxu0 0
    %503 = vmatpush2.bf16.msra.mxu0 %v195
    %504 = vmatprep.subr.bf16.mxu0 0
    %505 = vmatpush2.bf16.msra.mxu0 %v194
    %506 = vmatprep.subr.bf16.mxu0 0
    %507 = vmatpush2.bf16.msra.mxu0 %v193
    %508 = vmatprep.subr.bf16.mxu0 0
    %509 = vmatpush2.bf16.msra.mxu0 %v192
    %510 = vmatprep.subr.bf16.mxu0 0
    %511 = vmatpush2.bf16.msra.mxu0 %v191
    %512 = vmatprep.subr.bf16.mxu0 0
    %513 = vmatpush2.bf16.msra.mxu0 %v190
    %514 = vmatprep.subr.bf16.mxu0 0
    %515 = vmatpush2.bf16.msra.mxu0 %v189
    %516 = vmatprep.subr.bf16.mxu0 0
    %517 = vmatpush2.bf16.msra.mxu0 %v188
    %518 = vmatprep.mubr.bf16.mxu0 %v475
    %519 = vmatmul.mubr.bf16.gmra.mxu0 %v474
    %v520 = vpop.f32.mrf.mxu0
    %v521 = vadd.f32 0.0, %v520
    %v522 = vpop.f32.mrf.mxu0
    %v523 = vpop.f32.mrf.mxu0
    %v524 = vadd.f32 0.0, %v523
    %v525 = vpop.f32.mrf.mxu0
    %526 = vmatprep.mubr.bf16.mxu0 %v477
    %527 = vmatmul.mubr.bf16.gmra.mxu0 %v476
    %v528 = vpop.f32.mrf.mxu0
    %v529 = vadd.f32 0.0, %v528
    %v530 = vpop.f32.mrf.mxu0
    %v531 = vpop.f32.mrf.mxu0
    %v532 = vadd.f32 0.0, %v531
    %v533 = vpop.f32.mrf.mxu0
    %534 = vmatprep.mubr.bf16.mxu0 %v479
    %535 = vmatmul.mubr.bf16.gmra.mxu0 %v478
    %v536 = vpop.f32.mrf.mxu0
    %v537 = vadd.f32 0.0, %v536
    %v538 = vpop.f32.mrf.mxu0
    %v539 = vpop.f32.mrf.mxu0
    %v540 = vpop.f32.mrf.mxu0
    %541 = vdwg.mxu0
    %v542 = vmax.f32 %v449, %v521
    %v543 = vmax.f32 %v450, %v524
    %v544 = vmax.f32 %v451, %v529
    %v545 = vmax.f32 %v452, %v532
    %v546 = vmax.f32 %v453, %v537
    %v547 = vld [vmem:[%s5] sm:$0x1]
    %v549 = vlaneseq
    %v550 = vshrl.u32 %v549, 7
    %v551 = vsub.s32 0, %v550
    %v552 = vrot.slane %v547, %v551
    %v554 = vadd.f32 %v542, %v552
    %v555 = vadd.f32 %v543, %v552
    %v556 = vadd.f32 %v544, %v552
    %v557 = vadd.f32 %v545, %v552
    %v558 = vadd.f32 %v546, %v552
    %v559 = vpack.c.bf16 %v554, %v554
    %v560 = vld [vmem:[%s6] sm:$0xff]
    %v561 = vld [vmem:[%s6 + $0x8] sm:$0xff]
    %v562 = vld [vmem:[%s6 + $0x10] sm:$0xff]
    %v563 = vld [vmem:[%s6 + $0x18] sm:$0xff]
    %v564 = vld [vmem:[%s6 + $0x20] sm:$0xff]
    %v565 = vld [vmem:[%s6 + $0x28] sm:$0xff]
    %v566 = vld [vmem:[%s6 + $0x30] sm:$0xff]
    %v567 = vld [vmem:[%s6 + $0x38] sm:$0xff]
    %v568 = vld [vmem:[%s6 + $0x40] sm:$0xff]
    %v569 = vld [vmem:[%s6 + $0x48] sm:$0xff]
    %v570 = vld [vmem:[%s6 + $0x50] sm:$0xff]
    %v571 = vld [vmem:[%s6 + $0x58] sm:$0xff]
    %v572 = vld [vmem:[%s6 + $0x60] sm:$0xff]
    %v573 = vld [vmem:[%s6 + $0x68] sm:$0xff]
    %v574 = vld [vmem:[%s6 + $0x70] sm:$0xff]
    %v575 = vld [vmem:[%s6 + $0x78] sm:$0xff]
    %v577 = vrot.slane %v559, 1
    %v586 = vunpack.c.l.b16 %v568
    %v587 = vunpack.c.h.b16 %v568
    %v588 = vunpack.c.l.b16 %v569
    %v589 = vunpack.c.h.b16 %v569
    %v590 = vunpack.c.l.b16 %v570
    %v591 = vunpack.c.h.b16 %v570
    %v592 = vunpack.c.l.b16 %v571
    %v593 = vunpack.c.h.b16 %v571
    %v594 = vunpack.c.l.b16 %v572
    %v595 = vunpack.c.h.b16 %v572
    %v596 = vunpack.c.l.b16 %v573
    %v597 = vunpack.c.h.b16 %v573
    %v598 = vunpack.c.l.b16 %v574
    %v599 = vunpack.c.h.b16 %v574
    %v600 = vunpack.c.l.b16 %v575
    %v601 = vunpack.c.h.b16 %v575
    %v602 = vpack.c.b16 %v588, %v586
    %v603 = vpack.c.b16 %v589, %v587
    %v604 = vpack.c.b16 %v592, %v590
    %v605 = vpack.c.b16 %v593, %v591
    %v606 = vpack.c.b16 %v596, %v594
    %v607 = vpack.c.b16 %v597, %v595
    %v608 = vpack.c.b16 %v600, %v598
    %v609 = vpack.c.b16 %v601, %v599
    %vm618 = vcmask 523264
    %v620 = vsel %vm618, %v577, 0
    %622 = vmatprep.subr.bf16.mxu0 0
    %623 = vmatpush1.bf16.msra.mxu0 0
    %624 = vmatprep.subr.bf16.mxu0 0
    %625 = vmatpush1.bf16.msra.mxu0 0
    %626 = vmatprep.subr.bf16.mxu0 0
    %627 = vmatpush1.bf16.msra.mxu0 0
    %628 = vmatprep.subr.bf16.mxu0 0
    %629 = vmatpush1.bf16.msra.mxu0 0
    %630 = vmatprep.subr.bf16.mxu0 %v609
    %631 = vmatpush1.bf16.msra.mxu0 %v608
    %632 = vmatprep.subr.bf16.mxu0 %v607
    %633 = vmatpush1.bf16.msra.mxu0 %v606
    %634 = vmatprep.subr.bf16.mxu0 %v605
    %635 = vmatpush1.bf16.msra.mxu0 %v604
    %636 = vmatprep.subr.bf16.mxu0 %v603
    %637 = vmatpush1.bf16.msra.mxu0 %v602
    %638 = vmatprep.subr.bf16.mxu0 0
    %639 = vmatpush2.bf16.msra.mxu0 0
    %640 = vmatprep.subr.bf16.mxu0 0
    %641 = vmatpush2.bf16.msra.mxu0 0
    %642 = vmatprep.subr.bf16.mxu0 0
    %643 = vmatpush2.bf16.msra.mxu0 0
    %644 = vmatprep.subr.bf16.mxu0 0
    %645 = vmatpush2.bf16.msra.mxu0 0
    %646 = vmatprep.subr.bf16.mxu0 0
    %647 = vmatpush2.bf16.msra.mxu0 0
    %648 = vmatprep.subr.bf16.mxu0 0
    %649 = vmatpush2.bf16.msra.mxu0 0
    %650 = vmatprep.subr.bf16.mxu0 0
    %651 = vmatpush2.bf16.msra.mxu0 0
    %652 = vmatprep.subr.bf16.mxu0 0
    %653 = vmatpush2.bf16.msra.mxu0 0
    %654 = vmatprep.mubr.bf16.mxu0 0
    %655 = vmatmul.mubr.bf16.gmra.mxu0 %v620
    %v656 = vpop.f32.mrf.mxu0
    %v657 = vadd.f32 0.0, %v656
    %v658 = vpop.f32.mrf.mxu0
    %v659 = vadd.f32 0.0, %v658
    %v660 = vpop.f32.mrf.mxu0
    %v661 = vpop.f32.mrf.mxu0
    %662 = vdwg.mxu0
    %v671 = vunpack.c.l.b16 %v560
    %v672 = vunpack.c.h.b16 %v560
    %v673 = vunpack.c.l.b16 %v561
    %v674 = vunpack.c.h.b16 %v561
    %v675 = vunpack.c.l.b16 %v562
    %v676 = vunpack.c.h.b16 %v562
    %v677 = vunpack.c.l.b16 %v563
    %v678 = vunpack.c.h.b16 %v563
    %v679 = vunpack.c.l.b16 %v564
    %v680 = vunpack.c.h.b16 %v564
    %v681 = vunpack.c.l.b16 %v565
    %v682 = vunpack.c.h.b16 %v565
    %v683 = vunpack.c.l.b16 %v566
    %v684 = vunpack.c.h.b16 %v566
    %v685 = vunpack.c.l.b16 %v567
    %v686 = vunpack.c.h.b16 %v567
    %v687 = vpack.c.b16 %v673, %v671
    %v688 = vpack.c.b16 %v674, %v672
    %v689 = vpack.c.b16 %v677, %v675
    %v690 = vpack.c.b16 %v678, %v676
    %v691 = vpack.c.b16 %v681, %v679
    %v692 = vpack.c.b16 %v682, %v680
    %v693 = vpack.c.b16 %v685, %v683
    %v694 = vpack.c.b16 %v686, %v684
    %v704 = vsel %vm618, %v559, 0
    %706 = vmatprep.subr.bf16.mxu0 0
    %707 = vmatpush1.bf16.msra.mxu0 0
    %708 = vmatprep.subr.bf16.mxu0 0
    %709 = vmatpush1.bf16.msra.mxu0 0
    %710 = vmatprep.subr.bf16.mxu0 0
    %711 = vmatpush1.bf16.msra.mxu0 0
    %712 = vmatprep.subr.bf16.mxu0 0
    %713 = vmatpush1.bf16.msra.mxu0 0
    %714 = vmatprep.subr.bf16.mxu0 %v694
    %715 = vmatpush1.bf16.msra.mxu0 %v693
    %716 = vmatprep.subr.bf16.mxu0 %v692
    %717 = vmatpush1.bf16.msra.mxu0 %v691
    %718 = vmatprep.subr.bf16.mxu0 %v690
    %719 = vmatpush1.bf16.msra.mxu0 %v689
    %720 = vmatprep.subr.bf16.mxu0 %v688
    %721 = vmatpush1.bf16.msra.mxu0 %v687
    %722 = vmatprep.subr.bf16.mxu0 0
    %723 = vmatpush2.bf16.msra.mxu0 0
    %724 = vmatprep.subr.bf16.mxu0 0
    %725 = vmatpush2.bf16.msra.mxu0 0
    %726 = vmatprep.subr.bf16.mxu0 0
    %727 = vmatpush2.bf16.msra.mxu0 0
    %728 = vmatprep.subr.bf16.mxu0 0
    %729 = vmatpush2.bf16.msra.mxu0 0
    %730 = vmatprep.subr.bf16.mxu0 0
    %731 = vmatpush2.bf16.msra.mxu0 0
    %732 = vmatprep.subr.bf16.mxu0 0
    %733 = vmatpush2.bf16.msra.mxu0 0
    %734 = vmatprep.subr.bf16.mxu0 0
    %735 = vmatpush2.bf16.msra.mxu0 0
    %736 = vmatprep.subr.bf16.mxu0 0
    %737 = vmatpush2.bf16.msra.mxu0 0
    %738 = vmatprep.mubr.bf16.mxu0 0
    %739 = vmatmul.mubr.bf16.gmra.mxu0 %v704
    %v740 = vpop.f32.mrf.mxu0
    %v741 = vadd.f32 %v657, %v740
    %v742 = vpop.f32.mrf.mxu0
    %v743 = vadd.f32 %v659, %v742
    %v744 = vpop.f32.mrf.mxu0
    %v745 = vpop.f32.mrf.mxu0
    %746 = vdwg.mxu0
    %v747 = vld [vmem:[%s6 + $0x80] sm:$0xff]
    %v748 = vld [vmem:[%s6 + $0x88] sm:$0xff]
    %v749 = vld [vmem:[%s6 + $0x90] sm:$0xff]
    %v750 = vld [vmem:[%s6 + $0x98] sm:$0xff]
    %v751 = vld [vmem:[%s6 + $0xa0] sm:$0xff]
    %v752 = vld [vmem:[%s6 + $0xa8] sm:$0xff]
    %v753 = vld [vmem:[%s6 + $0xb0] sm:$0xff]
    %v754 = vld [vmem:[%s6 + $0xb8] sm:$0xff]
    %v755 = vrot.slane %v559, 2
    %v764 = vunpack.c.l.b16 %v747
    %v765 = vunpack.c.h.b16 %v747
    %v766 = vunpack.c.l.b16 %v748
    %v767 = vunpack.c.h.b16 %v748
    %v768 = vunpack.c.l.b16 %v749
    %v769 = vunpack.c.h.b16 %v749
    %v770 = vunpack.c.l.b16 %v750
    %v771 = vunpack.c.h.b16 %v750
    %v772 = vunpack.c.l.b16 %v751
    %v773 = vunpack.c.h.b16 %v751
    %v774 = vunpack.c.l.b16 %v752
    %v775 = vunpack.c.h.b16 %v752
    %v776 = vunpack.c.l.b16 %v753
    %v777 = vunpack.c.h.b16 %v753
    %v778 = vunpack.c.l.b16 %v754
    %v779 = vunpack.c.h.b16 %v754
    %v780 = vpack.c.b16 %v766, %v764
    %v781 = vpack.c.b16 %v767, %v765
    %v782 = vpack.c.b16 %v770, %v768
    %v783 = vpack.c.b16 %v771, %v769
    %v784 = vpack.c.b16 %v774, %v772
    %v785 = vpack.c.b16 %v775, %v773
    %v786 = vpack.c.b16 %v778, %v776
    %v787 = vpack.c.b16 %v779, %v777
    %v797 = vsel %vm618, %v755, 0
    %799 = vmatprep.subr.bf16.mxu0 0
    %800 = vmatpush1.bf16.msra.mxu0 0
    %801 = vmatprep.subr.bf16.mxu0 0
    %802 = vmatpush1.bf16.msra.mxu0 0
    %803 = vmatprep.subr.bf16.mxu0 0
    %804 = vmatpush1.bf16.msra.mxu0 0
    %805 = vmatprep.subr.bf16.mxu0 0
    %806 = vmatpush1.bf16.msra.mxu0 0
    %807 = vmatprep.subr.bf16.mxu0 %v787
    %808 = vmatpush1.bf16.msra.mxu0 %v786
    %809 = vmatprep.subr.bf16.mxu0 %v785
    %810 = vmatpush1.bf16.msra.mxu0 %v784
    %811 = vmatprep.subr.bf16.mxu0 %v783
    %812 = vmatpush1.bf16.msra.mxu0 %v782
    %813 = vmatprep.subr.bf16.mxu0 %v781
    %814 = vmatpush1.bf16.msra.mxu0 %v780
    %815 = vmatprep.subr.bf16.mxu0 0
    %816 = vmatpush2.bf16.msra.mxu0 0
    %817 = vmatprep.subr.bf16.mxu0 0
    %818 = vmatpush2.bf16.msra.mxu0 0
    %819 = vmatprep.subr.bf16.mxu0 0
    %820 = vmatpush2.bf16.msra.mxu0 0
    %821 = vmatprep.subr.bf16.mxu0 0
    %822 = vmatpush2.bf16.msra.mxu0 0
    %823 = vmatprep.subr.bf16.mxu0 0
    %824 = vmatpush2.bf16.msra.mxu0 0
    %825 = vmatprep.subr.bf16.mxu0 0
    %826 = vmatpush2.bf16.msra.mxu0 0
    %827 = vmatprep.subr.bf16.mxu0 0
    %828 = vmatpush2.bf16.msra.mxu0 0
    %829 = vmatprep.subr.bf16.mxu0 0
    %830 = vmatpush2.bf16.msra.mxu0 0
    %831 = vmatprep.mubr.bf16.mxu0 0
    %832 = vmatmul.mubr.bf16.gmra.mxu0 %v797
    %v833 = vpop.f32.mrf.mxu0
    %v834 = vadd.f32 0.0, %v833
    %v835 = vpop.f32.mrf.mxu0
    %v836 = vadd.f32 0.0, %v835
    %v837 = vpop.f32.mrf.mxu0
    %v838 = vpop.f32.mrf.mxu0
    %839 = vdwg.mxu0
    %v840 = vadd.f32 %v741, %v834
    %v841 = vadd.f32 %v743, %v836
    %v842 = vld [vmem:[%s6 + $0xc0] sm:$0xff]
    %v843 = vld [vmem:[%s6 + $0xc8] sm:$0xff]
    %v844 = vld [vmem:[%s6 + $0xd0] sm:$0xff]
    %v845 = vld [vmem:[%s6 + $0xd8] sm:$0xff]
    %v846 = vld [vmem:[%s6 + $0xe0] sm:$0xff]
    %v847 = vld [vmem:[%s6 + $0xe8] sm:$0xff]
    %v848 = vld [vmem:[%s6 + $0xf0] sm:$0xff]
    %v849 = vld [vmem:[%s6 + $0xf8] sm:$0xff]
    %v850 = vrot.slane %v559, 3
    %v859 = vunpack.c.l.b16 %v842
    %v860 = vunpack.c.h.b16 %v842
    %v861 = vunpack.c.l.b16 %v843
    %v862 = vunpack.c.h.b16 %v843
    %v863 = vunpack.c.l.b16 %v844
    %v864 = vunpack.c.h.b16 %v844
    %v865 = vunpack.c.l.b16 %v845
    %v866 = vunpack.c.h.b16 %v845
    %v867 = vunpack.c.l.b16 %v846
    %v868 = vunpack.c.h.b16 %v846
    %v869 = vunpack.c.l.b16 %v847
    %v870 = vunpack.c.h.b16 %v847
    %v871 = vunpack.c.l.b16 %v848
    %v872 = vunpack.c.h.b16 %v848
    %v873 = vunpack.c.l.b16 %v849
    %v874 = vunpack.c.h.b16 %v849
    %v875 = vpack.c.b16 %v861, %v859
    %v876 = vpack.c.b16 %v862, %v860
    %v877 = vpack.c.b16 %v865, %v863
    %v878 = vpack.c.b16 %v866, %v864
    %v879 = vpack.c.b16 %v869, %v867
    %v880 = vpack.c.b16 %v870, %v868
    %v881 = vpack.c.b16 %v873, %v871
    %v882 = vpack.c.b16 %v874, %v872
    %v892 = vsel %vm618, %v850, 0
    %894 = vmatprep.subr.bf16.mxu0 0
    %895 = vmatpush1.bf16.msra.mxu0 0
    %896 = vmatprep.subr.bf16.mxu0 0
    %897 = vmatpush1.bf16.msra.mxu0 0
    %898 = vmatprep.subr.bf16.mxu0 0
    %899 = vmatpush1.bf16.msra.mxu0 0
    %900 = vmatprep.subr.bf16.mxu0 0
    %901 = vmatpush1.bf16.msra.mxu0 0
    %902 = vmatprep.subr.bf16.mxu0 %v882
    %903 = vmatpush1.bf16.msra.mxu0 %v881
    %904 = vmatprep.subr.bf16.mxu0 %v880
    %905 = vmatpush1.bf16.msra.mxu0 %v879
    %906 = vmatprep.subr.bf16.mxu0 %v878
    %907 = vmatpush1.bf16.msra.mxu0 %v877
    %908 = vmatprep.subr.bf16.mxu0 %v876
    %909 = vmatpush1.bf16.msra.mxu0 %v875
    %910 = vmatprep.subr.bf16.mxu0 0
    %911 = vmatpush2.bf16.msra.mxu0 0
    %912 = vmatprep.subr.bf16.mxu0 0
    %913 = vmatpush2.bf16.msra.mxu0 0
    %914 = vmatprep.subr.bf16.mxu0 0
    %915 = vmatpush2.bf16.msra.mxu0 0
    %916 = vmatprep.subr.bf16.mxu0 0
    %917 = vmatpush2.bf16.msra.mxu0 0
    %918 = vmatprep.subr.bf16.mxu0 0
    %919 = vmatpush2.bf16.msra.mxu0 0
    %920 = vmatprep.subr.bf16.mxu0 0
    %921 = vmatpush2.bf16.msra.mxu0 0
    %922 = vmatprep.subr.bf16.mxu0 0
    %923 = vmatpush2.bf16.msra.mxu0 0
    %924 = vmatprep.subr.bf16.mxu0 0
    %925 = vmatpush2.bf16.msra.mxu0 0
    %926 = vmatprep.mubr.bf16.mxu0 0
    %927 = vmatmul.mubr.bf16.gmra.mxu0 %v892
    %v928 = vpop.f32.mrf.mxu0
    %v929 = vadd.f32 0.0, %v928
    %v930 = vpop.f32.mrf.mxu0
    %v931 = vadd.f32 0.0, %v930
    %v932 = vpop.f32.mrf.mxu0
    %v933 = vpop.f32.mrf.mxu0
    %934 = vdwg.mxu0
    %v935 = vadd.f32 %v840, %v929
    %v936 = vadd.f32 %v841, %v931
    %v937 = vpack.c.bf16 %v555, %v555
    %v938 = vld [vmem:[%s6 + $0x100] sm:$0xff]
    %v939 = vld [vmem:[%s6 + $0x108] sm:$0xff]
    %v940 = vld [vmem:[%s6 + $0x110] sm:$0xff]
    %v941 = vld [vmem:[%s6 + $0x118] sm:$0xff]
    %v942 = vld [vmem:[%s6 + $0x120] sm:$0xff]
    %v943 = vld [vmem:[%s6 + $0x128] sm:$0xff]
    %v944 = vld [vmem:[%s6 + $0x130] sm:$0xff]
    %v945 = vld [vmem:[%s6 + $0x138] sm:$0xff]
    %v954 = vunpack.c.l.b16 %v938
    %v955 = vunpack.c.h.b16 %v938
    %v956 = vunpack.c.l.b16 %v939
    %v957 = vunpack.c.h.b16 %v939
    %v958 = vunpack.c.l.b16 %v940
    %v959 = vunpack.c.h.b16 %v940
    %v960 = vunpack.c.l.b16 %v941
    %v961 = vunpack.c.h.b16 %v941
    %v962 = vunpack.c.l.b16 %v942
    %v963 = vunpack.c.h.b16 %v942
    %v964 = vunpack.c.l.b16 %v943
    %v965 = vunpack.c.h.b16 %v943
    %v966 = vunpack.c.l.b16 %v944
    %v967 = vunpack.c.h.b16 %v944
    %v968 = vunpack.c.l.b16 %v945
    %v969 = vunpack.c.h.b16 %v945
    %v970 = vpack.c.b16 %v956, %v954
    %v971 = vpack.c.b16 %v957, %v955
    %v972 = vpack.c.b16 %v960, %v958
    %v973 = vpack.c.b16 %v961, %v959
    %v974 = vpack.c.b16 %v964, %v962
    %v975 = vpack.c.b16 %v965, %v963
    %v976 = vpack.c.b16 %v968, %v966
    %v977 = vpack.c.b16 %v969, %v967
    %v987 = vsel %vm618, %v937, 0
    %989 = vmatprep.subr.bf16.mxu0 0
    %990 = vmatpush1.bf16.msra.mxu0 0
    %991 = vmatprep.subr.bf16.mxu0 0
    %992 = vmatpush1.bf16.msra.mxu0 0
    %993 = vmatprep.subr.bf16.mxu0 0
    %994 = vmatpush1.bf16.msra.mxu0 0
    %995 = vmatprep.subr.bf16.mxu0 0
    %996 = vmatpush1.bf16.msra.mxu0 0
    %997 = vmatprep.subr.bf16.mxu0 %v977
    %998 = vmatpush1.bf16.msra.mxu0 %v976
    %999 = vmatprep.subr.bf16.mxu0 %v975
    %1000 = vmatpush1.bf16.msra.mxu0 %v974
    %1001 = vmatprep.subr.bf16.mxu0 %v973
    %1002 = vmatpush1.bf16.msra.mxu0 %v972
    %1003 = vmatprep.subr.bf16.mxu0 %v971
    %1004 = vmatpush1.bf16.msra.mxu0 %v970
    %1005 = vmatprep.subr.bf16.mxu0 0
    %1006 = vmatpush2.bf16.msra.mxu0 0
    %1007 = vmatprep.subr.bf16.mxu0 0
    %1008 = vmatpush2.bf16.msra.mxu0 0
    %1009 = vmatprep.subr.bf16.mxu0 0
    %1010 = vmatpush2.bf16.msra.mxu0 0
    %1011 = vmatprep.subr.bf16.mxu0 0
    %1012 = vmatpush2.bf16.msra.mxu0 0
    %1013 = vmatprep.subr.bf16.mxu0 0
    %1014 = vmatpush2.bf16.msra.mxu0 0
    %1015 = vmatprep.subr.bf16.mxu0 0
    %1016 = vmatpush2.bf16.msra.mxu0 0
    %1017 = vmatprep.subr.bf16.mxu0 0
    %1018 = vmatpush2.bf16.msra.mxu0 0
    %1019 = vmatprep.subr.bf16.mxu0 0
    %1020 = vmatpush2.bf16.msra.mxu0 0
    %1021 = vmatprep.mubr.bf16.mxu0 0
    %1022 = vmatmul.mubr.bf16.gmra.mxu0 %v987
    %v1023 = vpop.f32.mrf.mxu0
    %v1024 = vadd.f32 0.0, %v1023
    %v1025 = vpop.f32.mrf.mxu0
    %v1026 = vadd.f32 0.0, %v1025
    %v1027 = vpop.f32.mrf.mxu0
    %v1028 = vpop.f32.mrf.mxu0
    %1029 = vdwg.mxu0
    %v1030 = vadd.f32 %v935, %v1024
    %v1031 = vadd.f32 %v936, %v1026
    %v1032 = vld [vmem:[%s6 + $0x140] sm:$0xff]
    %v1033 = vld [vmem:[%s6 + $0x148] sm:$0xff]
    %v1034 = vld [vmem:[%s6 + $0x150] sm:$0xff]
    %v1035 = vld [vmem:[%s6 + $0x158] sm:$0xff]
    %v1036 = vld [vmem:[%s6 + $0x160] sm:$0xff]
    %v1037 = vld [vmem:[%s6 + $0x168] sm:$0xff]
    %v1038 = vld [vmem:[%s6 + $0x170] sm:$0xff]
    %v1039 = vld [vmem:[%s6 + $0x178] sm:$0xff]
    %v1041 = vrot.slane %v937, 1
    %v1050 = vunpack.c.l.b16 %v1032
    %v1051 = vunpack.c.h.b16 %v1032
    %v1052 = vunpack.c.l.b16 %v1033
    %v1053 = vunpack.c.h.b16 %v1033
    %v1054 = vunpack.c.l.b16 %v1034
    %v1055 = vunpack.c.h.b16 %v1034
    %v1056 = vunpack.c.l.b16 %v1035
    %v1057 = vunpack.c.h.b16 %v1035
    %v1058 = vunpack.c.l.b16 %v1036
    %v1059 = vunpack.c.h.b16 %v1036
    %v1060 = vunpack.c.l.b16 %v1037
    %v1061 = vunpack.c.h.b16 %v1037
    %v1062 = vunpack.c.l.b16 %v1038
    %v1063 = vunpack.c.h.b16 %v1038
    %v1064 = vunpack.c.l.b16 %v1039
    %v1065 = vunpack.c.h.b16 %v1039
    %v1066 = vpack.c.b16 %v1052, %v1050
    %v1067 = vpack.c.b16 %v1053, %v1051
    %v1068 = vpack.c.b16 %v1056, %v1054
    %v1069 = vpack.c.b16 %v1057, %v1055
    %v1070 = vpack.c.b16 %v1060, %v1058
    %v1071 = vpack.c.b16 %v1061, %v1059
    %v1072 = vpack.c.b16 %v1064, %v1062
    %v1073 = vpack.c.b16 %v1065, %v1063
    %v1083 = vsel %vm618, %v1041, 0
    %1085 = vmatprep.subr.bf16.mxu0 0
    %1086 = vmatpush1.bf16.msra.mxu0 0
    %1087 = vmatprep.subr.bf16.mxu0 0
    %1088 = vmatpush1.bf16.msra.mxu0 0
    %1089 = vmatprep.subr.bf16.mxu0 0
    %1090 = vmatpush1.bf16.msra.mxu0 0
    %1091 = vmatprep.subr.bf16.mxu0 0
    %1092 = vmatpush1.bf16.msra.mxu0 0
    %1093 = vmatprep.subr.bf16.mxu0 %v1073
    %1094 = vmatpush1.bf16.msra.mxu0 %v1072
    %1095 = vmatprep.subr.bf16.mxu0 %v1071
    %1096 = vmatpush1.bf16.msra.mxu0 %v1070
    %1097 = vmatprep.subr.bf16.mxu0 %v1069
    %1098 = vmatpush1.bf16.msra.mxu0 %v1068
    %1099 = vmatprep.subr.bf16.mxu0 %v1067
    %1100 = vmatpush1.bf16.msra.mxu0 %v1066
    %1101 = vmatprep.subr.bf16.mxu0 0
    %1102 = vmatpush2.bf16.msra.mxu0 0
    %1103 = vmatprep.subr.bf16.mxu0 0
    %1104 = vmatpush2.bf16.msra.mxu0 0
    %1105 = vmatprep.subr.bf16.mxu0 0
    %1106 = vmatpush2.bf16.msra.mxu0 0
    %1107 = vmatprep.subr.bf16.mxu0 0
    %1108 = vmatpush2.bf16.msra.mxu0 0
    %1109 = vmatprep.subr.bf16.mxu0 0
    %1110 = vmatpush2.bf16.msra.mxu0 0
    %1111 = vmatprep.subr.bf16.mxu0 0
    %1112 = vmatpush2.bf16.msra.mxu0 0
    %1113 = vmatprep.subr.bf16.mxu0 0
    %1114 = vmatpush2.bf16.msra.mxu0 0
    %1115 = vmatprep.subr.bf16.mxu0 0
    %1116 = vmatpush2.bf16.msra.mxu0 0
    %1117 = vmatprep.mubr.bf16.mxu0 0
    %1118 = vmatmul.mubr.bf16.gmra.mxu0 %v1083
    %v1119 = vpop.f32.mrf.mxu0
    %v1120 = vadd.f32 0.0, %v1119
    %v1121 = vpop.f32.mrf.mxu0
    %v1122 = vadd.f32 0.0, %v1121
    %v1123 = vpop.f32.mrf.mxu0
    %v1124 = vpop.f32.mrf.mxu0
    %1125 = vdwg.mxu0
    %v1126 = vadd.f32 %v1030, %v1120
    %v1127 = vadd.f32 %v1031, %v1122
    %v1128 = vld [vmem:[%s6 + $0x180] sm:$0xff]
    %v1129 = vld [vmem:[%s6 + $0x188] sm:$0xff]
    %v1130 = vld [vmem:[%s6 + $0x190] sm:$0xff]
    %v1131 = vld [vmem:[%s6 + $0x198] sm:$0xff]
    %v1132 = vld [vmem:[%s6 + $0x1a0] sm:$0xff]
    %v1133 = vld [vmem:[%s6 + $0x1a8] sm:$0xff]
    %v1134 = vld [vmem:[%s6 + $0x1b0] sm:$0xff]
    %v1135 = vld [vmem:[%s6 + $0x1b8] sm:$0xff]
    %v1136 = vrot.slane %v937, 2
    %v1145 = vunpack.c.l.b16 %v1128
    %v1146 = vunpack.c.h.b16 %v1128
    %v1147 = vunpack.c.l.b16 %v1129
    %v1148 = vunpack.c.h.b16 %v1129
    %v1149 = vunpack.c.l.b16 %v1130
    %v1150 = vunpack.c.h.b16 %v1130
    %v1151 = vunpack.c.l.b16 %v1131
    %v1152 = vunpack.c.h.b16 %v1131
    %v1153 = vunpack.c.l.b16 %v1132
    %v1154 = vunpack.c.h.b16 %v1132
    %v1155 = vunpack.c.l.b16 %v1133
    %v1156 = vunpack.c.h.b16 %v1133
    %v1157 = vunpack.c.l.b16 %v1134
    %v1158 = vunpack.c.h.b16 %v1134
    %v1159 = vunpack.c.l.b16 %v1135
    %v1160 = vunpack.c.h.b16 %v1135
    %v1161 = vpack.c.b16 %v1147, %v1145
    %v1162 = vpack.c.b16 %v1148, %v1146
    %v1163 = vpack.c.b16 %v1151, %v1149
    %v1164 = vpack.c.b16 %v1152, %v1150
    %v1165 = vpack.c.b16 %v1155, %v1153
    %v1166 = vpack.c.b16 %v1156, %v1154
    %v1167 = vpack.c.b16 %v1159, %v1157
    %v1168 = vpack.c.b16 %v1160, %v1158
    %v1178 = vsel %vm618, %v1136, 0
    %1180 = vmatprep.subr.bf16.mxu0 0
    %1181 = vmatpush1.bf16.msra.mxu0 0
    %1182 = vmatprep.subr.bf16.mxu0 0
    %1183 = vmatpush1.bf16.msra.mxu0 0
    %1184 = vmatprep.subr.bf16.mxu0 0
    %1185 = vmatpush1.bf16.msra.mxu0 0
    %1186 = vmatprep.subr.bf16.mxu0 0
    %1187 = vmatpush1.bf16.msra.mxu0 0
    %1188 = vmatprep.subr.bf16.mxu0 %v1168
    %1189 = vmatpush1.bf16.msra.mxu0 %v1167
    %1190 = vmatprep.subr.bf16.mxu0 %v1166
    %1191 = vmatpush1.bf16.msra.mxu0 %v1165
    %1192 = vmatprep.subr.bf16.mxu0 %v1164
    %1193 = vmatpush1.bf16.msra.mxu0 %v1163
    %1194 = vmatprep.subr.bf16.mxu0 %v1162
    %1195 = vmatpush1.bf16.msra.mxu0 %v1161
    %1196 = vmatprep.subr.bf16.mxu0 0
    %1197 = vmatpush2.bf16.msra.mxu0 0
    %1198 = vmatprep.subr.bf16.mxu0 0
    %1199 = vmatpush2.bf16.msra.mxu0 0
    %1200 = vmatprep.subr.bf16.mxu0 0
    %1201 = vmatpush2.bf16.msra.mxu0 0
    %1202 = vmatprep.subr.bf16.mxu0 0
    %1203 = vmatpush2.bf16.msra.mxu0 0
    %1204 = vmatprep.subr.bf16.mxu0 0
    %1205 = vmatpush2.bf16.msra.mxu0 0
    %1206 = vmatprep.subr.bf16.mxu0 0
    %1207 = vmatpush2.bf16.msra.mxu0 0
    %1208 = vmatprep.subr.bf16.mxu0 0
    %1209 = vmatpush2.bf16.msra.mxu0 0
    %1210 = vmatprep.subr.bf16.mxu0 0
    %1211 = vmatpush2.bf16.msra.mxu0 0
    %1212 = vmatprep.mubr.bf16.mxu0 0
    %1213 = vmatmul.mubr.bf16.gmra.mxu0 %v1178
    %v1214 = vpop.f32.mrf.mxu0
    %v1215 = vadd.f32 0.0, %v1214
    %v1216 = vpop.f32.mrf.mxu0
    %v1217 = vadd.f32 0.0, %v1216
    %v1218 = vpop.f32.mrf.mxu0
    %v1219 = vpop.f32.mrf.mxu0
    %1220 = vdwg.mxu0
    %v1221 = vadd.f32 %v1126, %v1215
    %v1222 = vadd.f32 %v1127, %v1217
    %v1223 = vld [vmem:[%s6 + $0x1c0] sm:$0xff]
    %v1224 = vld [vmem:[%s6 + $0x1c8] sm:$0xff]
    %v1225 = vld [vmem:[%s6 + $0x1d0] sm:$0xff]
    %v1226 = vld [vmem:[%s6 + $0x1d8] sm:$0xff]
    %v1227 = vld [vmem:[%s6 + $0x1e0] sm:$0xff]
    %v1228 = vld [vmem:[%s6 + $0x1e8] sm:$0xff]
    %v1229 = vld [vmem:[%s6 + $0x1f0] sm:$0xff]
    %v1230 = vld [vmem:[%s6 + $0x1f8] sm:$0xff]
    %v1231 = vrot.slane %v937, 3
    %v1240 = vunpack.c.l.b16 %v1223
    %v1241 = vunpack.c.h.b16 %v1223
    %v1242 = vunpack.c.l.b16 %v1224
    %v1243 = vunpack.c.h.b16 %v1224
    %v1244 = vunpack.c.l.b16 %v1225
    %v1245 = vunpack.c.h.b16 %v1225
    %v1246 = vunpack.c.l.b16 %v1226
    %v1247 = vunpack.c.h.b16 %v1226
    %v1248 = vunpack.c.l.b16 %v1227
    %v1249 = vunpack.c.h.b16 %v1227
    %v1250 = vunpack.c.l.b16 %v1228
    %v1251 = vunpack.c.h.b16 %v1228
    %v1252 = vunpack.c.l.b16 %v1229
    %v1253 = vunpack.c.h.b16 %v1229
    %v1254 = vunpack.c.l.b16 %v1230
    %v1255 = vunpack.c.h.b16 %v1230
    %v1256 = vpack.c.b16 %v1242, %v1240
    %v1257 = vpack.c.b16 %v1243, %v1241
    %v1258 = vpack.c.b16 %v1246, %v1244
    %v1259 = vpack.c.b16 %v1247, %v1245
    %v1260 = vpack.c.b16 %v1250, %v1248
    %v1261 = vpack.c.b16 %v1251, %v1249
    %v1262 = vpack.c.b16 %v1254, %v1252
    %v1263 = vpack.c.b16 %v1255, %v1253
    %v1273 = vsel %vm618, %v1231, 0
    %1275 = vmatprep.subr.bf16.mxu0 0
    %1276 = vmatpush1.bf16.msra.mxu0 0
    %1277 = vmatprep.subr.bf16.mxu0 0
    %1278 = vmatpush1.bf16.msra.mxu0 0
    %1279 = vmatprep.subr.bf16.mxu0 0
    %1280 = vmatpush1.bf16.msra.mxu0 0
    %1281 = vmatprep.subr.bf16.mxu0 0
    %1282 = vmatpush1.bf16.msra.mxu0 0
    %1283 = vmatprep.subr.bf16.mxu0 %v1263
    %1284 = vmatpush1.bf16.msra.mxu0 %v1262
    %1285 = vmatprep.subr.bf16.mxu0 %v1261
    %1286 = vmatpush1.bf16.msra.mxu0 %v1260
    %1287 = vmatprep.subr.bf16.mxu0 %v1259
    %1288 = vmatpush1.bf16.msra.mxu0 %v1258
    %1289 = vmatprep.subr.bf16.mxu0 %v1257
    %1290 = vmatpush1.bf16.msra.mxu0 %v1256
    %1291 = vmatprep.subr.bf16.mxu0 0
    %1292 = vmatpush2.bf16.msra.mxu0 0
    %1293 = vmatprep.subr.bf16.mxu0 0
    %1294 = vmatpush2.bf16.msra.mxu0 0
    %1295 = vmatprep.subr.bf16.mxu0 0
    %1296 = vmatpush2.bf16.msra.mxu0 0
    %1297 = vmatprep.subr.bf16.mxu0 0
    %1298 = vmatpush2.bf16.msra.mxu0 0
    %1299 = vmatprep.subr.bf16.mxu0 0
    %1300 = vmatpush2.bf16.msra.mxu0 0
    %1301 = vmatprep.subr.bf16.mxu0 0
    %1302 = vmatpush2.bf16.msra.mxu0 0
    %1303 = vmatprep.subr.bf16.mxu0 0
    %1304 = vmatpush2.bf16.msra.mxu0 0
    %1305 = vmatprep.subr.bf16.mxu0 0
    %1306 = vmatpush2.bf16.msra.mxu0 0
    %1307 = vmatprep.mubr.bf16.mxu0 0
    %1308 = vmatmul.mubr.bf16.gmra.mxu0 %v1273
    %v1309 = vpop.f32.mrf.mxu0
    %v1310 = vadd.f32 0.0, %v1309
    %v1311 = vpop.f32.mrf.mxu0
    %v1312 = vadd.f32 0.0, %v1311
    %v1313 = vpop.f32.mrf.mxu0
    %v1314 = vpop.f32.mrf.mxu0
    %1315 = vdwg.mxu0
    %v1316 = vadd.f32 %v1221, %v1310
    %v1317 = vadd.f32 %v1222, %v1312
    %v1318 = vpack.c.bf16 %v556, %v556
    %v1319 = vld [vmem:[%s6 + $0x200] sm:$0xff]
    %v1320 = vld [vmem:[%s6 + $0x208] sm:$0xff]
    %v1321 = vld [vmem:[%s6 + $0x210] sm:$0xff]
    %v1322 = vld [vmem:[%s6 + $0x218] sm:$0xff]
    %v1323 = vld [vmem:[%s6 + $0x220] sm:$0xff]
    %v1324 = vld [vmem:[%s6 + $0x228] sm:$0xff]
    %v1325 = vld [vmem:[%s6 + $0x230] sm:$0xff]
    %v1326 = vld [vmem:[%s6 + $0x238] sm:$0xff]
    %v1335 = vunpack.c.l.b16 %v1319
    %v1336 = vunpack.c.h.b16 %v1319
    %v1337 = vunpack.c.l.b16 %v1320
    %v1338 = vunpack.c.h.b16 %v1320
    %v1339 = vunpack.c.l.b16 %v1321
    %v1340 = vunpack.c.h.b16 %v1321
    %v1341 = vunpack.c.l.b16 %v1322
    %v1342 = vunpack.c.h.b16 %v1322
    %v1343 = vunpack.c.l.b16 %v1323
    %v1344 = vunpack.c.h.b16 %v1323
    %v1345 = vunpack.c.l.b16 %v1324
    %v1346 = vunpack.c.h.b16 %v1324
    %v1347 = vunpack.c.l.b16 %v1325
    %v1348 = vunpack.c.h.b16 %v1325
    %v1349 = vunpack.c.l.b16 %v1326
    %v1350 = vunpack.c.h.b16 %v1326
    %v1351 = vpack.c.b16 %v1337, %v1335
    %v1352 = vpack.c.b16 %v1338, %v1336
    %v1353 = vpack.c.b16 %v1341, %v1339
    %v1354 = vpack.c.b16 %v1342, %v1340
    %v1355 = vpack.c.b16 %v1345, %v1343
    %v1356 = vpack.c.b16 %v1346, %v1344
    %v1357 = vpack.c.b16 %v1349, %v1347
    %v1358 = vpack.c.b16 %v1350, %v1348
    %v1368 = vsel %vm618, %v1318, 0
    %1370 = vmatprep.subr.bf16.mxu0 0
    %1371 = vmatpush1.bf16.msra.mxu0 0
    %1372 = vmatprep.subr.bf16.mxu0 0
    %1373 = vmatpush1.bf16.msra.mxu0 0
    %1374 = vmatprep.subr.bf16.mxu0 0
    %1375 = vmatpush1.bf16.msra.mxu0 0
    %1376 = vmatprep.subr.bf16.mxu0 0
    %1377 = vmatpush1.bf16.msra.mxu0 0
    %1378 = vmatprep.subr.bf16.mxu0 %v1358
    %1379 = vmatpush1.bf16.msra.mxu0 %v1357
    %1380 = vmatprep.subr.bf16.mxu0 %v1356
    %1381 = vmatpush1.bf16.msra.mxu0 %v1355
    %1382 = vmatprep.subr.bf16.mxu0 %v1354
    %1383 = vmatpush1.bf16.msra.mxu0 %v1353
    %1384 = vmatprep.subr.bf16.mxu0 %v1352
    %1385 = vmatpush1.bf16.msra.mxu0 %v1351
    %1386 = vmatprep.subr.bf16.mxu0 0
    %1387 = vmatpush2.bf16.msra.mxu0 0
    %1388 = vmatprep.subr.bf16.mxu0 0
    %1389 = vmatpush2.bf16.msra.mxu0 0
    %1390 = vmatprep.subr.bf16.mxu0 0
    %1391 = vmatpush2.bf16.msra.mxu0 0
    %1392 = vmatprep.subr.bf16.mxu0 0
    %1393 = vmatpush2.bf16.msra.mxu0 0
    %1394 = vmatprep.subr.bf16.mxu0 0
    %1395 = vmatpush2.bf16.msra.mxu0 0
    %1396 = vmatprep.subr.bf16.mxu0 0
    %1397 = vmatpush2.bf16.msra.mxu0 0
    %1398 = vmatprep.subr.bf16.mxu0 0
    %1399 = vmatpush2.bf16.msra.mxu0 0
    %1400 = vmatprep.subr.bf16.mxu0 0
    %1401 = vmatpush2.bf16.msra.mxu0 0
    %1402 = vmatprep.mubr.bf16.mxu0 0
    %1403 = vmatmul.mubr.bf16.gmra.mxu0 %v1368
    %v1404 = vpop.f32.mrf.mxu0
    %v1405 = vadd.f32 0.0, %v1404
    %v1406 = vpop.f32.mrf.mxu0
    %v1407 = vadd.f32 0.0, %v1406
    %v1408 = vpop.f32.mrf.mxu0
    %v1409 = vpop.f32.mrf.mxu0
    %1410 = vdwg.mxu0
    %v1411 = vadd.f32 %v1316, %v1405
    %v1412 = vadd.f32 %v1317, %v1407
    %v1413 = vld [vmem:[%s6 + $0x240] sm:$0xff]
    %v1414 = vld [vmem:[%s6 + $0x248] sm:$0xff]
    %v1415 = vld [vmem:[%s6 + $0x250] sm:$0xff]
    %v1416 = vld [vmem:[%s6 + $0x258] sm:$0xff]
    %v1417 = vld [vmem:[%s6 + $0x260] sm:$0xff]
    %v1418 = vld [vmem:[%s6 + $0x268] sm:$0xff]
    %v1419 = vld [vmem:[%s6 + $0x270] sm:$0xff]
    %v1420 = vld [vmem:[%s6 + $0x278] sm:$0xff]
    %v1422 = vrot.slane %v1318, 1
    %v1431 = vunpack.c.l.b16 %v1413
    %v1432 = vunpack.c.h.b16 %v1413
    %v1433 = vunpack.c.l.b16 %v1414
    %v1434 = vunpack.c.h.b16 %v1414
    %v1435 = vunpack.c.l.b16 %v1415
    %v1436 = vunpack.c.h.b16 %v1415
    %v1437 = vunpack.c.l.b16 %v1416
    %v1438 = vunpack.c.h.b16 %v1416
    %v1439 = vunpack.c.l.b16 %v1417
    %v1440 = vunpack.c.h.b16 %v1417
    %v1441 = vunpack.c.l.b16 %v1418
    %v1442 = vunpack.c.h.b16 %v1418
    %v1443 = vunpack.c.l.b16 %v1419
    %v1444 = vunpack.c.h.b16 %v1419
    %v1445 = vunpack.c.l.b16 %v1420
    %v1446 = vunpack.c.h.b16 %v1420
    %v1447 = vpack.c.b16 %v1433, %v1431
    %v1448 = vpack.c.b16 %v1434, %v1432
    %v1449 = vpack.c.b16 %v1437, %v1435
    %v1450 = vpack.c.b16 %v1438, %v1436
    %v1451 = vpack.c.b16 %v1441, %v1439
    %v1452 = vpack.c.b16 %v1442, %v1440
    %v1453 = vpack.c.b16 %v1445, %v1443
    %v1454 = vpack.c.b16 %v1446, %v1444
    %v1464 = vsel %vm618, %v1422, 0
    %1466 = vmatprep.subr.bf16.mxu0 0
    %1467 = vmatpush1.bf16.msra.mxu0 0
    %1468 = vmatprep.subr.bf16.mxu0 0
    %1469 = vmatpush1.bf16.msra.mxu0 0
    %1470 = vmatprep.subr.bf16.mxu0 0
    %1471 = vmatpush1.bf16.msra.mxu0 0
    %1472 = vmatprep.subr.bf16.mxu0 0
    %1473 = vmatpush1.bf16.msra.mxu0 0
    %1474 = vmatprep.subr.bf16.mxu0 %v1454
    %1475 = vmatpush1.bf16.msra.mxu0 %v1453
    %1476 = vmatprep.subr.bf16.mxu0 %v1452
    %1477 = vmatpush1.bf16.msra.mxu0 %v1451
    %1478 = vmatprep.subr.bf16.mxu0 %v1450
    %1479 = vmatpush1.bf16.msra.mxu0 %v1449
    %1480 = vmatprep.subr.bf16.mxu0 %v1448
    %1481 = vmatpush1.bf16.msra.mxu0 %v1447
    %1482 = vmatprep.subr.bf16.mxu0 0
    %1483 = vmatpush2.bf16.msra.mxu0 0
    %1484 = vmatprep.subr.bf16.mxu0 0
    %1485 = vmatpush2.bf16.msra.mxu0 0
    %1486 = vmatprep.subr.bf16.mxu0 0
    %1487 = vmatpush2.bf16.msra.mxu0 0
    %1488 = vmatprep.subr.bf16.mxu0 0
    %1489 = vmatpush2.bf16.msra.mxu0 0
    %1490 = vmatprep.subr.bf16.mxu0 0
    %1491 = vmatpush2.bf16.msra.mxu0 0
    %1492 = vmatprep.subr.bf16.mxu0 0
    %1493 = vmatpush2.bf16.msra.mxu0 0
    %1494 = vmatprep.subr.bf16.mxu0 0
    %1495 = vmatpush2.bf16.msra.mxu0 0
    %1496 = vmatprep.subr.bf16.mxu0 0
    %1497 = vmatpush2.bf16.msra.mxu0 0
    %1498 = vmatprep.mubr.bf16.mxu0 0
    %1499 = vmatmul.mubr.bf16.gmra.mxu0 %v1464
    %v1500 = vpop.f32.mrf.mxu0
    %v1501 = vadd.f32 0.0, %v1500
    %v1502 = vpop.f32.mrf.mxu0
    %v1503 = vadd.f32 0.0, %v1502
    %v1504 = vpop.f32.mrf.mxu0
    %v1505 = vpop.f32.mrf.mxu0
    %1506 = vdwg.mxu0
    %v1507 = vadd.f32 %v1411, %v1501
    %v1508 = vadd.f32 %v1412, %v1503
    %v1509 = vld [vmem:[%s6 + $0x280] sm:$0xff]
    %v1510 = vld [vmem:[%s6 + $0x288] sm:$0xff]
    %v1511 = vld [vmem:[%s6 + $0x290] sm:$0xff]
    %v1512 = vld [vmem:[%s6 + $0x298] sm:$0xff]
    %v1513 = vld [vmem:[%s6 + $0x2a0] sm:$0xff]
    %v1514 = vld [vmem:[%s6 + $0x2a8] sm:$0xff]
    %v1515 = vld [vmem:[%s6 + $0x2b0] sm:$0xff]
    %v1516 = vld [vmem:[%s6 + $0x2b8] sm:$0xff]
    %v1517 = vrot.slane %v1318, 2
    %v1526 = vunpack.c.l.b16 %v1509
    %v1527 = vunpack.c.h.b16 %v1509
    %v1528 = vunpack.c.l.b16 %v1510
    %v1529 = vunpack.c.h.b16 %v1510
    %v1530 = vunpack.c.l.b16 %v1511
    %v1531 = vunpack.c.h.b16 %v1511
    %v1532 = vunpack.c.l.b16 %v1512
    %v1533 = vunpack.c.h.b16 %v1512
    %v1534 = vunpack.c.l.b16 %v1513
    %v1535 = vunpack.c.h.b16 %v1513
    %v1536 = vunpack.c.l.b16 %v1514
    %v1537 = vunpack.c.h.b16 %v1514
    %v1538 = vunpack.c.l.b16 %v1515
    %v1539 = vunpack.c.h.b16 %v1515
    %v1540 = vunpack.c.l.b16 %v1516
    %v1541 = vunpack.c.h.b16 %v1516
    %v1542 = vpack.c.b16 %v1528, %v1526
    %v1543 = vpack.c.b16 %v1529, %v1527
    %v1544 = vpack.c.b16 %v1532, %v1530
    %v1545 = vpack.c.b16 %v1533, %v1531
    %v1546 = vpack.c.b16 %v1536, %v1534
    %v1547 = vpack.c.b16 %v1537, %v1535
    %v1548 = vpack.c.b16 %v1540, %v1538
    %v1549 = vpack.c.b16 %v1541, %v1539
    %v1559 = vsel %vm618, %v1517, 0
    %1561 = vmatprep.subr.bf16.mxu0 0
    %1562 = vmatpush1.bf16.msra.mxu0 0
    %1563 = vmatprep.subr.bf16.mxu0 0
    %1564 = vmatpush1.bf16.msra.mxu0 0
    %1565 = vmatprep.subr.bf16.mxu0 0
    %1566 = vmatpush1.bf16.msra.mxu0 0
    %1567 = vmatprep.subr.bf16.mxu0 0
    %1568 = vmatpush1.bf16.msra.mxu0 0
    %1569 = vmatprep.subr.bf16.mxu0 %v1549
    %1570 = vmatpush1.bf16.msra.mxu0 %v1548
    %1571 = vmatprep.subr.bf16.mxu0 %v1547
    %1572 = vmatpush1.bf16.msra.mxu0 %v1546
    %1573 = vmatprep.subr.bf16.mxu0 %v1545
    %1574 = vmatpush1.bf16.msra.mxu0 %v1544
    %1575 = vmatprep.subr.bf16.mxu0 %v1543
    %1576 = vmatpush1.bf16.msra.mxu0 %v1542
    %1577 = vmatprep.subr.bf16.mxu0 0
    %1578 = vmatpush2.bf16.msra.mxu0 0
    %1579 = vmatprep.subr.bf16.mxu0 0
    %1580 = vmatpush2.bf16.msra.mxu0 0
    %1581 = vmatprep.subr.bf16.mxu0 0
    %1582 = vmatpush2.bf16.msra.mxu0 0
    %1583 = vmatprep.subr.bf16.mxu0 0
    %1584 = vmatpush2.bf16.msra.mxu0 0
    %1585 = vmatprep.subr.bf16.mxu0 0
    %1586 = vmatpush2.bf16.msra.mxu0 0
    %1587 = vmatprep.subr.bf16.mxu0 0
    %1588 = vmatpush2.bf16.msra.mxu0 0
    %1589 = vmatprep.subr.bf16.mxu0 0
    %1590 = vmatpush2.bf16.msra.mxu0 0
    %1591 = vmatprep.subr.bf16.mxu0 0
    %1592 = vmatpush2.bf16.msra.mxu0 0
    %1593 = vmatprep.mubr.bf16.mxu0 0
    %1594 = vmatmul.mubr.bf16.gmra.mxu0 %v1559
    %v1595 = vpop.f32.mrf.mxu0
    %v1596 = vadd.f32 0.0, %v1595
    %v1597 = vpop.f32.mrf.mxu0
    %v1598 = vadd.f32 0.0, %v1597
    %v1599 = vpop.f32.mrf.mxu0
    %v1600 = vpop.f32.mrf.mxu0
    %1601 = vdwg.mxu0
    %v1602 = vadd.f32 %v1507, %v1596
    %v1603 = vadd.f32 %v1508, %v1598
    %v1604 = vld [vmem:[%s6 + $0x2c0] sm:$0xff]
    %v1605 = vld [vmem:[%s6 + $0x2c8] sm:$0xff]
    %v1606 = vld [vmem:[%s6 + $0x2d0] sm:$0xff]
    %v1607 = vld [vmem:[%s6 + $0x2d8] sm:$0xff]
    %v1608 = vld [vmem:[%s6 + $0x2e0] sm:$0xff]
    %v1609 = vld [vmem:[%s6 + $0x2e8] sm:$0xff]
    %v1610 = vld [vmem:[%s6 + $0x2f0] sm:$0xff]
    %v1611 = vld [vmem:[%s6 + $0x2f8] sm:$0xff]
    %v1612 = vrot.slane %v1318, 3
    %v1621 = vunpack.c.l.b16 %v1604
    %v1622 = vunpack.c.h.b16 %v1604
    %v1623 = vunpack.c.l.b16 %v1605
    %v1624 = vunpack.c.h.b16 %v1605
    %v1625 = vunpack.c.l.b16 %v1606
    %v1626 = vunpack.c.h.b16 %v1606
    %v1627 = vunpack.c.l.b16 %v1607
    %v1628 = vunpack.c.h.b16 %v1607
    %v1629 = vunpack.c.l.b16 %v1608
    %v1630 = vunpack.c.h.b16 %v1608
    %v1631 = vunpack.c.l.b16 %v1609
    %v1632 = vunpack.c.h.b16 %v1609
    %v1633 = vunpack.c.l.b16 %v1610
    %v1634 = vunpack.c.h.b16 %v1610
    %v1635 = vunpack.c.l.b16 %v1611
    %v1636 = vunpack.c.h.b16 %v1611
    %v1637 = vpack.c.b16 %v1623, %v1621
    %v1638 = vpack.c.b16 %v1624, %v1622
    %v1639 = vpack.c.b16 %v1627, %v1625
    %v1640 = vpack.c.b16 %v1628, %v1626
    %v1641 = vpack.c.b16 %v1631, %v1629
    %v1642 = vpack.c.b16 %v1632, %v1630
    %v1643 = vpack.c.b16 %v1635, %v1633
    %v1644 = vpack.c.b16 %v1636, %v1634
    %v1654 = vsel %vm618, %v1612, 0
    %1656 = vmatprep.subr.bf16.mxu0 0
    %1657 = vmatpush1.bf16.msra.mxu0 0
    %1658 = vmatprep.subr.bf16.mxu0 0
    %1659 = vmatpush1.bf16.msra.mxu0 0
    %1660 = vmatprep.subr.bf16.mxu0 0
    %1661 = vmatpush1.bf16.msra.mxu0 0
    %1662 = vmatprep.subr.bf16.mxu0 0
    %1663 = vmatpush1.bf16.msra.mxu0 0
    %1664 = vmatprep.subr.bf16.mxu0 %v1644
    %1665 = vmatpush1.bf16.msra.mxu0 %v1643
    %1666 = vmatprep.subr.bf16.mxu0 %v1642
    %1667 = vmatpush1.bf16.msra.mxu0 %v1641
    %1668 = vmatprep.subr.bf16.mxu0 %v1640
    %1669 = vmatpush1.bf16.msra.mxu0 %v1639
    %1670 = vmatprep.subr.bf16.mxu0 %v1638
    %1671 = vmatpush1.bf16.msra.mxu0 %v1637
    %1672 = vmatprep.subr.bf16.mxu0 0
    %1673 = vmatpush2.bf16.msra.mxu0 0
    %1674 = vmatprep.subr.bf16.mxu0 0
    %1675 = vmatpush2.bf16.msra.mxu0 0
    %1676 = vmatprep.subr.bf16.mxu0 0
    %1677 = vmatpush2.bf16.msra.mxu0 0
    %1678 = vmatprep.subr.bf16.mxu0 0
    %1679 = vmatpush2.bf16.msra.mxu0 0
    %1680 = vmatprep.subr.bf16.mxu0 0
    %1681 = vmatpush2.bf16.msra.mxu0 0
    %1682 = vmatprep.subr.bf16.mxu0 0
    %1683 = vmatpush2.bf16.msra.mxu0 0
    %1684 = vmatprep.subr.bf16.mxu0 0
    %1685 = vmatpush2.bf16.msra.mxu0 0
    %1686 = vmatprep.subr.bf16.mxu0 0
    %1687 = vmatpush2.bf16.msra.mxu0 0
    %1688 = vmatprep.mubr.bf16.mxu0 0
    %1689 = vmatmul.mubr.bf16.gmra.mxu0 %v1654
    %v1690 = vpop.f32.mrf.mxu0
    %v1691 = vadd.f32 0.0, %v1690
    %v1692 = vpop.f32.mrf.mxu0
    %v1693 = vadd.f32 0.0, %v1692
    %v1694 = vpop.f32.mrf.mxu0
    %v1695 = vpop.f32.mrf.mxu0
    %1696 = vdwg.mxu0
    %v1697 = vadd.f32 %v1602, %v1691
    %v1698 = vadd.f32 %v1603, %v1693
    %v1699 = vpack.c.bf16 %v557, %v557
    %v1700 = vld [vmem:[%s6 + $0x300] sm:$0xff]
    %v1701 = vld [vmem:[%s6 + $0x308] sm:$0xff]
    %v1702 = vld [vmem:[%s6 + $0x310] sm:$0xff]
    %v1703 = vld [vmem:[%s6 + $0x318] sm:$0xff]
    %v1704 = vld [vmem:[%s6 + $0x320] sm:$0xff]
    %v1705 = vld [vmem:[%s6 + $0x328] sm:$0xff]
    %v1706 = vld [vmem:[%s6 + $0x330] sm:$0xff]
    %v1707 = vld [vmem:[%s6 + $0x338] sm:$0xff]
    %v1716 = vunpack.c.l.b16 %v1700
    %v1717 = vunpack.c.h.b16 %v1700
    %v1718 = vunpack.c.l.b16 %v1701
    %v1719 = vunpack.c.h.b16 %v1701
    %v1720 = vunpack.c.l.b16 %v1702
    %v1721 = vunpack.c.h.b16 %v1702
    %v1722 = vunpack.c.l.b16 %v1703
    %v1723 = vunpack.c.h.b16 %v1703
    %v1724 = vunpack.c.l.b16 %v1704
    %v1725 = vunpack.c.h.b16 %v1704
    %v1726 = vunpack.c.l.b16 %v1705
    %v1727 = vunpack.c.h.b16 %v1705
    %v1728 = vunpack.c.l.b16 %v1706
    %v1729 = vunpack.c.h.b16 %v1706
    %v1730 = vunpack.c.l.b16 %v1707
    %v1731 = vunpack.c.h.b16 %v1707
    %v1732 = vpack.c.b16 %v1718, %v1716
    %v1733 = vpack.c.b16 %v1719, %v1717
    %v1734 = vpack.c.b16 %v1722, %v1720
    %v1735 = vpack.c.b16 %v1723, %v1721
    %v1736 = vpack.c.b16 %v1726, %v1724
    %v1737 = vpack.c.b16 %v1727, %v1725
    %v1738 = vpack.c.b16 %v1730, %v1728
    %v1739 = vpack.c.b16 %v1731, %v1729
    %v1749 = vsel %vm618, %v1699, 0
    %1751 = vmatprep.subr.bf16.mxu0 0
    %1752 = vmatpush1.bf16.msra.mxu0 0
    %1753 = vmatprep.subr.bf16.mxu0 0
    %1754 = vmatpush1.bf16.msra.mxu0 0
    %1755 = vmatprep.subr.bf16.mxu0 0
    %1756 = vmatpush1.bf16.msra.mxu0 0
    %1757 = vmatprep.subr.bf16.mxu0 0
    %1758 = vmatpush1.bf16.msra.mxu0 0
    %1759 = vmatprep.subr.bf16.mxu0 %v1739
    %1760 = vmatpush1.bf16.msra.mxu0 %v1738
    %1761 = vmatprep.subr.bf16.mxu0 %v1737
    %1762 = vmatpush1.bf16.msra.mxu0 %v1736
    %1763 = vmatprep.subr.bf16.mxu0 %v1735
    %1764 = vmatpush1.bf16.msra.mxu0 %v1734
    %1765 = vmatprep.subr.bf16.mxu0 %v1733
    %1766 = vmatpush1.bf16.msra.mxu0 %v1732
    %1767 = vmatprep.subr.bf16.mxu0 0
    %1768 = vmatpush2.bf16.msra.mxu0 0
    %1769 = vmatprep.subr.bf16.mxu0 0
    %1770 = vmatpush2.bf16.msra.mxu0 0
    %1771 = vmatprep.subr.bf16.mxu0 0
    %1772 = vmatpush2.bf16.msra.mxu0 0
    %1773 = vmatprep.subr.bf16.mxu0 0
    %1774 = vmatpush2.bf16.msra.mxu0 0
    %1775 = vmatprep.subr.bf16.mxu0 0
    %1776 = vmatpush2.bf16.msra.mxu0 0
    %1777 = vmatprep.subr.bf16.mxu0 0
    %1778 = vmatpush2.bf16.msra.mxu0 0
    %1779 = vmatprep.subr.bf16.mxu0 0
    %1780 = vmatpush2.bf16.msra.mxu0 0
    %1781 = vmatprep.subr.bf16.mxu0 0
    %1782 = vmatpush2.bf16.msra.mxu0 0
    %1783 = vmatprep.mubr.bf16.mxu0 0
    %1784 = vmatmul.mubr.bf16.gmra.mxu0 %v1749
    %v1785 = vpop.f32.mrf.mxu0
    %v1786 = vadd.f32 0.0, %v1785
    %v1787 = vpop.f32.mrf.mxu0
    %v1788 = vadd.f32 0.0, %v1787
    %v1789 = vpop.f32.mrf.mxu0
    %v1790 = vpop.f32.mrf.mxu0
    %1791 = vdwg.mxu0
    %v1792 = vadd.f32 %v1697, %v1786
    %v1793 = vadd.f32 %v1698, %v1788
    %v1794 = vld [vmem:[%s6 + $0x340] sm:$0xff]
    %v1795 = vld [vmem:[%s6 + $0x348] sm:$0xff]
    %v1796 = vld [vmem:[%s6 + $0x350] sm:$0xff]
    %v1797 = vld [vmem:[%s6 + $0x358] sm:$0xff]
    %v1798 = vld [vmem:[%s6 + $0x360] sm:$0xff]
    %v1799 = vld [vmem:[%s6 + $0x368] sm:$0xff]
    %v1800 = vld [vmem:[%s6 + $0x370] sm:$0xff]
    %v1801 = vld [vmem:[%s6 + $0x378] sm:$0xff]
    %v1803 = vrot.slane %v1699, 1
    %v1812 = vunpack.c.l.b16 %v1794
    %v1813 = vunpack.c.h.b16 %v1794
    %v1814 = vunpack.c.l.b16 %v1795
    %v1815 = vunpack.c.h.b16 %v1795
    %v1816 = vunpack.c.l.b16 %v1796
    %v1817 = vunpack.c.h.b16 %v1796
    %v1818 = vunpack.c.l.b16 %v1797
    %v1819 = vunpack.c.h.b16 %v1797
    %v1820 = vunpack.c.l.b16 %v1798
    %v1821 = vunpack.c.h.b16 %v1798
    %v1822 = vunpack.c.l.b16 %v1799
    %v1823 = vunpack.c.h.b16 %v1799
    %v1824 = vunpack.c.l.b16 %v1800
    %v1825 = vunpack.c.h.b16 %v1800
    %v1826 = vunpack.c.l.b16 %v1801
    %v1827 = vunpack.c.h.b16 %v1801
    %v1828 = vpack.c.b16 %v1814, %v1812
    %v1829 = vpack.c.b16 %v1815, %v1813
    %v1830 = vpack.c.b16 %v1818, %v1816
    %v1831 = vpack.c.b16 %v1819, %v1817
    %v1832 = vpack.c.b16 %v1822, %v1820
    %v1833 = vpack.c.b16 %v1823, %v1821
    %v1834 = vpack.c.b16 %v1826, %v1824
    %v1835 = vpack.c.b16 %v1827, %v1825
    %v1845 = vsel %vm618, %v1803, 0
    %1847 = vmatprep.subr.bf16.mxu0 0
    %1848 = vmatpush1.bf16.msra.mxu0 0
    %1849 = vmatprep.subr.bf16.mxu0 0
    %1850 = vmatpush1.bf16.msra.mxu0 0
    %1851 = vmatprep.subr.bf16.mxu0 0
    %1852 = vmatpush1.bf16.msra.mxu0 0
    %1853 = vmatprep.subr.bf16.mxu0 0
    %1854 = vmatpush1.bf16.msra.mxu0 0
    %1855 = vmatprep.subr.bf16.mxu0 %v1835
    %1856 = vmatpush1.bf16.msra.mxu0 %v1834
    %1857 = vmatprep.subr.bf16.mxu0 %v1833
    %1858 = vmatpush1.bf16.msra.mxu0 %v1832
    %1859 = vmatprep.subr.bf16.mxu0 %v1831
    %1860 = vmatpush1.bf16.msra.mxu0 %v1830
    %1861 = vmatprep.subr.bf16.mxu0 %v1829
    %1862 = vmatpush1.bf16.msra.mxu0 %v1828
    %1863 = vmatprep.subr.bf16.mxu0 0
    %1864 = vmatpush2.bf16.msra.mxu0 0
    %1865 = vmatprep.subr.bf16.mxu0 0
    %1866 = vmatpush2.bf16.msra.mxu0 0
    %1867 = vmatprep.subr.bf16.mxu0 0
    %1868 = vmatpush2.bf16.msra.mxu0 0
    %1869 = vmatprep.subr.bf16.mxu0 0
    %1870 = vmatpush2.bf16.msra.mxu0 0
    %1871 = vmatprep.subr.bf16.mxu0 0
    %1872 = vmatpush2.bf16.msra.mxu0 0
    %1873 = vmatprep.subr.bf16.mxu0 0
    %1874 = vmatpush2.bf16.msra.mxu0 0
    %1875 = vmatprep.subr.bf16.mxu0 0
    %1876 = vmatpush2.bf16.msra.mxu0 0
    %1877 = vmatprep.subr.bf16.mxu0 0
    %1878 = vmatpush2.bf16.msra.mxu0 0
    %1879 = vmatprep.mubr.bf16.mxu0 0
    %1880 = vmatmul.mubr.bf16.gmra.mxu0 %v1845
    %v1881 = vpop.f32.mrf.mxu0
    %v1882 = vadd.f32 0.0, %v1881
    %v1883 = vpop.f32.mrf.mxu0
    %v1884 = vadd.f32 0.0, %v1883
    %v1885 = vpop.f32.mrf.mxu0
    %v1886 = vpop.f32.mrf.mxu0
    %1887 = vdwg.mxu0
    %v1888 = vadd.f32 %v1792, %v1882
    %v1889 = vadd.f32 %v1793, %v1884
    %v1890 = vld [vmem:[%s6 + $0x380] sm:$0xff]
    %v1891 = vld [vmem:[%s6 + $0x388] sm:$0xff]
    %v1892 = vld [vmem:[%s6 + $0x390] sm:$0xff]
    %v1893 = vld [vmem:[%s6 + $0x398] sm:$0xff]
    %v1894 = vld [vmem:[%s6 + $0x3a0] sm:$0xff]
    %v1895 = vld [vmem:[%s6 + $0x3a8] sm:$0xff]
    %v1896 = vld [vmem:[%s6 + $0x3b0] sm:$0xff]
    %v1897 = vld [vmem:[%s6 + $0x3b8] sm:$0xff]
    %v1898 = vrot.slane %v1699, 2
    %v1907 = vunpack.c.l.b16 %v1890
    %v1908 = vunpack.c.h.b16 %v1890
    %v1909 = vunpack.c.l.b16 %v1891
    %v1910 = vunpack.c.h.b16 %v1891
    %v1911 = vunpack.c.l.b16 %v1892
    %v1912 = vunpack.c.h.b16 %v1892
    %v1913 = vunpack.c.l.b16 %v1893
    %v1914 = vunpack.c.h.b16 %v1893
    %v1915 = vunpack.c.l.b16 %v1894
    %v1916 = vunpack.c.h.b16 %v1894
    %v1917 = vunpack.c.l.b16 %v1895
    %v1918 = vunpack.c.h.b16 %v1895
    %v1919 = vunpack.c.l.b16 %v1896
    %v1920 = vunpack.c.h.b16 %v1896
    %v1921 = vunpack.c.l.b16 %v1897
    %v1922 = vunpack.c.h.b16 %v1897
    %v1923 = vpack.c.b16 %v1909, %v1907
    %v1924 = vpack.c.b16 %v1910, %v1908
    %v1925 = vpack.c.b16 %v1913, %v1911
    %v1926 = vpack.c.b16 %v1914, %v1912
    %v1927 = vpack.c.b16 %v1917, %v1915
    %v1928 = vpack.c.b16 %v1918, %v1916
    %v1929 = vpack.c.b16 %v1921, %v1919
    %v1930 = vpack.c.b16 %v1922, %v1920
    %v1940 = vsel %vm618, %v1898, 0
    %1942 = vmatprep.subr.bf16.mxu0 0
    %1943 = vmatpush1.bf16.msra.mxu0 0
    %1944 = vmatprep.subr.bf16.mxu0 0
    %1945 = vmatpush1.bf16.msra.mxu0 0
    %1946 = vmatprep.subr.bf16.mxu0 0
    %1947 = vmatpush1.bf16.msra.mxu0 0
    %1948 = vmatprep.subr.bf16.mxu0 0
    %1949 = vmatpush1.bf16.msra.mxu0 0
    %1950 = vmatprep.subr.bf16.mxu0 %v1930
    %1951 = vmatpush1.bf16.msra.mxu0 %v1929
    %1952 = vmatprep.subr.bf16.mxu0 %v1928
    %1953 = vmatpush1.bf16.msra.mxu0 %v1927
    %1954 = vmatprep.subr.bf16.mxu0 %v1926
    %1955 = vmatpush1.bf16.msra.mxu0 %v1925
    %1956 = vmatprep.subr.bf16.mxu0 %v1924
    %1957 = vmatpush1.bf16.msra.mxu0 %v1923
    %1958 = vmatprep.subr.bf16.mxu0 0
    %1959 = vmatpush2.bf16.msra.mxu0 0
    %1960 = vmatprep.subr.bf16.mxu0 0
    %1961 = vmatpush2.bf16.msra.mxu0 0
    %1962 = vmatprep.subr.bf16.mxu0 0
    %1963 = vmatpush2.bf16.msra.mxu0 0
    %1964 = vmatprep.subr.bf16.mxu0 0
    %1965 = vmatpush2.bf16.msra.mxu0 0
    %1966 = vmatprep.subr.bf16.mxu0 0
    %1967 = vmatpush2.bf16.msra.mxu0 0
    %1968 = vmatprep.subr.bf16.mxu0 0
    %1969 = vmatpush2.bf16.msra.mxu0 0
    %1970 = vmatprep.subr.bf16.mxu0 0
    %1971 = vmatpush2.bf16.msra.mxu0 0
    %1972 = vmatprep.subr.bf16.mxu0 0
    %1973 = vmatpush2.bf16.msra.mxu0 0
    %1974 = vmatprep.mubr.bf16.mxu0 0
    %1975 = vmatmul.mubr.bf16.gmra.mxu0 %v1940
    %v1976 = vpop.f32.mrf.mxu0
    %v1977 = vadd.f32 0.0, %v1976
    %v1978 = vpop.f32.mrf.mxu0
    %v1979 = vadd.f32 0.0, %v1978
    %v1980 = vpop.f32.mrf.mxu0
    %v1981 = vpop.f32.mrf.mxu0
    %1982 = vdwg.mxu0
    %v1983 = vadd.f32 %v1888, %v1977
    %v1984 = vadd.f32 %v1889, %v1979
    %v1985 = vld [vmem:[%s6 + $0x3c0] sm:$0xff]
    %v1986 = vld [vmem:[%s6 + $0x3c8] sm:$0xff]
    %v1987 = vld [vmem:[%s6 + $0x3d0] sm:$0xff]
    %v1988 = vld [vmem:[%s6 + $0x3d8] sm:$0xff]
    %v1989 = vld [vmem:[%s6 + $0x3e0] sm:$0xff]
    %v1990 = vld [vmem:[%s6 + $0x3e8] sm:$0xff]
    %v1991 = vld [vmem:[%s6 + $0x3f0] sm:$0xff]
    %v1992 = vld [vmem:[%s6 + $0x3f8] sm:$0xff]
    %v1993 = vrot.slane %v1699, 3
    %v2002 = vunpack.c.l.b16 %v1985
    %v2003 = vunpack.c.h.b16 %v1985
    %v2004 = vunpack.c.l.b16 %v1986
    %v2005 = vunpack.c.h.b16 %v1986
    %v2006 = vunpack.c.l.b16 %v1987
    %v2007 = vunpack.c.h.b16 %v1987
    %v2008 = vunpack.c.l.b16 %v1988
    %v2009 = vunpack.c.h.b16 %v1988
    %v2010 = vunpack.c.l.b16 %v1989
    %v2011 = vunpack.c.h.b16 %v1989
    %v2012 = vunpack.c.l.b16 %v1990
    %v2013 = vunpack.c.h.b16 %v1990
    %v2014 = vunpack.c.l.b16 %v1991
    %v2015 = vunpack.c.h.b16 %v1991
    %v2016 = vunpack.c.l.b16 %v1992
    %v2017 = vunpack.c.h.b16 %v1992
    %v2018 = vpack.c.b16 %v2004, %v2002
    %v2019 = vpack.c.b16 %v2005, %v2003
    %v2020 = vpack.c.b16 %v2008, %v2006
    %v2021 = vpack.c.b16 %v2009, %v2007
    %v2022 = vpack.c.b16 %v2012, %v2010
    %v2023 = vpack.c.b16 %v2013, %v2011
    %v2024 = vpack.c.b16 %v2016, %v2014
    %v2025 = vpack.c.b16 %v2017, %v2015
    %v2035 = vsel %vm618, %v1993, 0
    %2037 = vmatprep.subr.bf16.mxu0 0
    %2038 = vmatpush1.bf16.msra.mxu0 0
    %2039 = vmatprep.subr.bf16.mxu0 0
    %2040 = vmatpush1.bf16.msra.mxu0 0
    %2041 = vmatprep.subr.bf16.mxu0 0
    %2042 = vmatpush1.bf16.msra.mxu0 0
    %2043 = vmatprep.subr.bf16.mxu0 0
    %2044 = vmatpush1.bf16.msra.mxu0 0
    %2045 = vmatprep.subr.bf16.mxu0 %v2025
    %2046 = vmatpush1.bf16.msra.mxu0 %v2024
    %2047 = vmatprep.subr.bf16.mxu0 %v2023
    %2048 = vmatpush1.bf16.msra.mxu0 %v2022
    %2049 = vmatprep.subr.bf16.mxu0 %v2021
    %2050 = vmatpush1.bf16.msra.mxu0 %v2020
    %2051 = vmatprep.subr.bf16.mxu0 %v2019
    %2052 = vmatpush1.bf16.msra.mxu0 %v2018
    %2053 = vmatprep.subr.bf16.mxu0 0
    %2054 = vmatpush2.bf16.msra.mxu0 0
    %2055 = vmatprep.subr.bf16.mxu0 0
    %2056 = vmatpush2.bf16.msra.mxu0 0
    %2057 = vmatprep.subr.bf16.mxu0 0
    %2058 = vmatpush2.bf16.msra.mxu0 0
    %2059 = vmatprep.subr.bf16.mxu0 0
    %2060 = vmatpush2.bf16.msra.mxu0 0
    %2061 = vmatprep.subr.bf16.mxu0 0
    %2062 = vmatpush2.bf16.msra.mxu0 0
    %2063 = vmatprep.subr.bf16.mxu0 0
    %2064 = vmatpush2.bf16.msra.mxu0 0
    %2065 = vmatprep.subr.bf16.mxu0 0
    %2066 = vmatpush2.bf16.msra.mxu0 0
    %2067 = vmatprep.subr.bf16.mxu0 0
    %2068 = vmatpush2.bf16.msra.mxu0 0
    %2069 = vmatprep.mubr.bf16.mxu0 0
    %2070 = vmatmul.mubr.bf16.gmra.mxu0 %v2035
    %v2071 = vpop.f32.mrf.mxu0
    %v2072 = vadd.f32 0.0, %v2071
    %v2073 = vpop.f32.mrf.mxu0
    %v2074 = vadd.f32 0.0, %v2073
    %v2075 = vpop.f32.mrf.mxu0
    %v2076 = vpop.f32.mrf.mxu0
    %2077 = vdwg.mxu0
    %v2078 = vadd.f32 %v1983, %v2072
    %v2079 = vadd.f32 %v1984, %v2074
    %v2080 = vpack.c.bf16 %v558, %v558
    %v2081 = vld [vmem:[%s6 + $0x400] sm:$0xff]
    %v2082 = vld [vmem:[%s6 + $0x408] sm:$0xff]
    %v2083 = vld [vmem:[%s6 + $0x410] sm:$0xff]
    %v2084 = vld [vmem:[%s6 + $0x418] sm:$0xff]
    %v2085 = vld [vmem:[%s6 + $0x420] sm:$0xff]
    %v2086 = vld [vmem:[%s6 + $0x428] sm:$0xff]
    %v2087 = vld [vmem:[%s6 + $0x430] sm:$0xff]
    %v2088 = vld [vmem:[%s6 + $0x438] sm:$0xff]
    %v2097 = vunpack.c.l.b16 %v2081
    %v2098 = vunpack.c.h.b16 %v2081
    %v2099 = vunpack.c.l.b16 %v2082
    %v2100 = vunpack.c.h.b16 %v2082
    %v2101 = vunpack.c.l.b16 %v2083
    %v2102 = vunpack.c.h.b16 %v2083
    %v2103 = vunpack.c.l.b16 %v2084
    %v2104 = vunpack.c.h.b16 %v2084
    %v2105 = vunpack.c.l.b16 %v2085
    %v2106 = vunpack.c.h.b16 %v2085
    %v2107 = vunpack.c.l.b16 %v2086
    %v2108 = vunpack.c.h.b16 %v2086
    %v2109 = vunpack.c.l.b16 %v2087
    %v2110 = vunpack.c.h.b16 %v2087
    %v2111 = vunpack.c.l.b16 %v2088
    %v2112 = vunpack.c.h.b16 %v2088
    %v2113 = vpack.c.b16 %v2099, %v2097
    %v2114 = vpack.c.b16 %v2100, %v2098
    %v2115 = vpack.c.b16 %v2103, %v2101
    %v2116 = vpack.c.b16 %v2104, %v2102
    %v2117 = vpack.c.b16 %v2107, %v2105
    %v2118 = vpack.c.b16 %v2108, %v2106
    %v2119 = vpack.c.b16 %v2111, %v2109
    %v2120 = vpack.c.b16 %v2112, %v2110
    %v2130 = vsel %vm618, %v2080, 0
    %2132 = vmatprep.subr.bf16.mxu0 0
    %2133 = vmatpush1.bf16.msra.mxu0 0
    %2134 = vmatprep.subr.bf16.mxu0 0
    %2135 = vmatpush1.bf16.msra.mxu0 0
    %2136 = vmatprep.subr.bf16.mxu0 0
    %2137 = vmatpush1.bf16.msra.mxu0 0
    %2138 = vmatprep.subr.bf16.mxu0 0
    %2139 = vmatpush1.bf16.msra.mxu0 0
    %2140 = vmatprep.subr.bf16.mxu0 %v2120
    %2141 = vmatpush1.bf16.msra.mxu0 %v2119
    %2142 = vmatprep.subr.bf16.mxu0 %v2118
    %2143 = vmatpush1.bf16.msra.mxu0 %v2117
    %2144 = vmatprep.subr.bf16.mxu0 %v2116
    %2145 = vmatpush1.bf16.msra.mxu0 %v2115
    %2146 = vmatprep.subr.bf16.mxu0 %v2114
    %2147 = vmatpush1.bf16.msra.mxu0 %v2113
    %2148 = vmatprep.subr.bf16.mxu0 0
    %2149 = vmatpush2.bf16.msra.mxu0 0
    %2150 = vmatprep.subr.bf16.mxu0 0
    %2151 = vmatpush2.bf16.msra.mxu0 0
    %2152 = vmatprep.subr.bf16.mxu0 0
    %2153 = vmatpush2.bf16.msra.mxu0 0
    %2154 = vmatprep.subr.bf16.mxu0 0
    %2155 = vmatpush2.bf16.msra.mxu0 0
    %2156 = vmatprep.subr.bf16.mxu0 0
    %2157 = vmatpush2.bf16.msra.mxu0 0
    %2158 = vmatprep.subr.bf16.mxu0 0
    %2159 = vmatpush2.bf16.msra.mxu0 0
    %2160 = vmatprep.subr.bf16.mxu0 0
    %2161 = vmatpush2.bf16.msra.mxu0 0
    %2162 = vmatprep.subr.bf16.mxu0 0
    %2163 = vmatpush2.bf16.msra.mxu0 0
    %2164 = vmatprep.mubr.bf16.mxu0 0
    %2165 = vmatmul.mubr.bf16.gmra.mxu0 %v2130
    %v2166 = vpop.f32.mrf.mxu0
    %v2167 = vadd.f32 0.0, %v2166
    %v2168 = vpop.f32.mrf.mxu0
    %v2169 = vadd.f32 0.0, %v2168
    %v2170 = vpop.f32.mrf.mxu0
    %v2171 = vpop.f32.mrf.mxu0
    %2172 = vdwg.mxu0
    %v2173 = vadd.f32 %v2078, %v2167
    %v2174 = vadd.f32 %v2079, %v2169
    %v2175 = vld [vmem:[%s6 + $0x440] sm:$0xff]
    %v2176 = vld [vmem:[%s6 + $0x448] sm:$0xff]
    %v2177 = vld [vmem:[%s6 + $0x450] sm:$0xff]
    %v2178 = vld [vmem:[%s6 + $0x458] sm:$0xff]
    %v2179 = vld [vmem:[%s6 + $0x460] sm:$0xff]
    %v2180 = vld [vmem:[%s6 + $0x468] sm:$0xff]
    %v2181 = vld [vmem:[%s6 + $0x470] sm:$0xff]
    %v2182 = vld [vmem:[%s6 + $0x478] sm:$0xff]
    %v2184 = vrot.slane %v2080, 1
    %v2193 = vunpack.c.l.b16 %v2175
    %v2194 = vunpack.c.h.b16 %v2175
    %v2195 = vunpack.c.l.b16 %v2176
    %v2196 = vunpack.c.h.b16 %v2176
    %v2197 = vunpack.c.l.b16 %v2177
    %v2198 = vunpack.c.h.b16 %v2177
    %v2199 = vunpack.c.l.b16 %v2178
    %v2200 = vunpack.c.h.b16 %v2178
    %v2201 = vunpack.c.l.b16 %v2179
    %v2202 = vunpack.c.h.b16 %v2179
    %v2203 = vunpack.c.l.b16 %v2180
    %v2204 = vunpack.c.h.b16 %v2180
    %v2205 = vunpack.c.l.b16 %v2181
    %v2206 = vunpack.c.h.b16 %v2181
    %v2207 = vunpack.c.l.b16 %v2182
    %v2208 = vunpack.c.h.b16 %v2182
    %v2209 = vpack.c.b16 %v2195, %v2193
    %v2210 = vpack.c.b16 %v2196, %v2194
    %v2211 = vpack.c.b16 %v2199, %v2197
    %v2212 = vpack.c.b16 %v2200, %v2198
    %v2213 = vpack.c.b16 %v2203, %v2201
    %v2214 = vpack.c.b16 %v2204, %v2202
    %v2215 = vpack.c.b16 %v2207, %v2205
    %v2216 = vpack.c.b16 %v2208, %v2206
    %v2226 = vsel %vm618, %v2184, 0
    %2228 = vmatprep.subr.bf16.mxu0 0
    %2229 = vmatpush1.bf16.msra.mxu0 0
    %2230 = vmatprep.subr.bf16.mxu0 0
    %2231 = vmatpush1.bf16.msra.mxu0 0
    %2232 = vmatprep.subr.bf16.mxu0 0
    %2233 = vmatpush1.bf16.msra.mxu0 0
    %2234 = vmatprep.subr.bf16.mxu0 0
    %2235 = vmatpush1.bf16.msra.mxu0 0
    %2236 = vmatprep.subr.bf16.mxu0 %v2216
    %2237 = vmatpush1.bf16.msra.mxu0 %v2215
    %2238 = vmatprep.subr.bf16.mxu0 %v2214
    %2239 = vmatpush1.bf16.msra.mxu0 %v2213
    %2240 = vmatprep.subr.bf16.mxu0 %v2212
    %2241 = vmatpush1.bf16.msra.mxu0 %v2211
    %2242 = vmatprep.subr.bf16.mxu0 %v2210
    %2243 = vmatpush1.bf16.msra.mxu0 %v2209
    %2244 = vmatprep.subr.bf16.mxu0 0
    %2245 = vmatpush2.bf16.msra.mxu0 0
    %2246 = vmatprep.subr.bf16.mxu0 0
    %2247 = vmatpush2.bf16.msra.mxu0 0
    %2248 = vmatprep.subr.bf16.mxu0 0
    %2249 = vmatpush2.bf16.msra.mxu0 0
    %2250 = vmatprep.subr.bf16.mxu0 0
    %2251 = vmatpush2.bf16.msra.mxu0 0
    %2252 = vmatprep.subr.bf16.mxu0 0
    %2253 = vmatpush2.bf16.msra.mxu0 0
    %2254 = vmatprep.subr.bf16.mxu0 0
    %2255 = vmatpush2.bf16.msra.mxu0 0
    %2256 = vmatprep.subr.bf16.mxu0 0
    %2257 = vmatpush2.bf16.msra.mxu0 0
    %2258 = vmatprep.subr.bf16.mxu0 0
    %2259 = vmatpush2.bf16.msra.mxu0 0
    %2260 = vmatprep.mubr.bf16.mxu0 0
    %2261 = vmatmul.mubr.bf16.gmra.mxu0 %v2226
    %v2262 = vpop.f32.mrf.mxu0
    %v2263 = vadd.f32 0.0, %v2262
    %v2264 = vpop.f32.mrf.mxu0
    %v2265 = vadd.f32 0.0, %v2264
    %v2266 = vpop.f32.mrf.mxu0
    %v2267 = vpop.f32.mrf.mxu0
    %2268 = vdwg.mxu0
    %v2269 = vadd.f32 %v2173, %v2263
    %v2270 = vadd.f32 %v2174, %v2265
    %v2271 = vld [vmem:[%s6 + $0x480] sm:$0xff]
    %v2272 = vld [vmem:[%s6 + $0x488] sm:$0xff]
    %v2273 = vld [vmem:[%s6 + $0x490] sm:$0xff]
    %v2274 = vld [vmem:[%s6 + $0x498] sm:$0xff]
    %v2275 = vld [vmem:[%s6 + $0x4a0] sm:$0xff]
    %v2276 = vld [vmem:[%s6 + $0x4a8] sm:$0xff]
    %v2277 = vld [vmem:[%s6 + $0x4b0] sm:$0xff]
    %v2278 = vld [vmem:[%s6 + $0x4b8] sm:$0xff]
    %v2279 = vrot.slane %v2080, 2
    %v2288 = vunpack.c.l.b16 %v2271
    %v2289 = vunpack.c.h.b16 %v2271
    %v2290 = vunpack.c.l.b16 %v2272
    %v2291 = vunpack.c.h.b16 %v2272
    %v2292 = vunpack.c.l.b16 %v2273
    %v2293 = vunpack.c.h.b16 %v2273
    %v2294 = vunpack.c.l.b16 %v2274
    %v2295 = vunpack.c.h.b16 %v2274
    %v2296 = vunpack.c.l.b16 %v2275
    %v2297 = vunpack.c.h.b16 %v2275
    %v2298 = vunpack.c.l.b16 %v2276
    %v2299 = vunpack.c.h.b16 %v2276
    %v2300 = vunpack.c.l.b16 %v2277
    %v2301 = vunpack.c.h.b16 %v2277
    %v2302 = vunpack.c.l.b16 %v2278
    %v2303 = vunpack.c.h.b16 %v2278
    %v2304 = vpack.c.b16 %v2290, %v2288
    %v2305 = vpack.c.b16 %v2291, %v2289
    %v2306 = vpack.c.b16 %v2294, %v2292
    %v2307 = vpack.c.b16 %v2295, %v2293
    %v2308 = vpack.c.b16 %v2298, %v2296
    %v2309 = vpack.c.b16 %v2299, %v2297
    %v2310 = vpack.c.b16 %v2302, %v2300
    %v2311 = vpack.c.b16 %v2303, %v2301
    %v2321 = vsel %vm618, %v2279, 0
    %2323 = vmatprep.subr.bf16.mxu0 0
    %2324 = vmatpush1.bf16.msra.mxu0 0
    %2325 = vmatprep.subr.bf16.mxu0 0
    %2326 = vmatpush1.bf16.msra.mxu0 0
    %2327 = vmatprep.subr.bf16.mxu0 0
    %2328 = vmatpush1.bf16.msra.mxu0 0
    %2329 = vmatprep.subr.bf16.mxu0 0
    %2330 = vmatpush1.bf16.msra.mxu0 0
    %2331 = vmatprep.subr.bf16.mxu0 %v2311
    %2332 = vmatpush1.bf16.msra.mxu0 %v2310
    %2333 = vmatprep.subr.bf16.mxu0 %v2309
    %2334 = vmatpush1.bf16.msra.mxu0 %v2308
    %2335 = vmatprep.subr.bf16.mxu0 %v2307
    %2336 = vmatpush1.bf16.msra.mxu0 %v2306
    %2337 = vmatprep.subr.bf16.mxu0 %v2305
    %2338 = vmatpush1.bf16.msra.mxu0 %v2304
    %2339 = vmatprep.subr.bf16.mxu0 0
    %2340 = vmatpush2.bf16.msra.mxu0 0
    %2341 = vmatprep.subr.bf16.mxu0 0
    %2342 = vmatpush2.bf16.msra.mxu0 0
    %2343 = vmatprep.subr.bf16.mxu0 0
    %2344 = vmatpush2.bf16.msra.mxu0 0
    %2345 = vmatprep.subr.bf16.mxu0 0
    %2346 = vmatpush2.bf16.msra.mxu0 0
    %2347 = vmatprep.subr.bf16.mxu0 0
    %2348 = vmatpush2.bf16.msra.mxu0 0
    %2349 = vmatprep.subr.bf16.mxu0 0
    %2350 = vmatpush2.bf16.msra.mxu0 0
    %2351 = vmatprep.subr.bf16.mxu0 0
    %2352 = vmatpush2.bf16.msra.mxu0 0
    %2353 = vmatprep.subr.bf16.mxu0 0
    %2354 = vmatpush2.bf16.msra.mxu0 0
    %2355 = vmatprep.mubr.bf16.mxu0 0
    %2356 = vmatmul.mubr.bf16.gmra.mxu0 %v2321
    %v2357 = vpop.f32.mrf.mxu0
    %v2358 = vadd.f32 0.0, %v2357
    %v2359 = vpop.f32.mrf.mxu0
    %v2360 = vadd.f32 0.0, %v2359
    %v2361 = vpop.f32.mrf.mxu0
    %v2362 = vpop.f32.mrf.mxu0
    %2363 = vdwg.mxu0
    %v2364 = vadd.f32 %v2269, %v2358
    %v2365 = vadd.f32 %v2270, %v2360
    %v2366 = vld [vmem:[%s6 + $0x4c0] sm:$0xff]
    %v2367 = vld [vmem:[%s6 + $0x4c8] sm:$0xff]
    %v2368 = vld [vmem:[%s6 + $0x4d0] sm:$0xff]
    %v2369 = vld [vmem:[%s6 + $0x4d8] sm:$0xff]
    %v2370 = vld [vmem:[%s6 + $0x4e0] sm:$0xff]
    %v2371 = vld [vmem:[%s6 + $0x4e8] sm:$0xff]
    %v2372 = vld [vmem:[%s6 + $0x4f0] sm:$0xff]
    %v2373 = vld [vmem:[%s6 + $0x4f8] sm:$0xff]
    %v2374 = vrot.slane %v2080, 3
    %v2383 = vunpack.c.l.b16 %v2366
    %v2384 = vunpack.c.h.b16 %v2366
    %v2385 = vunpack.c.l.b16 %v2367
    %v2386 = vunpack.c.h.b16 %v2367
    %v2387 = vunpack.c.l.b16 %v2368
    %v2388 = vunpack.c.h.b16 %v2368
    %v2389 = vunpack.c.l.b16 %v2369
    %v2390 = vunpack.c.h.b16 %v2369
    %v2391 = vunpack.c.l.b16 %v2370
    %v2392 = vunpack.c.h.b16 %v2370
    %v2393 = vunpack.c.l.b16 %v2371
    %v2394 = vunpack.c.h.b16 %v2371
    %v2395 = vunpack.c.l.b16 %v2372
    %v2396 = vunpack.c.h.b16 %v2372
    %v2397 = vunpack.c.l.b16 %v2373
    %v2398 = vunpack.c.h.b16 %v2373
    %v2399 = vpack.c.b16 %v2385, %v2383
    %v2400 = vpack.c.b16 %v2386, %v2384
    %v2401 = vpack.c.b16 %v2389, %v2387
    %v2402 = vpack.c.b16 %v2390, %v2388
    %v2403 = vpack.c.b16 %v2393, %v2391
    %v2404 = vpack.c.b16 %v2394, %v2392
    %v2405 = vpack.c.b16 %v2397, %v2395
    %v2406 = vpack.c.b16 %v2398, %v2396
    %v2416 = vsel %vm618, %v2374, 0
    %2418 = vmatprep.subr.bf16.mxu0 0
    %2419 = vmatpush1.bf16.msra.mxu0 0
    %2420 = vmatprep.subr.bf16.mxu0 0
    %2421 = vmatpush1.bf16.msra.mxu0 0
    %2422 = vmatprep.subr.bf16.mxu0 0
    %2423 = vmatpush1.bf16.msra.mxu0 0
    %2424 = vmatprep.subr.bf16.mxu0 0
    %2425 = vmatpush1.bf16.msra.mxu0 0
    %2426 = vmatprep.subr.bf16.mxu0 %v2406
    %2427 = vmatpush1.bf16.msra.mxu0 %v2405
    %2428 = vmatprep.subr.bf16.mxu0 %v2404
    %2429 = vmatpush1.bf16.msra.mxu0 %v2403
    %2430 = vmatprep.subr.bf16.mxu0 %v2402
    %2431 = vmatpush1.bf16.msra.mxu0 %v2401
    %2432 = vmatprep.subr.bf16.mxu0 %v2400
    %2433 = vmatpush1.bf16.msra.mxu0 %v2399
    %2434 = vmatprep.subr.bf16.mxu0 0
    %2435 = vmatpush2.bf16.msra.mxu0 0
    %2436 = vmatprep.subr.bf16.mxu0 0
    %2437 = vmatpush2.bf16.msra.mxu0 0
    %2438 = vmatprep.subr.bf16.mxu0 0
    %2439 = vmatpush2.bf16.msra.mxu0 0
    %2440 = vmatprep.subr.bf16.mxu0 0
    %2441 = vmatpush2.bf16.msra.mxu0 0
    %2442 = vmatprep.subr.bf16.mxu0 0
    %2443 = vmatpush2.bf16.msra.mxu0 0
    %2444 = vmatprep.subr.bf16.mxu0 0
    %2445 = vmatpush2.bf16.msra.mxu0 0
    %2446 = vmatprep.subr.bf16.mxu0 0
    %2447 = vmatpush2.bf16.msra.mxu0 0
    %2448 = vmatprep.subr.bf16.mxu0 0
    %2449 = vmatpush2.bf16.msra.mxu0 0
    %2450 = vmatprep.mubr.bf16.mxu0 0
    %2451 = vmatmul.mubr.bf16.gmra.mxu0 %v2416
    %v2452 = vpop.f32.mrf.mxu0
    %v2453 = vadd.f32 0.0, %v2452
    %v2454 = vpop.f32.mrf.mxu0
    %v2455 = vadd.f32 0.0, %v2454
    %v2456 = vpop.f32.mrf.mxu0
    %v2457 = vpop.f32.mrf.mxu0
    %2458 = vdwg.mxu0
    %v2459 = vadd.f32 %v2364, %v2453
    %v2460 = vadd.f32 %v2365, %v2455
    %v2461 = vld [vmem:[%s7] sm:$0x3]
    %v2463 = vlaneseq
    %v2464 = vshrl.u32 %v2463, 7
    %v2465 = vsub.s32 0, %v2464
    %v2466 = vrot.slane %v2461, %v2465
    %v2467 = vlaneseq
    %v2468 = vshrl.u32 %v2467, 7
    %v2469 = vsub.s32 1, %v2468
    %v2470 = vrot.slane %v2461, %v2469
    %v2473 = vadd.f32 %v2459, %v2466
    %v2474 = vadd.f32 %v2460, %v2470
    %vm2475 = vcmp.ge.f32.partialorder %v2473, 0.0
    %vm2476 = vcmp.ge.f32.partialorder %v2474, 0.0
    %v2477 = vmul.f32 %v2473, 0.01
    %v2478 = vmul.f32 %v2474, 0.01
    %v2479 = vsel %vm2475, %v2473, %v2477
    %v2480 = vsel %vm2476, %v2474, %v2478
    %v2481 = vpack.c.bf16 %v2479, %v2479
    %v2482 = vpack.c.bf16 %v2480, %v2480
    %v2483 = vld [vmem:[%s8] sm:$0xf]
    %v2484 = vld [vmem:[%s8 + $0x4] sm:$0xf]
    %v2485 = vld [vmem:[%s8 + $0x8] sm:$0xf]
    %v2486 = vld [vmem:[%s8 + $0xc] sm:$0xf]
    %v2487 = vld [vmem:[%s8 + $0x10] sm:$0xf]
    %v2488 = vld [vmem:[%s8 + $0x14] sm:$0xf]
    %v2489 = vld [vmem:[%s8 + $0x18] sm:$0xf]
    %v2490 = vld [vmem:[%s8 + $0x1c] sm:$0xf]
    %v2491 = vld [vmem:[%s8 + $0x20] sm:$0xf]
    %v2492 = vld [vmem:[%s8 + $0x24] sm:$0xf]
    %v2493 = vld [vmem:[%s8 + $0x28] sm:$0xf]
    %v2494 = vld [vmem:[%s8 + $0x2c] sm:$0xf]
    %v2495 = vld [vmem:[%s8 + $0x30] sm:$0xf]
    %v2496 = vld [vmem:[%s8 + $0x34] sm:$0xf]
    %v2497 = vld [vmem:[%s8 + $0x38] sm:$0xf]
    %v2498 = vld [vmem:[%s8 + $0x3c] sm:$0xf]
    %v2499 = vld [vmem:[%s8 + $0x40] sm:$0xf]
    %v2500 = vld [vmem:[%s8 + $0x44] sm:$0xf]
    %v2501 = vld [vmem:[%s8 + $0x48] sm:$0xf]
    %v2502 = vld [vmem:[%s8 + $0x4c] sm:$0xf]
    %v2503 = vld [vmem:[%s8 + $0x50] sm:$0xf]
    %v2504 = vld [vmem:[%s8 + $0x54] sm:$0xf]
    %v2505 = vld [vmem:[%s8 + $0x58] sm:$0xf]
    %v2506 = vld [vmem:[%s8 + $0x5c] sm:$0xf]
    %v2507 = vld [vmem:[%s8 + $0x60] sm:$0xf]
    %v2508 = vld [vmem:[%s8 + $0x64] sm:$0xf]
    %v2509 = vld [vmem:[%s8 + $0x68] sm:$0xf]
    %v2510 = vld [vmem:[%s8 + $0x6c] sm:$0xf]
    %v2511 = vld [vmem:[%s8 + $0x70] sm:$0xf]
    %v2512 = vld [vmem:[%s8 + $0x74] sm:$0xf]
    %v2513 = vld [vmem:[%s8 + $0x78] sm:$0xf]
    %v2514 = vld [vmem:[%s8 + $0x7c] sm:$0xf]
    %v2515 = vld [vmem:[%s9] sm:$0x1]
    %v2517 = vlaneseq
    %v2518 = vshrl.u32 %v2517, 7
    %v2519 = vsub.s32 0, %v2518
    %v2520 = vrot.slane %v2515, %v2519
    %v2554 = vunpack.c.l.b16 %v2483
    %v2555 = vunpack.c.l.b16 %v2484
    %v2556 = vunpack.c.l.b16 %v2485
    %v2557 = vunpack.c.l.b16 %v2486
    %v2558 = vunpack.c.l.b16 %v2487
    %v2559 = vunpack.c.l.b16 %v2488
    %v2560 = vunpack.c.l.b16 %v2489
    %v2561 = vunpack.c.l.b16 %v2490
    %v2562 = vunpack.c.l.b16 %v2491
    %v2563 = vunpack.c.l.b16 %v2492
    %v2564 = vunpack.c.l.b16 %v2493
    %v2565 = vunpack.c.l.b16 %v2494
    %v2566 = vunpack.c.l.b16 %v2495
    %v2567 = vunpack.c.l.b16 %v2496
    %v2568 = vunpack.c.l.b16 %v2497
    %v2569 = vunpack.c.l.b16 %v2498
    %v2570 = vunpack.c.l.b16 %v2499
    %v2571 = vunpack.c.l.b16 %v2500
    %v2572 = vunpack.c.l.b16 %v2501
    %v2573 = vunpack.c.l.b16 %v2502
    %v2574 = vunpack.c.l.b16 %v2503
    %v2575 = vunpack.c.l.b16 %v2504
    %v2576 = vunpack.c.l.b16 %v2505
    %v2577 = vunpack.c.l.b16 %v2506
    %v2578 = vunpack.c.l.b16 %v2507
    %v2579 = vunpack.c.l.b16 %v2508
    %v2580 = vunpack.c.l.b16 %v2509
    %v2581 = vunpack.c.l.b16 %v2510
    %v2582 = vunpack.c.l.b16 %v2511
    %v2583 = vunpack.c.l.b16 %v2512
    %v2584 = vunpack.c.l.b16 %v2513
    %v2585 = vunpack.c.l.b16 %v2514
    %v2586 = vpack.c.b16 %v2555, %v2554
    %v2587 = vpack.c.b16 %v2557, %v2556
    %v2588 = vpack.c.b16 %v2559, %v2558
    %v2589 = vpack.c.b16 %v2561, %v2560
    %v2590 = vpack.c.b16 %v2563, %v2562
    %v2591 = vpack.c.b16 %v2565, %v2564
    %v2592 = vpack.c.b16 %v2567, %v2566
    %v2593 = vpack.c.b16 %v2569, %v2568
    %v2594 = vpack.c.b16 %v2571, %v2570
    %v2595 = vpack.c.b16 %v2573, %v2572
    %v2596 = vpack.c.b16 %v2575, %v2574
    %v2597 = vpack.c.b16 %v2577, %v2576
    %v2598 = vpack.c.b16 %v2579, %v2578
    %v2599 = vpack.c.b16 %v2581, %v2580
    %v2600 = vpack.c.b16 %v2583, %v2582
    %v2601 = vpack.c.b16 %v2585, %v2584
    %2618 = vmatprep.subr.bf16.mxu0 0
    %2619 = vmatpush1.bf16.msra.mxu0 %v2593
    %2620 = vmatprep.subr.bf16.mxu0 0
    %2621 = vmatpush1.bf16.msra.mxu0 %v2592
    %2622 = vmatprep.subr.bf16.mxu0 0
    %2623 = vmatpush1.bf16.msra.mxu0 %v2591
    %2624 = vmatprep.subr.bf16.mxu0 0
    %2625 = vmatpush1.bf16.msra.mxu0 %v2590
    %2626 = vmatprep.subr.bf16.mxu0 0
    %2627 = vmatpush1.bf16.msra.mxu0 %v2589
    %2628 = vmatprep.subr.bf16.mxu0 0
    %2629 = vmatpush1.bf16.msra.mxu0 %v2588
    %2630 = vmatprep.subr.bf16.mxu0 0
    %2631 = vmatpush1.bf16.msra.mxu0 %v2587
    %2632 = vmatprep.subr.bf16.mxu0 0
    %2633 = vmatpush1.bf16.msra.mxu0 %v2586
    %2634 = vmatprep.subr.bf16.mxu0 0
    %2635 = vmatpush2.bf16.msra.mxu0 %v2601
    %2636 = vmatprep.subr.bf16.mxu0 0
    %2637 = vmatpush2.bf16.msra.mxu0 %v2600
    %2638 = vmatprep.subr.bf16.mxu0 0
    %2639 = vmatpush2.bf16.msra.mxu0 %v2599
    %2640 = vmatprep.subr.bf16.mxu0 0
    %2641 = vmatpush2.bf16.msra.mxu0 %v2598
    %2642 = vmatprep.subr.bf16.mxu0 0
    %2643 = vmatpush2.bf16.msra.mxu0 %v2597
    %2644 = vmatprep.subr.bf16.mxu0 0
    %2645 = vmatpush2.bf16.msra.mxu0 %v2596
    %2646 = vmatprep.subr.bf16.mxu0 0
    %2647 = vmatpush2.bf16.msra.mxu0 %v2595
    %2648 = vmatprep.subr.bf16.mxu0 0
    %2649 = vmatpush2.bf16.msra.mxu0 %v2594
    %2650 = vmatprep.mubr.bf16.mxu0 %v2482
    %2651 = vmatmul.mubr.bf16.gmra.mxu0 %v2481
    %v2652 = vpop.f32.mrf.mxu0
    %v2653 = vadd.f32 %v2520, %v2652
    %v2654 = vpop.f32.mrf.mxu0
    %v2655 = vpop.f32.mrf.mxu0
    %v2656 = vpop.f32.mrf.mxu0
    %2657 = vdwg.mxu0
    %v2658 = vmax.f32 %v2653, 0.0
    %v2659 = vpack.c.bf16 %v2658, %v2658
    %v2660 = vld [vmem:[%s10] sm:$0xf]
    %v2661 = vld [vmem:[%s10 + $0x4] sm:$0xf]
    %v2662 = vld [vmem:[%s10 + $0x8] sm:$0xf]
    %v2663 = vld [vmem:[%s10 + $0xc] sm:$0xf]
    %v2664 = vld [vmem:[%s10 + $0x10] sm:$0xf]
    %v2665 = vld [vmem:[%s10 + $0x14] sm:$0xf]
    %v2666 = vld [vmem:[%s10 + $0x18] sm:$0xf]
    %v2667 = vld [vmem:[%s10 + $0x1c] sm:$0xf]
    %v2668 = vld [vmem:[%s11] sm:$0x1]
    %v2670 = vlaneseq
    %v2671 = vshrl.u32 %v2670, 7
    %v2672 = vsub.s32 0, %v2671
    %v2673 = vrot.slane %v2668, %v2672
    %v2683 = vunpack.c.l.b16 %v2660
    %v2684 = vunpack.c.l.b16 %v2661
    %v2685 = vunpack.c.l.b16 %v2662
    %v2686 = vunpack.c.l.b16 %v2663
    %v2687 = vunpack.c.l.b16 %v2664
    %v2688 = vunpack.c.l.b16 %v2665
    %v2689 = vunpack.c.l.b16 %v2666
    %v2690 = vunpack.c.l.b16 %v2667
    %v2691 = vpack.c.b16 %v2684, %v2683
    %v2692 = vpack.c.b16 %v2686, %v2685
    %v2693 = vpack.c.b16 %v2688, %v2687
    %v2694 = vpack.c.b16 %v2690, %v2689
    %v2700 = vsel %vm618, %v2659, 0
    %2702 = vmatprep.subr.bf16.mxu0 0
    %2703 = vmatpush1.bf16.msra.mxu0 0
    %2704 = vmatprep.subr.bf16.mxu0 0
    %2705 = vmatpush1.bf16.msra.mxu0 0
    %2706 = vmatprep.subr.bf16.mxu0 0
    %2707 = vmatpush1.bf16.msra.mxu0 0
    %2708 = vmatprep.subr.bf16.mxu0 0
    %2709 = vmatpush1.bf16.msra.mxu0 0
    %2710 = vmatprep.subr.bf16.mxu0 0
    %2711 = vmatpush1.bf16.msra.mxu0 %v2694
    %2712 = vmatprep.subr.bf16.mxu0 0
    %2713 = vmatpush1.bf16.msra.mxu0 %v2693
    %2714 = vmatprep.subr.bf16.mxu0 0
    %2715 = vmatpush1.bf16.msra.mxu0 %v2692
    %2716 = vmatprep.subr.bf16.mxu0 0
    %2717 = vmatpush1.bf16.msra.mxu0 %v2691
    %2718 = vmatprep.subr.bf16.mxu0 0
    %2719 = vmatpush2.bf16.msra.mxu0 0
    %2720 = vmatprep.subr.bf16.mxu0 0
    %2721 = vmatpush2.bf16.msra.mxu0 0
    %2722 = vmatprep.subr.bf16.mxu0 0
    %2723 = vmatpush2.bf16.msra.mxu0 0
    %2724 = vmatprep.subr.bf16.mxu0 0
    %2725 = vmatpush2.bf16.msra.mxu0 0
    %2726 = vmatprep.subr.bf16.mxu0 0
    %2727 = vmatpush2.bf16.msra.mxu0 0
    %2728 = vmatprep.subr.bf16.mxu0 0
    %2729 = vmatpush2.bf16.msra.mxu0 0
    %2730 = vmatprep.subr.bf16.mxu0 0
    %2731 = vmatpush2.bf16.msra.mxu0 0
    %2732 = vmatprep.subr.bf16.mxu0 0
    %2733 = vmatpush2.bf16.msra.mxu0 0
    %2734 = vmatprep.mubr.bf16.mxu0 0
    %2735 = vmatmul.mubr.bf16.gmra.mxu0 %v2700
    %v2736 = vpop.f32.mrf.mxu0
    %v2737 = vadd.f32 %v2673, %v2736
    %v2738 = vpop.f32.mrf.mxu0
    %v2739 = vpop.f32.mrf.mxu0
    %v2740 = vpop.f32.mrf.mxu0
    %2741 = vdwg.mxu0
    %v2742 = vmax.f32 %v2737, 0.0
    %v2743 = vpack.c.bf16 %v2742, %v2742
    %v2744 = vld [vmem:[%s12] sm:$0xf]
    %v2745 = vld [vmem:[%s12 + $0x4] sm:$0xf]
    %v2746 = vld [vmem:[%s12 + $0x8] sm:$0xf]
    %v2747 = vld [vmem:[%s12 + $0xc] sm:$0xf]
    %v2748 = vld [vmem:[%s12 + $0x10] sm:$0xf]
    %v2749 = vld [vmem:[%s12 + $0x14] sm:$0xf]
    %v2750 = vld [vmem:[%s12 + $0x18] sm:$0xf]
    %v2751 = vld [vmem:[%s12 + $0x1c] sm:$0xf]
    %v2752 = vld [vmem:[%s13] sm:$0x1]
    %v2754 = vlaneseq
    %v2755 = vshrl.u32 %v2754, 7
    %v2756 = vsub.s32 0, %v2755
    %v2757 = vrot.slane %v2752, %v2756
    %v2767 = vunpack.c.l.b16 %v2744
    %v2768 = vunpack.c.l.b16 %v2745
    %v2769 = vunpack.c.l.b16 %v2746
    %v2770 = vunpack.c.l.b16 %v2747
    %v2771 = vunpack.c.l.b16 %v2748
    %v2772 = vunpack.c.l.b16 %v2749
    %v2773 = vunpack.c.l.b16 %v2750
    %v2774 = vunpack.c.l.b16 %v2751
    %v2775 = vpack.c.b16 %v2768, %v2767
    %v2776 = vpack.c.b16 %v2770, %v2769
    %v2777 = vpack.c.b16 %v2772, %v2771
    %v2778 = vpack.c.b16 %v2774, %v2773
    %v2784 = vsel %vm618, %v2743, 0
    %2786 = vmatprep.subr.bf16.mxu0 0
    %2787 = vmatpush1.bf16.msra.mxu0 0
    %2788 = vmatprep.subr.bf16.mxu0 0
    %2789 = vmatpush1.bf16.msra.mxu0 0
    %2790 = vmatprep.subr.bf16.mxu0 0
    %2791 = vmatpush1.bf16.msra.mxu0 0
    %2792 = vmatprep.subr.bf16.mxu0 0
    %2793 = vmatpush1.bf16.msra.mxu0 0
    %2794 = vmatprep.subr.bf16.mxu0 0
    %2795 = vmatpush1.bf16.msra.mxu0 %v2778
    %2796 = vmatprep.subr.bf16.mxu0 0
    %2797 = vmatpush1.bf16.msra.mxu0 %v2777
    %2798 = vmatprep.subr.bf16.mxu0 0
    %2799 = vmatpush1.bf16.msra.mxu0 %v2776
    %2800 = vmatprep.subr.bf16.mxu0 0
    %2801 = vmatpush1.bf16.msra.mxu0 %v2775
    %2802 = vmatprep.subr.bf16.mxu0 0
    %2803 = vmatpush2.bf16.msra.mxu0 0
    %2804 = vmatprep.subr.bf16.mxu0 0
    %2805 = vmatpush2.bf16.msra.mxu0 0
    %2806 = vmatprep.subr.bf16.mxu0 0
    %2807 = vmatpush2.bf16.msra.mxu0 0
    %2808 = vmatprep.subr.bf16.mxu0 0
    %2809 = vmatpush2.bf16.msra.mxu0 0
    %2810 = vmatprep.subr.bf16.mxu0 0
    %2811 = vmatpush2.bf16.msra.mxu0 0
    %2812 = vmatprep.subr.bf16.mxu0 0
    %2813 = vmatpush2.bf16.msra.mxu0 0
    %2814 = vmatprep.subr.bf16.mxu0 0
    %2815 = vmatpush2.bf16.msra.mxu0 0
    %2816 = vmatprep.subr.bf16.mxu0 0
    %2817 = vmatpush2.bf16.msra.mxu0 0
    %2818 = vmatprep.mubr.bf16.mxu0 0
    %2819 = vmatmul.mubr.bf16.gmra.mxu0 %v2784
    %v2820 = vpop.f32.mrf.mxu0
    %v2821 = vadd.f32 %v2757, %v2820
    %v2822 = vpop.f32.mrf.mxu0
    %v2823 = vpop.f32.mrf.mxu0
    %v2824 = vpop.f32.mrf.mxu0
    %2825 = vdwg.mxu0
    %vm2826 = vcmask 17408
    %2827 = vst.msk [vmem:[#allocation2] sm:$0x3] %vm2826, %v2821
    %v2828 = vmax.f32 %v2821, -20.0
    %v2829 = vmin.f32 %v2828, 2.0
    %2831 = vrot.lane.b32.xlu0 %v2829, 125
    %v2832 = vpop.permute.xlu0 %2831
    %2834 = vst.msk [vmem:[#allocation4] sm:$0x3] %vm2826, %v2832
    // Predicated region
    $region58: #{actor_forward.5} parent=1 // pred_check
      _
    $region59: #{actor_forward.5} parent=1 // pred_check_branch
      %2836 = sbr.rel (0) target = $region61
    $region60: #{actor_forward.5} parent=1 // pred_region
      %s2838 = ssub.s32 32, 32
      %2839 = vsyncadd [#allocation3], %s2838
      %s2841 = sshll.u32 [#allocation2], 4
      %s2842 = int_to_ptr.vmem [resolvable:$true] %s2841
      %2844 = dma.vmem_to_hbm [thread:$0]  %s2842, 32, %s14, [#allocation3]
    $region61: #{actor_forward.5} parent=1 // pred_fallthru
      _
    // Predicated region
    $region62: #{actor_forward.5} parent=1 // pred_check
      _
    $region63: #{actor_forward.5} parent=1 // pred_check_branch
      %2846 = sbr.rel (0) target = $region65
    $region64: #{actor_forward.5} parent=1 // pred_region
      %s2848 = ssub.s32 32, 32
      %2849 = vsyncadd [#allocation5], %s2848
      %s2851 = sshll.u32 [#allocation4], 4
      %s2852 = int_to_ptr.vmem [resolvable:$true] %s2851
      %2854 = dma.vmem_to_hbm [thread:$0]  %s2852, 32, %s15, [#allocation5]
    $region65: #{actor_forward.5} parent=1 // pred_fallthru
      _
    // Predicated region
    $region66: #{actor_forward.5} parent=1 // pred_check
      _
    $region67: #{actor_forward.5} parent=1 // pred_check_branch
      %2856 = sbr.rel (0) target = $region69
    $region68: #{actor_forward.5} parent=1 // pred_region
      %2857 = dma.done [#allocation3], 32
    $region69: #{actor_forward.5} parent=1 // pred_fallthru
      _
    // Predicated region
    $region70: #{actor_forward.5} parent=1 // pred_check
      _
    $region71: #{actor_forward.5} parent=1 // pred_check_branch
      %2859 = sbr.rel (0) target = $region73
    $region72: #{actor_forward.5} parent=1 // pred_region
      %2860 = dma.done [#allocation5], 32
    $region73: #{actor_forward.5} parent=1 // pred_fallthru
      _
    %2861 = vsyncpa [#allocation3], 1
    %2862 = vsyncpa [#allocation5], 1

</llo_original>
